<compile_context>
chip_gen: v7x
topology: tpu7x:2x2x1
jax: 0.10.0
libtpu: 0.0.40
codegen_flags: <defaults>
</compile_context>

<pallas_src>
import functools
import math

import jax
import jax.numpy as jnp
from jax import lax
from jax.experimental import pallas as pl
from jax.experimental.pallas import tpu as pltpu

MATMUL_DTYPE = jnp.bfloat16   # MXU operand dtype (accumulation is always f32)
STORE_DTYPE = jnp.bfloat16    # HBM dtype for the gx / h intermediates
TIME_CHUNK = 16               # timesteps handled per LSTM grid step
ROW_TILE_PROJ = 512           # row tile for the hoisted input projection
ROW_TILE_SOFTMAX = 128        # row tile for output projection + log_softmax
LANE = 128


def _round_up(x, m):
    return (x + m - 1) // m * m


def _vmem_limit(nbytes):
    """VMEM limit derived from block math, +50% headroom, clamped to sane bounds."""
    return int(min(max(nbytes * 3 // 2 + (1 << 20), 4 << 20), 100 << 20))


# ----------------------------------------------------------------------------
# Kernel 1: row-tiled matmul (+ bias, optional log_softmax over the last axis)
#   Used for (a) the hoisted input projection x @ W_ih^T + b  and
#            (b) the output projection + log_softmax.
# ----------------------------------------------------------------------------
def _rowblock_matmul_kernel(x_ref, w_ref, b_ref, o_ref, *, log_softmax):
    acc = jnp.dot(x_ref[...], w_ref[...],
                  preferred_element_type=jnp.float32) + b_ref[...]
    if log_softmax:
        m = jnp.max(acc, axis=-1, keepdims=True)
        shifted = acc - m
        lse = jnp.log(jnp.sum(jnp.exp(shifted), axis=-1, keepdims=True))
        acc = shifted - lse
    o_ref[...] = acc.astype(o_ref.dtype)


def rowblock_matmul(x, w, b, *, log_softmax=False, out_dtype=jnp.float32,
                    max_row_tile=ROW_TILE_PROJ):
    rows, k = x.shape
    n = w.shape[1]
    # Row tile is a multiple of 16 so bf16 inputs/outputs stay sublane-aligned.
    row_tile = min(_round_up(rows, 16), max_row_tile)
    rows_p = _round_up(rows, row_tile)
    if rows_p != rows:
        x = jnp.pad(x, ((0, rows_p - rows), (0, 0)))

    out_bytes = jnp.dtype(out_dtype).itemsize
    need = (2 * row_tile * k * x.dtype.itemsize       # x block, double buffered
            + k * n * w.dtype.itemsize                # resident weight (Buffered(1))
            + n * 4                                   # resident bias (Buffered(1))
            + 2 * row_tile * n * out_bytes            # out block, double buffered
            + row_tile * n * 4)                       # f32 accumulator temporaries

    out = pl.pallas_call(
        functools.partial(_rowblock_matmul_kernel, log_softmax=log_softmax),
        out_shape=jax.ShapeDtypeStruct((rows_p, n), out_dtype),
        grid=(rows_p // row_tile,),
        in_specs=[
            pl.BlockSpec((row_tile, k), lambda i: (i, 0)),
            # Constant-index weight/bias: single buffer, stays resident.
            pl.BlockSpec((k, n), lambda i: (0, 0),
                         pipeline_mode=pl.Buffered(1)),
            pl.BlockSpec((1, n), lambda i: (0, 0),
                         pipeline_mode=pl.Buffered(1)),
        ],
        out_specs=pl.BlockSpec((row_tile, n), lambda i: (i, 0)),
        compiler_params=pltpu.CompilerParams(
            dimension_semantics=("parallel",),        # rows independent (megacore)
            vmem_limit_bytes=_vmem_limit(need)),
    )(x, w, b)
    return out[:rows]


# ----------------------------------------------------------------------------
# Kernel 2: masked LSTM recurrence.
#   gx      : (T, Bp, 4*Hp) bf16  precomputed x @ W_ih^T + (b_ih + b_hh)
#   w_hh_t  : (Hp, 4*Hp)    bf16  recurrent weights, gate-padded
#   len_b1  : (Bp, 1)       int32 sequence lengths (-1 on batch-pad rows)
#   out     : (T, Bp, Hp)   bf16  h_t, zeroed where t >= length[b] + 1
# Grid = (batch_blocks, T // TIME_CHUNK): the batch axis is "parallel" (v7x
# megacore), the time axis is sequential; h/c live in VMEM scratch.
# ----------------------------------------------------------------------------
def _sigmoid_tanh(x):
    # sigmoid(x) == 0.5 * (tanh(x / 2) + 1): one EUP op instead of exp + recip.
    return 0.5 * jnp.tanh(0.5 * x) + 0.5


def _lstm_chunk_kernel(gx_ref, whh_ref, len_ref, out_ref, h_st, c_st, *, hidden):
    @pl.when(pl.program_id(1) == 0)
    def _():
        h_st[...] = jnp.zeros_like(h_st)
        c_st[...] = jnp.zeros_like(c_st)

    tc = gx_ref.shape[0]
    t0 = pl.program_id(1) * tc

    def step(t, carry):
        # Only the recurrent (Bblk,Hp)@(Hp,4Hp) matmul + activations are serial.
        gates = gx_ref[t].astype(jnp.float32) + jnp.dot(
            h_st[...].astype(MATMUL_DTYPE), whh_ref[...],
            preferred_element_type=jnp.float32)             # (Bblk, 4Hp) f32

        # hidden == 128*k, so these slices are lane-aligned.
        i_g = _sigmoid_tanh(gates[:, 0 * hidden:1 * hidden])
        f_g = _sigmoid_tanh(gates[:, 1 * hidden:2 * hidden])
        g_g = jnp.tanh(gates[:, 2 * hidden:3 * hidden])
        o_g = _sigmoid_tanh(gates[:, 3 * hidden:4 * hidden])

        c_new = f_g * c_st[...] + i_g * g_g
        h_new = o_g * jnp.tanh(c_new)
        c_st[...] = c_new
        h_st[...] = h_new
        out_ref[t] = h_new.astype(out_ref.dtype)
        return carry

    lax.fori_loop(0, tc, step, 0, unroll=True)

    # pad_packed_sequence mask, hoisted off the serial path: keep t <= length[b]
    # (i.e. t < length[b] + 1), applied once over the whole chunk.
    b_blk = len_ref.shape[0]
    t_idx = t0 + lax.broadcasted_iota(jnp.int32, (tc, b_blk, 1), 0)
    keep = (len_ref[...][None, :, :] >= t_idx).astype(jnp.float32)
    out_ref[...] = (out_ref[...].astype(jnp.float32) * keep).astype(out_ref.dtype)


def lstm_recurrence(gx, w_hh_t, len_b1, hidden_p, time_chunk, batch_blocks):
    T, Bp, G4 = gx.shape
    b_blk = Bp // batch_blocks

    need = (2 * time_chunk * b_blk * G4 * gx.dtype.itemsize   # gx block, dbl buf
            + hidden_p * G4 * w_hh_t.dtype.itemsize           # whh (Buffered(1))
            + b_blk * 4                                       # lengths
            + 2 * time_chunk * b_blk * hidden_p * 2           # bf16 out, dbl buf
            + 2 * b_blk * hidden_p * 4                        # h/c scratch
            + 2 * b_blk * G4 * 4)                             # gate temporaries

    return pl.pallas_call(
        functools.partial(_lstm_chunk_kernel, hidden=hidden_p),
        out_shape=jax.ShapeDtypeStruct((T, Bp, hidden_p), STORE_DTYPE),
        grid_spec=pltpu.PrefetchScalarGridSpec(
            num_scalar_prefetch=0,
            grid=(batch_blocks, T // time_chunk),
            in_specs=[
                pl.BlockSpec((time_chunk, b_blk, G4), lambda b, c: (c, b, 0)),
                pl.BlockSpec((hidden_p, G4), lambda b, c: (0, 0),
                             pipeline_mode=pl.Buffered(1)),
                pl.BlockSpec((b_blk, 1), lambda b, c: (b, 0),
                             pipeline_mode=pl.Buffered(1)),
            ],
            out_specs=pl.BlockSpec((time_chunk, b_blk, hidden_p),
                                   lambda b, c: (c, b, 0)),
            scratch_shapes=[
                pltpu.VMEM((b_blk, hidden_p), jnp.float32),   # h state
                pltpu.VMEM((b_blk, hidden_p), jnp.float32),   # c state
            ],
        ),
        compiler_params=pltpu.CompilerParams(
            dimension_semantics=("parallel", "arbitrary"),
            vmem_limit_bytes=_vmem_limit(need)),
    )(gx, w_hh_t, len_b1)


# ----------------------------------------------------------------------------
# Full forward pass (glue in plain JAX, hot paths in Pallas)
# ----------------------------------------------------------------------------
def rnn_forward(params, input_seq, length, *, max_len, vocab_size):
    """max_len must be the static Python int == int(max(length)) + 1."""
    emb_table = params["embedding"]      # (V, E)  f32
    w_ih_t = params["w_ih_t"]            # (E, 4Hp) bf16
    w_hh_t = params["w_hh_t"]            # (Hp, 4Hp) bf16
    gate_bias = params["gate_bias"]      # (1, 4Hp) f32  (b_ih + b_hh, padded)
    w_out_t = params["w_out_t"]          # (Hp, Vp) bf16
    b_out = params["b_out"]              # (1, Vp)  f32  (-1e30 on pad columns)
    V = vocab_size
    Hp = w_hh_t.shape[0]

    B = input_seq.shape[0]
    T = _round_up(max_len, TIME_CHUNK)
    # Pad batch to a bf16 sublane multiple so every per-step vector op / MXU
    # feed in the recurrence is full-vreg.
    Bp = _round_up(B, 16)
    # Split batch into 2 blocks (v7x megacore "parallel" axis) only when the
    # halves stay bf16-sublane aligned; single-TC chips just iterate them.
    batch_blocks = 2 if (Bp >= 32 and Bp % 32 == 0) else 1

    # Embedding gather (plain XLA); eval-mode dropout == identity.
    emb = emb_table[input_seq[:, :max_len]]                  # (B, T', E)
    x = jnp.transpose(emb, (1, 0, 2))                        # (T', B, E)
    x = jnp.pad(x, ((0, T - max_len), (0, Bp - B), (0, 0)))  # (T, Bp, E)
    E = x.shape[-1]

    # 1) Hoisted input projection for all timesteps: one big MXU matmul.
    #    Stored in bf16 (largest intermediate -> half the HBM traffic).
    gx = rowblock_matmul(x.reshape(T * Bp, E).astype(MATMUL_DTYPE),
                         w_ih_t, gate_bias, out_dtype=STORE_DTYPE,
                         max_row_tile=ROW_TILE_PROJ)         # (T*Bp, 4Hp) bf16
    gx = gx.reshape(T, Bp, 4 * Hp)

    # 2) Serial recurrence (chunked grid, state resident in VMEM scratch).
    len_b1 = jnp.pad(length.astype(jnp.int32), (0, Bp - B),
                     constant_values=-1).reshape(Bp, 1)
    h = lstm_recurrence(gx, w_hh_t, len_b1, Hp, TIME_CHUNK,
                        batch_blocks)                        # (T, Bp, Hp) bf16

    # 3) Output projection + log_softmax (row-tiled, lane-dense padded vocab).
    #    Transpose happens on the bf16 h (half the bytes of the old f32 path).
    h_rows = jnp.transpose(h[:max_len], (1, 0, 2))[:B].reshape(B * max_len, Hp)
    logp = rowblock_matmul(h_rows, w_out_t, b_out, log_softmax=True,
                           out_dtype=jnp.float32,            # keep f32: -1e30 pad bias
                           max_row_tile=ROW_TILE_SOFTMAX)    # (B*T', Vp) f32
    return logp[:, :V].reshape(B, max_len, V)


# ----------------------------------------------------------------------------
# Parameter init (PyTorch layout) + one-time packing into kernel layout
# ----------------------------------------------------------------------------
def init_params(key, vocab_size, embed_size, hidden_size, pad_idx):
    ks = jax.random.split(key, 7)
    k = 1.0 / math.sqrt(hidden_size)
    emb = 0.1 * jax.random.normal(ks[0], (vocab_size, embed_size), jnp.float32)
    emb = emb.at[pad_idx].set(0.0)
    return {
        "embedding": emb,
        "w_ih": jax.random.uniform(ks[1], (4 * hidden_size, embed_size),
                                   jnp.float32, -k, k),
        "w_hh": jax.random.uniform(ks[2], (4 * hidden_size, hidden_size),
                                   jnp.float32, -k, k),
        "b_ih": jax.random.uniform(ks[3], (4 * hidden_size,), jnp.float32, -k, k),
        "b_hh": jax.random.uniform(ks[4], (4 * hidden_size,), jnp.float32, -k, k),
        "w_out": jax.random.uniform(ks[5], (vocab_size, hidden_size),
                                    jnp.float32, -k, k),
        "b_out": jax.random.uniform(ks[6], (vocab_size,), jnp.float32, -k, k),
    }


def prepare_params(raw, hidden_size, vocab_size):
    """Pre-transpose, pre-sum bias, pad H and V to 128 lanes, cast to bf16."""
    H, V = hidden_size, vocab_size
    Hp, Vp = _round_up(H, LANE), _round_up(V, LANE)

    def pad_gate_cols(w_t):                       # (d, 4H) -> (d, 4Hp), per-gate
        d = w_t.shape[0]
        w4 = jnp.pad(w_t.reshape(d, 4, H), ((0, 0), (0, 0), (0, Hp - H)))
        return w4.reshape(d, 4 * Hp)

    w_ih_t = pad_gate_cols(raw["w_ih"].T)                           # (E, 4Hp)
    w_hh_t = jnp.pad(pad_gate_cols(raw["w_hh"].T),
                     ((0, Hp - H), (0, 0)))                         # (Hp, 4Hp)
    gate_bias = jnp.pad((raw["b_ih"] + raw["b_hh"]).reshape(4, H),
                        ((0, 0), (0, Hp - H))).reshape(1, 4 * Hp)
    w_out_t = jnp.pad(raw["w_out"].T, ((0, Hp - H), (0, Vp - V)))   # (Hp, Vp)
    b_out = jnp.pad(raw["b_out"], (0, Vp - V),
                    constant_values=-1e30).reshape(1, Vp)

    return {
        "embedding": raw["embedding"],
        "w_ih_t": w_ih_t.astype(MATMUL_DTYPE),
        "w_hh_t": w_hh_t.astype(MATMUL_DTYPE),
        "gate_bias": gate_bias.astype(jnp.float32),
        "w_out_t": w_out_t.astype(MATMUL_DTYPE),
        "b_out": b_out.astype(jnp.float32),
    }


if __name__ == "__main__":
    vocab_size = 50
    embed_size = 16
    time_step = 8
    hidden_size = 32
    dropout_rate = 0.5
    bos_idx, eos_idx, pad_idx = 1, 2, 0
    batch = 4

    key = jax.random.PRNGKey(0)
    pkey, dkey = jax.random.split(key)
    raw = init_params(pkey, vocab_size, embed_size, hidden_size, pad_idx)
    params = prepare_params(raw, hidden_size, vocab_size)

    input_seq = jax.random.randint(dkey, (batch, time_step), 3, vocab_size,
                                   dtype=jnp.int32)
    # lengths such that length + 1 <= time_step (pack_padded_sequence needs this)
    length_list = [7, 4, 2, 6]
    length = jnp.array(length_list, dtype=jnp.int32)
    # Static max_len: no device->host sync, no recompile churn per batch.
    max_len = max(length_list) + 1

    fwd = jax.jit(functools.partial(rnn_forward, max_len=max_len,
                                    vocab_size=vocab_size))
    logp = fwd(params, input_seq, length)                    # (B, max_len, V)
    jax.block_until_ready(logp)
    assert logp.shape == (batch, max_len, vocab_size)
    assert bool(jnp.all(jnp.isfinite(logp)))
    print("KERNEL_OK")
</pallas_src>

<mosaic_0001>
module attributes {stable_mosaic.version = 11 : i64} {
  func.func @_rowblock_matmul_kernel(%arg0: i32, %arg1: memref<256x16xbf16, #tpu.memory_space<vmem>>, %arg2: memref<16x512xbf16, #tpu.memory_space<vmem>>, %arg3: memref<1x512xf32, #tpu.memory_space<vmem>>, %arg4: memref<256x512xbf16, #tpu.memory_space<vmem>>) attributes {dimension_semantics = [#tpu.dimension_semantics<parallel>], iteration_bounds = array<i64: 1>, scalar_prefetch = 0 : i64, scratch_operands = 0 : i64, tpu.core_type = #tpu.core_type<tc>, window_params = [{transform_indices = @transform_0, window_bounds = array<i64: 256, 16>}, {pipeline_mode = #tpu.pipeline_mode<synchronous>, transform_indices = @transform_1, window_bounds = array<i64: 16, 512>}, {pipeline_mode = #tpu.pipeline_mode<synchronous>, transform_indices = @transform_2, window_bounds = array<i64: 1, 512>}, {transform_indices = @transform_3, window_bounds = array<i64: 256, 512>}]} {
    %c0 = arith.constant 0 : index
    %c0_0 = arith.constant 0 : index
    %0 = vector.load %arg1[%c0, %c0_0] : memref<256x16xbf16, #tpu.memory_space<vmem>>, vector<256x16xbf16>
    %c0_1 = arith.constant 0 : index
    %c0_2 = arith.constant 0 : index
    %1 = vector.load %arg2[%c0_1, %c0_2] : memref<16x512xbf16, #tpu.memory_space<vmem>>, vector<16x512xbf16>
    %cst = arith.constant dense<0.000000e+00> : vector<256x512xf32>
    %2 = tpu.matmul %0, %1, %cst {dimension_numbers = #tpu.dot_dimension_numbers<[1], [0], [0], [1], [0, 0, 1, 1], [], []>} : vector<256x16xbf16>, vector<16x512xbf16>, vector<256x512xf32> -> vector<256x512xf32>
    %c0_3 = arith.constant 0 : index
    %c0_4 = arith.constant 0 : index
    %3 = vector.load %arg3[%c0_3, %c0_4] : memref<1x512xf32, #tpu.memory_space<vmem>>, vector<1x512xf32>
    %4 = vector.broadcast %3 : vector<1x512xf32> to vector<256x512xf32>
    %5 = arith.addf %2, %4 : vector<256x512xf32>
    %6 = arith.truncf %5 : vector<256x512xf32> to vector<256x512xbf16>
    %c0_5 = arith.constant 0 : index
    %c0_6 = arith.constant 0 : index
    %7 = vector.load %arg4[%c0_5, %c0_6] : memref<256x512xbf16, #tpu.memory_space<vmem>>, vector<256x512xbf16>
    tpu.vector_store %arg4[%c0_5, %c0_6], %6 {strides = array<i32>} : memref<256x512xbf16, #tpu.memory_space<vmem>>, vector<256x512xbf16>,
    return
  }
  func.func @transform_0(%arg0: i32) -> (i32, i32) {
    %c0_i32 = arith.constant 0 : i32
    %c0_i32_0 = arith.constant 0 : i32
    return %arg0, %c0_i32 : i32, i32
  }
  func.func @transform_1(%arg0: i32) -> (i32, i32) {
    %c0_i32 = arith.constant 0 : i32
    %c0_i32_0 = arith.constant 0 : i32
    %c0_i32_1 = arith.constant 0 : i32
    return %c0_i32, %c0_i32_0 : i32, i32
  }
  func.func @transform_2(%arg0: i32) -> (i32, i32) {
    %c0_i32 = arith.constant 0 : i32
    %c0_i32_0 = arith.constant 0 : i32
    %c0_i32_1 = arith.constant 0 : i32
    return %c0_i32, %c0_i32_0 : i32, i32
  }
  func.func @transform_3(%arg0: i32) -> (i32, i32) {
    %c0_i32 = arith.constant 0 : i32
    %c0_i32_0 = arith.constant 0 : i32
    return %arg0, %c0_i32 : i32, i32
  }
}

module attributes {stable_mosaic.version = 11 : i64} {
  func.func @_lstm_chunk_kernel(%arg0: i32, %arg1: i32, %arg2: memref<16x16x512xbf16, #tpu.memory_space<vmem>>, %arg3: memref<128x512xbf16, #tpu.memory_space<vmem>>, %arg4: memref<16x1xi32, #tpu.memory_space<vmem>>, %arg5: memref<16x16x128xbf16, #tpu.memory_space<vmem>>, %arg6: memref<16x128xf32, #tpu.memory_space<vmem>>, %arg7: memref<16x128xf32, #tpu.memory_space<vmem>>) attributes {dimension_semantics = [#tpu.dimension_semantics<parallel>, #tpu.dimension_semantics<arbitrary>], iteration_bounds = array<i64: 1, 1>, scalar_prefetch = 0 : i64, scratch_operands = 2 : i64, tpu.core_type = #tpu.core_type<tc>, window_params = [{transform_indices = @transform_0, window_bounds = array<i64: 16, 16, 512>}, {pipeline_mode = #tpu.pipeline_mode<synchronous>, transform_indices = @transform_1, window_bounds = array<i64: 128, 512>}, {pipeline_mode = #tpu.pipeline_mode<synchronous>, transform_indices = @transform_2, window_bounds = array<i64: 16, 1>}, {transform_indices = @transform_3, window_bounds = array<i64: 16, 16, 128>}]} {
    %c0_i32 = arith.constant 0 : i32
    %0 = arith.cmpi eq, %arg1, %c0_i32 : i32
    %1 = arith.extui %0 : i1 to i32
    %c0_i32_0 = arith.constant 0 : i32
    %2 = arith.cmpi ne, %1, %c0_i32_0 : i32
    scf.if %2 {
      %cst_393 = arith.constant 0.000000e+00 : f32
      %787 = vector.broadcast %cst_393 : f32 to vector<16x128xf32>
      %c0_394 = arith.constant 0 : index
      %c0_395 = arith.constant 0 : index
      %788 = vector.load %arg6[%c0_394, %c0_395] : memref<16x128xf32, #tpu.memory_space<vmem>>, vector<16x128xf32>
      tpu.vector_store %arg6[%c0_394, %c0_395], %787 {strides = array<i32>} : memref<16x128xf32, #tpu.memory_space<vmem>>, vector<16x128xf32>,
      %cst_396 = arith.constant 0.000000e+00 : f32
      %789 = vector.broadcast %cst_396 : f32 to vector<16x128xf32>
      %c0_397 = arith.constant 0 : index
      %c0_398 = arith.constant 0 : index
      %790 = vector.load %arg7[%c0_397, %c0_398] : memref<16x128xf32, #tpu.memory_space<vmem>>, vector<16x128xf32>
      tpu.vector_store %arg7[%c0_397, %c0_398], %789 {strides = array<i32>} : memref<16x128xf32, #tpu.memory_space<vmem>>, vector<16x128xf32>,
    } else {
    }
    %c16_i32 = arith.constant 16 : i32
    %3 = arith.muli %arg1, %c16_i32 : i32
    %c0_i32_1 = arith.constant 0 : i32
    %4 = arith.index_cast %c0_i32_1 : i32 to index
    %c0 = arith.constant 0 : index
    %c0_2 = arith.constant 0 : index
    %5 = vector.load %arg2[%4, %c0, %c0_2] : memref<16x16x512xbf16, #tpu.memory_space<vmem>>, vector<1x16x512xbf16>
    %6 = vector.shape_cast %5 : vector<1x16x512xbf16> to vector<16x512xbf16>
    %7 = arith.extf %6 : vector<16x512xbf16> to vector<16x512xf32>
    %c0_3 = arith.constant 0 : index
    %c0_4 = arith.constant 0 : index
    %8 = vector.load %arg6[%c0_3, %c0_4] : memref<16x128xf32, #tpu.memory_space<vmem>>, vector<16x128xf32>
    %9 = arith.truncf %8 : vector<16x128xf32> to vector<16x128xbf16>
    %c0_5 = arith.constant 0 : index
    %c0_6 = arith.constant 0 : index
    %10 = vector.load %arg3[%c0_5, %c0_6] : memref<128x512xbf16, #tpu.memory_space<vmem>>, vector<128x512xbf16>
    %cst = arith.constant dense<0.000000e+00> : vector<16x512xf32>
    %11 = tpu.matmul %9, %10, %cst {dimension_numbers = #tpu.dot_dimension_numbers<[1], [0], [0], [1], [0, 0, 1, 1], [], []>} : vector<16x128xbf16>, vector<128x512xbf16>, vector<16x512xf32> -> vector<16x512xf32>
    %12 = arith.addf %7, %11 : vector<16x512xf32>
    %13 = vector.extract_strided_slice %12 {offsets = [0, 0], sizes = [16, 128], strides = [1, 1]} : vector<16x512xf32> to vector<16x128xf32>
    %cst_7 = arith.constant 5.000000e-01 : f32
    %14 = vector.broadcast %cst_7 : f32 to vector<16x128xf32>
    %15 = arith.mulf %14, %13 : vector<16x128xf32>
    %16 = math.tanh %15 : vector<16x128xf32>
    %cst_8 = arith.constant 5.000000e-01 : f32
    %17 = vector.broadcast %cst_8 : f32 to vector<16x128xf32>
    %18 = arith.mulf %17, %16 : vector<16x128xf32>
    %cst_9 = arith.constant 5.000000e-01 : f32
    %19 = vector.broadcast %cst_9 : f32 to vector<16x128xf32>
    %20 = arith.addf %18, %19 : vector<16x128xf32>
    %21 = vector.extract_strided_slice %12 {offsets = [0, 128], sizes = [16, 128], strides = [1, 1]} : vector<16x512xf32> to vector<16x128xf32>
    %cst_10 = arith.constant 5.000000e-01 : f32
    %22 = vector.broadcast %cst_10 : f32 to vector<16x128xf32>
    %23 = arith.mulf %22, %21 : vector<16x128xf32>
    %24 = math.tanh %23 : vector<16x128xf32>
    %cst_11 = arith.constant 5.000000e-01 : f32
    %25 = vector.broadcast %cst_11 : f32 to vector<16x128xf32>
    %26 = arith.mulf %25, %24 : vector<16x128xf32>
    %cst_12 = arith.constant 5.000000e-01 : f32
    %27 = vector.broadcast %cst_12 : f32 to vector<16x128xf32>
    %28 = arith.addf %26, %27 : vector<16x128xf32>
    %29 = vector.extract_strided_slice %12 {offsets = [0, 256], sizes = [16, 128], strides = [1, 1]} : vector<16x512xf32> to vector<16x128xf32>
    %30 = math.tanh %29 : vector<16x128xf32>
    %31 = vector.extract_strided_slice %12 {offsets = [0, 384], sizes = [16, 128], strides = [1, 1]} : vector<16x512xf32> to vector<16x128xf32>
    %cst_13 = arith.constant 5.000000e-01 : f32
    %32 = vector.broadcast %cst_13 : f32 to vector<16x128xf32>
    %33 = arith.mulf %32, %31 : vector<16x128xf32>
    %34 = math.tanh %33 : vector<16x128xf32>
    %cst_14 = arith.constant 5.000000e-01 : f32
    %35 = vector.broadcast %cst_14 : f32 to vector<16x128xf32>
    %36 = arith.mulf %35, %34 : vector<16x128xf32>
    %cst_15 = arith.constant 5.000000e-01 : f32
    %37 = vector.broadcast %cst_15 : f32 to vector<16x128xf32>
    %38 = arith.addf %36, %37 : vector<16x128xf32>
    %c0_16 = arith.constant 0 : index
    %c0_17 = arith.constant 0 : index
    %39 = vector.load %arg7[%c0_16, %c0_17] : memref<16x128xf32, #tpu.memory_space<vmem>>, vector<16x128xf32>
    %40 = arith.mulf %28, %39 : vector<16x128xf32>
    %41 = arith.mulf %20, %30 : vector<16x128xf32>
    %42 = arith.addf %40, %41 : vector<16x128xf32>
    %43 = math.tanh %42 : vector<16x128xf32>
    %44 = arith.mulf %38, %43 : vector<16x128xf32>
    %c0_18 = arith.constant 0 : index
    %c0_19 = arith.constant 0 : index
    %45 = vector.load %arg7[%c0_18, %c0_19] : memref<16x128xf32, #tpu.memory_space<vmem>>, vector<16x128xf32>
    tpu.vector_store %arg7[%c0_18, %c0_19], %42 {strides = array<i32>} : memref<16x128xf32, #tpu.memory_space<vmem>>, vector<16x128xf32>,
    %c0_20 = arith.constant 0 : index
    %c0_21 = arith.constant 0 : index
    %46 = vector.load %arg6[%c0_20, %c0_21] : memref<16x128xf32, #tpu.memory_space<vmem>>, vector<16x128xf32>
    tpu.vector_store %arg6[%c0_20, %c0_21], %44 {strides = array<i32>} : memref<16x128xf32, #tpu.memory_space<vmem>>, vector<16x128xf32>,
    %47 = arith.truncf %44 : vector<16x128xf32> to vector<16x128xbf16>
    %48 = arith.index_cast %c0_i32_1 : i32 to index
    %c0_22 = arith.constant 0 : index
    %c0_23 = arith.constant 0 : index
    %49 = vector.load %arg5[%48, %c0_22, %c0_23] : memref<16x16x128xbf16, #tpu.memory_space<vmem>>, vector<1x16x128xbf16>
    %50 = vector.shape_cast %49 : vector<1x16x128xbf16> to vector<16x128xbf16>
    %51 = vector.shape_cast %47 : vector<16x128xbf16> to vector<1x16x128xbf16>
    tpu.vector_store %arg5[%48, %c0_22, %c0_23], %51 {strides = array<i32>} : memref<16x16x128xbf16, #tpu.memory_space<vmem>>, vector<1x16x128xbf16>,
    %c1_i32 = arith.constant 1 : i32
    %52 = arith.index_cast %c1_i32 : i32 to index
    %c0_24 = arith.constant 0 : index
    %c0_25 = arith.constant 0 : index
    %53 = vector.load %arg2[%52, %c0_24, %c0_25] : memref<16x16x512xbf16, #tpu.memory_space<vmem>>, vector<1x16x512xbf16>
    %54 = vector.shape_cast %53 : vector<1x16x512xbf16> to vector<16x512xbf16>
    %55 = arith.extf %54 : vector<16x512xbf16> to vector<16x512xf32>
    %c0_26 = arith.constant 0 : index
    %c0_27 = arith.constant 0 : index
    %56 = vector.load %arg6[%c0_26, %c0_27] : memref<16x128xf32, #tpu.memory_space<vmem>>, vector<16x128xf32>
    %57 = arith.truncf %56 : vector<16x128xf32> to vector<16x128xbf16>
    %c0_28 = arith.constant 0 : index
    %c0_29 = arith.constant 0 : index
    %58 = vector.load %arg3[%c0_28, %c0_29] : memref<128x512xbf16, #tpu.memory_space<vmem>>, vector<128x512xbf16>
    %cst_30 = arith.constant dense<0.000000e+00> : vector<16x512xf32>
    %59 = tpu.matmul %57, %58, %cst_30 {dimension_numbers = #tpu.dot_dimension_numbers<[1], [0], [0], [1], [0, 0, 1, 1], [], []>} : vector<16x128xbf16>, vector<128x512xbf16>, vector<16x512xf32> -> vector<16x512xf32>
    %60 = arith.addf %55, %59 : vector<16x512xf32>
    %61 = vector.extract_strided_slice %60 {offsets = [0, 0], sizes = [16, 128], strides = [1, 1]} : vector<16x512xf32> to vector<16x128xf32>
    %cst_31 = arith.constant 5.000000e-01 : f32
    %62 = vector.broadcast %cst_31 : f32 to vector<16x128xf32>
    %63 = arith.mulf %62, %61 : vector<16x128xf32>
    %64 = math.tanh %63 : vector<16x128xf32>
    %cst_32 = arith.constant 5.000000e-01 : f32
    %65 = vector.broadcast %cst_32 : f32 to vector<16x128xf32>
    %66 = arith.mulf %65, %64 : vector<16x128xf32>
    %cst_33 = arith.constant 5.000000e-01 : f32
    %67 = vector.broadcast %cst_33 : f32 to vector<16x128xf32>
    %68 = arith.addf %66, %67 : vector<16x128xf32>
    %69 = vector.extract_strided_slice %60 {offsets = [0, 128], sizes = [16, 128], strides = [1, 1]} : vector<16x512xf32> to vector<16x128xf32>
    %cst_34 = arith.constant 5.000000e-01 : f32
    %70 = vector.broadcast %cst_34 : f32 to vector<16x128xf32>
    %71 = arith.mulf %70, %69 : vector<16x128xf32>
    %72 = math.tanh %71 : vector<16x128xf32>
    %cst_35 = arith.constant 5.000000e-01 : f32
    %73 = vector.broadcast %cst_35 : f32 to vector<16x128xf32>
    %74 = arith.mulf %73, %72 : vector<16x128xf32>
    %cst_36 = arith.constant 5.000000e-01 : f32
    %75 = vector.broadcast %cst_36 : f32 to vector<16x128xf32>
    %76 = arith.addf %74, %75 : vector<16x128xf32>
    %77 = vector.extract_strided_slice %60 {offsets = [0, 256], sizes = [16, 128], strides = [1, 1]} : vector<16x512xf32> to vector<16x128xf32>
    %78 = math.tanh %77 : vector<16x128xf32>
    %79 = vector.extract_strided_slice %60 {offsets = [0, 384], sizes = [16, 128], strides = [1, 1]} : vector<16x512xf32> to vector<16x128xf32>
    %cst_37 = arith.constant 5.000000e-01 : f32
    %80 = vector.broadcast %cst_37 : f32 to vector<16x128xf32>
    %81 = arith.mulf %80, %79 : vector<16x128xf32>
    %82 = math.tanh %81 : vector<16x128xf32>
    %cst_38 = arith.constant 5.000000e-01 : f32
    %83 = vector.broadcast %cst_38 : f32 to vector<16x128xf32>
    %84 = arith.mulf %83, %82 : vector<16x128xf32>
    %cst_39 = arith.constant 5.000000e-01 : f32
    %85 = vector.broadcast %cst_39 : f32 to vector<16x128xf32>
    %86 = arith.addf %84, %85 : vector<16x128xf32>
    %c0_40 = arith.constant 0 : index
    %c0_41 = arith.constant 0 : index
    %87 = vector.load %arg7[%c0_40, %c0_41] : memref<16x128xf32, #tpu.memory_space<vmem>>, vector<16x128xf32>
    %88 = arith.mulf %76, %87 : vector<16x128xf32>
    %89 = arith.mulf %68, %78 : vector<16x128xf32>
    %90 = arith.addf %88, %89 : vector<16x128xf32>
    %91 = math.tanh %90 : vector<16x128xf32>
    %92 = arith.mulf %86, %91 : vector<16x128xf32>
    %c0_42 = arith.constant 0 : index
    %c0_43 = arith.constant 0 : index
    %93 = vector.load %arg7[%c0_42, %c0_43] : memref<16x128xf32, #tpu.memory_space<vmem>>, vector<16x128xf32>
    tpu.vector_store %arg7[%c0_42, %c0_43], %90 {strides = array<i32>} : memref<16x128xf32, #tpu.memory_space<vmem>>, vector<16x128xf32>,
    %c0_44 = arith.constant 0 : index
    %c0_45 = arith.constant 0 : index
    %94 = vector.load %arg6[%c0_44, %c0_45] : memref<16x128xf32, #tpu.memory_space<vmem>>, vector<16x128xf32>
    tpu.vector_store %arg6[%c0_44, %c0_45], %92 {strides = array<i32>} : memref<16x128xf32, #tpu.memory_space<vmem>>, vector<16x128xf32>,
    %95 = arith.truncf %92 : vector<16x128xf32> to vector<16x128xbf16>
    %96 = arith.index_cast %c1_i32 : i32 to index
    %c0_46 = arith.constant 0 : index
    %c0_47 = arith.constant 0 : index
    %97 = vector.load %arg5[%96, %c0_46, %c0_47] : memref<16x16x128xbf16, #tpu.memory_space<vmem>>, vector<1x16x128xbf16>
    %98 = vector.shape_cast %97 : vector<1x16x128xbf16> to vector<16x128xbf16>
    %99 = vector.shape_cast %95 : vector<16x128xbf16> to vector<1x16x128xbf16>
    tpu.vector_store %arg5[%96, %c0_46, %c0_47], %99 {strides = array<i32>} : memref<16x16x128xbf16, #tpu.memory_space<vmem>>, vector<1x16x128xbf16>,
    %c2_i32 = arith.constant 2 : i32
    %100 = arith.index_cast %c2_i32 : i32 to index
    %c0_48 = arith.constant 0 : index
    %c0_49 = arith.constant 0 : index
    %101 = vector.load %arg2[%100, %c0_48, %c0_49] : memref<16x16x512xbf16, #tpu.memory_space<vmem>>, vector<1x16x512xbf16>
    %102 = vector.shape_cast %101 : vector<1x16x512xbf16> to vector<16x512xbf16>
    %103 = arith.extf %102 : vector<16x512xbf16> to vector<16x512xf32>
    %c0_50 = arith.constant 0 : index
    %c0_51 = arith.constant 0 : index
    %104 = vector.load %arg6[%c0_50, %c0_51] : memref<16x128xf32, #tpu.memory_space<vmem>>, vector<16x128xf32>
    %105 = arith.truncf %104 : vector<16x128xf32> to vector<16x128xbf16>
    %c0_52 = arith.constant 0 : index
    %c0_53 = arith.constant 0 : index
    %106 = vector.load %arg3[%c0_52, %c0_53] : memref<128x512xbf16, #tpu.memory_space<vmem>>, vector<128x512xbf16>
    %cst_54 = arith.constant dense<0.000000e+00> : vector<16x512xf32>
    %107 = tpu.matmul %105, %106, %cst_54 {dimension_numbers = #tpu.dot_dimension_numbers<[1], [0], [0], [1], [0, 0, 1, 1], [], []>} : vector<16x128xbf16>, vector<128x512xbf16>, vector<16x512xf32> -> vector<16x512xf32>
    %108 = arith.addf %103, %107 : vector<16x512xf32>
    %109 = vector.extract_strided_slice %108 {offsets = [0, 0], sizes = [16, 128], strides = [1, 1]} : vector<16x512xf32> to vector<16x128xf32>
    %cst_55 = arith.constant 5.000000e-01 : f32
    %110 = vector.broadcast %cst_55 : f32 to vector<16x128xf32>
    %111 = arith.mulf %110, %109 : vector<16x128xf32>
    %112 = math.tanh %111 : vector<16x128xf32>
    %cst_56 = arith.constant 5.000000e-01 : f32
    %113 = vector.broadcast %cst_56 : f32 to vector<16x128xf32>
    %114 = arith.mulf %113, %112 : vector<16x128xf32>
    %cst_57 = arith.constant 5.000000e-01 : f32
    %115 = vector.broadcast %cst_57 : f32 to vector<16x128xf32>
    %116 = arith.addf %114, %115 : vector<16x128xf32>
    %117 = vector.extract_strided_slice %108 {offsets = [0, 128], sizes = [16, 128], strides = [1, 1]} : vector<16x512xf32> to vector<16x128xf32>
    %cst_58 = arith.constant 5.000000e-01 : f32
    %118 = vector.broadcast %cst_58 : f32 to vector<16x128xf32>
    %119 = arith.mulf %118, %117 : vector<16x128xf32>
    %120 = math.tanh %119 : vector<16x128xf32>
    %cst_59 = arith.constant 5.000000e-01 : f32
    %121 = vector.broadcast %cst_59 : f32 to vector<16x128xf32>
    %122 = arith.mulf %121, %120 : vector<16x128xf32>
    %cst_60 = arith.constant 5.000000e-01 : f32
    %123 = vector.broadcast %cst_60 : f32 to vector<16x128xf32>
    %124 = arith.addf %122, %123 : vector<16x128xf32>
    %125 = vector.extract_strided_slice %108 {offsets = [0, 256], sizes = [16, 128], strides = [1, 1]} : vector<16x512xf32> to vector<16x128xf32>
    %126 = math.tanh %125 : vector<16x128xf32>
    %127 = vector.extract_strided_slice %108 {offsets = [0, 384], sizes = [16, 128], strides = [1, 1]} : vector<16x512xf32> to vector<16x128xf32>
    %cst_61 = arith.constant 5.000000e-01 : f32
    %128 = vector.broadcast %cst_61 : f32 to vector<16x128xf32>
    %129 = arith.mulf %128, %127 : vector<16x128xf32>
    %130 = math.tanh %129 : vector<16x128xf32>
    %cst_62 = arith.constant 5.000000e-01 : f32
    %131 = vector.broadcast %cst_62 : f32 to vector<16x128xf32>
    %132 = arith.mulf %131, %130 : vector<16x128xf32>
    %cst_63 = arith.constant 5.000000e-01 : f32
    %133 = vector.broadcast %cst_63 : f32 to vector<16x128xf32>
    %134 = arith.addf %132, %133 : vector<16x128xf32>
    %c0_64 = arith.constant 0 : index
    %c0_65 = arith.constant 0 : index
    %135 = vector.load %arg7[%c0_64, %c0_65] : memref<16x128xf32, #tpu.memory_space<vmem>>, vector<16x128xf32>
    %136 = arith.mulf %124, %135 : vector<16x128xf32>
    %137 = arith.mulf %116, %126 : vector<16x128xf32>
    %138 = arith.addf %136, %137 : vector<16x128xf32>
    %139 = math.tanh %138 : vector<16x128xf32>
    %140 = arith.mulf %134, %139 : vector<16x128xf32>
    %c0_66 = arith.constant 0 : index
    %c0_67 = arith.constant 0 : index
    %141 = vector.load %arg7[%c0_66, %c0_67] : memref<16x128xf32, #tpu.memory_space<vmem>>, vector<16x128xf32>
    tpu.vector_store %arg7[%c0_66, %c0_67], %138 {strides = array<i32>} : memref<16x128xf32, #tpu.memory_space<vmem>>, vector<16x128xf32>,
    %c0_68 = arith.constant 0 : index
    %c0_69 = arith.constant 0 : index
    %142 = vector.load %arg6[%c0_68, %c0_69] : memref<16x128xf32, #tpu.memory_space<vmem>>, vector<16x128xf32>
    tpu.vector_store %arg6[%c0_68, %c0_69], %140 {strides = array<i32>} : memref<16x128xf32, #tpu.memory_space<vmem>>, vector<16x128xf32>,
    %143 = arith.truncf %140 : vector<16x128xf32> to vector<16x128xbf16>
    %144 = arith.index_cast %c2_i32 : i32 to index
    %c0_70 = arith.constant 0 : index
    %c0_71 = arith.constant 0 : index
    %145 = vector.load %arg5[%144, %c0_70, %c0_71] : memref<16x16x128xbf16, #tpu.memory_space<vmem>>, vector<1x16x128xbf16>
    %146 = vector.shape_cast %145 : vector<1x16x128xbf16> to vector<16x128xbf16>
    %147 = vector.shape_cast %143 : vector<16x128xbf16> to vector<1x16x128xbf16>
    tpu.vector_store %arg5[%144, %c0_70, %c0_71], %147 {strides = array<i32>} : memref<16x16x128xbf16, #tpu.memory_space<vmem>>, vector<1x16x128xbf16>,
    %c3_i32 = arith.constant 3 : i32
    %148 = arith.index_cast %c3_i32 : i32 to index
    %c0_72 = arith.constant 0 : index
    %c0_73 = arith.constant 0 : index
    %149 = vector.load %arg2[%148, %c0_72, %c0_73] : memref<16x16x512xbf16, #tpu.memory_space<vmem>>, vector<1x16x512xbf16>
    %150 = vector.shape_cast %149 : vector<1x16x512xbf16> to vector<16x512xbf16>
    %151 = arith.extf %150 : vector<16x512xbf16> to vector<16x512xf32>
    %c0_74 = arith.constant 0 : index
    %c0_75 = arith.constant 0 : index
    %152 = vector.load %arg6[%c0_74, %c0_75] : memref<16x128xf32, #tpu.memory_space<vmem>>, vector<16x128xf32>
    %153 = arith.truncf %152 : vector<16x128xf32> to vector<16x128xbf16>
    %c0_76 = arith.constant 0 : index
    %c0_77 = arith.constant 0 : index
    %154 = vector.load %arg3[%c0_76, %c0_77] : memref<128x512xbf16, #tpu.memory_space<vmem>>, vector<128x512xbf16>
    %cst_78 = arith.constant dense<0.000000e+00> : vector<16x512xf32>
    %155 = tpu.matmul %153, %154, %cst_78 {dimension_numbers = #tpu.dot_dimension_numbers<[1], [0], [0], [1], [0, 0, 1, 1], [], []>} : vector<16x128xbf16>, vector<128x512xbf16>, vector<16x512xf32> -> vector<16x512xf32>
    %156 = arith.addf %151, %155 : vector<16x512xf32>
    %157 = vector.extract_strided_slice %156 {offsets = [0, 0], sizes = [16, 128], strides = [1, 1]} : vector<16x512xf32> to vector<16x128xf32>
    %cst_79 = arith.constant 5.000000e-01 : f32
    %158 = vector.broadcast %cst_79 : f32 to vector<16x128xf32>
    %159 = arith.mulf %158, %157 : vector<16x128xf32>
    %160 = math.tanh %159 : vector<16x128xf32>
    %cst_80 = arith.constant 5.000000e-01 : f32
    %161 = vector.broadcast %cst_80 : f32 to vector<16x128xf32>
    %162 = arith.mulf %161, %160 : vector<16x128xf32>
    %cst_81 = arith.constant 5.000000e-01 : f32
    %163 = vector.broadcast %cst_81 : f32 to vector<16x128xf32>
    %164 = arith.addf %162, %163 : vector<16x128xf32>
    %165 = vector.extract_strided_slice %156 {offsets = [0, 128], sizes = [16, 128], strides = [1, 1]} : vector<16x512xf32> to vector<16x128xf32>
    %cst_82 = arith.constant 5.000000e-01 : f32
    %166 = vector.broadcast %cst_82 : f32 to vector<16x128xf32>
    %167 = arith.mulf %166, %165 : vector<16x128xf32>
    %168 = math.tanh %167 : vector<16x128xf32>
    %cst_83 = arith.constant 5.000000e-01 : f32
    %169 = vector.broadcast %cst_83 : f32 to vector<16x128xf32>
    %170 = arith.mulf %169, %168 : vector<16x128xf32>
    %cst_84 = arith.constant 5.000000e-01 : f32
    %171 = vector.broadcast %cst_84 : f32 to vector<16x128xf32>
    %172 = arith.addf %170, %171 : vector<16x128xf32>
    %173 = vector.extract_strided_slice %156 {offsets = [0, 256], sizes = [16, 128], strides = [1, 1]} : vector<16x512xf32> to vector<16x128xf32>
    %174 = math.tanh %173 : vector<16x128xf32>
    %175 = vector.extract_strided_slice %156 {offsets = [0, 384], sizes = [16, 128], strides = [1, 1]} : vector<16x512xf32> to vector<16x128xf32>
    %cst_85 = arith.constant 5.000000e-01 : f32
    %176 = vector.broadcast %cst_85 : f32 to vector<16x128xf32>
    %177 = arith.mulf %176, %175 : vector<16x128xf32>
    %178 = math.tanh %177 : vector<16x128xf32>
    %cst_86 = arith.constant 5.000000e-01 : f32
    %179 = vector.broadcast %cst_86 : f32 to vector<16x128xf32>
    %180 = arith.mulf %179, %178 : vector<16x128xf32>
    %cst_87 = arith.constant 5.000000e-01 : f32
    %181 = vector.broadcast %cst_87 : f32 to vector<16x128xf32>
    %182 = arith.addf %180, %181 : vector<16x128xf32>
    %c0_88 = arith.constant 0 : index
    %c0_89 = arith.constant 0 : index
    %183 = vector.load %arg7[%c0_88, %c0_89] : memref<16x128xf32, #tpu.memory_space<vmem>>, vector<16x128xf32>
    %184 = arith.mulf %172, %183 : vector<16x128xf32>
    %185 = arith.mulf %164, %174 : vector<16x128xf32>
    %186 = arith.addf %184, %185 : vector<16x128xf32>
    %187 = math.tanh %186 : vector<16x128xf32>
    %188 = arith.mulf %182, %187 : vector<16x128xf32>
    %c0_90 = arith.constant 0 : index
    %c0_91 = arith.constant 0 : index
    %189 = vector.load %arg7[%c0_90, %c0_91] : memref<16x128xf32, #tpu.memory_space<vmem>>, vector<16x128xf32>
    tpu.vector_store %arg7[%c0_90, %c0_91], %186 {strides = array<i32>} : memref<16x128xf32, #tpu.memory_space<vmem>>, vector<16x128xf32>,
    %c0_92 = arith.constant 0 : index
    %c0_93 = arith.constant 0 : index
    %190 = vector.load %arg6[%c0_92, %c0_93] : memref<16x128xf32, #tpu.memory_space<vmem>>, vector<16x128xf32>
    tpu.vector_store %arg6[%c0_92, %c0_93], %188 {strides = array<i32>} : memref<16x128xf32, #tpu.memory_space<vmem>>, vector<16x128xf32>,
    %191 = arith.truncf %188 : vector<16x128xf32> to vector<16x128xbf16>
    %192 = arith.index_cast %c3_i32 : i32 to index
    %c0_94 = arith.constant 0 : index
    %c0_95 = arith.constant 0 : index
    %193 = vector.load %arg5[%192, %c0_94, %c0_95] : memref<16x16x128xbf16, #tpu.memory_space<vmem>>, vector<1x16x128xbf16>
    %194 = vector.shape_cast %193 : vector<1x16x128xbf16> to vector<16x128xbf16>
    %195 = vector.shape_cast %191 : vector<16x128xbf16> to vector<1x16x128xbf16>
    tpu.vector_store %arg5[%192, %c0_94, %c0_95], %195 {strides = array<i32>} : memref<16x16x128xbf16, #tpu.memory_space<vmem>>, vector<1x16x128xbf16>,
    %c4_i32 = arith.constant 4 : i32
    %196 = arith.index_cast %c4_i32 : i32 to index
    %c0_96 = arith.constant 0 : index
    %c0_97 = arith.constant 0 : index
    %197 = vector.load %arg2[%196, %c0_96, %c0_97] : memref<16x16x512xbf16, #tpu.memory_space<vmem>>, vector<1x16x512xbf16>
    %198 = vector.shape_cast %197 : vector<1x16x512xbf16> to vector<16x512xbf16>
    %199 = arith.extf %198 : vector<16x512xbf16> to vector<16x512xf32>
    %c0_98 = arith.constant 0 : index
    %c0_99 = arith.constant 0 : index
    %200 = vector.load %arg6[%c0_98, %c0_99] : memref<16x128xf32, #tpu.memory_space<vmem>>, vector<16x128xf32>
    %201 = arith.truncf %200 : vector<16x128xf32> to vector<16x128xbf16>
    %c0_100 = arith.constant 0 : index
    %c0_101 = arith.constant 0 : index
    %202 = vector.load %arg3[%c0_100, %c0_101] : memref<128x512xbf16, #tpu.memory_space<vmem>>, vector<128x512xbf16>
    %cst_102 = arith.constant dense<0.000000e+00> : vector<16x512xf32>
    %203 = tpu.matmul %201, %202, %cst_102 {dimension_numbers = #tpu.dot_dimension_numbers<[1], [0], [0], [1], [0, 0, 1, 1], [], []>} : vector<16x128xbf16>, vector<128x512xbf16>, vector<16x512xf32> -> vector<16x512xf32>
    %204 = arith.addf %199, %203 : vector<16x512xf32>
    %205 = vector.extract_strided_slice %204 {offsets = [0, 0], sizes = [16, 128], strides = [1, 1]} : vector<16x512xf32> to vector<16x128xf32>
    %cst_103 = arith.constant 5.000000e-01 : f32
    %206 = vector.broadcast %cst_103 : f32 to vector<16x128xf32>
    %207 = arith.mulf %206, %205 : vector<16x128xf32>
    %208 = math.tanh %207 : vector<16x128xf32>
    %cst_104 = arith.constant 5.000000e-01 : f32
    %209 = vector.broadcast %cst_104 : f32 to vector<16x128xf32>
    %210 = arith.mulf %209, %208 : vector<16x128xf32>
    %cst_105 = arith.constant 5.000000e-01 : f32
    %211 = vector.broadcast %cst_105 : f32 to vector<16x128xf32>
    %212 = arith.addf %210, %211 : vector<16x128xf32>
    %213 = vector.extract_strided_slice %204 {offsets = [0, 128], sizes = [16, 128], strides = [1, 1]} : vector<16x512xf32> to vector<16x128xf32>
    %cst_106 = arith.constant 5.000000e-01 : f32
    %214 = vector.broadcast %cst_106 : f32 to vector<16x128xf32>
    %215 = arith.mulf %214, %213 : vector<16x128xf32>
    %216 = math.tanh %215 : vector<16x128xf32>
    %cst_107 = arith.constant 5.000000e-01 : f32
    %217 = vector.broadcast %cst_107 : f32 to vector<16x128xf32>
    %218 = arith.mulf %217, %216 : vector<16x128xf32>
    %cst_108 = arith.constant 5.000000e-01 : f32
    %219 = vector.broadcast %cst_108 : f32 to vector<16x128xf32>
    %220 = arith.addf %218, %219 : vector<16x128xf32>
    %221 = vector.extract_strided_slice %204 {offsets = [0, 256], sizes = [16, 128], strides = [1, 1]} : vector<16x512xf32> to vector<16x128xf32>
    %222 = math.tanh %221 : vector<16x128xf32>
    %223 = vector.extract_strided_slice %204 {offsets = [0, 384], sizes = [16, 128], strides = [1, 1]} : vector<16x512xf32> to vector<16x128xf32>
    %cst_109 = arith.constant 5.000000e-01 : f32
    %224 = vector.broadcast %cst_109 : f32 to vector<16x128xf32>
    %225 = arith.mulf %224, %223 : vector<16x128xf32>
    %226 = math.tanh %225 : vector<16x128xf32>
    %cst_110 = arith.constant 5.000000e-01 : f32
    %227 = vector.broadcast %cst_110 : f32 to vector<16x128xf32>
    %228 = arith.mulf %227, %226 : vector<16x128xf32>
    %cst_111 = arith.constant 5.000000e-01 : f32
    %229 = vector.broadcast %cst_111 : f32 to vector<16x128xf32>
    %230 = arith.addf %228, %229 : vector<16x128xf32>
    %c0_112 = arith.constant 0 : index
    %c0_113 = arith.constant 0 : index
    %231 = vector.load %arg7[%c0_112, %c0_113] : memref<16x128xf32, #tpu.memory_space<vmem>>, vector<16x128xf32>
    %232 = arith.mulf %220, %231 : vector<16x128xf32>
    %233 = arith.mulf %212, %222 : vector<16x128xf32>
    %234 = arith.addf %232, %233 : vector<16x128xf32>
    %235 = math.tanh %234 : vector<16x128xf32>
    %236 = arith.mulf %230, %235 : vector<16x128xf32>
    %c0_114 = arith.constant 0 : index
    %c0_115 = arith.constant 0 : index
    %237 = vector.load %arg7[%c0_114, %c0_115] : memref<16x128xf32, #tpu.memory_space<vmem>>, vector<16x128xf32>
    tpu.vector_store %arg7[%c0_114, %c0_115], %234 {strides = array<i32>} : memref<16x128xf32, #tpu.memory_space<vmem>>, vector<16x128xf32>,
    %c0_116 = arith.constant 0 : index
    %c0_117 = arith.constant 0 : index
    %238 = vector.load %arg6[%c0_116, %c0_117] : memref<16x128xf32, #tpu.memory_space<vmem>>, vector<16x128xf32>
    tpu.vector_store %arg6[%c0_116, %c0_117], %236 {strides = array<i32>} : memref<16x128xf32, #tpu.memory_space<vmem>>, vector<16x128xf32>,
    %239 = arith.truncf %236 : vector<16x128xf32> to vector<16x128xbf16>
    %240 = arith.index_cast %c4_i32 : i32 to index
    %c0_118 = arith.constant 0 : index
    %c0_119 = arith.constant 0 : index
    %241 = vector.load %arg5[%240, %c0_118, %c0_119] : memref<16x16x128xbf16, #tpu.memory_space<vmem>>, vector<1x16x128xbf16>
    %242 = vector.shape_cast %241 : vector<1x16x128xbf16> to vector<16x128xbf16>
    %243 = vector.shape_cast %239 : vector<16x128xbf16> to vector<1x16x128xbf16>
    tpu.vector_store %arg5[%240, %c0_118, %c0_119], %243 {strides = array<i32>} : memref<16x16x128xbf16, #tpu.memory_space<vmem>>, vector<1x16x128xbf16>,
    %c5_i32 = arith.constant 5 : i32
    %244 = arith.index_cast %c5_i32 : i32 to index
    %c0_120 = arith.constant 0 : index
    %c0_121 = arith.constant 0 : index
    %245 = vector.load %arg2[%244, %c0_120, %c0_121] : memref<16x16x512xbf16, #tpu.memory_space<vmem>>, vector<1x16x512xbf16>
    %246 = vector.shape_cast %245 : vector<1x16x512xbf16> to vector<16x512xbf16>
    %247 = arith.extf %246 : vector<16x512xbf16> to vector<16x512xf32>
    %c0_122 = arith.constant 0 : index
    %c0_123 = arith.constant 0 : index
    %248 = vector.load %arg6[%c0_122, %c0_123] : memref<16x128xf32, #tpu.memory_space<vmem>>, vector<16x128xf32>
    %249 = arith.truncf %248 : vector<16x128xf32> to vector<16x128xbf16>
    %c0_124 = arith.constant 0 : index
    %c0_125 = arith.constant 0 : index
    %250 = vector.load %arg3[%c0_124, %c0_125] : memref<128x512xbf16, #tpu.memory_space<vmem>>, vector<128x512xbf16>
    %cst_126 = arith.constant dense<0.000000e+00> : vector<16x512xf32>
    %251 = tpu.matmul %249, %250, %cst_126 {dimension_numbers = #tpu.dot_dimension_numbers<[1], [0], [0], [1], [0, 0, 1, 1], [], []>} : vector<16x128xbf16>, vector<128x512xbf16>, vector<16x512xf32> -> vector<16x512xf32>
    %252 = arith.addf %247, %251 : vector<16x512xf32>
    %253 = vector.extract_strided_slice %252 {offsets = [0, 0], sizes = [16, 128], strides = [1, 1]} : vector<16x512xf32> to vector<16x128xf32>
    %cst_127 = arith.constant 5.000000e-01 : f32
    %254 = vector.broadcast %cst_127 : f32 to vector<16x128xf32>
    %255 = arith.mulf %254, %253 : vector<16x128xf32>
    %256 = math.tanh %255 : vector<16x128xf32>
    %cst_128 = arith.constant 5.000000e-01 : f32
    %257 = vector.broadcast %cst_128 : f32 to vector<16x128xf32>
    %258 = arith.mulf %257, %256 : vector<16x128xf32>
    %cst_129 = arith.constant 5.000000e-01 : f32
    %259 = vector.broadcast %cst_129 : f32 to vector<16x128xf32>
    %260 = arith.addf %258, %259 : vector<16x128xf32>
    %261 = vector.extract_strided_slice %252 {offsets = [0, 128], sizes = [16, 128], strides = [1, 1]} : vector<16x512xf32> to vector<16x128xf32>
    %cst_130 = arith.constant 5.000000e-01 : f32
    %262 = vector.broadcast %cst_130 : f32 to vector<16x128xf32>
    %263 = arith.mulf %262, %261 : vector<16x128xf32>
    %264 = math.tanh %263 : vector<16x128xf32>
    %cst_131 = arith.constant 5.000000e-01 : f32
    %265 = vector.broadcast %cst_131 : f32 to vector<16x128xf32>
    %266 = arith.mulf %265, %264 : vector<16x128xf32>
    %cst_132 = arith.constant 5.000000e-01 : f32
    %267 = vector.broadcast %cst_132 : f32 to vector<16x128xf32>
    %268 = arith.addf %266, %267 : vector<16x128xf32>
    %269 = vector.extract_strided_slice %252 {offsets = [0, 256], sizes = [16, 128], strides = [1, 1]} : vector<16x512xf32> to vector<16x128xf32>
    %270 = math.tanh %269 : vector<16x128xf32>
    %271 = vector.extract_strided_slice %252 {offsets = [0, 384], sizes = [16, 128], strides = [1, 1]} : vector<16x512xf32> to vector<16x128xf32>
    %cst_133 = arith.constant 5.000000e-01 : f32
    %272 = vector.broadcast %cst_133 : f32 to vector<16x128xf32>
    %273 = arith.mulf %272, %271 : vector<16x128xf32>
    %274 = math.tanh %273 : vector<16x128xf32>
    %cst_134 = arith.constant 5.000000e-01 : f32
    %275 = vector.broadcast %cst_134 : f32 to vector<16x128xf32>
    %276 = arith.mulf %275, %274 : vector<16x128xf32>
    %cst_135 = arith.constant 5.000000e-01 : f32
    %277 = vector.broadcast %cst_135 : f32 to vector<16x128xf32>
    %278 = arith.addf %276, %277 : vector<16x128xf32>
    %c0_136 = arith.constant 0 : index
    %c0_137 = arith.constant 0 : index
    %279 = vector.load %arg7[%c0_136, %c0_137] : memref<16x128xf32, #tpu.memory_space<vmem>>, vector<16x128xf32>
    %280 = arith.mulf %268, %279 : vector<16x128xf32>
    %281 = arith.mulf %260, %270 : vector<16x128xf32>
    %282 = arith.addf %280, %281 : vector<16x128xf32>
    %283 = math.tanh %282 : vector<16x128xf32>
    %284 = arith.mulf %278, %283 : vector<16x128xf32>
    %c0_138 = arith.constant 0 : index
    %c0_139 = arith.constant 0 : index
    %285 = vector.load %arg7[%c0_138, %c0_139] : memref<16x128xf32, #tpu.memory_space<vmem>>, vector<16x128xf32>
    tpu.vector_store %arg7[%c0_138, %c0_139], %282 {strides = array<i32>} : memref<16x128xf32, #tpu.memory_space<vmem>>, vector<16x128xf32>,
    %c0_140 = arith.constant 0 : index
    %c0_141 = arith.constant 0 : index
    %286 = vector.load %arg6[%c0_140, %c0_141] : memref<16x128xf32, #tpu.memory_space<vmem>>, vector<16x128xf32>
    tpu.vector_store %arg6[%c0_140, %c0_141], %284 {strides = array<i32>} : memref<16x128xf32, #tpu.memory_space<vmem>>, vector<16x128xf32>,
    %287 = arith.truncf %284 : vector<16x128xf32> to vector<16x128xbf16>
    %288 = arith.index_cast %c5_i32 : i32 to index
    %c0_142 = arith.constant 0 : index
    %c0_143 = arith.constant 0 : index
    %289 = vector.load %arg5[%288, %c0_142, %c0_143] : memref<16x16x128xbf16, #tpu.memory_space<vmem>>, vector<1x16x128xbf16>
    %290 = vector.shape_cast %289 : vector<1x16x128xbf16> to vector<16x128xbf16>
    %291 = vector.shape_cast %287 : vector<16x128xbf16> to vector<1x16x128xbf16>
    tpu.vector_store %arg5[%288, %c0_142, %c0_143], %291 {strides = array<i32>} : memref<16x16x128xbf16, #tpu.memory_space<vmem>>, vector<1x16x128xbf16>,
    %c6_i32 = arith.constant 6 : i32
    %292 = arith.index_cast %c6_i32 : i32 to index
    %c0_144 = arith.constant 0 : index
    %c0_145 = arith.constant 0 : index
    %293 = vector.load %arg2[%292, %c0_144, %c0_145] : memref<16x16x512xbf16, #tpu.memory_space<vmem>>, vector<1x16x512xbf16>
    %294 = vector.shape_cast %293 : vector<1x16x512xbf16> to vector<16x512xbf16>
    %295 = arith.extf %294 : vector<16x512xbf16> to vector<16x512xf32>
    %c0_146 = arith.constant 0 : index
    %c0_147 = arith.constant 0 : index
    %296 = vector.load %arg6[%c0_146, %c0_147] : memref<16x128xf32, #tpu.memory_space<vmem>>, vector<16x128xf32>
    %297 = arith.truncf %296 : vector<16x128xf32> to vector<16x128xbf16>
    %c0_148 = arith.constant 0 : index
    %c0_149 = arith.constant 0 : index
    %298 = vector.load %arg3[%c0_148, %c0_149] : memref<128x512xbf16, #tpu.memory_space<vmem>>, vector<128x512xbf16>
    %cst_150 = arith.constant dense<0.000000e+00> : vector<16x512xf32>
    %299 = tpu.matmul %297, %298, %cst_150 {dimension_numbers = #tpu.dot_dimension_numbers<[1], [0], [0], [1], [0, 0, 1, 1], [], []>} : vector<16x128xbf16>, vector<128x512xbf16>, vector<16x512xf32> -> vector<16x512xf32>
    %300 = arith.addf %295, %299 : vector<16x512xf32>
    %301 = vector.extract_strided_slice %300 {offsets = [0, 0], sizes = [16, 128], strides = [1, 1]} : vector<16x512xf32> to vector<16x128xf32>
    %cst_151 = arith.constant 5.000000e-01 : f32
    %302 = vector.broadcast %cst_151 : f32 to vector<16x128xf32>
    %303 = arith.mulf %302, %301 : vector<16x128xf32>
    %304 = math.tanh %303 : vector<16x128xf32>
    %cst_152 = arith.constant 5.000000e-01 : f32
    %305 = vector.broadcast %cst_152 : f32 to vector<16x128xf32>
    %306 = arith.mulf %305, %304 : vector<16x128xf32>
    %cst_153 = arith.constant 5.000000e-01 : f32
    %307 = vector.broadcast %cst_153 : f32 to vector<16x128xf32>
    %308 = arith.addf %306, %307 : vector<16x128xf32>
    %309 = vector.extract_strided_slice %300 {offsets = [0, 128], sizes = [16, 128], strides = [1, 1]} : vector<16x512xf32> to vector<16x128xf32>
    %cst_154 = arith.constant 5.000000e-01 : f32
    %310 = vector.broadcast %cst_154 : f32 to vector<16x128xf32>
    %311 = arith.mulf %310, %309 : vector<16x128xf32>
    %312 = math.tanh %311 : vector<16x128xf32>
    %cst_155 = arith.constant 5.000000e-01 : f32
    %313 = vector.broadcast %cst_155 : f32 to vector<16x128xf32>
    %314 = arith.mulf %313, %312 : vector<16x128xf32>
    %cst_156 = arith.constant 5.000000e-01 : f32
    %315 = vector.broadcast %cst_156 : f32 to vector<16x128xf32>
    %316 = arith.addf %314, %315 : vector<16x128xf32>
    %317 = vector.extract_strided_slice %300 {offsets = [0, 256], sizes = [16, 128], strides = [1, 1]} : vector<16x512xf32> to vector<16x128xf32>
    %318 = math.tanh %317 : vector<16x128xf32>
    %319 = vector.extract_strided_slice %300 {offsets = [0, 384], sizes = [16, 128], strides = [1, 1]} : vector<16x512xf32> to vector<16x128xf32>
    %cst_157 = arith.constant 5.000000e-01 : f32
    %320 = vector.broadcast %cst_157 : f32 to vector<16x128xf32>
    %321 = arith.mulf %320, %319 : vector<16x128xf32>
    %322 = math.tanh %321 : vector<16x128xf32>
    %cst_158 = arith.constant 5.000000e-01 : f32
    %323 = vector.broadcast %cst_158 : f32 to vector<16x128xf32>
    %324 = arith.mulf %323, %322 : vector<16x128xf32>
    %cst_159 = arith.constant 5.000000e-01 : f32
    %325 = vector.broadcast %cst_159 : f32 to vector<16x128xf32>
    %326 = arith.addf %324, %325 : vector<16x128xf32>
    %c0_160 = arith.constant 0 : index
    %c0_161 = arith.constant 0 : index
    %327 = vector.load %arg7[%c0_160, %c0_161] : memref<16x128xf32, #tpu.memory_space<vmem>>, vector<16x128xf32>
    %328 = arith.mulf %316, %327 : vector<16x128xf32>
    %329 = arith.mulf %308, %318 : vector<16x128xf32>
    %330 = arith.addf %328, %329 : vector<16x128xf32>
    %331 = math.tanh %330 : vector<16x128xf32>
    %332 = arith.mulf %326, %331 : vector<16x128xf32>
    %c0_162 = arith.constant 0 : index
    %c0_163 = arith.constant 0 : index
    %333 = vector.load %arg7[%c0_162, %c0_163] : memref<16x128xf32, #tpu.memory_space<vmem>>, vector<16x128xf32>
    tpu.vector_store %arg7[%c0_162, %c0_163], %330 {strides = array<i32>} : memref<16x128xf32, #tpu.memory_space<vmem>>, vector<16x128xf32>,
    %c0_164 = arith.constant 0 : index
    %c0_165 = arith.constant 0 : index
    %334 = vector.load %arg6[%c0_164, %c0_165] : memref<16x128xf32, #tpu.memory_space<vmem>>, vector<16x128xf32>
    tpu.vector_store %arg6[%c0_164, %c0_165], %332 {strides = array<i32>} : memref<16x128xf32, #tpu.memory_space<vmem>>, vector<16x128xf32>,
    %335 = arith.truncf %332 : vector<16x128xf32> to vector<16x128xbf16>
    %336 = arith.index_cast %c6_i32 : i32 to index
    %c0_166 = arith.constant 0 : index
    %c0_167 = arith.constant 0 : index
    %337 = vector.load %arg5[%336, %c0_166, %c0_167] : memref<16x16x128xbf16, #tpu.memory_space<vmem>>, vector<1x16x128xbf16>
    %338 = vector.shape_cast %337 : vector<1x16x128xbf16> to vector<16x128xbf16>
    %339 = vector.shape_cast %335 : vector<16x128xbf16> to vector<1x16x128xbf16>
    tpu.vector_store %arg5[%336, %c0_166, %c0_167], %339 {strides = array<i32>} : memref<16x16x128xbf16, #tpu.memory_space<vmem>>, vector<1x16x128xbf16>,
    %c7_i32 = arith.constant 7 : i32
    %340 = arith.index_cast %c7_i32 : i32 to index
    %c0_168 = arith.constant 0 : index
    %c0_169 = arith.constant 0 : index
    %341 = vector.load %arg2[%340, %c0_168, %c0_169] : memref<16x16x512xbf16, #tpu.memory_space<vmem>>, vector<1x16x512xbf16>
    %342 = vector.shape_cast %341 : vector<1x16x512xbf16> to vector<16x512xbf16>
    %343 = arith.extf %342 : vector<16x512xbf16> to vector<16x512xf32>
    %c0_170 = arith.constant 0 : index
    %c0_171 = arith.constant 0 : index
    %344 = vector.load %arg6[%c0_170, %c0_171] : memref<16x128xf32, #tpu.memory_space<vmem>>, vector<16x128xf32>
    %345 = arith.truncf %344 : vector<16x128xf32> to vector<16x128xbf16>
    %c0_172 = arith.constant 0 : index
    %c0_173 = arith.constant 0 : index
    %346 = vector.load %arg3[%c0_172, %c0_173] : memref<128x512xbf16, #tpu.memory_space<vmem>>, vector<128x512xbf16>
    %cst_174 = arith.constant dense<0.000000e+00> : vector<16x512xf32>
    %347 = tpu.matmul %345, %346, %cst_174 {dimension_numbers = #tpu.dot_dimension_numbers<[1], [0], [0], [1], [0, 0, 1, 1], [], []>} : vector<16x128xbf16>, vector<128x512xbf16>, vector<16x512xf32> -> vector<16x512xf32>
    %348 = arith.addf %343, %347 : vector<16x512xf32>
    %349 = vector.extract_strided_slice %348 {offsets = [0, 0], sizes = [16, 128], strides = [1, 1]} : vector<16x512xf32> to vector<16x128xf32>
    %cst_175 = arith.constant 5.000000e-01 : f32
    %350 = vector.broadcast %cst_175 : f32 to vector<16x128xf32>
    %351 = arith.mulf %350, %349 : vector<16x128xf32>
    %352 = math.tanh %351 : vector<16x128xf32>
    %cst_176 = arith.constant 5.000000e-01 : f32
    %353 = vector.broadcast %cst_176 : f32 to vector<16x128xf32>
    %354 = arith.mulf %353, %352 : vector<16x128xf32>
    %cst_177 = arith.constant 5.000000e-01 : f32
    %355 = vector.broadcast %cst_177 : f32 to vector<16x128xf32>
    %356 = arith.addf %354, %355 : vector<16x128xf32>
    %357 = vector.extract_strided_slice %348 {offsets = [0, 128], sizes = [16, 128], strides = [1, 1]} : vector<16x512xf32> to vector<16x128xf32>
    %cst_178 = arith.constant 5.000000e-01 : f32
    %358 = vector.broadcast %cst_178 : f32 to vector<16x128xf32>
    %359 = arith.mulf %358, %357 : vector<16x128xf32>
    %360 = math.tanh %359 : vector<16x128xf32>
    %cst_179 = arith.constant 5.000000e-01 : f32
    %361 = vector.broadcast %cst_179 : f32 to vector<16x128xf32>
    %362 = arith.mulf %361, %360 : vector<16x128xf32>
    %cst_180 = arith.constant 5.000000e-01 : f32
    %363 = vector.broadcast %cst_180 : f32 to vector<16x128xf32>
    %364 = arith.addf %362, %363 : vector<16x128xf32>
    %365 = vector.extract_strided_slice %348 {offsets = [0, 256], sizes = [16, 128], strides = [1, 1]} : vector<16x512xf32> to vector<16x128xf32>
    %366 = math.tanh %365 : vector<16x128xf32>
    %367 = vector.extract_strided_slice %348 {offsets = [0, 384], sizes = [16, 128], strides = [1, 1]} : vector<16x512xf32> to vector<16x128xf32>
    %cst_181 = arith.constant 5.000000e-01 : f32
    %368 = vector.broadcast %cst_181 : f32 to vector<16x128xf32>
    %369 = arith.mulf %368, %367 : vector<16x128xf32>
    %370 = math.tanh %369 : vector<16x128xf32>
    %cst_182 = arith.constant 5.000000e-01 : f32
    %371 = vector.broadcast %cst_182 : f32 to vector<16x128xf32>
    %372 = arith.mulf %371, %370 : vector<16x128xf32>
    %cst_183 = arith.constant 5.000000e-01 : f32
    %373 = vector.broadcast %cst_183 : f32 to vector<16x128xf32>
    %374 = arith.addf %372, %373 : vector<16x128xf32>
    %c0_184 = arith.constant 0 : index
    %c0_185 = arith.constant 0 : index
    %375 = vector.load %arg7[%c0_184, %c0_185] : memref<16x128xf32, #tpu.memory_space<vmem>>, vector<16x128xf32>
    %376 = arith.mulf %364, %375 : vector<16x128xf32>
    %377 = arith.mulf %356, %366 : vector<16x128xf32>
    %378 = arith.addf %376, %377 : vector<16x128xf32>
    %379 = math.tanh %378 : vector<16x128xf32>
    %380 = arith.mulf %374, %379 : vector<16x128xf32>
    %c0_186 = arith.constant 0 : index
    %c0_187 = arith.constant 0 : index
    %381 = vector.load %arg7[%c0_186, %c0_187] : memref<16x128xf32, #tpu.memory_space<vmem>>, vector<16x128xf32>
    tpu.vector_store %arg7[%c0_186, %c0_187], %378 {strides = array<i32>} : memref<16x128xf32, #tpu.memory_space<vmem>>, vector<16x128xf32>,
    %c0_188 = arith.constant 0 : index
    %c0_189 = arith.constant 0 : index
    %382 = vector.load %arg6[%c0_188, %c0_189] : memref<16x128xf32, #tpu.memory_space<vmem>>, vector<16x128xf32>
    tpu.vector_store %arg6[%c0_188, %c0_189], %380 {strides = array<i32>} : memref<16x128xf32, #tpu.memory_space<vmem>>, vector<16x128xf32>,
    %383 = arith.truncf %380 : vector<16x128xf32> to vector<16x128xbf16>
    %384 = arith.index_cast %c7_i32 : i32 to index
    %c0_190 = arith.constant 0 : index
    %c0_191 = arith.constant 0 : index
    %385 = vector.load %arg5[%384, %c0_190, %c0_191] : memref<16x16x128xbf16, #tpu.memory_space<vmem>>, vector<1x16x128xbf16>
    %386 = vector.shape_cast %385 : vector<1x16x128xbf16> to vector<16x128xbf16>
    %387 = vector.shape_cast %383 : vector<16x128xbf16> to vector<1x16x128xbf16>
    tpu.vector_store %arg5[%384, %c0_190, %c0_191], %387 {strides = array<i32>} : memref<16x16x128xbf16, #tpu.memory_space<vmem>>, vector<1x16x128xbf16>,
    %c8_i32 = arith.constant 8 : i32
    %388 = arith.index_cast %c8_i32 : i32 to index
    %c0_192 = arith.constant 0 : index
    %c0_193 = arith.constant 0 : index
    %389 = vector.load %arg2[%388, %c0_192, %c0_193] : memref<16x16x512xbf16, #tpu.memory_space<vmem>>, vector<1x16x512xbf16>
    %390 = vector.shape_cast %389 : vector<1x16x512xbf16> to vector<16x512xbf16>
    %391 = arith.extf %390 : vector<16x512xbf16> to vector<16x512xf32>
    %c0_194 = arith.constant 0 : index
    %c0_195 = arith.constant 0 : index
    %392 = vector.load %arg6[%c0_194, %c0_195] : memref<16x128xf32, #tpu.memory_space<vmem>>, vector<16x128xf32>
    %393 = arith.truncf %392 : vector<16x128xf32> to vector<16x128xbf16>
    %c0_196 = arith.constant 0 : index
    %c0_197 = arith.constant 0 : index
    %394 = vector.load %arg3[%c0_196, %c0_197] : memref<128x512xbf16, #tpu.memory_space<vmem>>, vector<128x512xbf16>
    %cst_198 = arith.constant dense<0.000000e+00> : vector<16x512xf32>
    %395 = tpu.matmul %393, %394, %cst_198 {dimension_numbers = #tpu.dot_dimension_numbers<[1], [0], [0], [1], [0, 0, 1, 1], [], []>} : vector<16x128xbf16>, vector<128x512xbf16>, vector<16x512xf32> -> vector<16x512xf32>
    %396 = arith.addf %391, %395 : vector<16x512xf32>
    %397 = vector.extract_strided_slice %396 {offsets = [0, 0], sizes = [16, 128], strides = [1, 1]} : vector<16x512xf32> to vector<16x128xf32>
    %cst_199 = arith.constant 5.000000e-01 : f32
    %398 = vector.broadcast %cst_199 : f32 to vector<16x128xf32>
    %399 = arith.mulf %398, %397 : vector<16x128xf32>
    %400 = math.tanh %399 : vector<16x128xf32>
    %cst_200 = arith.constant 5.000000e-01 : f32
    %401 = vector.broadcast %cst_200 : f32 to vector<16x128xf32>
    %402 = arith.mulf %401, %400 : vector<16x128xf32>
    %cst_201 = arith.constant 5.000000e-01 : f32
    %403 = vector.broadcast %cst_201 : f32 to vector<16x128xf32>
    %404 = arith.addf %402, %403 : vector<16x128xf32>
    %405 = vector.extract_strided_slice %396 {offsets = [0, 128], sizes = [16, 128], strides = [1, 1]} : vector<16x512xf32> to vector<16x128xf32>
    %cst_202 = arith.constant 5.000000e-01 : f32
    %406 = vector.broadcast %cst_202 : f32 to vector<16x128xf32>
    %407 = arith.mulf %406, %405 : vector<16x128xf32>
    %408 = math.tanh %407 : vector<16x128xf32>
    %cst_203 = arith.constant 5.000000e-01 : f32
    %409 = vector.broadcast %cst_203 : f32 to vector<16x128xf32>
    %410 = arith.mulf %409, %408 : vector<16x128xf32>
    %cst_204 = arith.constant 5.000000e-01 : f32
    %411 = vector.broadcast %cst_204 : f32 to vector<16x128xf32>
    %412 = arith.addf %410, %411 : vector<16x128xf32>
    %413 = vector.extract_strided_slice %396 {offsets = [0, 256], sizes = [16, 128], strides = [1, 1]} : vector<16x512xf32> to vector<16x128xf32>
    %414 = math.tanh %413 : vector<16x128xf32>
    %415 = vector.extract_strided_slice %396 {offsets = [0, 384], sizes = [16, 128], strides = [1, 1]} : vector<16x512xf32> to vector<16x128xf32>
    %cst_205 = arith.constant 5.000000e-01 : f32
    %416 = vector.broadcast %cst_205 : f32 to vector<16x128xf32>
    %417 = arith.mulf %416, %415 : vector<16x128xf32>
    %418 = math.tanh %417 : vector<16x128xf32>
    %cst_206 = arith.constant 5.000000e-01 : f32
    %419 = vector.broadcast %cst_206 : f32 to vector<16x128xf32>
    %420 = arith.mulf %419, %418 : vector<16x128xf32>
    %cst_207 = arith.constant 5.000000e-01 : f32
    %421 = vector.broadcast %cst_207 : f32 to vector<16x128xf32>
    %422 = arith.addf %420, %421 : vector<16x128xf32>
    %c0_208 = arith.constant 0 : index
    %c0_209 = arith.constant 0 : index
    %423 = vector.load %arg7[%c0_208, %c0_209] : memref<16x128xf32, #tpu.memory_space<vmem>>, vector<16x128xf32>
    %424 = arith.mulf %412, %423 : vector<16x128xf32>
    %425 = arith.mulf %404, %414 : vector<16x128xf32>
    %426 = arith.addf %424, %425 : vector<16x128xf32>
    %427 = math.tanh %426 : vector<16x128xf32>
    %428 = arith.mulf %422, %427 : vector<16x128xf32>
    %c0_210 = arith.constant 0 : index
    %c0_211 = arith.constant 0 : index
    %429 = vector.load %arg7[%c0_210, %c0_211] : memref<16x128xf32, #tpu.memory_space<vmem>>, vector<16x128xf32>
    tpu.vector_store %arg7[%c0_210, %c0_211], %426 {strides = array<i32>} : memref<16x128xf32, #tpu.memory_space<vmem>>, vector<16x128xf32>,
    %c0_212 = arith.constant 0 : index
    %c0_213 = arith.constant 0 : index
    %430 = vector.load %arg6[%c0_212, %c0_213] : memref<16x128xf32, #tpu.memory_space<vmem>>, vector<16x128xf32>
    tpu.vector_store %arg6[%c0_212, %c0_213], %428 {strides = array<i32>} : memref<16x128xf32, #tpu.memory_space<vmem>>, vector<16x128xf32>,
    %431 = arith.truncf %428 : vector<16x128xf32> to vector<16x128xbf16>
    %432 = arith.index_cast %c8_i32 : i32 to index
    %c0_214 = arith.constant 0 : index
    %c0_215 = arith.constant 0 : index
    %433 = vector.load %arg5[%432, %c0_214, %c0_215] : memref<16x16x128xbf16, #tpu.memory_space<vmem>>, vector<1x16x128xbf16>
    %434 = vector.shape_cast %433 : vector<1x16x128xbf16> to vector<16x128xbf16>
    %435 = vector.shape_cast %431 : vector<16x128xbf16> to vector<1x16x128xbf16>
    tpu.vector_store %arg5[%432, %c0_214, %c0_215], %435 {strides = array<i32>} : memref<16x16x128xbf16, #tpu.memory_space<vmem>>, vector<1x16x128xbf16>,
    %c9_i32 = arith.constant 9 : i32
    %436 = arith.index_cast %c9_i32 : i32 to index
    %c0_216 = arith.constant 0 : index
    %c0_217 = arith.constant 0 : index
    %437 = vector.load %arg2[%436, %c0_216, %c0_217] : memref<16x16x512xbf16, #tpu.memory_space<vmem>>, vector<1x16x512xbf16>
    %438 = vector.shape_cast %437 : vector<1x16x512xbf16> to vector<16x512xbf16>
    %439 = arith.extf %438 : vector<16x512xbf16> to vector<16x512xf32>
    %c0_218 = arith.constant 0 : index
    %c0_219 = arith.constant 0 : index
    %440 = vector.load %arg6[%c0_218, %c0_219] : memref<16x128xf32, #tpu.memory_space<vmem>>, vector<16x128xf32>
    %441 = arith.truncf %440 : vector<16x128xf32> to vector<16x128xbf16>
    %c0_220 = arith.constant 0 : index
    %c0_221 = arith.constant 0 : index
    %442 = vector.load %arg3[%c0_220, %c0_221] : memref<128x512xbf16, #tpu.memory_space<vmem>>, vector<128x512xbf16>
    %cst_222 = arith.constant dense<0.000000e+00> : vector<16x512xf32>
    %443 = tpu.matmul %441, %442, %cst_222 {dimension_numbers = #tpu.dot_dimension_numbers<[1], [0], [0], [1], [0, 0, 1, 1], [], []>} : vector<16x128xbf16>, vector<128x512xbf16>, vector<16x512xf32> -> vector<16x512xf32>
    %444 = arith.addf %439, %443 : vector<16x512xf32>
    %445 = vector.extract_strided_slice %444 {offsets = [0, 0], sizes = [16, 128], strides = [1, 1]} : vector<16x512xf32> to vector<16x128xf32>
    %cst_223 = arith.constant 5.000000e-01 : f32
    %446 = vector.broadcast %cst_223 : f32 to vector<16x128xf32>
    %447 = arith.mulf %446, %445 : vector<16x128xf32>
    %448 = math.tanh %447 : vector<16x128xf32>
    %cst_224 = arith.constant 5.000000e-01 : f32
    %449 = vector.broadcast %cst_224 : f32 to vector<16x128xf32>
    %450 = arith.mulf %449, %448 : vector<16x128xf32>
    %cst_225 = arith.constant 5.000000e-01 : f32
    %451 = vector.broadcast %cst_225 : f32 to vector<16x128xf32>
    %452 = arith.addf %450, %451 : vector<16x128xf32>
    %453 = vector.extract_strided_slice %444 {offsets = [0, 128], sizes = [16, 128], strides = [1, 1]} : vector<16x512xf32> to vector<16x128xf32>
    %cst_226 = arith.constant 5.000000e-01 : f32
    %454 = vector.broadcast %cst_226 : f32 to vector<16x128xf32>
    %455 = arith.mulf %454, %453 : vector<16x128xf32>
    %456 = math.tanh %455 : vector<16x128xf32>
    %cst_227 = arith.constant 5.000000e-01 : f32
    %457 = vector.broadcast %cst_227 : f32 to vector<16x128xf32>
    %458 = arith.mulf %457, %456 : vector<16x128xf32>
    %cst_228 = arith.constant 5.000000e-01 : f32
    %459 = vector.broadcast %cst_228 : f32 to vector<16x128xf32>
    %460 = arith.addf %458, %459 : vector<16x128xf32>
    %461 = vector.extract_strided_slice %444 {offsets = [0, 256], sizes = [16, 128], strides = [1, 1]} : vector<16x512xf32> to vector<16x128xf32>
    %462 = math.tanh %461 : vector<16x128xf32>
    %463 = vector.extract_strided_slice %444 {offsets = [0, 384], sizes = [16, 128], strides = [1, 1]} : vector<16x512xf32> to vector<16x128xf32>
    %cst_229 = arith.constant 5.000000e-01 : f32
    %464 = vector.broadcast %cst_229 : f32 to vector<16x128xf32>
    %465 = arith.mulf %464, %463 : vector<16x128xf32>
    %466 = math.tanh %465 : vector<16x128xf32>
    %cst_230 = arith.constant 5.000000e-01 : f32
    %467 = vector.broadcast %cst_230 : f32 to vector<16x128xf32>
    %468 = arith.mulf %467, %466 : vector<16x128xf32>
    %cst_231 = arith.constant 5.000000e-01 : f32
    %469 = vector.broadcast %cst_231 : f32 to vector<16x128xf32>
    %470 = arith.addf %468, %469 : vector<16x128xf32>
    %c0_232 = arith.constant 0 : index
    %c0_233 = arith.constant 0 : index
    %471 = vector.load %arg7[%c0_232, %c0_233] : memref<16x128xf32, #tpu.memory_space<vmem>>, vector<16x128xf32>
    %472 = arith.mulf %460, %471 : vector<16x128xf32>
    %473 = arith.mulf %452, %462 : vector<16x128xf32>
    %474 = arith.addf %472, %473 : vector<16x128xf32>
    %475 = math.tanh %474 : vector<16x128xf32>
    %476 = arith.mulf %470, %475 : vector<16x128xf32>
    %c0_234 = arith.constant 0 : index
    %c0_235 = arith.constant 0 : index
    %477 = vector.load %arg7[%c0_234, %c0_235] : memref<16x128xf32, #tpu.memory_space<vmem>>, vector<16x128xf32>
    tpu.vector_store %arg7[%c0_234, %c0_235], %474 {strides = array<i32>} : memref<16x128xf32, #tpu.memory_space<vmem>>, vector<16x128xf32>,
    %c0_236 = arith.constant 0 : index
    %c0_237 = arith.constant 0 : index
    %478 = vector.load %arg6[%c0_236, %c0_237] : memref<16x128xf32, #tpu.memory_space<vmem>>, vector<16x128xf32>
    tpu.vector_store %arg6[%c0_236, %c0_237], %476 {strides = array<i32>} : memref<16x128xf32, #tpu.memory_space<vmem>>, vector<16x128xf32>,
    %479 = arith.truncf %476 : vector<16x128xf32> to vector<16x128xbf16>
    %480 = arith.index_cast %c9_i32 : i32 to index
    %c0_238 = arith.constant 0 : index
    %c0_239 = arith.constant 0 : index
    %481 = vector.load %arg5[%480, %c0_238, %c0_239] : memref<16x16x128xbf16, #tpu.memory_space<vmem>>, vector<1x16x128xbf16>
    %482 = vector.shape_cast %481 : vector<1x16x128xbf16> to vector<16x128xbf16>
    %483 = vector.shape_cast %479 : vector<16x128xbf16> to vector<1x16x128xbf16>
    tpu.vector_store %arg5[%480, %c0_238, %c0_239], %483 {strides = array<i32>} : memref<16x16x128xbf16, #tpu.memory_space<vmem>>, vector<1x16x128xbf16>,
    %c10_i32 = arith.constant 10 : i32
    %484 = arith.index_cast %c10_i32 : i32 to index
    %c0_240 = arith.constant 0 : index
    %c0_241 = arith.constant 0 : index
    %485 = vector.load %arg2[%484, %c0_240, %c0_241] : memref<16x16x512xbf16, #tpu.memory_space<vmem>>, vector<1x16x512xbf16>
    %486 = vector.shape_cast %485 : vector<1x16x512xbf16> to vector<16x512xbf16>
    %487 = arith.extf %486 : vector<16x512xbf16> to vector<16x512xf32>
    %c0_242 = arith.constant 0 : index
    %c0_243 = arith.constant 0 : index
    %488 = vector.load %arg6[%c0_242, %c0_243] : memref<16x128xf32, #tpu.memory_space<vmem>>, vector<16x128xf32>
    %489 = arith.truncf %488 : vector<16x128xf32> to vector<16x128xbf16>
    %c0_244 = arith.constant 0 : index
    %c0_245 = arith.constant 0 : index
    %490 = vector.load %arg3[%c0_244, %c0_245] : memref<128x512xbf16, #tpu.memory_space<vmem>>, vector<128x512xbf16>
    %cst_246 = arith.constant dense<0.000000e+00> : vector<16x512xf32>
    %491 = tpu.matmul %489, %490, %cst_246 {dimension_numbers = #tpu.dot_dimension_numbers<[1], [0], [0], [1], [0, 0, 1, 1], [], []>} : vector<16x128xbf16>, vector<128x512xbf16>, vector<16x512xf32> -> vector<16x512xf32>
    %492 = arith.addf %487, %491 : vector<16x512xf32>
    %493 = vector.extract_strided_slice %492 {offsets = [0, 0], sizes = [16, 128], strides = [1, 1]} : vector<16x512xf32> to vector<16x128xf32>
    %cst_247 = arith.constant 5.000000e-01 : f32
    %494 = vector.broadcast %cst_247 : f32 to vector<16x128xf32>
    %495 = arith.mulf %494, %493 : vector<16x128xf32>
    %496 = math.tanh %495 : vector<16x128xf32>
    %cst_248 = arith.constant 5.000000e-01 : f32
    %497 = vector.broadcast %cst_248 : f32 to vector<16x128xf32>
    %498 = arith.mulf %497, %496 : vector<16x128xf32>
    %cst_249 = arith.constant 5.000000e-01 : f32
    %499 = vector.broadcast %cst_249 : f32 to vector<16x128xf32>
    %500 = arith.addf %498, %499 : vector<16x128xf32>
    %501 = vector.extract_strided_slice %492 {offsets = [0, 128], sizes = [16, 128], strides = [1, 1]} : vector<16x512xf32> to vector<16x128xf32>
    %cst_250 = arith.constant 5.000000e-01 : f32
    %502 = vector.broadcast %cst_250 : f32 to vector<16x128xf32>
    %503 = arith.mulf %502, %501 : vector<16x128xf32>
    %504 = math.tanh %503 : vector<16x128xf32>
    %cst_251 = arith.constant 5.000000e-01 : f32
    %505 = vector.broadcast %cst_251 : f32 to vector<16x128xf32>
    %506 = arith.mulf %505, %504 : vector<16x128xf32>
    %cst_252 = arith.constant 5.000000e-01 : f32
    %507 = vector.broadcast %cst_252 : f32 to vector<16x128xf32>
    %508 = arith.addf %506, %507 : vector<16x128xf32>
    %509 = vector.extract_strided_slice %492 {offsets = [0, 256], sizes = [16, 128], strides = [1, 1]} : vector<16x512xf32> to vector<16x128xf32>
    %510 = math.tanh %509 : vector<16x128xf32>
    %511 = vector.extract_strided_slice %492 {offsets = [0, 384], sizes = [16, 128], strides = [1, 1]} : vector<16x512xf32> to vector<16x128xf32>
    %cst_253 = arith.constant 5.000000e-01 : f32
    %512 = vector.broadcast %cst_253 : f32 to vector<16x128xf32>
    %513 = arith.mulf %512, %511 : vector<16x128xf32>
    %514 = math.tanh %513 : vector<16x128xf32>
    %cst_254 = arith.constant 5.000000e-01 : f32
    %515 = vector.broadcast %cst_254 : f32 to vector<16x128xf32>
    %516 = arith.mulf %515, %514 : vector<16x128xf32>
    %cst_255 = arith.constant 5.000000e-01 : f32
    %517 = vector.broadcast %cst_255 : f32 to vector<16x128xf32>
    %518 = arith.addf %516, %517 : vector<16x128xf32>
    %c0_256 = arith.constant 0 : index
    %c0_257 = arith.constant 0 : index
    %519 = vector.load %arg7[%c0_256, %c0_257] : memref<16x128xf32, #tpu.memory_space<vmem>>, vector<16x128xf32>
    %520 = arith.mulf %508, %519 : vector<16x128xf32>
    %521 = arith.mulf %500, %510 : vector<16x128xf32>
    %522 = arith.addf %520, %521 : vector<16x128xf32>
    %523 = math.tanh %522 : vector<16x128xf32>
    %524 = arith.mulf %518, %523 : vector<16x128xf32>
    %c0_258 = arith.constant 0 : index
    %c0_259 = arith.constant 0 : index
    %525 = vector.load %arg7[%c0_258, %c0_259] : memref<16x128xf32, #tpu.memory_space<vmem>>, vector<16x128xf32>
    tpu.vector_store %arg7[%c0_258, %c0_259], %522 {strides = array<i32>} : memref<16x128xf32, #tpu.memory_space<vmem>>, vector<16x128xf32>,
    %c0_260 = arith.constant 0 : index
    %c0_261 = arith.constant 0 : index
    %526 = vector.load %arg6[%c0_260, %c0_261] : memref<16x128xf32, #tpu.memory_space<vmem>>, vector<16x128xf32>
    tpu.vector_store %arg6[%c0_260, %c0_261], %524 {strides = array<i32>} : memref<16x128xf32, #tpu.memory_space<vmem>>, vector<16x128xf32>,
    %527 = arith.truncf %524 : vector<16x128xf32> to vector<16x128xbf16>
    %528 = arith.index_cast %c10_i32 : i32 to index
    %c0_262 = arith.constant 0 : index
    %c0_263 = arith.constant 0 : index
    %529 = vector.load %arg5[%528, %c0_262, %c0_263] : memref<16x16x128xbf16, #tpu.memory_space<vmem>>, vector<1x16x128xbf16>
    %530 = vector.shape_cast %529 : vector<1x16x128xbf16> to vector<16x128xbf16>
    %531 = vector.shape_cast %527 : vector<16x128xbf16> to vector<1x16x128xbf16>
    tpu.vector_store %arg5[%528, %c0_262, %c0_263], %531 {strides = array<i32>} : memref<16x16x128xbf16, #tpu.memory_space<vmem>>, vector<1x16x128xbf16>,
    %c11_i32 = arith.constant 11 : i32
    %532 = arith.index_cast %c11_i32 : i32 to index
    %c0_264 = arith.constant 0 : index
    %c0_265 = arith.constant 0 : index
    %533 = vector.load %arg2[%532, %c0_264, %c0_265] : memref<16x16x512xbf16, #tpu.memory_space<vmem>>, vector<1x16x512xbf16>
    %534 = vector.shape_cast %533 : vector<1x16x512xbf16> to vector<16x512xbf16>
    %535 = arith.extf %534 : vector<16x512xbf16> to vector<16x512xf32>
    %c0_266 = arith.constant 0 : index
    %c0_267 = arith.constant 0 : index
    %536 = vector.load %arg6[%c0_266, %c0_267] : memref<16x128xf32, #tpu.memory_space<vmem>>, vector<16x128xf32>
    %537 = arith.truncf %536 : vector<16x128xf32> to vector<16x128xbf16>
    %c0_268 = arith.constant 0 : index
    %c0_269 = arith.constant 0 : index
    %538 = vector.load %arg3[%c0_268, %c0_269] : memref<128x512xbf16, #tpu.memory_space<vmem>>, vector<128x512xbf16>
    %cst_270 = arith.constant dense<0.000000e+00> : vector<16x512xf32>
    %539 = tpu.matmul %537, %538, %cst_270 {dimension_numbers = #tpu.dot_dimension_numbers<[1], [0], [0], [1], [0, 0, 1, 1], [], []>} : vector<16x128xbf16>, vector<128x512xbf16>, vector<16x512xf32> -> vector<16x512xf32>
    %540 = arith.addf %535, %539 : vector<16x512xf32>
    %541 = vector.extract_strided_slice %540 {offsets = [0, 0], sizes = [16, 128], strides = [1, 1]} : vector<16x512xf32> to vector<16x128xf32>
    %cst_271 = arith.constant 5.000000e-01 : f32
    %542 = vector.broadcast %cst_271 : f32 to vector<16x128xf32>
    %543 = arith.mulf %542, %541 : vector<16x128xf32>
    %544 = math.tanh %543 : vector<16x128xf32>
    %cst_272 = arith.constant 5.000000e-01 : f32
    %545 = vector.broadcast %cst_272 : f32 to vector<16x128xf32>
    %546 = arith.mulf %545, %544 : vector<16x128xf32>
    %cst_273 = arith.constant 5.000000e-01 : f32
    %547 = vector.broadcast %cst_273 : f32 to vector<16x128xf32>
    %548 = arith.addf %546, %547 : vector<16x128xf32>
    %549 = vector.extract_strided_slice %540 {offsets = [0, 128], sizes = [16, 128], strides = [1, 1]} : vector<16x512xf32> to vector<16x128xf32>
    %cst_274 = arith.constant 5.000000e-01 : f32
    %550 = vector.broadcast %cst_274 : f32 to vector<16x128xf32>
    %551 = arith.mulf %550, %549 : vector<16x128xf32>
    %552 = math.tanh %551 : vector<16x128xf32>
    %cst_275 = arith.constant 5.000000e-01 : f32
    %553 = vector.broadcast %cst_275 : f32 to vector<16x128xf32>
    %554 = arith.mulf %553, %552 : vector<16x128xf32>
    %cst_276 = arith.constant 5.000000e-01 : f32
    %555 = vector.broadcast %cst_276 : f32 to vector<16x128xf32>
    %556 = arith.addf %554, %555 : vector<16x128xf32>
    %557 = vector.extract_strided_slice %540 {offsets = [0, 256], sizes = [16, 128], strides = [1, 1]} : vector<16x512xf32> to vector<16x128xf32>
    %558 = math.tanh %557 : vector<16x128xf32>
    %559 = vector.extract_strided_slice %540 {offsets = [0, 384], sizes = [16, 128], strides = [1, 1]} : vector<16x512xf32> to vector<16x128xf32>
    %cst_277 = arith.constant 5.000000e-01 : f32
    %560 = vector.broadcast %cst_277 : f32 to vector<16x128xf32>
    %561 = arith.mulf %560, %559 : vector<16x128xf32>
    %562 = math.tanh %561 : vector<16x128xf32>
    %cst_278 = arith.constant 5.000000e-01 : f32
    %563 = vector.broadcast %cst_278 : f32 to vector<16x128xf32>
    %564 = arith.mulf %563, %562 : vector<16x128xf32>
    %cst_279 = arith.constant 5.000000e-01 : f32
    %565 = vector.broadcast %cst_279 : f32 to vector<16x128xf32>
    %566 = arith.addf %564, %565 : vector<16x128xf32>
    %c0_280 = arith.constant 0 : index
    %c0_281 = arith.constant 0 : index
    %567 = vector.load %arg7[%c0_280, %c0_281] : memref<16x128xf32, #tpu.memory_space<vmem>>, vector<16x128xf32>
    %568 = arith.mulf %556, %567 : vector<16x128xf32>
    %569 = arith.mulf %548, %558 : vector<16x128xf32>
    %570 = arith.addf %568, %569 : vector<16x128xf32>
    %571 = math.tanh %570 : vector<16x128xf32>
    %572 = arith.mulf %566, %571 : vector<16x128xf32>
    %c0_282 = arith.constant 0 : index
    %c0_283 = arith.constant 0 : index
    %573 = vector.load %arg7[%c0_282, %c0_283] : memref<16x128xf32, #tpu.memory_space<vmem>>, vector<16x128xf32>
    tpu.vector_store %arg7[%c0_282, %c0_283], %570 {strides = array<i32>} : memref<16x128xf32, #tpu.memory_space<vmem>>, vector<16x128xf32>,
    %c0_284 = arith.constant 0 : index
    %c0_285 = arith.constant 0 : index
    %574 = vector.load %arg6[%c0_284, %c0_285] : memref<16x128xf32, #tpu.memory_space<vmem>>, vector<16x128xf32>
    tpu.vector_store %arg6[%c0_284, %c0_285], %572 {strides = array<i32>} : memref<16x128xf32, #tpu.memory_space<vmem>>, vector<16x128xf32>,
    %575 = arith.truncf %572 : vector<16x128xf32> to vector<16x128xbf16>
    %576 = arith.index_cast %c11_i32 : i32 to index
    %c0_286 = arith.constant 0 : index
    %c0_287 = arith.constant 0 : index
    %577 = vector.load %arg5[%576, %c0_286, %c0_287] : memref<16x16x128xbf16, #tpu.memory_space<vmem>>, vector<1x16x128xbf16>
    %578 = vector.shape_cast %577 : vector<1x16x128xbf16> to vector<16x128xbf16>
    %579 = vector.shape_cast %575 : vector<16x128xbf16> to vector<1x16x128xbf16>
    tpu.vector_store %arg5[%576, %c0_286, %c0_287], %579 {strides = array<i32>} : memref<16x16x128xbf16, #tpu.memory_space<vmem>>, vector<1x16x128xbf16>,
    %c12_i32 = arith.constant 12 : i32
    %580 = arith.index_cast %c12_i32 : i32 to index
    %c0_288 = arith.constant 0 : index
    %c0_289 = arith.constant 0 : index
    %581 = vector.load %arg2[%580, %c0_288, %c0_289] : memref<16x16x512xbf16, #tpu.memory_space<vmem>>, vector<1x16x512xbf16>
    %582 = vector.shape_cast %581 : vector<1x16x512xbf16> to vector<16x512xbf16>
    %583 = arith.extf %582 : vector<16x512xbf16> to vector<16x512xf32>
    %c0_290 = arith.constant 0 : index
    %c0_291 = arith.constant 0 : index
    %584 = vector.load %arg6[%c0_290, %c0_291] : memref<16x128xf32, #tpu.memory_space<vmem>>, vector<16x128xf32>
    %585 = arith.truncf %584 : vector<16x128xf32> to vector<16x128xbf16>
    %c0_292 = arith.constant 0 : index
    %c0_293 = arith.constant 0 : index
    %586 = vector.load %arg3[%c0_292, %c0_293] : memref<128x512xbf16, #tpu.memory_space<vmem>>, vector<128x512xbf16>
    %cst_294 = arith.constant dense<0.000000e+00> : vector<16x512xf32>
    %587 = tpu.matmul %585, %586, %cst_294 {dimension_numbers = #tpu.dot_dimension_numbers<[1], [0], [0], [1], [0, 0, 1, 1], [], []>} : vector<16x128xbf16>, vector<128x512xbf16>, vector<16x512xf32> -> vector<16x512xf32>
    %588 = arith.addf %583, %587 : vector<16x512xf32>
    %589 = vector.extract_strided_slice %588 {offsets = [0, 0], sizes = [16, 128], strides = [1, 1]} : vector<16x512xf32> to vector<16x128xf32>
    %cst_295 = arith.constant 5.000000e-01 : f32
    %590 = vector.broadcast %cst_295 : f32 to vector<16x128xf32>
    %591 = arith.mulf %590, %589 : vector<16x128xf32>
    %592 = math.tanh %591 : vector<16x128xf32>
    %cst_296 = arith.constant 5.000000e-01 : f32
    %593 = vector.broadcast %cst_296 : f32 to vector<16x128xf32>
    %594 = arith.mulf %593, %592 : vector<16x128xf32>
    %cst_297 = arith.constant 5.000000e-01 : f32
    %595 = vector.broadcast %cst_297 : f32 to vector<16x128xf32>
    %596 = arith.addf %594, %595 : vector<16x128xf32>
    %597 = vector.extract_strided_slice %588 {offsets = [0, 128], sizes = [16, 128], strides = [1, 1]} : vector<16x512xf32> to vector<16x128xf32>
    %cst_298 = arith.constant 5.000000e-01 : f32
    %598 = vector.broadcast %cst_298 : f32 to vector<16x128xf32>
    %599 = arith.mulf %598, %597 : vector<16x128xf32>
    %600 = math.tanh %599 : vector<16x128xf32>
    %cst_299 = arith.constant 5.000000e-01 : f32
    %601 = vector.broadcast %cst_299 : f32 to vector<16x128xf32>
    %602 = arith.mulf %601, %600 : vector<16x128xf32>
    %cst_300 = arith.constant 5.000000e-01 : f32
    %603 = vector.broadcast %cst_300 : f32 to vector<16x128xf32>
    %604 = arith.addf %602, %603 : vector<16x128xf32>
    %605 = vector.extract_strided_slice %588 {offsets = [0, 256], sizes = [16, 128], strides = [1, 1]} : vector<16x512xf32> to vector<16x128xf32>
    %606 = math.tanh %605 : vector<16x128xf32>
    %607 = vector.extract_strided_slice %588 {offsets = [0, 384], sizes = [16, 128], strides = [1, 1]} : vector<16x512xf32> to vector<16x128xf32>
    %cst_301 = arith.constant 5.000000e-01 : f32
    %608 = vector.broadcast %cst_301 : f32 to vector<16x128xf32>
    %609 = arith.mulf %608, %607 : vector<16x128xf32>
    %610 = math.tanh %609 : vector<16x128xf32>
    %cst_302 = arith.constant 5.000000e-01 : f32
    %611 = vector.broadcast %cst_302 : f32 to vector<16x128xf32>
    %612 = arith.mulf %611, %610 : vector<16x128xf32>
    %cst_303 = arith.constant 5.000000e-01 : f32
    %613 = vector.broadcast %cst_303 : f32 to vector<16x128xf32>
    %614 = arith.addf %612, %613 : vector<16x128xf32>
    %c0_304 = arith.constant 0 : index
    %c0_305 = arith.constant 0 : index
    %615 = vector.load %arg7[%c0_304, %c0_305] : memref<16x128xf32, #tpu.memory_space<vmem>>, vector<16x128xf32>
    %616 = arith.mulf %604, %615 : vector<16x128xf32>
    %617 = arith.mulf %596, %606 : vector<16x128xf32>
    %618 = arith.addf %616, %617 : vector<16x128xf32>
    %619 = math.tanh %618 : vector<16x128xf32>
    %620 = arith.mulf %614, %619 : vector<16x128xf32>
    %c0_306 = arith.constant 0 : index
    %c0_307 = arith.constant 0 : index
    %621 = vector.load %arg7[%c0_306, %c0_307] : memref<16x128xf32, #tpu.memory_space<vmem>>, vector<16x128xf32>
    tpu.vector_store %arg7[%c0_306, %c0_307], %618 {strides = array<i32>} : memref<16x128xf32, #tpu.memory_space<vmem>>, vector<16x128xf32>,
    %c0_308 = arith.constant 0 : index
    %c0_309 = arith.constant 0 : index
    %622 = vector.load %arg6[%c0_308, %c0_309] : memref<16x128xf32, #tpu.memory_space<vmem>>, vector<16x128xf32>
    tpu.vector_store %arg6[%c0_308, %c0_309], %620 {strides = array<i32>} : memref<16x128xf32, #tpu.memory_space<vmem>>, vector<16x128xf32>,
    %623 = arith.truncf %620 : vector<16x128xf32> to vector<16x128xbf16>
    %624 = arith.index_cast %c12_i32 : i32 to index
    %c0_310 = arith.constant 0 : index
    %c0_311 = arith.constant 0 : index
    %625 = vector.load %arg5[%624, %c0_310, %c0_311] : memref<16x16x128xbf16, #tpu.memory_space<vmem>>, vector<1x16x128xbf16>
    %626 = vector.shape_cast %625 : vector<1x16x128xbf16> to vector<16x128xbf16>
    %627 = vector.shape_cast %623 : vector<16x128xbf16> to vector<1x16x128xbf16>
    tpu.vector_store %arg5[%624, %c0_310, %c0_311], %627 {strides = array<i32>} : memref<16x16x128xbf16, #tpu.memory_space<vmem>>, vector<1x16x128xbf16>,
    %c13_i32 = arith.constant 13 : i32
    %628 = arith.index_cast %c13_i32 : i32 to index
    %c0_312 = arith.constant 0 : index
    %c0_313 = arith.constant 0 : index
    %629 = vector.load %arg2[%628, %c0_312, %c0_313] : memref<16x16x512xbf16, #tpu.memory_space<vmem>>, vector<1x16x512xbf16>
    %630 = vector.shape_cast %629 : vector<1x16x512xbf16> to vector<16x512xbf16>
    %631 = arith.extf %630 : vector<16x512xbf16> to vector<16x512xf32>
    %c0_314 = arith.constant 0 : index
    %c0_315 = arith.constant 0 : index
    %632 = vector.load %arg6[%c0_314, %c0_315] : memref<16x128xf32, #tpu.memory_space<vmem>>, vector<16x128xf32>
    %633 = arith.truncf %632 : vector<16x128xf32> to vector<16x128xbf16>
    %c0_316 = arith.constant 0 : index
    %c0_317 = arith.constant 0 : index
    %634 = vector.load %arg3[%c0_316, %c0_317] : memref<128x512xbf16, #tpu.memory_space<vmem>>, vector<128x512xbf16>
    %cst_318 = arith.constant dense<0.000000e+00> : vector<16x512xf32>
    %635 = tpu.matmul %633, %634, %cst_318 {dimension_numbers = #tpu.dot_dimension_numbers<[1], [0], [0], [1], [0, 0, 1, 1], [], []>} : vector<16x128xbf16>, vector<128x512xbf16>, vector<16x512xf32> -> vector<16x512xf32>
    %636 = arith.addf %631, %635 : vector<16x512xf32>
    %637 = vector.extract_strided_slice %636 {offsets = [0, 0], sizes = [16, 128], strides = [1, 1]} : vector<16x512xf32> to vector<16x128xf32>
    %cst_319 = arith.constant 5.000000e-01 : f32
    %638 = vector.broadcast %cst_319 : f32 to vector<16x128xf32>
    %639 = arith.mulf %638, %637 : vector<16x128xf32>
    %640 = math.tanh %639 : vector<16x128xf32>
    %cst_320 = arith.constant 5.000000e-01 : f32
    %641 = vector.broadcast %cst_320 : f32 to vector<16x128xf32>
    %642 = arith.mulf %641, %640 : vector<16x128xf32>
    %cst_321 = arith.constant 5.000000e-01 : f32
    %643 = vector.broadcast %cst_321 : f32 to vector<16x128xf32>
    %644 = arith.addf %642, %643 : vector<16x128xf32>
    %645 = vector.extract_strided_slice %636 {offsets = [0, 128], sizes = [16, 128], strides = [1, 1]} : vector<16x512xf32> to vector<16x128xf32>
    %cst_322 = arith.constant 5.000000e-01 : f32
    %646 = vector.broadcast %cst_322 : f32 to vector<16x128xf32>
    %647 = arith.mulf %646, %645 : vector<16x128xf32>
    %648 = math.tanh %647 : vector<16x128xf32>
    %cst_323 = arith.constant 5.000000e-01 : f32
    %649 = vector.broadcast %cst_323 : f32 to vector<16x128xf32>
    %650 = arith.mulf %649, %648 : vector<16x128xf32>
    %cst_324 = arith.constant 5.000000e-01 : f32
    %651 = vector.broadcast %cst_324 : f32 to vector<16x128xf32>
    %652 = arith.addf %650, %651 : vector<16x128xf32>
    %653 = vector.extract_strided_slice %636 {offsets = [0, 256], sizes = [16, 128], strides = [1, 1]} : vector<16x512xf32> to vector<16x128xf32>
    %654 = math.tanh %653 : vector<16x128xf32>
    %655 = vector.extract_strided_slice %636 {offsets = [0, 384], sizes = [16, 128], strides = [1, 1]} : vector<16x512xf32> to vector<16x128xf32>
    %cst_325 = arith.constant 5.000000e-01 : f32
    %656 = vector.broadcast %cst_325 : f32 to vector<16x128xf32>
    %657 = arith.mulf %656, %655 : vector<16x128xf32>
    %658 = math.tanh %657 : vector<16x128xf32>
    %cst_326 = arith.constant 5.000000e-01 : f32
    %659 = vector.broadcast %cst_326 : f32 to vector<16x128xf32>
    %660 = arith.mulf %659, %658 : vector<16x128xf32>
    %cst_327 = arith.constant 5.000000e-01 : f32
    %661 = vector.broadcast %cst_327 : f32 to vector<16x128xf32>
    %662 = arith.addf %660, %661 : vector<16x128xf32>
    %c0_328 = arith.constant 0 : index
    %c0_329 = arith.constant 0 : index
    %663 = vector.load %arg7[%c0_328, %c0_329] : memref<16x128xf32, #tpu.memory_space<vmem>>, vector<16x128xf32>
    %664 = arith.mulf %652, %663 : vector<16x128xf32>
    %665 = arith.mulf %644, %654 : vector<16x128xf32>
    %666 = arith.addf %664, %665 : vector<16x128xf32>
    %667 = math.tanh %666 : vector<16x128xf32>
    %668 = arith.mulf %662, %667 : vector<16x128xf32>
    %c0_330 = arith.constant 0 : index
    %c0_331 = arith.constant 0 : index
    %669 = vector.load %arg7[%c0_330, %c0_331] : memref<16x128xf32, #tpu.memory_space<vmem>>, vector<16x128xf32>
    tpu.vector_store %arg7[%c0_330, %c0_331], %666 {strides = array<i32>} : memref<16x128xf32, #tpu.memory_space<vmem>>, vector<16x128xf32>,
    %c0_332 = arith.constant 0 : index
    %c0_333 = arith.constant 0 : index
    %670 = vector.load %arg6[%c0_332, %c0_333] : memref<16x128xf32, #tpu.memory_space<vmem>>, vector<16x128xf32>
    tpu.vector_store %arg6[%c0_332, %c0_333], %668 {strides = array<i32>} : memref<16x128xf32, #tpu.memory_space<vmem>>, vector<16x128xf32>,
    %671 = arith.truncf %668 : vector<16x128xf32> to vector<16x128xbf16>
    %672 = arith.index_cast %c13_i32 : i32 to index
    %c0_334 = arith.constant 0 : index
    %c0_335 = arith.constant 0 : index
    %673 = vector.load %arg5[%672, %c0_334, %c0_335] : memref<16x16x128xbf16, #tpu.memory_space<vmem>>, vector<1x16x128xbf16>
    %674 = vector.shape_cast %673 : vector<1x16x128xbf16> to vector<16x128xbf16>
    %675 = vector.shape_cast %671 : vector<16x128xbf16> to vector<1x16x128xbf16>
    tpu.vector_store %arg5[%672, %c0_334, %c0_335], %675 {strides = array<i32>} : memref<16x16x128xbf16, #tpu.memory_space<vmem>>, vector<1x16x128xbf16>,
    %c14_i32 = arith.constant 14 : i32
    %676 = arith.index_cast %c14_i32 : i32 to index
    %c0_336 = arith.constant 0 : index
    %c0_337 = arith.constant 0 : index
    %677 = vector.load %arg2[%676, %c0_336, %c0_337] : memref<16x16x512xbf16, #tpu.memory_space<vmem>>, vector<1x16x512xbf16>
    %678 = vector.shape_cast %677 : vector<1x16x512xbf16> to vector<16x512xbf16>
    %679 = arith.extf %678 : vector<16x512xbf16> to vector<16x512xf32>
    %c0_338 = arith.constant 0 : index
    %c0_339 = arith.constant 0 : index
    %680 = vector.load %arg6[%c0_338, %c0_339] : memref<16x128xf32, #tpu.memory_space<vmem>>, vector<16x128xf32>
    %681 = arith.truncf %680 : vector<16x128xf32> to vector<16x128xbf16>
    %c0_340 = arith.constant 0 : index
    %c0_341 = arith.constant 0 : index
    %682 = vector.load %arg3[%c0_340, %c0_341] : memref<128x512xbf16, #tpu.memory_space<vmem>>, vector<128x512xbf16>
    %cst_342 = arith.constant dense<0.000000e+00> : vector<16x512xf32>
    %683 = tpu.matmul %681, %682, %cst_342 {dimension_numbers = #tpu.dot_dimension_numbers<[1], [0], [0], [1], [0, 0, 1, 1], [], []>} : vector<16x128xbf16>, vector<128x512xbf16>, vector<16x512xf32> -> vector<16x512xf32>
    %684 = arith.addf %679, %683 : vector<16x512xf32>
    %685 = vector.extract_strided_slice %684 {offsets = [0, 0], sizes = [16, 128], strides = [1, 1]} : vector<16x512xf32> to vector<16x128xf32>
    %cst_343 = arith.constant 5.000000e-01 : f32
    %686 = vector.broadcast %cst_343 : f32 to vector<16x128xf32>
    %687 = arith.mulf %686, %685 : vector<16x128xf32>
    %688 = math.tanh %687 : vector<16x128xf32>
    %cst_344 = arith.constant 5.000000e-01 : f32
    %689 = vector.broadcast %cst_344 : f32 to vector<16x128xf32>
    %690 = arith.mulf %689, %688 : vector<16x128xf32>
    %cst_345 = arith.constant 5.000000e-01 : f32
    %691 = vector.broadcast %cst_345 : f32 to vector<16x128xf32>
    %692 = arith.addf %690, %691 : vector<16x128xf32>
    %693 = vector.extract_strided_slice %684 {offsets = [0, 128], sizes = [16, 128], strides = [1, 1]} : vector<16x512xf32> to vector<16x128xf32>
    %cst_346 = arith.constant 5.000000e-01 : f32
    %694 = vector.broadcast %cst_346 : f32 to vector<16x128xf32>
    %695 = arith.mulf %694, %693 : vector<16x128xf32>
    %696 = math.tanh %695 : vector<16x128xf32>
    %cst_347 = arith.constant 5.000000e-01 : f32
    %697 = vector.broadcast %cst_347 : f32 to vector<16x128xf32>
    %698 = arith.mulf %697, %696 : vector<16x128xf32>
    %cst_348 = arith.constant 5.000000e-01 : f32
    %699 = vector.broadcast %cst_348 : f32 to vector<16x128xf32>
    %700 = arith.addf %698, %699 : vector<16x128xf32>
    %701 = vector.extract_strided_slice %684 {offsets = [0, 256], sizes = [16, 128], strides = [1, 1]} : vector<16x512xf32> to vector<16x128xf32>
    %702 = math.tanh %701 : vector<16x128xf32>
    %703 = vector.extract_strided_slice %684 {offsets = [0, 384], sizes = [16, 128], strides = [1, 1]} : vector<16x512xf32> to vector<16x128xf32>
    %cst_349 = arith.constant 5.000000e-01 : f32
    %704 = vector.broadcast %cst_349 : f32 to vector<16x128xf32>
    %705 = arith.mulf %704, %703 : vector<16x128xf32>
    %706 = math.tanh %705 : vector<16x128xf32>
    %cst_350 = arith.constant 5.000000e-01 : f32
    %707 = vector.broadcast %cst_350 : f32 to vector<16x128xf32>
    %708 = arith.mulf %707, %706 : vector<16x128xf32>
    %cst_351 = arith.constant 5.000000e-01 : f32
    %709 = vector.broadcast %cst_351 : f32 to vector<16x128xf32>
    %710 = arith.addf %708, %709 : vector<16x128xf32>
    %c0_352 = arith.constant 0 : index
    %c0_353 = arith.constant 0 : index
    %711 = vector.load %arg7[%c0_352, %c0_353] : memref<16x128xf32, #tpu.memory_space<vmem>>, vector<16x128xf32>
    %712 = arith.mulf %700, %711 : vector<16x128xf32>
    %713 = arith.mulf %692, %702 : vector<16x128xf32>
    %714 = arith.addf %712, %713 : vector<16x128xf32>
    %715 = math.tanh %714 : vector<16x128xf32>
    %716 = arith.mulf %710, %715 : vector<16x128xf32>
    %c0_354 = arith.constant 0 : index
    %c0_355 = arith.constant 0 : index
    %717 = vector.load %arg7[%c0_354, %c0_355] : memref<16x128xf32, #tpu.memory_space<vmem>>, vector<16x128xf32>
    tpu.vector_store %arg7[%c0_354, %c0_355], %714 {strides = array<i32>} : memref<16x128xf32, #tpu.memory_space<vmem>>, vector<16x128xf32>,
    %c0_356 = arith.constant 0 : index
    %c0_357 = arith.constant 0 : index
    %718 = vector.load %arg6[%c0_356, %c0_357] : memref<16x128xf32, #tpu.memory_space<vmem>>, vector<16x128xf32>
    tpu.vector_store %arg6[%c0_356, %c0_357], %716 {strides = array<i32>} : memref<16x128xf32, #tpu.memory_space<vmem>>, vector<16x128xf32>,
    %719 = arith.truncf %716 : vector<16x128xf32> to vector<16x128xbf16>
    %720 = arith.index_cast %c14_i32 : i32 to index
    %c0_358 = arith.constant 0 : index
    %c0_359 = arith.constant 0 : index
    %721 = vector.load %arg5[%720, %c0_358, %c0_359] : memref<16x16x128xbf16, #tpu.memory_space<vmem>>, vector<1x16x128xbf16>
    %722 = vector.shape_cast %721 : vector<1x16x128xbf16> to vector<16x128xbf16>
    %723 = vector.shape_cast %719 : vector<16x128xbf16> to vector<1x16x128xbf16>
    tpu.vector_store %arg5[%720, %c0_358, %c0_359], %723 {strides = array<i32>} : memref<16x16x128xbf16, #tpu.memory_space<vmem>>, vector<1x16x128xbf16>,
    %c15_i32 = arith.constant 15 : i32
    %724 = arith.index_cast %c15_i32 : i32 to index
    %c0_360 = arith.constant 0 : index
    %c0_361 = arith.constant 0 : index
    %725 = vector.load %arg2[%724, %c0_360, %c0_361] : memref<16x16x512xbf16, #tpu.memory_space<vmem>>, vector<1x16x512xbf16>
    %726 = vector.shape_cast %725 : vector<1x16x512xbf16> to vector<16x512xbf16>
    %727 = arith.extf %726 : vector<16x512xbf16> to vector<16x512xf32>
    %c0_362 = arith.constant 0 : index
    %c0_363 = arith.constant 0 : index
    %728 = vector.load %arg6[%c0_362, %c0_363] : memref<16x128xf32, #tpu.memory_space<vmem>>, vector<16x128xf32>
    %729 = arith.truncf %728 : vector<16x128xf32> to vector<16x128xbf16>
    %c0_364 = arith.constant 0 : index
    %c0_365 = arith.constant 0 : index
    %730 = vector.load %arg3[%c0_364, %c0_365] : memref<128x512xbf16, #tpu.memory_space<vmem>>, vector<128x512xbf16>
    %cst_366 = arith.constant dense<0.000000e+00> : vector<16x512xf32>
    %731 = tpu.matmul %729, %730, %cst_366 {dimension_numbers = #tpu.dot_dimension_numbers<[1], [0], [0], [1], [0, 0, 1, 1], [], []>} : vector<16x128xbf16>, vector<128x512xbf16>, vector<16x512xf32> -> vector<16x512xf32>
    %732 = arith.addf %727, %731 : vector<16x512xf32>
    %733 = vector.extract_strided_slice %732 {offsets = [0, 0], sizes = [16, 128], strides = [1, 1]} : vector<16x512xf32> to vector<16x128xf32>
    %cst_367 = arith.constant 5.000000e-01 : f32
    %734 = vector.broadcast %cst_367 : f32 to vector<16x128xf32>
    %735 = arith.mulf %734, %733 : vector<16x128xf32>
    %736 = math.tanh %735 : vector<16x128xf32>
    %cst_368 = arith.constant 5.000000e-01 : f32
    %737 = vector.broadcast %cst_368 : f32 to vector<16x128xf32>
    %738 = arith.mulf %737, %736 : vector<16x128xf32>
    %cst_369 = arith.constant 5.000000e-01 : f32
    %739 = vector.broadcast %cst_369 : f32 to vector<16x128xf32>
    %740 = arith.addf %738, %739 : vector<16x128xf32>
    %741 = vector.extract_strided_slice %732 {offsets = [0, 128], sizes = [16, 128], strides = [1, 1]} : vector<16x512xf32> to vector<16x128xf32>
    %cst_370 = arith.constant 5.000000e-01 : f32
    %742 = vector.broadcast %cst_370 : f32 to vector<16x128xf32>
    %743 = arith.mulf %742, %741 : vector<16x128xf32>
    %744 = math.tanh %743 : vector<16x128xf32>
    %cst_371 = arith.constant 5.000000e-01 : f32
    %745 = vector.broadcast %cst_371 : f32 to vector<16x128xf32>
    %746 = arith.mulf %745, %744 : vector<16x128xf32>
    %cst_372 = arith.constant 5.000000e-01 : f32
    %747 = vector.broadcast %cst_372 : f32 to vector<16x128xf32>
    %748 = arith.addf %746, %747 : vector<16x128xf32>
    %749 = vector.extract_strided_slice %732 {offsets = [0, 256], sizes = [16, 128], strides = [1, 1]} : vector<16x512xf32> to vector<16x128xf32>
    %750 = math.tanh %749 : vector<16x128xf32>
    %751 = vector.extract_strided_slice %732 {offsets = [0, 384], sizes = [16, 128], strides = [1, 1]} : vector<16x512xf32> to vector<16x128xf32>
    %cst_373 = arith.constant 5.000000e-01 : f32
    %752 = vector.broadcast %cst_373 : f32 to vector<16x128xf32>
    %753 = arith.mulf %752, %751 : vector<16x128xf32>
    %754 = math.tanh %753 : vector<16x128xf32>
    %cst_374 = arith.constant 5.000000e-01 : f32
    %755 = vector.broadcast %cst_374 : f32 to vector<16x128xf32>
    %756 = arith.mulf %755, %754 : vector<16x128xf32>
    %cst_375 = arith.constant 5.000000e-01 : f32
    %757 = vector.broadcast %cst_375 : f32 to vector<16x128xf32>
    %758 = arith.addf %756, %757 : vector<16x128xf32>
    %c0_376 = arith.constant 0 : index
    %c0_377 = arith.constant 0 : index
    %759 = vector.load %arg7[%c0_376, %c0_377] : memref<16x128xf32, #tpu.memory_space<vmem>>, vector<16x128xf32>
    %760 = arith.mulf %748, %759 : vector<16x128xf32>
    %761 = arith.mulf %740, %750 : vector<16x128xf32>
    %762 = arith.addf %760, %761 : vector<16x128xf32>
    %763 = math.tanh %762 : vector<16x128xf32>
    %764 = arith.mulf %758, %763 : vector<16x128xf32>
    %c0_378 = arith.constant 0 : index
    %c0_379 = arith.constant 0 : index
    %765 = vector.load %arg7[%c0_378, %c0_379] : memref<16x128xf32, #tpu.memory_space<vmem>>, vector<16x128xf32>
    tpu.vector_store %arg7[%c0_378, %c0_379], %762 {strides = array<i32>} : memref<16x128xf32, #tpu.memory_space<vmem>>, vector<16x128xf32>,
    %c0_380 = arith.constant 0 : index
    %c0_381 = arith.constant 0 : index
    %766 = vector.load %arg6[%c0_380, %c0_381] : memref<16x128xf32, #tpu.memory_space<vmem>>, vector<16x128xf32>
    tpu.vector_store %arg6[%c0_380, %c0_381], %764 {strides = array<i32>} : memref<16x128xf32, #tpu.memory_space<vmem>>, vector<16x128xf32>,
    %767 = arith.truncf %764 : vector<16x128xf32> to vector<16x128xbf16>
    %768 = arith.index_cast %c15_i32 : i32 to index
    %c0_382 = arith.constant 0 : index
    %c0_383 = arith.constant 0 : index
    %769 = vector.load %arg5[%768, %c0_382, %c0_383] : memref<16x16x128xbf16, #tpu.memory_space<vmem>>, vector<1x16x128xbf16>
    %770 = vector.shape_cast %769 : vector<1x16x128xbf16> to vector<16x128xbf16>
    %771 = vector.shape_cast %767 : vector<16x128xbf16> to vector<1x16x128xbf16>
    tpu.vector_store %arg5[%768, %c0_382, %c0_383], %771 {strides = array<i32>} : memref<16x16x128xbf16, #tpu.memory_space<vmem>>, vector<1x16x128xbf16>,
    %c16_i32_384 = arith.constant 16 : i32
    %772 = tpu.iota {dimensions = array<i32: 0>} : vector<16x16x1xi32>
    %773 = vector.broadcast %3 : i32 to vector<16x16x1xi32>
    %774 = arith.addi %773, %772 : vector<16x16x1xi32>
    %c0_385 = arith.constant 0 : index
    %c0_386 = arith.constant 0 : index
    %775 = vector.load %arg4[%c0_385, %c0_386] : memref<16x1xi32, #tpu.memory_space<vmem>>, vector<16x1xi32>
    %776 = vector.shape_cast %775 : vector<16x1xi32> to vector<1x16x1xi32>
    %777 = vector.broadcast %776 : vector<1x16x1xi32> to vector<16x16x1xi32>
    %778 = arith.cmpi sge, %777, %774 : vector<16x16x1xi32>
    %779 = arith.extui %778 : vector<16x16x1xi1> to vector<16x16x1xi32>
    %780 = arith.sitofp %779 : vector<16x16x1xi32> to vector<16x16x1xf32>
    %c0_387 = arith.constant 0 : index
    %c0_388 = arith.constant 0 : index
    %c0_389 = arith.constant 0 : index
    %781 = vector.load %arg5[%c0_387, %c0_388, %c0_389] : memref<16x16x128xbf16, #tpu.memory_space<vmem>>, vector<16x16x128xbf16>
    %782 = arith.extf %781 : vector<16x16x128xbf16> to vector<16x16x128xf32>
    %783 = vector.broadcast %780 : vector<16x16x1xf32> to vector<16x16x128xf32>
    %784 = arith.mulf %782, %783 : vector<16x16x128xf32>
    %785 = arith.truncf %784 : vector<16x16x128xf32> to vector<16x16x128xbf16>
    %c0_390 = arith.constant 0 : index
    %c0_391 = arith.constant 0 : index
    %c0_392 = arith.constant 0 : index
    %786 = vector.load %arg5[%c0_390, %c0_391, %c0_392] : memref<16x16x128xbf16, #tpu.memory_space<vmem>>, vector<16x16x128xbf16>
    tpu.vector_store %arg5[%c0_390, %c0_391, %c0_392], %785 {strides = array<i32>} : memref<16x16x128xbf16, #tpu.memory_space<vmem>>, vector<16x16x128xbf16>,
    return
  }
  func.func @transform_0(%arg0: i32, %arg1: i32) -> (i32, i32, i32) {
    %c0_i32 = arith.constant 0 : i32
    %c0_i32_0 = arith.constant 0 : i32
    return %arg1, %arg0, %c0_i32 : i32, i32, i32
  }
  func.func @transform_1(%arg0: i32, %arg1: i32) -> (i32, i32) {
    %c0_i32 = arith.constant 0 : i32
    %c0_i32_0 = arith.constant 0 : i32
    %c0_i32_1 = arith.constant 0 : i32
    return %c0_i32, %c0_i32_0 : i32, i32
  }
  func.func @transform_2(%arg0: i32, %arg1: i32) -> (i32, i32) {
    %c0_i32 = arith.constant 0 : i32
    %c0_i32_0 = arith.constant 0 : i32
    return %arg0, %c0_i32 : i32, i32
  }
  func.func @transform_3(%arg0: i32, %arg1: i32) -> (i32, i32, i32) {
    %c0_i32 = arith.constant 0 : i32
    %c0_i32_0 = arith.constant 0 : i32
    return %arg1, %arg0, %c0_i32 : i32, i32, i32
  }
}

module attributes {stable_mosaic.version = 11 : i64} {
  func.func @_rowblock_matmul_kernel(%arg0: i32, %arg1: memref<32x128xbf16, #tpu.memory_space<vmem>>, %arg2: memref<128x128xbf16, #tpu.memory_space<vmem>>, %arg3: memref<1x128xf32, #tpu.memory_space<vmem>>, %arg4: memref<32x128xf32, #tpu.memory_space<vmem>>) attributes {dimension_semantics = [#tpu.dimension_semantics<parallel>], iteration_bounds = array<i64: 1>, scalar_prefetch = 0 : i64, scratch_operands = 0 : i64, tpu.core_type = #tpu.core_type<tc>, window_params = [{transform_indices = @transform_0, window_bounds = array<i64: 32, 128>}, {pipeline_mode = #tpu.pipeline_mode<synchronous>, transform_indices = @transform_1, window_bounds = array<i64: 128, 128>}, {pipeline_mode = #tpu.pipeline_mode<synchronous>, transform_indices = @transform_2, window_bounds = array<i64: 1, 128>}, {transform_indices = @transform_3, window_bounds = array<i64: 32, 128>}]} {
    %c0 = arith.constant 0 : index
    %c0_0 = arith.constant 0 : index
    %0 = vector.load %arg1[%c0, %c0_0] : memref<32x128xbf16, #tpu.memory_space<vmem>>, vector<32x128xbf16>
    %c0_1 = arith.constant 0 : index
    %c0_2 = arith.constant 0 : index
    %1 = vector.load %arg2[%c0_1, %c0_2] : memref<128x128xbf16, #tpu.memory_space<vmem>>, vector<128x128xbf16>
    %cst = arith.constant dense<0.000000e+00> : vector<32x128xf32>
    %2 = tpu.matmul %0, %1, %cst {dimension_numbers = #tpu.dot_dimension_numbers<[1], [0], [0], [1], [0, 0, 1, 1], [], []>} : vector<32x128xbf16>, vector<128x128xbf16>, vector<32x128xf32> -> vector<32x128xf32>
    %c0_3 = arith.constant 0 : index
    %c0_4 = arith.constant 0 : index
    %3 = vector.load %arg3[%c0_3, %c0_4] : memref<1x128xf32, #tpu.memory_space<vmem>>, vector<1x128xf32>
    %4 = vector.broadcast %3 : vector<1x128xf32> to vector<32x128xf32>
    %5 = arith.addf %2, %4 : vector<32x128xf32>
    %cst_5 = arith.constant dense<0xFF800000> : vector<32xf32>
    %6 = vector.multi_reduction <maximumf>, %5, %cst_5 [1] : vector<32x128xf32> to vector<32xf32>
    %7 = vector.shape_cast %6 : vector<32xf32> to vector<32x1xf32>
    %8 = vector.broadcast %7 : vector<32x1xf32> to vector<32x128xf32>
    %9 = arith.subf %5, %8 : vector<32x128xf32>
    %10 = math.exp %9 : vector<32x128xf32>
    %cst_6 = arith.constant dense<0.000000e+00> : vector<32xf32>
    %11 = vector.multi_reduction <add>, %10, %cst_6 [1] : vector<32x128xf32> to vector<32xf32>
    %12 = vector.shape_cast %11 : vector<32xf32> to vector<32x1xf32>
    %13 = math.log %12 : vector<32x1xf32>
    %14 = vector.broadcast %13 : vector<32x1xf32> to vector<32x128xf32>
    %15 = arith.subf %9, %14 : vector<32x128xf32>
    %c0_7 = arith.constant 0 : index
    %c0_8 = arith.constant 0 : index
    %16 = vector.load %arg4[%c0_7, %c0_8] : memref<32x128xf32, #tpu.memory_space<vmem>>, vector<32x128xf32>
    tpu.vector_store %arg4[%c0_7, %c0_8], %15 {strides = array<i32>} : memref<32x128xf32, #tpu.memory_space<vmem>>, vector<32x128xf32>,
    return
  }
  func.func @transform_0(%arg0: i32) -> (i32, i32) {
    %c0_i32 = arith.constant 0 : i32
    %c0_i32_0 = arith.constant 0 : i32
    return %arg0, %c0_i32 : i32, i32
  }
  func.func @transform_1(%arg0: i32) -> (i32, i32) {
    %c0_i32 = arith.constant 0 : i32
    %c0_i32_0 = arith.constant 0 : i32
    %c0_i32_1 = arith.constant 0 : i32
    return %c0_i32, %c0_i32_0 : i32, i32
  }
  func.func @transform_2(%arg0: i32) -> (i32, i32) {
    %c0_i32 = arith.constant 0 : i32
    %c0_i32_0 = arith.constant 0 : i32
    %c0_i32_1 = arith.constant 0 : i32
    return %c0_i32, %c0_i32_0 : i32, i32
  }
  func.func @transform_3(%arg0: i32) -> (i32, i32) {
    %c0_i32 = arith.constant 0 : i32
    %c0_i32_0 = arith.constant 0 : i32
    return %arg0, %c0_i32 : i32, i32
  }
}

</mosaic_0001>

<llo_original>
// kernel: rnn_forward.5
$region0: #{rnn_forward.5}
  #allocation0 [shape = 'u32[]', space=smem, size = 0x4, offset = 0x4, fixed_abs, tag = 'smem constant byte address 0x4 - core index']
  #allocation1 [shape = 'u32[144,128]{1,0:T(1,128)}', space=vmem, size = 0x12000, scoped, tag = 'internal scratch']
  %s0 = inlined_call_operand.vmem [shape: bf16[32,128], index: 0, kind: input, shape index: {}]
  %s1 = inlined_call_operand.vmem [shape: bf16[128,128], index: 1, kind: input, shape index: {}]
  %s2 = inlined_call_operand.vmem [shape: f32[1,128], index: 2, kind: input, shape index: {}]
  %s3 = inlined_call_operand.vmem [shape: f32[32,128], index: 3, kind: output, shape index: {}]
  %s4 = sld [smem:[#allocation0]]
  $region22: #{rnn_forward.5} parent=0
    _
  %s6 = ssub.s32 1, %s4
  %s7 = scalar_select 0, %s6, %s4
  // Predicated region
  $region2: #{rnn_forward.5} parent=0 // pred_check
    _
  $region3: #{rnn_forward.5} parent=0 // pred_check_branch
    %9 = sbr.rel (0) target = $region5
  $region4: #{rnn_forward.5} parent=0 // pred_region
    _
  $region5: #{rnn_forward.5} parent=0 // pred_fallthru
    _
  // Predicated region
  $region6: #{rnn_forward.5} parent=0 // pred_check
    _
  $region7: #{rnn_forward.5} parent=0 // pred_check_branch
    %11 = sbr.rel (0) target = $region9
  $region8: #{rnn_forward.5} parent=0 // pred_region
    _
  $region9: #{rnn_forward.5} parent=0 // pred_fallthru
    _
  // Predicated region
  $region10: #{rnn_forward.5} parent=0 // pred_check
    _
  $region11: #{rnn_forward.5} parent=0 // pred_check_branch
    %13 = sbr.rel (0) target = $region13
  $region12: #{rnn_forward.5} parent=0 // pred_region
    _
  $region13: #{rnn_forward.5} parent=0 // pred_fallthru
    _
  %v15 = vld [vmem:[%s0] sm:$0xf]
  %v16 = vld [vmem:[%s0 + $0x4] sm:$0xf]
  %v17 = vld [vmem:[%s0 + $0x8] sm:$0xf]
  %v18 = vld [vmem:[%s0 + $0xc] sm:$0xf]
  %v19 = vld [vmem:[%s1] sm:$0xf]
  %v20 = vld [vmem:[%s1 + $0x4] sm:$0xf]
  %v21 = vld [vmem:[%s1 + $0x8] sm:$0xf]
  %v22 = vld [vmem:[%s1 + $0xc] sm:$0xf]
  %v23 = vld [vmem:[%s1 + $0x10] sm:$0xf]
  %v24 = vld [vmem:[%s1 + $0x14] sm:$0xf]
  %v25 = vld [vmem:[%s1 + $0x18] sm:$0xf]
  %v26 = vld [vmem:[%s1 + $0x1c] sm:$0xf]
  %v27 = vld [vmem:[%s1 + $0x20] sm:$0xf]
  %v28 = vld [vmem:[%s1 + $0x24] sm:$0xf]
  %v29 = vld [vmem:[%s1 + $0x28] sm:$0xf]
  %v30 = vld [vmem:[%s1 + $0x2c] sm:$0xf]
  %v31 = vld [vmem:[%s1 + $0x30] sm:$0xf]
  %v32 = vld [vmem:[%s1 + $0x34] sm:$0xf]
  %v33 = vld [vmem:[%s1 + $0x38] sm:$0xf]
  %v34 = vld [vmem:[%s1 + $0x3c] sm:$0xf]
  %v35 = vld [vmem:[%s2] sm:$0x1]
  %v37 = vlaneseq
  %v38 = vshrl.u32 %v37, 7
  %v39 = vsub.s32 0, %v38
  %v40 = vrot.slane %v35, %v39
  %v46 = vunpack.c.l.b16 %v15
  %v47 = vunpack.c.l.b16 %v16
  %v48 = vunpack.c.l.b16 %v17
  %v49 = vunpack.c.l.b16 %v18
  %v50 = vpack.c.b16 %v47, %v46
  %v51 = vpack.c.b16 %v49, %v48
  %v70 = vunpack.c.l.b16 %v19
  %v71 = vunpack.c.l.b16 %v20
  %v72 = vunpack.c.l.b16 %v21
  %v73 = vunpack.c.l.b16 %v22
  %v74 = vunpack.c.l.b16 %v23
  %v75 = vunpack.c.l.b16 %v24
  %v76 = vunpack.c.l.b16 %v25
  %v77 = vunpack.c.l.b16 %v26
  %v78 = vunpack.c.l.b16 %v27
  %v79 = vunpack.c.l.b16 %v28
  %v80 = vunpack.c.l.b16 %v29
  %v81 = vunpack.c.l.b16 %v30
  %v82 = vunpack.c.l.b16 %v31
  %v83 = vunpack.c.l.b16 %v32
  %v84 = vunpack.c.l.b16 %v33
  %v85 = vunpack.c.l.b16 %v34
  %v86 = vpack.c.b16 %v71, %v70
  %v87 = vpack.c.b16 %v73, %v72
  %v88 = vpack.c.b16 %v75, %v74
  %v89 = vpack.c.b16 %v77, %v76
  %v90 = vpack.c.b16 %v79, %v78
  %v91 = vpack.c.b16 %v81, %v80
  %v92 = vpack.c.b16 %v83, %v82
  %v93 = vpack.c.b16 %v85, %v84
  %102 = vmatprep.subr.bf16.mxu0 0
  %103 = vmatpush1.bf16.msra.mxu0 %v86
  %104 = vmatprep.subr.bf16.mxu0 0
  %105 = vmatpush1.bf16.msra.mxu0 %v87
  %106 = vmatprep.subr.bf16.mxu0 0
  %107 = vmatpush1.bf16.msra.mxu0 %v88
  %108 = vmatprep.subr.bf16.mxu0 0
  %109 = vmatpush1.bf16.msra.mxu0 %v89
  %110 = vmatprep.subr.bf16.mxu0 0
  %111 = vmatpush1.bf16.msra.mxu0 %v90
  %112 = vmatprep.subr.bf16.mxu0 0
  %113 = vmatpush1.bf16.msra.mxu0 %v91
  %114 = vmatprep.subr.bf16.mxu0 0
  %115 = vmatpush1.bf16.msra.mxu0 %v92
  %116 = vmatprep.subr.bf16.mxu0 0
  %117 = vmatpush1.bf16.msra.mxu0 %v93
  %118 = vmatprep.subr.bf16.mxu0 0
  %119 = vmatpush1.bf16.msra.mxu0 0
  %120 = vmatprep.subr.bf16.mxu0 0
  %121 = vmatpush1.bf16.msra.mxu0 0
  %122 = vmatprep.subr.bf16.mxu0 0
  %123 = vmatpush1.bf16.msra.mxu0 0
  %124 = vmatprep.subr.bf16.mxu0 0
  %125 = vmatpush1.bf16.msra.mxu0 0
  %126 = vmatprep.subr.bf16.mxu0 0
  %127 = vmatpush1.bf16.msra.mxu0 0
  %128 = vmatprep.subr.bf16.mxu0 0
  %129 = vmatpush1.bf16.msra.mxu0 0
  %130 = vmatprep.subr.bf16.mxu0 0
  %131 = vmatpush1.bf16.msra.mxu0 0
  %132 = vmatprep.subr.bf16.mxu0 0
  %133 = vmatpush1.bf16.msra.mxu0 0
  %134 = vmatprep.mubr.bf16.mxu0 0
  %135 = vmatmul.mubr.bf16.gmra.mrb[0].mxu0 %v50
  %v136 = vpop.f32.mrb[0].mxu0
  %v137 = vadd.f32 %v40, %v136
  %v138 = vpop.f32.mrb[0].mxu0
  %v139 = vpop.f32.mrb[0].mxu0
  %v140 = vadd.f32 %v40, %v139
  %v141 = vpop.f32.mrb[0].mxu0
  %142 = vmatprep.mubr.bf16.mxu0 0
  %143 = vmatmul.mubr.bf16.gmra.mrb[0].mxu0 %v51
  %v144 = vpop.f32.mrb[0].mxu0
  %v145 = vadd.f32 %v40, %v144
  %v146 = vpop.f32.mrb[0].mxu0
  %v147 = vpop.f32.mrb[0].mxu0
  %v148 = vadd.f32 %v40, %v147
  %v149 = vpop.f32.mrb[0].mxu0
  %150 = vdwg.mxu0
  %151 = vmax.xlane.f32.xlu0 %v137
  %v152 = vpop.xlane.xlu0 %151
  %153 = vmax.xlane.f32.xlu0 %v140
  %v154 = vpop.xlane.xlu0 %153
  %155 = vmax.xlane.f32.xlu0 %v145
  %v156 = vpop.xlane.xlu0 %155
  %157 = vmax.xlane.f32.xlu0 %v148
  %v158 = vpop.xlane.xlu0 %157
  %v159 = vsub.f32 %v137, %v152
  %v160 = vsub.f32 %v140, %v154
  %v161 = vsub.f32 %v145, %v156
  %v162 = vsub.f32 %v148, %v158
  %v163 = vmul.f32 %v159, 1.442695
  %v164 = vpow.pop %v163
  %v165 = vmul.f32 %v160, 1.442695
  %v166 = vpow.pop %v165
  %v167 = vmul.f32 %v161, 1.442695
  %v168 = vpow.pop %v167
  %v169 = vmul.f32 %v162, 1.442695
  %v170 = vpow.pop %v169
  %171 = vadd.xlane.f32.xlu0 %v164
  %v172 = vpop.xlane.xlu0 %171
  %173 = vadd.xlane.f32.xlu0 %v166
  %v174 = vpop.xlane.xlu0 %173
  %175 = vadd.xlane.f32.xlu0 %v168
  %v176 = vpop.xlane.xlu0 %175
  %177 = vadd.xlane.f32.xlu0 %v170
  %v178 = vpop.xlane.xlu0 %177
  %v179 = vlog2.pop %v172
  %v180 = vmul.f32 %v179, 0.6931472
  %v181 = vlog2.pop %v174
  %v182 = vmul.f32 %v181, 0.6931472
  %v183 = vlog2.pop %v176
  %v184 = vmul.f32 %v183, 0.6931472
  %v185 = vlog2.pop %v178
  %v186 = vmul.f32 %v185, 0.6931472
  %v187 = vsub.f32 %v159, %v180
  %v188 = vsub.f32 %v160, %v182
  %v189 = vsub.f32 %v161, %v184
  %v190 = vsub.f32 %v162, %v186
  %191 = vst [vmem:[%s3] sm:$0xff] %v187
  %192 = vst [vmem:[%s3 + $0x8] sm:$0xff] %v188
  %193 = vst [vmem:[%s3 + $0x10] sm:$0xff] %v189
  %194 = vst [vmem:[%s3 + $0x18] sm:$0xff] %v190
  // Predicated region
  $region14: #{rnn_forward.5} parent=0 // pred_check
    _
  $region15: #{rnn_forward.5} parent=0 // pred_check_branch
    %196 = sbr.rel (0) target = $region17
  $region16: #{rnn_forward.5} parent=0 // pred_region
    _
  $region17: #{rnn_forward.5} parent=0 // pred_fallthru
    _
  // Predicated region
  $region18: #{rnn_forward.5} parent=0 // pred_check
    _
  $region19: #{rnn_forward.5} parent=0 // pred_check_branch
    %198 = sbr.rel (0) target = $region21
  $region20: #{rnn_forward.5} parent=0 // pred_region
    _
  $region21: #{rnn_forward.5} parent=0 // pred_fallthru
    _

// kernel: rnn_forward.3
$region0: #{rnn_forward.3}
  #allocation0 [shape = 'u32[]', space=smem, size = 0x4, offset = 0x4, fixed_abs, tag = 'smem constant byte address 0x4 - core index']
  #allocation1 [shape = 'u32[144,128]{1,0:T(1,128)}', space=vmem, size = 0x12000, scoped, tag = 'internal scratch']
  %s0 = inlined_call_operand.vmem [shape: bf16[256,16], index: 0, kind: input, shape index: {}]
  %s1 = inlined_call_operand.vmem [shape: bf16[16,512], index: 1, kind: input, shape index: {}]
  %s2 = inlined_call_operand.vmem [shape: f32[1,512], index: 2, kind: input, shape index: {}]
  %s3 = inlined_call_operand.vmem [shape: bf16[256,512], index: 3, kind: output, shape index: {}]
  %s4 = sld [smem:[#allocation0]]
  $region22: #{rnn_forward.3} parent=0
    _
  %s6 = ssub.s32 1, %s4
  %s7 = scalar_select 0, %s6, %s4
  // Predicated region
  $region2: #{rnn_forward.3} parent=0 // pred_check
    _
  $region3: #{rnn_forward.3} parent=0 // pred_check_branch
    %9 = sbr.rel (0) target = $region5
  $region4: #{rnn_forward.3} parent=0 // pred_region
    _
  $region5: #{rnn_forward.3} parent=0 // pred_fallthru
    _
  // Predicated region
  $region6: #{rnn_forward.3} parent=0 // pred_check
    _
  $region7: #{rnn_forward.3} parent=0 // pred_check_branch
    %11 = sbr.rel (0) target = $region9
  $region8: #{rnn_forward.3} parent=0 // pred_region
    _
  $region9: #{rnn_forward.3} parent=0 // pred_fallthru
    _
  // Predicated region
  $region10: #{rnn_forward.3} parent=0 // pred_check
    _
  $region11: #{rnn_forward.3} parent=0 // pred_check_branch
    %13 = sbr.rel (0) target = $region13
  $region12: #{rnn_forward.3} parent=0 // pred_region
    _
  $region13: #{rnn_forward.3} parent=0 // pred_fallthru
    _
  %v15 = vld [vmem:[%s0] sm:$0xf]
  %v16 = vld [vmem:[%s0 + $0x4] sm:$0xf]
  %v17 = vld [vmem:[%s0 + $0x8] sm:$0xf]
  %v18 = vld [vmem:[%s0 + $0xc] sm:$0xf]
  %v19 = vld [vmem:[%s0 + $0x10] sm:$0xf]
  %v20 = vld [vmem:[%s0 + $0x14] sm:$0xf]
  %v21 = vld [vmem:[%s0 + $0x18] sm:$0xf]
  %v22 = vld [vmem:[%s0 + $0x1c] sm:$0xf]
  %v23 = vld [vmem:[%s0 + $0x20] sm:$0xf]
  %v24 = vld [vmem:[%s0 + $0x24] sm:$0xf]
  %v25 = vld [vmem:[%s0 + $0x28] sm:$0xf]
  %v26 = vld [vmem:[%s0 + $0x2c] sm:$0xf]
  %v27 = vld [vmem:[%s0 + $0x30] sm:$0xf]
  %v28 = vld [vmem:[%s0 + $0x34] sm:$0xf]
  %v29 = vld [vmem:[%s0 + $0x38] sm:$0xf]
  %v30 = vld [vmem:[%s0 + $0x3c] sm:$0xf]
  %v31 = vld [vmem:[%s0 + $0x40] sm:$0xf]
  %v32 = vld [vmem:[%s0 + $0x44] sm:$0xf]
  %v33 = vld [vmem:[%s0 + $0x48] sm:$0xf]
  %v34 = vld [vmem:[%s0 + $0x4c] sm:$0xf]
  %v35 = vld [vmem:[%s0 + $0x50] sm:$0xf]
  %v36 = vld [vmem:[%s0 + $0x54] sm:$0xf]
  %v37 = vld [vmem:[%s0 + $0x58] sm:$0xf]
  %v38 = vld [vmem:[%s0 + $0x5c] sm:$0xf]
  %v39 = vld [vmem:[%s0 + $0x60] sm:$0xf]
  %v40 = vld [vmem:[%s0 + $0x64] sm:$0xf]
  %v41 = vld [vmem:[%s0 + $0x68] sm:$0xf]
  %v42 = vld [vmem:[%s0 + $0x6c] sm:$0xf]
  %v43 = vld [vmem:[%s0 + $0x70] sm:$0xf]
  %v44 = vld [vmem:[%s0 + $0x74] sm:$0xf]
  %v45 = vld [vmem:[%s0 + $0x78] sm:$0xf]
  %v46 = vld [vmem:[%s0 + $0x7c] sm:$0xf]
  %v47 = vld [vmem:[%s1] sm:$0xff]
  %v48 = vld [vmem:[%s1 + $0x8] sm:$0xff]
  %v49 = vld [vmem:[%s1 + $0x10] sm:$0xff]
  %v50 = vld [vmem:[%s1 + $0x18] sm:$0xff]
  %v51 = vld [vmem:[%s2] sm:$0xf]
  %v53 = vlaneseq
  %v54 = vshrl.u32 %v53, 7
  %v55 = vsub.s32 0, %v54
  %v56 = vrot.slane %v51, %v55
  %v57 = vlaneseq
  %v58 = vshrl.u32 %v57, 7
  %v59 = vsub.s32 1, %v58
  %v60 = vrot.slane %v51, %v59
  %v61 = vlaneseq
  %v62 = vshrl.u32 %v61, 7
  %v63 = vsub.s32 2, %v62
  %v64 = vrot.slane %v51, %v63
  %v65 = vlaneseq
  %v66 = vshrl.u32 %v65, 7
  %v67 = vsub.s32 3, %v66
  %v68 = vrot.slane %v51, %v67
  %v105 = vunpack.c.l.b16 %v15
  %v106 = vunpack.c.l.b16 %v16
  %v107 = vunpack.c.l.b16 %v17
  %v108 = vunpack.c.l.b16 %v18
  %v109 = vunpack.c.l.b16 %v19
  %v110 = vunpack.c.l.b16 %v20
  %v111 = vunpack.c.l.b16 %v21
  %v112 = vunpack.c.l.b16 %v22
  %v113 = vunpack.c.l.b16 %v23
  %v114 = vunpack.c.l.b16 %v24
  %v115 = vunpack.c.l.b16 %v25
  %v116 = vunpack.c.l.b16 %v26
  %v117 = vunpack.c.l.b16 %v27
  %v118 = vunpack.c.l.b16 %v28
  %v119 = vunpack.c.l.b16 %v29
  %v120 = vunpack.c.l.b16 %v30
  %v121 = vunpack.c.l.b16 %v31
  %v122 = vunpack.c.l.b16 %v32
  %v123 = vunpack.c.l.b16 %v33
  %v124 = vunpack.c.l.b16 %v34
  %v125 = vunpack.c.l.b16 %v35
  %v126 = vunpack.c.l.b16 %v36
  %v127 = vunpack.c.l.b16 %v37
  %v128 = vunpack.c.l.b16 %v38
  %v129 = vunpack.c.l.b16 %v39
  %v130 = vunpack.c.l.b16 %v40
  %v131 = vunpack.c.l.b16 %v41
  %v132 = vunpack.c.l.b16 %v42
  %v133 = vunpack.c.l.b16 %v43
  %v134 = vunpack.c.l.b16 %v44
  %v135 = vunpack.c.l.b16 %v45
  %v136 = vunpack.c.l.b16 %v46
  %v137 = vpack.c.b16 %v106, %v105
  %v138 = vpack.c.b16 %v108, %v107
  %v139 = vpack.c.b16 %v110, %v109
  %v140 = vpack.c.b16 %v112, %v111
  %v141 = vpack.c.b16 %v114, %v113
  %v142 = vpack.c.b16 %v116, %v115
  %v143 = vpack.c.b16 %v118, %v117
  %v144 = vpack.c.b16 %v120, %v119
  %v145 = vpack.c.b16 %v122, %v121
  %v146 = vpack.c.b16 %v124, %v123
  %v147 = vpack.c.b16 %v126, %v125
  %v148 = vpack.c.b16 %v128, %v127
  %v149 = vpack.c.b16 %v130, %v129
  %v150 = vpack.c.b16 %v132, %v131
  %v151 = vpack.c.b16 %v134, %v133
  %v152 = vpack.c.b16 %v136, %v135
  %v157 = vunpack.c.l.b16 %v47
  %v158 = vunpack.c.h.b16 %v47
  %v159 = vunpack.c.l.b16 %v48
  %v160 = vunpack.c.h.b16 %v48
  %v161 = vunpack.c.l.b16 %v49
  %v162 = vunpack.c.h.b16 %v49
  %v163 = vunpack.c.l.b16 %v50
  %v164 = vunpack.c.h.b16 %v50
  %v165 = vpack.c.b16 %v161, %v157
  %v166 = vpack.c.b16 %v162, %v158
  %v167 = vpack.c.b16 %v163, %v159
  %v168 = vpack.c.b16 %v164, %v160
  %vm173 = vcmask 130048
  %v175 = vsel %vm173, %v137, 0
  %v178 = vsel %vm173, %v138, 0
  %v181 = vsel %vm173, %v139, 0
  %v184 = vsel %vm173, %v140, 0
  %v187 = vsel %vm173, %v141, 0
  %v190 = vsel %vm173, %v142, 0
  %v193 = vsel %vm173, %v143, 0
  %v196 = vsel %vm173, %v144, 0
  %v199 = vsel %vm173, %v145, 0
  %v202 = vsel %vm173, %v146, 0
  %v205 = vsel %vm173, %v147, 0
  %v208 = vsel %vm173, %v148, 0
  %v211 = vsel %vm173, %v149, 0
  %v214 = vsel %vm173, %v150, 0
  %v217 = vsel %vm173, %v151, 0
  %v220 = vsel %vm173, %v152, 0
  %222 = vmatprep.subr.bf16.mxu0 %v166
  %223 = vmatpush1.bf16.msra.mxu0 %v165
  %224 = vmatprep.subr.bf16.mxu0 0
  %225 = vmatpush1.bf16.msra.mxu0 0
  %226 = vmatprep.subr.bf16.mxu0 0
  %227 = vmatpush1.bf16.msra.mxu0 0
  %228 = vmatprep.subr.bf16.mxu0 0
  %229 = vmatpush1.bf16.msra.mxu0 0
  %230 = vmatprep.subr.bf16.mxu0 0
  %231 = vmatpush1.bf16.msra.mxu0 0
  %232 = vmatprep.subr.bf16.mxu0 0
  %233 = vmatpush1.bf16.msra.mxu0 0
  %234 = vmatprep.subr.bf16.mxu0 0
  %235 = vmatpush1.bf16.msra.mxu0 0
  %236 = vmatprep.subr.bf16.mxu0 0
  %237 = vmatpush1.bf16.msra.mxu0 0
  %238 = vmatprep.subr.bf16.mxu0 0
  %239 = vmatpush1.bf16.msra.mxu0 0
  %240 = vmatprep.subr.bf16.mxu0 0
  %241 = vmatpush1.bf16.msra.mxu0 0
  %242 = vmatprep.subr.bf16.mxu0 0
  %243 = vmatpush1.bf16.msra.mxu0 0
  %244 = vmatprep.subr.bf16.mxu0 0
  %245 = vmatpush1.bf16.msra.mxu0 0
  %246 = vmatprep.subr.bf16.mxu0 0
  %247 = vmatpush1.bf16.msra.mxu0 0
  %248 = vmatprep.subr.bf16.mxu0 0
  %249 = vmatpush1.bf16.msra.mxu0 0
  %250 = vmatprep.subr.bf16.mxu0 0
  %251 = vmatpush1.bf16.msra.mxu0 0
  %252 = vmatprep.subr.bf16.mxu0 0
  %253 = vmatpush1.bf16.msra.mxu0 0
  %254 = vmatprep.mubr.bf16.mxu0 0
  %255 = vmatmul.mubr.bf16.gmra.mrb[0].mxu0 %v175
  %v256 = vpop.f32.mrb[0].mxu0
  %v257 = vadd.f32 %v56, %v256
  %v258 = vpop.f32.mrb[0].mxu0
  %v259 = vadd.f32 %v60, %v258
  %v260 = vpop.f32.mrb[0].mxu0
  %v261 = vadd.f32 %v56, %v260
  %v262 = vpop.f32.mrb[0].mxu0
  %v263 = vadd.f32 %v60, %v262
  %264 = vmatprep.mubr.bf16.mxu0 0
  %265 = vmatmul.mubr.bf16.gmra.mrb[0].mxu0 %v178
  %v266 = vpop.f32.mrb[0].mxu0
  %v267 = vadd.f32 %v56, %v266
  %v268 = vpop.f32.mrb[0].mxu0
  %v269 = vadd.f32 %v60, %v268
  %v270 = vpop.f32.mrb[0].mxu0
  %v271 = vadd.f32 %v56, %v270
  %v272 = vpop.f32.mrb[0].mxu0
  %v273 = vadd.f32 %v60, %v272
  %274 = vmatprep.mubr.bf16.mxu0 0
  %275 = vmatmul.mubr.bf16.gmra.mrb[0].mxu0 %v181
  %v276 = vpop.f32.mrb[0].mxu0
  %v277 = vadd.f32 %v56, %v276
  %v278 = vpop.f32.mrb[0].mxu0
  %v279 = vadd.f32 %v60, %v278
  %v280 = vpop.f32.mrb[0].mxu0
  %v281 = vadd.f32 %v56, %v280
  %v282 = vpop.f32.mrb[0].mxu0
  %v283 = vadd.f32 %v60, %v282
  %284 = vmatprep.mubr.bf16.mxu0 0
  %285 = vmatmul.mubr.bf16.gmra.mrb[0].mxu0 %v184
  %v286 = vpop.f32.mrb[0].mxu0
  %v287 = vadd.f32 %v56, %v286
  %v288 = vpop.f32.mrb[0].mxu0
  %v289 = vadd.f32 %v60, %v288
  %v290 = vpop.f32.mrb[0].mxu0
  %v291 = vadd.f32 %v56, %v290
  %v292 = vpop.f32.mrb[0].mxu0
  %v293 = vadd.f32 %v60, %v292
  %294 = vmatprep.mubr.bf16.mxu0 0
  %295 = vmatmul.mubr.bf16.gmra.mrb[0].mxu0 %v187
  %v296 = vpop.f32.mrb[0].mxu0
  %v297 = vadd.f32 %v56, %v296
  %v298 = vpop.f32.mrb[0].mxu0
  %v299 = vadd.f32 %v60, %v298
  %v300 = vpop.f32.mrb[0].mxu0
  %v301 = vadd.f32 %v56, %v300
  %v302 = vpop.f32.mrb[0].mxu0
  %v303 = vadd.f32 %v60, %v302
  %304 = vmatprep.mubr.bf16.mxu0 0
  %305 = vmatmul.mubr.bf16.gmra.mrb[0].mxu0 %v190
  %v306 = vpop.f32.mrb[0].mxu0
  %v307 = vadd.f32 %v56, %v306
  %v308 = vpop.f32.mrb[0].mxu0
  %v309 = vadd.f32 %v60, %v308
  %v310 = vpop.f32.mrb[0].mxu0
  %v311 = vadd.f32 %v56, %v310
  %v312 = vpop.f32.mrb[0].mxu0
  %v313 = vadd.f32 %v60, %v312
  %314 = vmatprep.mubr.bf16.mxu0 0
  %315 = vmatmul.mubr.bf16.gmra.mrb[0].mxu0 %v193
  %v316 = vpop.f32.mrb[0].mxu0
  %v317 = vadd.f32 %v56, %v316
  %v318 = vpop.f32.mrb[0].mxu0
  %v319 = vadd.f32 %v60, %v318
  %v320 = vpop.f32.mrb[0].mxu0
  %v321 = vadd.f32 %v56, %v320
  %v322 = vpop.f32.mrb[0].mxu0
  %v323 = vadd.f32 %v60, %v322
  %324 = vmatprep.mubr.bf16.mxu0 0
  %325 = vmatmul.mubr.bf16.gmra.mrb[0].mxu0 %v196
  %v326 = vpop.f32.mrb[0].mxu0
  %v327 = vadd.f32 %v56, %v326
  %v328 = vpop.f32.mrb[0].mxu0
  %v329 = vadd.f32 %v60, %v328
  %v330 = vpop.f32.mrb[0].mxu0
  %v331 = vadd.f32 %v56, %v330
  %v332 = vpop.f32.mrb[0].mxu0
  %v333 = vadd.f32 %v60, %v332
  %334 = vmatprep.mubr.bf16.mxu0 0
  %335 = vmatmul.mubr.bf16.gmra.mrb[0].mxu0 %v199
  %v336 = vpop.f32.mrb[0].mxu0
  %v337 = vadd.f32 %v56, %v336
  %v338 = vpop.f32.mrb[0].mxu0
  %v339 = vadd.f32 %v60, %v338
  %v340 = vpop.f32.mrb[0].mxu0
  %v341 = vadd.f32 %v56, %v340
  %v342 = vpop.f32.mrb[0].mxu0
  %v343 = vadd.f32 %v60, %v342
  %344 = vmatprep.mubr.bf16.mxu0 0
  %345 = vmatmul.mubr.bf16.gmra.mrb[0].mxu0 %v202
  %v346 = vpop.f32.mrb[0].mxu0
  %v347 = vadd.f32 %v56, %v346
  %v348 = vpop.f32.mrb[0].mxu0
  %v349 = vadd.f32 %v60, %v348
  %v350 = vpop.f32.mrb[0].mxu0
  %v351 = vadd.f32 %v56, %v350
  %v352 = vpop.f32.mrb[0].mxu0
  %v353 = vadd.f32 %v60, %v352
  %354 = vmatprep.mubr.bf16.mxu0 0
  %355 = vmatmul.mubr.bf16.gmra.mrb[0].mxu0 %v205
  %v356 = vpop.f32.mrb[0].mxu0
  %v357 = vadd.f32 %v56, %v356
  %v358 = vpop.f32.mrb[0].mxu0
  %v359 = vadd.f32 %v60, %v358
  %v360 = vpop.f32.mrb[0].mxu0
  %v361 = vadd.f32 %v56, %v360
  %v362 = vpop.f32.mrb[0].mxu0
  %v363 = vadd.f32 %v60, %v362
  %364 = vmatprep.mubr.bf16.mxu0 0
  %365 = vmatmul.mubr.bf16.gmra.mrb[0].mxu0 %v208
  %v366 = vpop.f32.mrb[0].mxu0
  %v367 = vadd.f32 %v56, %v366
  %v368 = vpop.f32.mrb[0].mxu0
  %v369 = vadd.f32 %v60, %v368
  %v370 = vpop.f32.mrb[0].mxu0
  %v371 = vadd.f32 %v56, %v370
  %v372 = vpop.f32.mrb[0].mxu0
  %v373 = vadd.f32 %v60, %v372
  %374 = vmatprep.mubr.bf16.mxu0 0
  %375 = vmatmul.mubr.bf16.gmra.mrb[0].mxu0 %v211
  %v376 = vpop.f32.mrb[0].mxu0
  %v377 = vadd.f32 %v56, %v376
  %v378 = vpop.f32.mrb[0].mxu0
  %v379 = vadd.f32 %v60, %v378
  %v380 = vpop.f32.mrb[0].mxu0
  %v381 = vadd.f32 %v56, %v380
  %v382 = vpop.f32.mrb[0].mxu0
  %v383 = vadd.f32 %v60, %v382
  %384 = vmatprep.mubr.bf16.mxu0 0
  %385 = vmatmul.mubr.bf16.gmra.mrb[0].mxu0 %v214
  %v386 = vpop.f32.mrb[0].mxu0
  %v387 = vadd.f32 %v56, %v386
  %v388 = vpop.f32.mrb[0].mxu0
  %v389 = vadd.f32 %v60, %v388
  %v390 = vpop.f32.mrb[0].mxu0
  %v391 = vadd.f32 %v56, %v390
  %v392 = vpop.f32.mrb[0].mxu0
  %v393 = vadd.f32 %v60, %v392
  %394 = vmatprep.mubr.bf16.mxu0 0
  %395 = vmatmul.mubr.bf16.gmra.mrb[0].mxu0 %v217
  %v396 = vpop.f32.mrb[0].mxu0
  %v397 = vadd.f32 %v56, %v396
  %v398 = vpop.f32.mrb[0].mxu0
  %v399 = vadd.f32 %v60, %v398
  %v400 = vpop.f32.mrb[0].mxu0
  %v401 = vadd.f32 %v56, %v400
  %v402 = vpop.f32.mrb[0].mxu0
  %v403 = vadd.f32 %v60, %v402
  %404 = vmatprep.mubr.bf16.mxu0 0
  %405 = vmatmul.mubr.bf16.gmra.mrb[0].mxu0 %v220
  %v406 = vpop.f32.mrb[0].mxu0
  %v407 = vadd.f32 %v56, %v406
  %v408 = vpop.f32.mrb[0].mxu0
  %v409 = vadd.f32 %v60, %v408
  %v410 = vpop.f32.mrb[0].mxu0
  %v411 = vadd.f32 %v56, %v410
  %v412 = vpop.f32.mrb[0].mxu0
  %v413 = vadd.f32 %v60, %v412
  %414 = vdwg.mxu0
  %415 = vmatprep.subr.bf16.mxu0 %v168
  %416 = vmatpush1.bf16.msra.mxu0 %v167
  %417 = vmatprep.subr.bf16.mxu0 0
  %418 = vmatpush1.bf16.msra.mxu0 0
  %419 = vmatprep.subr.bf16.mxu0 0
  %420 = vmatpush1.bf16.msra.mxu0 0
  %421 = vmatprep.subr.bf16.mxu0 0
  %422 = vmatpush1.bf16.msra.mxu0 0
  %423 = vmatprep.subr.bf16.mxu0 0
  %424 = vmatpush1.bf16.msra.mxu0 0
  %425 = vmatprep.subr.bf16.mxu0 0
  %426 = vmatpush1.bf16.msra.mxu0 0
  %427 = vmatprep.subr.bf16.mxu0 0
  %428 = vmatpush1.bf16.msra.mxu0 0
  %429 = vmatprep.subr.bf16.mxu0 0
  %430 = vmatpush1.bf16.msra.mxu0 0
  %431 = vmatprep.subr.bf16.mxu0 0
  %432 = vmatpush1.bf16.msra.mxu0 0
  %433 = vmatprep.subr.bf16.mxu0 0
  %434 = vmatpush1.bf16.msra.mxu0 0
  %435 = vmatprep.subr.bf16.mxu0 0
  %436 = vmatpush1.bf16.msra.mxu0 0
  %437 = vmatprep.subr.bf16.mxu0 0
  %438 = vmatpush1.bf16.msra.mxu0 0
  %439 = vmatprep.subr.bf16.mxu0 0
  %440 = vmatpush1.bf16.msra.mxu0 0
  %441 = vmatprep.subr.bf16.mxu0 0
  %442 = vmatpush1.bf16.msra.mxu0 0
  %443 = vmatprep.subr.bf16.mxu0 0
  %444 = vmatpush1.bf16.msra.mxu0 0
  %445 = vmatprep.subr.bf16.mxu0 0
  %446 = vmatpush1.bf16.msra.mxu0 0
  %447 = vmatprep.mubr.bf16.mxu0 0
  %448 = vmatmul.mubr.bf16.gmra.mrb[0].mxu0 %v175
  %v449 = vpop.f32.mrb[0].mxu0
  %v450 = vadd.f32 %v64, %v449
  %v451 = vpop.f32.mrb[0].mxu0
  %v452 = vadd.f32 %v68, %v451
  %v453 = vpop.f32.mrb[0].mxu0
  %v454 = vadd.f32 %v64, %v453
  %v455 = vpop.f32.mrb[0].mxu0
  %v456 = vadd.f32 %v68, %v455
  %457 = vmatprep.mubr.bf16.mxu0 0
  %458 = vmatmul.mubr.bf16.gmra.mrb[0].mxu0 %v178
  %v459 = vpop.f32.mrb[0].mxu0
  %v460 = vadd.f32 %v64, %v459
  %v461 = vpop.f32.mrb[0].mxu0
  %v462 = vadd.f32 %v68, %v461
  %v463 = vpop.f32.mrb[0].mxu0
  %v464 = vadd.f32 %v64, %v463
  %v465 = vpop.f32.mrb[0].mxu0
  %v466 = vadd.f32 %v68, %v465
  %467 = vmatprep.mubr.bf16.mxu0 0
  %468 = vmatmul.mubr.bf16.gmra.mrb[0].mxu0 %v181
  %v469 = vpop.f32.mrb[0].mxu0
  %v470 = vadd.f32 %v64, %v469
  %v471 = vpop.f32.mrb[0].mxu0
  %v472 = vadd.f32 %v68, %v471
  %v473 = vpop.f32.mrb[0].mxu0
  %v474 = vadd.f32 %v64, %v473
  %v475 = vpop.f32.mrb[0].mxu0
  %v476 = vadd.f32 %v68, %v475
  %477 = vmatprep.mubr.bf16.mxu0 0
  %478 = vmatmul.mubr.bf16.gmra.mrb[0].mxu0 %v184
  %v479 = vpop.f32.mrb[0].mxu0
  %v480 = vadd.f32 %v64, %v479
  %v481 = vpop.f32.mrb[0].mxu0
  %v482 = vadd.f32 %v68, %v481
  %v483 = vpop.f32.mrb[0].mxu0
  %v484 = vadd.f32 %v64, %v483
  %v485 = vpop.f32.mrb[0].mxu0
  %v486 = vadd.f32 %v68, %v485
  %487 = vmatprep.mubr.bf16.mxu0 0
  %488 = vmatmul.mubr.bf16.gmra.mrb[0].mxu0 %v187
  %v489 = vpop.f32.mrb[0].mxu0
  %v490 = vadd.f32 %v64, %v489
  %v491 = vpop.f32.mrb[0].mxu0
  %v492 = vadd.f32 %v68, %v491
  %v493 = vpop.f32.mrb[0].mxu0
  %v494 = vadd.f32 %v64, %v493
  %v495 = vpop.f32.mrb[0].mxu0
  %v496 = vadd.f32 %v68, %v495
  %497 = vmatprep.mubr.bf16.mxu0 0
  %498 = vmatmul.mubr.bf16.gmra.mrb[0].mxu0 %v190
  %v499 = vpop.f32.mrb[0].mxu0
  %v500 = vadd.f32 %v64, %v499
  %v501 = vpop.f32.mrb[0].mxu0
  %v502 = vadd.f32 %v68, %v501
  %v503 = vpop.f32.mrb[0].mxu0
  %v504 = vadd.f32 %v64, %v503
  %v505 = vpop.f32.mrb[0].mxu0
  %v506 = vadd.f32 %v68, %v505
  %507 = vmatprep.mubr.bf16.mxu0 0
  %508 = vmatmul.mubr.bf16.gmra.mrb[0].mxu0 %v193
  %v509 = vpop.f32.mrb[0].mxu0
  %v510 = vadd.f32 %v64, %v509
  %v511 = vpop.f32.mrb[0].mxu0
  %v512 = vadd.f32 %v68, %v511
  %v513 = vpop.f32.mrb[0].mxu0
  %v514 = vadd.f32 %v64, %v513
  %v515 = vpop.f32.mrb[0].mxu0
  %v516 = vadd.f32 %v68, %v515
  %517 = vmatprep.mubr.bf16.mxu0 0
  %518 = vmatmul.mubr.bf16.gmra.mrb[0].mxu0 %v196
  %v519 = vpop.f32.mrb[0].mxu0
  %v520 = vadd.f32 %v64, %v519
  %v521 = vpop.f32.mrb[0].mxu0
  %v522 = vadd.f32 %v68, %v521
  %v523 = vpop.f32.mrb[0].mxu0
  %v524 = vadd.f32 %v64, %v523
  %v525 = vpop.f32.mrb[0].mxu0
  %v526 = vadd.f32 %v68, %v525
  %527 = vmatprep.mubr.bf16.mxu0 0
  %528 = vmatmul.mubr.bf16.gmra.mrb[0].mxu0 %v199
  %v529 = vpop.f32.mrb[0].mxu0
  %v530 = vadd.f32 %v64, %v529
  %v531 = vpop.f32.mrb[0].mxu0
  %v532 = vadd.f32 %v68, %v531
  %v533 = vpop.f32.mrb[0].mxu0
  %v534 = vadd.f32 %v64, %v533
  %v535 = vpop.f32.mrb[0].mxu0
  %v536 = vadd.f32 %v68, %v535
  %537 = vmatprep.mubr.bf16.mxu0 0
  %538 = vmatmul.mubr.bf16.gmra.mrb[0].mxu0 %v202
  %v539 = vpop.f32.mrb[0].mxu0
  %v540 = vadd.f32 %v64, %v539
  %v541 = vpop.f32.mrb[0].mxu0
  %v542 = vadd.f32 %v68, %v541
  %v543 = vpop.f32.mrb[0].mxu0
  %v544 = vadd.f32 %v64, %v543
  %v545 = vpop.f32.mrb[0].mxu0
  %v546 = vadd.f32 %v68, %v545
  %547 = vmatprep.mubr.bf16.mxu0 0
  %548 = vmatmul.mubr.bf16.gmra.mrb[0].mxu0 %v205
  %v549 = vpop.f32.mrb[0].mxu0
  %v550 = vadd.f32 %v64, %v549
  %v551 = vpop.f32.mrb[0].mxu0
  %v552 = vadd.f32 %v68, %v551
  %v553 = vpop.f32.mrb[0].mxu0
  %v554 = vadd.f32 %v64, %v553
  %v555 = vpop.f32.mrb[0].mxu0
  %v556 = vadd.f32 %v68, %v555
  %557 = vmatprep.mubr.bf16.mxu0 0
  %558 = vmatmul.mubr.bf16.gmra.mrb[0].mxu0 %v208
  %v559 = vpop.f32.mrb[0].mxu0
  %v560 = vadd.f32 %v64, %v559
  %v561 = vpop.f32.mrb[0].mxu0
  %v562 = vadd.f32 %v68, %v561
  %v563 = vpop.f32.mrb[0].mxu0
  %v564 = vadd.f32 %v64, %v563
  %v565 = vpop.f32.mrb[0].mxu0
  %v566 = vadd.f32 %v68, %v565
  %567 = vmatprep.mubr.bf16.mxu0 0
  %568 = vmatmul.mubr.bf16.gmra.mrb[0].mxu0 %v211
  %v569 = vpop.f32.mrb[0].mxu0
  %v570 = vadd.f32 %v64, %v569
  %v571 = vpop.f32.mrb[0].mxu0
  %v572 = vadd.f32 %v68, %v571
  %v573 = vpop.f32.mrb[0].mxu0
  %v574 = vadd.f32 %v64, %v573
  %v575 = vpop.f32.mrb[0].mxu0
  %v576 = vadd.f32 %v68, %v575
  %577 = vmatprep.mubr.bf16.mxu0 0
  %578 = vmatmul.mubr.bf16.gmra.mrb[0].mxu0 %v214
  %v579 = vpop.f32.mrb[0].mxu0
  %v580 = vadd.f32 %v64, %v579
  %v581 = vpop.f32.mrb[0].mxu0
  %v582 = vadd.f32 %v68, %v581
  %v583 = vpop.f32.mrb[0].mxu0
  %v584 = vadd.f32 %v64, %v583
  %v585 = vpop.f32.mrb[0].mxu0
  %v586 = vadd.f32 %v68, %v585
  %587 = vmatprep.mubr.bf16.mxu0 0
  %588 = vmatmul.mubr.bf16.gmra.mrb[0].mxu0 %v217
  %v589 = vpop.f32.mrb[0].mxu0
  %v590 = vadd.f32 %v64, %v589
  %v591 = vpop.f32.mrb[0].mxu0
  %v592 = vadd.f32 %v68, %v591
  %v593 = vpop.f32.mrb[0].mxu0
  %v594 = vadd.f32 %v64, %v593
  %v595 = vpop.f32.mrb[0].mxu0
  %v596 = vadd.f32 %v68, %v595
  %597 = vmatprep.mubr.bf16.mxu0 0
  %598 = vmatmul.mubr.bf16.gmra.mrb[0].mxu0 %v220
  %v599 = vpop.f32.mrb[0].mxu0
  %v600 = vadd.f32 %v64, %v599
  %v601 = vpop.f32.mrb[0].mxu0
  %v602 = vadd.f32 %v68, %v601
  %v603 = vpop.f32.mrb[0].mxu0
  %v604 = vadd.f32 %v64, %v603
  %v605 = vpop.f32.mrb[0].mxu0
  %v606 = vadd.f32 %v68, %v605
  %607 = vdwg.mxu0
  %v608 = vpack.c.bf16 %v261, %v257
  %v609 = vpack.c.bf16 %v263, %v259
  %v610 = vpack.c.bf16 %v454, %v450
  %v611 = vpack.c.bf16 %v456, %v452
  %v612 = vpack.c.bf16 %v271, %v267
  %v613 = vpack.c.bf16 %v273, %v269
  %v614 = vpack.c.bf16 %v464, %v460
  %v615 = vpack.c.bf16 %v466, %v462
  %v616 = vpack.c.bf16 %v281, %v277
  %v617 = vpack.c.bf16 %v283, %v279
  %v618 = vpack.c.bf16 %v474, %v470
  %v619 = vpack.c.bf16 %v476, %v472
  %v620 = vpack.c.bf16 %v291, %v287
  %v621 = vpack.c.bf16 %v293, %v289
  %v622 = vpack.c.bf16 %v484, %v480
  %v623 = vpack.c.bf16 %v486, %v482
  %v624 = vpack.c.bf16 %v301, %v297
  %v625 = vpack.c.bf16 %v303, %v299
  %v626 = vpack.c.bf16 %v494, %v490
  %v627 = vpack.c.bf16 %v496, %v492
  %v628 = vpack.c.bf16 %v311, %v307
  %v629 = vpack.c.bf16 %v313, %v309
  %v630 = vpack.c.bf16 %v504, %v500
  %v631 = vpack.c.bf16 %v506, %v502
  %v632 = vpack.c.bf16 %v321, %v317
  %v633 = vpack.c.bf16 %v323, %v319
  %v634 = vpack.c.bf16 %v514, %v510
  %v635 = vpack.c.bf16 %v516, %v512
  %v636 = vpack.c.bf16 %v331, %v327
  %v637 = vpack.c.bf16 %v333, %v329
  %v638 = vpack.c.bf16 %v524, %v520
  %v639 = vpack.c.bf16 %v526, %v522
  %v640 = vpack.c.bf16 %v341, %v337
  %v641 = vpack.c.bf16 %v343, %v339
  %v642 = vpack.c.bf16 %v534, %v530
  %v643 = vpack.c.bf16 %v536, %v532
  %v644 = vpack.c.bf16 %v351, %v347
  %v645 = vpack.c.bf16 %v353, %v349
  %v646 = vpack.c.bf16 %v544, %v540
  %v647 = vpack.c.bf16 %v546, %v542
  %v648 = vpack.c.bf16 %v361, %v357
  %v649 = vpack.c.bf16 %v363, %v359
  %v650 = vpack.c.bf16 %v554, %v550
  %v651 = vpack.c.bf16 %v556, %v552
  %v652 = vpack.c.bf16 %v371, %v367
  %v653 = vpack.c.bf16 %v373, %v369
  %v654 = vpack.c.bf16 %v564, %v560
  %v655 = vpack.c.bf16 %v566, %v562
  %v656 = vpack.c.bf16 %v381, %v377
  %v657 = vpack.c.bf16 %v383, %v379
  %v658 = vpack.c.bf16 %v574, %v570
  %v659 = vpack.c.bf16 %v576, %v572
  %v660 = vpack.c.bf16 %v391, %v387
  %v661 = vpack.c.bf16 %v393, %v389
  %v662 = vpack.c.bf16 %v584, %v580
  %v663 = vpack.c.bf16 %v586, %v582
  %v664 = vpack.c.bf16 %v401, %v397
  %v665 = vpack.c.bf16 %v403, %v399
  %v666 = vpack.c.bf16 %v594, %v590
  %v667 = vpack.c.bf16 %v596, %v592
  %v668 = vpack.c.bf16 %v411, %v407
  %v669 = vpack.c.bf16 %v413, %v409
  %v670 = vpack.c.bf16 %v604, %v600
  %v671 = vpack.c.bf16 %v606, %v602
  %v736 = vunpack.c.l.b16 %v608
  %v737 = vunpack.c.l.b16 %v609
  %v738 = vunpack.c.l.b16 %v610
  %v739 = vunpack.c.l.b16 %v611
  %v740 = vunpack.c.h.b16 %v608
  %v741 = vunpack.c.h.b16 %v609
  %v742 = vunpack.c.h.b16 %v610
  %v743 = vunpack.c.h.b16 %v611
  %v744 = vunpack.c.l.b16 %v612
  %v745 = vunpack.c.l.b16 %v613
  %v746 = vunpack.c.l.b16 %v614
  %v747 = vunpack.c.l.b16 %v615
  %v748 = vunpack.c.h.b16 %v612
  %v749 = vunpack.c.h.b16 %v613
  %v750 = vunpack.c.h.b16 %v614
  %v751 = vunpack.c.h.b16 %v615
  %v752 = vunpack.c.l.b16 %v616
  %v753 = vunpack.c.l.b16 %v617
  %v754 = vunpack.c.l.b16 %v618
  %v755 = vunpack.c.l.b16 %v619
  %v756 = vunpack.c.h.b16 %v616
  %v757 = vunpack.c.h.b16 %v617
  %v758 = vunpack.c.h.b16 %v618
  %v759 = vunpack.c.h.b16 %v619
  %v760 = vunpack.c.l.b16 %v620
  %v761 = vunpack.c.l.b16 %v621
  %v762 = vunpack.c.l.b16 %v622
  %v763 = vunpack.c.l.b16 %v623
  %v764 = vunpack.c.h.b16 %v620
  %v765 = vunpack.c.h.b16 %v621
  %v766 = vunpack.c.h.b16 %v622
  %v767 = vunpack.c.h.b16 %v623
  %v768 = vunpack.c.l.b16 %v624
  %v769 = vunpack.c.l.b16 %v625
  %v770 = vunpack.c.l.b16 %v626
  %v771 = vunpack.c.l.b16 %v627
  %v772 = vunpack.c.h.b16 %v624
  %v773 = vunpack.c.h.b16 %v625
  %v774 = vunpack.c.h.b16 %v626
  %v775 = vunpack.c.h.b16 %v627
  %v776 = vunpack.c.l.b16 %v628
  %v777 = vunpack.c.l.b16 %v629
  %v778 = vunpack.c.l.b16 %v630
  %v779 = vunpack.c.l.b16 %v631
  %v780 = vunpack.c.h.b16 %v628
  %v781 = vunpack.c.h.b16 %v629
  %v782 = vunpack.c.h.b16 %v630
  %v783 = vunpack.c.h.b16 %v631
  %v784 = vunpack.c.l.b16 %v632
  %v785 = vunpack.c.l.b16 %v633
  %v786 = vunpack.c.l.b16 %v634
  %v787 = vunpack.c.l.b16 %v635
  %v788 = vunpack.c.h.b16 %v632
  %v789 = vunpack.c.h.b16 %v633
  %v790 = vunpack.c.h.b16 %v634
  %v791 = vunpack.c.h.b16 %v635
  %v792 = vunpack.c.l.b16 %v636
  %v793 = vunpack.c.l.b16 %v637
  %v794 = vunpack.c.l.b16 %v638
  %v795 = vunpack.c.l.b16 %v639
  %v796 = vunpack.c.h.b16 %v636
  %v797 = vunpack.c.h.b16 %v637
  %v798 = vunpack.c.h.b16 %v638
  %v799 = vunpack.c.h.b16 %v639
  %v800 = vunpack.c.l.b16 %v640
  %v801 = vunpack.c.l.b16 %v641
  %v802 = vunpack.c.l.b16 %v642
  %v803 = vunpack.c.l.b16 %v643
  %v804 = vunpack.c.h.b16 %v640
  %v805 = vunpack.c.h.b16 %v641
  %v806 = vunpack.c.h.b16 %v642
  %v807 = vunpack.c.h.b16 %v643
  %v808 = vunpack.c.l.b16 %v644
  %v809 = vunpack.c.l.b16 %v645
  %v810 = vunpack.c.l.b16 %v646
  %v811 = vunpack.c.l.b16 %v647
  %v812 = vunpack.c.h.b16 %v644
  %v813 = vunpack.c.h.b16 %v645
  %v814 = vunpack.c.h.b16 %v646
  %v815 = vunpack.c.h.b16 %v647
  %v816 = vunpack.c.l.b16 %v648
  %v817 = vunpack.c.l.b16 %v649
  %v818 = vunpack.c.l.b16 %v650
  %v819 = vunpack.c.l.b16 %v651
  %v820 = vunpack.c.h.b16 %v648
  %v821 = vunpack.c.h.b16 %v649
  %v822 = vunpack.c.h.b16 %v650
  %v823 = vunpack.c.h.b16 %v651
  %v824 = vunpack.c.l.b16 %v652
  %v825 = vunpack.c.l.b16 %v653
  %v826 = vunpack.c.l.b16 %v654
  %v827 = vunpack.c.l.b16 %v655
  %v828 = vunpack.c.h.b16 %v652
  %v829 = vunpack.c.h.b16 %v653
  %v830 = vunpack.c.h.b16 %v654
  %v831 = vunpack.c.h.b16 %v655
  %v832 = vunpack.c.l.b16 %v656
  %v833 = vunpack.c.l.b16 %v657
  %v834 = vunpack.c.l.b16 %v658
  %v835 = vunpack.c.l.b16 %v659
  %v836 = vunpack.c.h.b16 %v656
  %v837 = vunpack.c.h.b16 %v657
  %v838 = vunpack.c.h.b16 %v658
  %v839 = vunpack.c.h.b16 %v659
  %v840 = vunpack.c.l.b16 %v660
  %v841 = vunpack.c.l.b16 %v661
  %v842 = vunpack.c.l.b16 %v662
  %v843 = vunpack.c.l.b16 %v663
  %v844 = vunpack.c.h.b16 %v660
  %v845 = vunpack.c.h.b16 %v661
  %v846 = vunpack.c.h.b16 %v662
  %v847 = vunpack.c.h.b16 %v663
  %v848 = vunpack.c.l.b16 %v664
  %v849 = vunpack.c.l.b16 %v665
  %v850 = vunpack.c.l.b16 %v666
  %v851 = vunpack.c.l.b16 %v667
  %v852 = vunpack.c.h.b16 %v664
  %v853 = vunpack.c.h.b16 %v665
  %v854 = vunpack.c.h.b16 %v666
  %v855 = vunpack.c.h.b16 %v667
  %v856 = vunpack.c.l.b16 %v668
  %v857 = vunpack.c.l.b16 %v669
  %v858 = vunpack.c.l.b16 %v670
  %v859 = vunpack.c.l.b16 %v671
  %v860 = vunpack.c.h.b16 %v668
  %v861 = vunpack.c.h.b16 %v669
  %v862 = vunpack.c.h.b16 %v670
  %v863 = vunpack.c.h.b16 %v671
  %v864 = vpack.c.b16 %v737, %v736
  %v865 = vpack.c.b16 %v739, %v738
  %v866 = vpack.c.b16 %v741, %v740
  %v867 = vpack.c.b16 %v743, %v742
  %v868 = vpack.c.b16 %v745, %v744
  %v869 = vpack.c.b16 %v747, %v746
  %v870 = vpack.c.b16 %v749, %v748
  %v871 = vpack.c.b16 %v751, %v750
  %v872 = vpack.c.b16 %v753, %v752
  %v873 = vpack.c.b16 %v755, %v754
  %v874 = vpack.c.b16 %v757, %v756
  %v875 = vpack.c.b16 %v759, %v758
  %v876 = vpack.c.b16 %v761, %v760
  %v877 = vpack.c.b16 %v763, %v762
  %v878 = vpack.c.b16 %v765, %v764
  %v879 = vpack.c.b16 %v767, %v766
  %v880 = vpack.c.b16 %v769, %v768
  %v881 = vpack.c.b16 %v771, %v770
  %v882 = vpack.c.b16 %v773, %v772
  %v883 = vpack.c.b16 %v775, %v774
  %v884 = vpack.c.b16 %v777, %v776
  %v885 = vpack.c.b16 %v779, %v778
  %v886 = vpack.c.b16 %v781, %v780
  %v887 = vpack.c.b16 %v783, %v782
  %v888 = vpack.c.b16 %v785, %v784
  %v889 = vpack.c.b16 %v787, %v786
  %v890 = vpack.c.b16 %v789, %v788
  %v891 = vpack.c.b16 %v791, %v790
  %v892 = vpack.c.b16 %v793, %v792
  %v893 = vpack.c.b16 %v795, %v794
  %v894 = vpack.c.b16 %v797, %v796
  %v895 = vpack.c.b16 %v799, %v798
  %v896 = vpack.c.b16 %v801, %v800
  %v897 = vpack.c.b16 %v803, %v802
  %v898 = vpack.c.b16 %v805, %v804
  %v899 = vpack.c.b16 %v807, %v806
  %v900 = vpack.c.b16 %v809, %v808
  %v901 = vpack.c.b16 %v811, %v810
  %v902 = vpack.c.b16 %v813, %v812
  %v903 = vpack.c.b16 %v815, %v814
  %v904 = vpack.c.b16 %v817, %v816
  %v905 = vpack.c.b16 %v819, %v818
  %v906 = vpack.c.b16 %v821, %v820
  %v907 = vpack.c.b16 %v823, %v822
  %v908 = vpack.c.b16 %v825, %v824
  %v909 = vpack.c.b16 %v827, %v826
  %v910 = vpack.c.b16 %v829, %v828
  %v911 = vpack.c.b16 %v831, %v830
  %v912 = vpack.c.b16 %v833, %v832
  %v913 = vpack.c.b16 %v835, %v834
  %v914 = vpack.c.b16 %v837, %v836
  %v915 = vpack.c.b16 %v839, %v838
  %v916 = vpack.c.b16 %v841, %v840
  %v917 = vpack.c.b16 %v843, %v842
  %v918 = vpack.c.b16 %v845, %v844
  %v919 = vpack.c.b16 %v847, %v846
  %v920 = vpack.c.b16 %v849, %v848
  %v921 = vpack.c.b16 %v851, %v850
  %v922 = vpack.c.b16 %v853, %v852
  %v923 = vpack.c.b16 %v855, %v854
  %v924 = vpack.c.b16 %v857, %v856
  %v925 = vpack.c.b16 %v859, %v858
  %v926 = vpack.c.b16 %v861, %v860
  %v927 = vpack.c.b16 %v863, %v862
  %992 = vst [vmem:[%s3] sm:$0xff] %v864
  %993 = vst [vmem:[%s3 + $0x8] sm:$0xff] %v865
  %994 = vst [vmem:[%s3 + $0x10] sm:$0xff] %v866
  %995 = vst [vmem:[%s3 + $0x18] sm:$0xff] %v867
  %996 = vst [vmem:[%s3 + $0x20] sm:$0xff] %v868
  %997 = vst [vmem:[%s3 + $0x28] sm:$0xff] %v869
  %998 = vst [vmem:[%s3 + $0x30] sm:$0xff] %v870
  %999 = vst [vmem:[%s3 + $0x38] sm:$0xff] %v871
  %1000 = vst [vmem:[%s3 + $0x40] sm:$0xff] %v872
  %1001 = vst [vmem:[%s3 + $0x48] sm:$0xff] %v873
  %1002 = vst [vmem:[%s3 + $0x50] sm:$0xff] %v874
  %1003 = vst [vmem:[%s3 + $0x58] sm:$0xff] %v875
  %1004 = vst [vmem:[%s3 + $0x60] sm:$0xff] %v876
  %1005 = vst [vmem:[%s3 + $0x68] sm:$0xff] %v877
  %1006 = vst [vmem:[%s3 + $0x70] sm:$0xff] %v878
  %1007 = vst [vmem:[%s3 + $0x78] sm:$0xff] %v879
  %1008 = vst [vmem:[%s3 + $0x80] sm:$0xff] %v880
  %1009 = vst [vmem:[%s3 + $0x88] sm:$0xff] %v881
  %1010 = vst [vmem:[%s3 + $0x90] sm:$0xff] %v882
  %1011 = vst [vmem:[%s3 + $0x98] sm:$0xff] %v883
  %1012 = vst [vmem:[%s3 + $0xa0] sm:$0xff] %v884
  %1013 = vst [vmem:[%s3 + $0xa8] sm:$0xff] %v885
  %1014 = vst [vmem:[%s3 + $0xb0] sm:$0xff] %v886
  %1015 = vst [vmem:[%s3 + $0xb8] sm:$0xff] %v887
  %1016 = vst [vmem:[%s3 + $0xc0] sm:$0xff] %v888
  %1017 = vst [vmem:[%s3 + $0xc8] sm:$0xff] %v889
  %1018 = vst [vmem:[%s3 + $0xd0] sm:$0xff] %v890
  %1019 = vst [vmem:[%s3 + $0xd8] sm:$0xff] %v891
  %1020 = vst [vmem:[%s3 + $0xe0] sm:$0xff] %v892
  %1021 = vst [vmem:[%s3 + $0xe8] sm:$0xff] %v893
  %1022 = vst [vmem:[%s3 + $0xf0] sm:$0xff] %v894
  %1023 = vst [vmem:[%s3 + $0xf8] sm:$0xff] %v895
  %1024 = vst [vmem:[%s3 + $0x100] sm:$0xff] %v896
  %1025 = vst [vmem:[%s3 + $0x108] sm:$0xff] %v897
  %1026 = vst [vmem:[%s3 + $0x110] sm:$0xff] %v898
  %1027 = vst [vmem:[%s3 + $0x118] sm:$0xff] %v899
  %1028 = vst [vmem:[%s3 + $0x120] sm:$0xff] %v900
  %1029 = vst [vmem:[%s3 + $0x128] sm:$0xff] %v901
  %1030 = vst [vmem:[%s3 + $0x130] sm:$0xff] %v902
  %1031 = vst [vmem:[%s3 + $0x138] sm:$0xff] %v903
  %1032 = vst [vmem:[%s3 + $0x140] sm:$0xff] %v904
  %1033 = vst [vmem:[%s3 + $0x148] sm:$0xff] %v905
  %1034 = vst [vmem:[%s3 + $0x150] sm:$0xff] %v906
  %1035 = vst [vmem:[%s3 + $0x158] sm:$0xff] %v907
  %1036 = vst [vmem:[%s3 + $0x160] sm:$0xff] %v908
  %1037 = vst [vmem:[%s3 + $0x168] sm:$0xff] %v909
  %1038 = vst [vmem:[%s3 + $0x170] sm:$0xff] %v910
  %1039 = vst [vmem:[%s3 + $0x178] sm:$0xff] %v911
  %1040 = vst [vmem:[%s3 + $0x180] sm:$0xff] %v912
  %1041 = vst [vmem:[%s3 + $0x188] sm:$0xff] %v913
  %1042 = vst [vmem:[%s3 + $0x190] sm:$0xff] %v914
  %1043 = vst [vmem:[%s3 + $0x198] sm:$0xff] %v915
  %1044 = vst [vmem:[%s3 + $0x1a0] sm:$0xff] %v916
  %1045 = vst [vmem:[%s3 + $0x1a8] sm:$0xff] %v917
  %1046 = vst [vmem:[%s3 + $0x1b0] sm:$0xff] %v918
  %1047 = vst [vmem:[%s3 + $0x1b8] sm:$0xff] %v919
  %1048 = vst [vmem:[%s3 + $0x1c0] sm:$0xff] %v920
  %1049 = vst [vmem:[%s3 + $0x1c8] sm:$0xff] %v921
  %1050 = vst [vmem:[%s3 + $0x1d0] sm:$0xff] %v922
  %1051 = vst [vmem:[%s3 + $0x1d8] sm:$0xff] %v923
  %1052 = vst [vmem:[%s3 + $0x1e0] sm:$0xff] %v924
  %1053 = vst [vmem:[%s3 + $0x1e8] sm:$0xff] %v925
  %1054 = vst [vmem:[%s3 + $0x1f0] sm:$0xff] %v926
  %1055 = vst [vmem:[%s3 + $0x1f8] sm:$0xff] %v927
  // Predicated region
  $region14: #{rnn_forward.3} parent=0 // pred_check
    _
  $region15: #{rnn_forward.3} parent=0 // pred_check_branch
    %1057 = sbr.rel (0) target = $region17
  $region16: #{rnn_forward.3} parent=0 // pred_region
    _
  $region17: #{rnn_forward.3} parent=0 // pred_fallthru
    _
  // Predicated region
  $region18: #{rnn_forward.3} parent=0 // pred_check
    _
  $region19: #{rnn_forward.3} parent=0 // pred_check_branch
    %1059 = sbr.rel (0) target = $region21
  $region20: #{rnn_forward.3} parent=0 // pred_region
    _
  $region21: #{rnn_forward.3} parent=0 // pred_fallthru
    _

// kernel: rnn_forward.4
$region0: #{rnn_forward.4}
  #allocation0 [shape = 'u32[]', space=smem, size = 0x4, offset = 0x4, fixed_abs, tag = 'smem constant byte address 0x4 - core index']
  #allocation1 [shape = 'u32[144,128]{1,0:T(1,128)}', space=vmem, size = 0x12000, scoped, tag = 'internal scratch']
  #allocation2 [shape = 'f32[16,128]{1,0:T(8,128)}', space=vmem, size = 0x2000, scoped, tag = 'scratch operand']
  #allocation3 [shape = 'f32[16,128]{1,0:T(8,128)}', space=vmem, size = 0x2000, scoped, tag = 'scratch operand']
  %s0 = inlined_call_operand.vmem [shape: bf16[16,16,512], index: 0, kind: input, shape index: {}]
  %s1 = inlined_call_operand.vmem [shape: bf16[128,512], index: 1, kind: input, shape index: {}]
  %s2 = inlined_call_operand.vmem [shape: s32[16,1], index: 2, kind: input, shape index: {}]
  %s3 = inlined_call_operand.vmem [shape: bf16[16,16,128], index: 3, kind: output, shape index: {}]
  %s4 = sld [smem:[#allocation0]]
  $region26: #{rnn_forward.4} parent=0
    _
  %s6 = ssub.s32 1, %s4
  %s7 = scalar_select 0, %s6, %s4
  // Predicated region
  $region2: #{rnn_forward.4} parent=0 // pred_check
    _
  $region3: #{rnn_forward.4} parent=0 // pred_check_branch
    %9 = sbr.rel (0) target = $region5
  $region4: #{rnn_forward.4} parent=0 // pred_region
    _
  $region5: #{rnn_forward.4} parent=0 // pred_fallthru
    _
  // Predicated region
  $region6: #{rnn_forward.4} parent=0 // pred_check
    _
  $region7: #{rnn_forward.4} parent=0 // pred_check_branch
    %11 = sbr.rel (0) target = $region9
  $region8: #{rnn_forward.4} parent=0 // pred_region
    _
  $region9: #{rnn_forward.4} parent=0 // pred_fallthru
    _
  // Predicated region
  $region10: #{rnn_forward.4} parent=0 // pred_check
    _
  $region11: #{rnn_forward.4} parent=0 // pred_check_branch
    %13 = sbr.rel (0) target = $region13
  $region12: #{rnn_forward.4} parent=0 // pred_region
    _
  $region13: #{rnn_forward.4} parent=0 // pred_fallthru
    _
  %p15 = scmp.eq.s32.totalorder 0, 0
  // Predicated region
  $region14: #{rnn_forward.4} parent=0 // pred_check
    %p16 = pneg %p15
  $region15: #{rnn_forward.4} parent=0 // pred_check_branch
    %18 = sbr.rel (%p16) target = $region17
  $region16: #{rnn_forward.4} parent=0 // pred_region
    %19 = vst [vmem:[#allocation2] sm:$0xff] 0.0
    %20 = vst [vmem:[#allocation2 + $0x8] sm:$0xff] 0.0
    %21 = vst [vmem:[#allocation3] sm:$0xff] 0.0
    %22 = vst [vmem:[#allocation3 + $0x8] sm:$0xff] 0.0
  $region17: #{rnn_forward.4} parent=0 // pred_fallthru
    _
  %s23 = smul.u32 0, 16
  %v24 = vld [vmem:[%s0] sm:$0xff]
  %v25 = vld [vmem:[%s0 + $0x8] sm:$0xff]
  %v26 = vld [vmem:[%s0 + $0x10] sm:$0xff]
  %v27 = vld [vmem:[%s0 + $0x18] sm:$0xff]
  %v28 = vunpack.c.l.bf16 %v24
  %v29 = vunpack.c.h.bf16 %v24
  %v30 = vunpack.c.l.bf16 %v25
  %v31 = vunpack.c.h.bf16 %v25
  %v32 = vunpack.c.l.bf16 %v26
  %v33 = vunpack.c.h.bf16 %v26
  %v34 = vunpack.c.l.bf16 %v27
  %v35 = vunpack.c.h.bf16 %v27
  %v36 = vld [vmem:[#allocation2] sm:$0xff]
  %v37 = vld [vmem:[#allocation2 + $0x8] sm:$0xff]
  %v38 = vpack.c.bf16 %v37, %v36
  %v39 = vld [vmem:[%s1] sm:$0xff]
  %v40 = vld [vmem:[%s1 + $0x8] sm:$0xff]
  %v41 = vld [vmem:[%s1 + $0x10] sm:$0xff]
  %v42 = vld [vmem:[%s1 + $0x18] sm:$0xff]
  %v43 = vld [vmem:[%s1 + $0x20] sm:$0xff]
  %v44 = vld [vmem:[%s1 + $0x28] sm:$0xff]
  %v45 = vld [vmem:[%s1 + $0x30] sm:$0xff]
  %v46 = vld [vmem:[%s1 + $0x38] sm:$0xff]
  %v47 = vld [vmem:[%s1 + $0x40] sm:$0xff]
  %v48 = vld [vmem:[%s1 + $0x48] sm:$0xff]
  %v49 = vld [vmem:[%s1 + $0x50] sm:$0xff]
  %v50 = vld [vmem:[%s1 + $0x58] sm:$0xff]
  %v51 = vld [vmem:[%s1 + $0x60] sm:$0xff]
  %v52 = vld [vmem:[%s1 + $0x68] sm:$0xff]
  %v53 = vld [vmem:[%s1 + $0x70] sm:$0xff]
  %v54 = vld [vmem:[%s1 + $0x78] sm:$0xff]
  %v55 = vld [vmem:[%s1 + $0x80] sm:$0xff]
  %v56 = vld [vmem:[%s1 + $0x88] sm:$0xff]
  %v57 = vld [vmem:[%s1 + $0x90] sm:$0xff]
  %v58 = vld [vmem:[%s1 + $0x98] sm:$0xff]
  %v59 = vld [vmem:[%s1 + $0xa0] sm:$0xff]
  %v60 = vld [vmem:[%s1 + $0xa8] sm:$0xff]
  %v61 = vld [vmem:[%s1 + $0xb0] sm:$0xff]
  %v62 = vld [vmem:[%s1 + $0xb8] sm:$0xff]
  %v63 = vld [vmem:[%s1 + $0xc0] sm:$0xff]
  %v64 = vld [vmem:[%s1 + $0xc8] sm:$0xff]
  %v65 = vld [vmem:[%s1 + $0xd0] sm:$0xff]
  %v66 = vld [vmem:[%s1 + $0xd8] sm:$0xff]
  %v67 = vld [vmem:[%s1 + $0xe0] sm:$0xff]
  %v68 = vld [vmem:[%s1 + $0xe8] sm:$0xff]
  %v69 = vld [vmem:[%s1 + $0xf0] sm:$0xff]
  %v70 = vld [vmem:[%s1 + $0xf8] sm:$0xff]
  %v103 = vunpack.c.l.b16 %v39
  %v104 = vunpack.c.h.b16 %v39
  %v105 = vunpack.c.l.b16 %v40
  %v106 = vunpack.c.h.b16 %v40
  %v107 = vunpack.c.l.b16 %v41
  %v108 = vunpack.c.h.b16 %v41
  %v109 = vunpack.c.l.b16 %v42
  %v110 = vunpack.c.h.b16 %v42
  %v111 = vunpack.c.l.b16 %v43
  %v112 = vunpack.c.h.b16 %v43
  %v113 = vunpack.c.l.b16 %v44
  %v114 = vunpack.c.h.b16 %v44
  %v115 = vunpack.c.l.b16 %v45
  %v116 = vunpack.c.h.b16 %v45
  %v117 = vunpack.c.l.b16 %v46
  %v118 = vunpack.c.h.b16 %v46
  %v119 = vunpack.c.l.b16 %v47
  %v120 = vunpack.c.h.b16 %v47
  %v121 = vunpack.c.l.b16 %v48
  %v122 = vunpack.c.h.b16 %v48
  %v123 = vunpack.c.l.b16 %v49
  %v124 = vunpack.c.h.b16 %v49
  %v125 = vunpack.c.l.b16 %v50
  %v126 = vunpack.c.h.b16 %v50
  %v127 = vunpack.c.l.b16 %v51
  %v128 = vunpack.c.h.b16 %v51
  %v129 = vunpack.c.l.b16 %v52
  %v130 = vunpack.c.h.b16 %v52
  %v131 = vunpack.c.l.b16 %v53
  %v132 = vunpack.c.h.b16 %v53
  %v133 = vunpack.c.l.b16 %v54
  %v134 = vunpack.c.h.b16 %v54
  %v135 = vunpack.c.l.b16 %v55
  %v136 = vunpack.c.h.b16 %v55
  %v137 = vunpack.c.l.b16 %v56
  %v138 = vunpack.c.h.b16 %v56
  %v139 = vunpack.c.l.b16 %v57
  %v140 = vunpack.c.h.b16 %v57
  %v141 = vunpack.c.l.b16 %v58
  %v142 = vunpack.c.h.b16 %v58
  %v143 = vunpack.c.l.b16 %v59
  %v144 = vunpack.c.h.b16 %v59
  %v145 = vunpack.c.l.b16 %v60
  %v146 = vunpack.c.h.b16 %v60
  %v147 = vunpack.c.l.b16 %v61
  %v148 = vunpack.c.h.b16 %v61
  %v149 = vunpack.c.l.b16 %v62
  %v150 = vunpack.c.h.b16 %v62
  %v151 = vunpack.c.l.b16 %v63
  %v152 = vunpack.c.h.b16 %v63
  %v153 = vunpack.c.l.b16 %v64
  %v154 = vunpack.c.h.b16 %v64
  %v155 = vunpack.c.l.b16 %v65
  %v156 = vunpack.c.h.b16 %v65
  %v157 = vunpack.c.l.b16 %v66
  %v158 = vunpack.c.h.b16 %v66
  %v159 = vunpack.c.l.b16 %v67
  %v160 = vunpack.c.h.b16 %v67
  %v161 = vunpack.c.l.b16 %v68
  %v162 = vunpack.c.h.b16 %v68
  %v163 = vunpack.c.l.b16 %v69
  %v164 = vunpack.c.h.b16 %v69
  %v165 = vunpack.c.l.b16 %v70
  %v166 = vunpack.c.h.b16 %v70
  %v167 = vpack.c.b16 %v107, %v103
  %v168 = vpack.c.b16 %v108, %v104
  %v169 = vpack.c.b16 %v109, %v105
  %v170 = vpack.c.b16 %v110, %v106
  %v171 = vpack.c.b16 %v115, %v111
  %v172 = vpack.c.b16 %v116, %v112
  %v173 = vpack.c.b16 %v117, %v113
  %v174 = vpack.c.b16 %v118, %v114
  %v175 = vpack.c.b16 %v123, %v119
  %v176 = vpack.c.b16 %v124, %v120
  %v177 = vpack.c.b16 %v125, %v121
  %v178 = vpack.c.b16 %v126, %v122
  %v179 = vpack.c.b16 %v131, %v127
  %v180 = vpack.c.b16 %v132, %v128
  %v181 = vpack.c.b16 %v133, %v129
  %v182 = vpack.c.b16 %v134, %v130
  %v183 = vpack.c.b16 %v139, %v135
  %v184 = vpack.c.b16 %v140, %v136
  %v185 = vpack.c.b16 %v141, %v137
  %v186 = vpack.c.b16 %v142, %v138
  %v187 = vpack.c.b16 %v147, %v143
  %v188 = vpack.c.b16 %v148, %v144
  %v189 = vpack.c.b16 %v149, %v145
  %v190 = vpack.c.b16 %v150, %v146
  %v191 = vpack.c.b16 %v155, %v151
  %v192 = vpack.c.b16 %v156, %v152
  %v193 = vpack.c.b16 %v157, %v153
  %v194 = vpack.c.b16 %v158, %v154
  %v195 = vpack.c.b16 %v163, %v159
  %v196 = vpack.c.b16 %v164, %v160
  %v197 = vpack.c.b16 %v165, %v161
  %v198 = vpack.c.b16 %v166, %v162
  %231 = vmatprep.subr.bf16.mxu0 %v168
  %232 = vmatpush1.bf16.msra.mxu0 %v167
  %233 = vmatprep.subr.bf16.mxu0 %v172
  %234 = vmatpush1.bf16.msra.mxu0 %v171
  %235 = vmatprep.subr.bf16.mxu0 %v176
  %236 = vmatpush1.bf16.msra.mxu0 %v175
  %237 = vmatprep.subr.bf16.mxu0 %v180
  %238 = vmatpush1.bf16.msra.mxu0 %v179
  %239 = vmatprep.subr.bf16.mxu0 %v184
  %240 = vmatpush1.bf16.msra.mxu0 %v183
  %241 = vmatprep.subr.bf16.mxu0 %v188
  %242 = vmatpush1.bf16.msra.mxu0 %v187
  %243 = vmatprep.subr.bf16.mxu0 %v192
  %244 = vmatpush1.bf16.msra.mxu0 %v191
  %245 = vmatprep.subr.bf16.mxu0 %v196
  %246 = vmatpush1.bf16.msra.mxu0 %v195
  %247 = vmatprep.subr.bf16.mxu0 0
  %248 = vmatpush1.bf16.msra.mxu0 0
  %249 = vmatprep.subr.bf16.mxu0 0
  %250 = vmatpush1.bf16.msra.mxu0 0
  %251 = vmatprep.subr.bf16.mxu0 0
  %252 = vmatpush1.bf16.msra.mxu0 0
  %253 = vmatprep.subr.bf16.mxu0 0
  %254 = vmatpush1.bf16.msra.mxu0 0
  %255 = vmatprep.subr.bf16.mxu0 0
  %256 = vmatpush1.bf16.msra.mxu0 0
  %257 = vmatprep.subr.bf16.mxu0 0
  %258 = vmatpush1.bf16.msra.mxu0 0
  %259 = vmatprep.subr.bf16.mxu0 0
  %260 = vmatpush1.bf16.msra.mxu0 0
  %261 = vmatprep.subr.bf16.mxu0 0
  %262 = vmatpush1.bf16.msra.mxu0 0
  %263 = vmatprep.mubr.bf16.mxu0 0
  %264 = vmatmul.mubr.bf16.gmra.mrb[0].mxu0 %v38
  %v265 = vpop.f32.mrb[0].mxu0
  %v266 = vadd.f32 0.0, %v265
  %v267 = vpop.f32.mrb[0].mxu0
  %v268 = vadd.f32 0.0, %v267
  %v269 = vpop.f32.mrb[0].mxu0
  %v270 = vadd.f32 0.0, %v269
  %v271 = vpop.f32.mrb[0].mxu0
  %v272 = vadd.f32 0.0, %v271
  %273 = vdwg.mxu0
  %274 = vmatprep.subr.bf16.mxu0 %v170
  %275 = vmatpush1.bf16.msra.mxu0 %v169
  %276 = vmatprep.subr.bf16.mxu0 %v174
  %277 = vmatpush1.bf16.msra.mxu0 %v173
  %278 = vmatprep.subr.bf16.mxu0 %v178
  %279 = vmatpush1.bf16.msra.mxu0 %v177
  %280 = vmatprep.subr.bf16.mxu0 %v182
  %281 = vmatpush1.bf16.msra.mxu0 %v181
  %282 = vmatprep.subr.bf16.mxu0 %v186
  %283 = vmatpush1.bf16.msra.mxu0 %v185
  %284 = vmatprep.subr.bf16.mxu0 %v190
  %285 = vmatpush1.bf16.msra.mxu0 %v189
  %286 = vmatprep.subr.bf16.mxu0 %v194
  %287 = vmatpush1.bf16.msra.mxu0 %v193
  %288 = vmatprep.subr.bf16.mxu0 %v198
  %289 = vmatpush1.bf16.msra.mxu0 %v197
  %290 = vmatprep.subr.bf16.mxu0 0
  %291 = vmatpush1.bf16.msra.mxu0 0
  %292 = vmatprep.subr.bf16.mxu0 0
  %293 = vmatpush1.bf16.msra.mxu0 0
  %294 = vmatprep.subr.bf16.mxu0 0
  %295 = vmatpush1.bf16.msra.mxu0 0
  %296 = vmatprep.subr.bf16.mxu0 0
  %297 = vmatpush1.bf16.msra.mxu0 0
  %298 = vmatprep.subr.bf16.mxu0 0
  %299 = vmatpush1.bf16.msra.mxu0 0
  %300 = vmatprep.subr.bf16.mxu0 0
  %301 = vmatpush1.bf16.msra.mxu0 0
  %302 = vmatprep.subr.bf16.mxu0 0
  %303 = vmatpush1.bf16.msra.mxu0 0
  %304 = vmatprep.subr.bf16.mxu0 0
  %305 = vmatpush1.bf16.msra.mxu0 0
  %306 = vmatprep.mubr.bf16.mxu0 0
  %307 = vmatmul.mubr.bf16.gmra.mrb[0].mxu0 %v38
  %v308 = vpop.f32.mrb[0].mxu0
  %v309 = vadd.f32 0.0, %v308
  %v310 = vpop.f32.mrb[0].mxu0
  %v311 = vadd.f32 0.0, %v310
  %v312 = vpop.f32.mrb[0].mxu0
  %v313 = vadd.f32 0.0, %v312
  %v314 = vpop.f32.mrb[0].mxu0
  %v315 = vadd.f32 0.0, %v314
  %316 = vdwg.mxu0
  %v317 = vadd.f32 %v28, %v266
  %v318 = vadd.f32 %v29, %v268
  %v319 = vadd.f32 %v30, %v309
  %v320 = vadd.f32 %v31, %v311
  %v321 = vadd.f32 %v32, %v270
  %v322 = vadd.f32 %v33, %v272
  %v323 = vadd.f32 %v34, %v313
  %v324 = vadd.f32 %v35, %v315
  %v325 = vmul.f32 %v317, 0.5
  %v326 = vmul.f32 %v321, 0.5
  %v327 = vtanh.pop %v325
  %v328 = vtanh.pop %v326
  %v329 = vmul.f32 %v327, 0.5
  %v330 = vmul.f32 %v328, 0.5
  %v331 = vadd.f32 %v329, 0.5
  %v332 = vadd.f32 %v330, 0.5
  %v333 = vmul.f32 %v318, 0.5
  %v334 = vmul.f32 %v322, 0.5
  %v335 = vtanh.pop %v333
  %v336 = vtanh.pop %v334
  %v337 = vmul.f32 %v335, 0.5
  %v338 = vmul.f32 %v336, 0.5
  %v339 = vadd.f32 %v337, 0.5
  %v340 = vadd.f32 %v338, 0.5
  %v341 = vtanh.pop %v319
  %v342 = vtanh.pop %v323
  %v343 = vmul.f32 %v320, 0.5
  %v344 = vmul.f32 %v324, 0.5
  %v345 = vtanh.pop %v343
  %v346 = vtanh.pop %v344
  %v347 = vmul.f32 %v345, 0.5
  %v348 = vmul.f32 %v346, 0.5
  %v349 = vadd.f32 %v347, 0.5
  %v350 = vadd.f32 %v348, 0.5
  %v351 = vld [vmem:[#allocation3] sm:$0xff]
  %v352 = vld [vmem:[#allocation3 + $0x8] sm:$0xff]
  %v353 = vmul.f32 %v339, %v351
  %v354 = vmul.f32 %v340, %v352
  %v355 = vmul.f32 %v331, %v341
  %v356 = vmul.f32 %v332, %v342
  %v357 = vadd.f32 %v353, %v355
  %v358 = vadd.f32 %v354, %v356
  %v359 = vtanh.pop %v357
  %v360 = vtanh.pop %v358
  %v361 = vmul.f32 %v349, %v359
  %v362 = vmul.f32 %v350, %v360
  %363 = vst [vmem:[#allocation3] sm:$0xff] %v357
  %364 = vst [vmem:[#allocation3 + $0x8] sm:$0xff] %v358
  %365 = vst [vmem:[#allocation2] sm:$0xff] %v361
  %366 = vst [vmem:[#allocation2 + $0x8] sm:$0xff] %v362
  %v367 = vpack.c.bf16 %v362, %v361
  %v369 = vunpack.c.l.b16 %v367
  %v370 = vunpack.c.h.b16 %v367
  %v371 = vpack.c.b16 %v369, %v369
  %v372 = vpack.c.b16 %v370, %v370
  %375 = vst [vmem:[%s3] sm:$0xf] %v371
  %376 = vst [vmem:[%s3 + $0x4] sm:$0xf] %v372
  %s377 = scalar_lea.vmem %s0, 32
  %v378 = vld [vmem:[%s377] sm:$0xff]
  %v379 = vld [vmem:[%s377 + $0x8] sm:$0xff]
  %v380 = vld [vmem:[%s377 + $0x10] sm:$0xff]
  %v381 = vld [vmem:[%s377 + $0x18] sm:$0xff]
  %v382 = vunpack.c.l.bf16 %v378
  %v383 = vunpack.c.h.bf16 %v378
  %v384 = vunpack.c.l.bf16 %v379
  %v385 = vunpack.c.h.bf16 %v379
  %v386 = vunpack.c.l.bf16 %v380
  %v387 = vunpack.c.h.bf16 %v380
  %v388 = vunpack.c.l.bf16 %v381
  %v389 = vunpack.c.h.bf16 %v381
  %v390 = vld [vmem:[#allocation2] sm:$0xff]
  %v391 = vld [vmem:[#allocation2 + $0x8] sm:$0xff]
  %v392 = vpack.c.bf16 %v391, %v390
  %v393 = vld [vmem:[%s1] sm:$0xff]
  %v394 = vld [vmem:[%s1 + $0x8] sm:$0xff]
  %v395 = vld [vmem:[%s1 + $0x10] sm:$0xff]
  %v396 = vld [vmem:[%s1 + $0x18] sm:$0xff]
  %v397 = vld [vmem:[%s1 + $0x20] sm:$0xff]
  %v398 = vld [vmem:[%s1 + $0x28] sm:$0xff]
  %v399 = vld [vmem:[%s1 + $0x30] sm:$0xff]
  %v400 = vld [vmem:[%s1 + $0x38] sm:$0xff]
  %v401 = vld [vmem:[%s1 + $0x40] sm:$0xff]
  %v402 = vld [vmem:[%s1 + $0x48] sm:$0xff]
  %v403 = vld [vmem:[%s1 + $0x50] sm:$0xff]
  %v404 = vld [vmem:[%s1 + $0x58] sm:$0xff]
  %v405 = vld [vmem:[%s1 + $0x60] sm:$0xff]
  %v406 = vld [vmem:[%s1 + $0x68] sm:$0xff]
  %v407 = vld [vmem:[%s1 + $0x70] sm:$0xff]
  %v408 = vld [vmem:[%s1 + $0x78] sm:$0xff]
  %v409 = vld [vmem:[%s1 + $0x80] sm:$0xff]
  %v410 = vld [vmem:[%s1 + $0x88] sm:$0xff]
  %v411 = vld [vmem:[%s1 + $0x90] sm:$0xff]
  %v412 = vld [vmem:[%s1 + $0x98] sm:$0xff]
  %v413 = vld [vmem:[%s1 + $0xa0] sm:$0xff]
  %v414 = vld [vmem:[%s1 + $0xa8] sm:$0xff]
  %v415 = vld [vmem:[%s1 + $0xb0] sm:$0xff]
  %v416 = vld [vmem:[%s1 + $0xb8] sm:$0xff]
  %v417 = vld [vmem:[%s1 + $0xc0] sm:$0xff]
  %v418 = vld [vmem:[%s1 + $0xc8] sm:$0xff]
  %v419 = vld [vmem:[%s1 + $0xd0] sm:$0xff]
  %v420 = vld [vmem:[%s1 + $0xd8] sm:$0xff]
  %v421 = vld [vmem:[%s1 + $0xe0] sm:$0xff]
  %v422 = vld [vmem:[%s1 + $0xe8] sm:$0xff]
  %v423 = vld [vmem:[%s1 + $0xf0] sm:$0xff]
  %v424 = vld [vmem:[%s1 + $0xf8] sm:$0xff]
  %v457 = vunpack.c.l.b16 %v393
  %v458 = vunpack.c.h.b16 %v393
  %v459 = vunpack.c.l.b16 %v394
  %v460 = vunpack.c.h.b16 %v394
  %v461 = vunpack.c.l.b16 %v395
  %v462 = vunpack.c.h.b16 %v395
  %v463 = vunpack.c.l.b16 %v396
  %v464 = vunpack.c.h.b16 %v396
  %v465 = vunpack.c.l.b16 %v397
  %v466 = vunpack.c.h.b16 %v397
  %v467 = vunpack.c.l.b16 %v398
  %v468 = vunpack.c.h.b16 %v398
  %v469 = vunpack.c.l.b16 %v399
  %v470 = vunpack.c.h.b16 %v399
  %v471 = vunpack.c.l.b16 %v400
  %v472 = vunpack.c.h.b16 %v400
  %v473 = vunpack.c.l.b16 %v401
  %v474 = vunpack.c.h.b16 %v401
  %v475 = vunpack.c.l.b16 %v402
  %v476 = vunpack.c.h.b16 %v402
  %v477 = vunpack.c.l.b16 %v403
  %v478 = vunpack.c.h.b16 %v403
  %v479 = vunpack.c.l.b16 %v404
  %v480 = vunpack.c.h.b16 %v404
  %v481 = vunpack.c.l.b16 %v405
  %v482 = vunpack.c.h.b16 %v405
  %v483 = vunpack.c.l.b16 %v406
  %v484 = vunpack.c.h.b16 %v406
  %v485 = vunpack.c.l.b16 %v407
  %v486 = vunpack.c.h.b16 %v407
  %v487 = vunpack.c.l.b16 %v408
  %v488 = vunpack.c.h.b16 %v408
  %v489 = vunpack.c.l.b16 %v409
  %v490 = vunpack.c.h.b16 %v409
  %v491 = vunpack.c.l.b16 %v410
  %v492 = vunpack.c.h.b16 %v410
  %v493 = vunpack.c.l.b16 %v411
  %v494 = vunpack.c.h.b16 %v411
  %v495 = vunpack.c.l.b16 %v412
  %v496 = vunpack.c.h.b16 %v412
  %v497 = vunpack.c.l.b16 %v413
  %v498 = vunpack.c.h.b16 %v413
  %v499 = vunpack.c.l.b16 %v414
  %v500 = vunpack.c.h.b16 %v414
  %v501 = vunpack.c.l.b16 %v415
  %v502 = vunpack.c.h.b16 %v415
  %v503 = vunpack.c.l.b16 %v416
  %v504 = vunpack.c.h.b16 %v416
  %v505 = vunpack.c.l.b16 %v417
  %v506 = vunpack.c.h.b16 %v417
  %v507 = vunpack.c.l.b16 %v418
  %v508 = vunpack.c.h.b16 %v418
  %v509 = vunpack.c.l.b16 %v419
  %v510 = vunpack.c.h.b16 %v419
  %v511 = vunpack.c.l.b16 %v420
  %v512 = vunpack.c.h.b16 %v420
  %v513 = vunpack.c.l.b16 %v421
  %v514 = vunpack.c.h.b16 %v421
  %v515 = vunpack.c.l.b16 %v422
  %v516 = vunpack.c.h.b16 %v422
  %v517 = vunpack.c.l.b16 %v423
  %v518 = vunpack.c.h.b16 %v423
  %v519 = vunpack.c.l.b16 %v424
  %v520 = vunpack.c.h.b16 %v424
  %v521 = vpack.c.b16 %v461, %v457
  %v522 = vpack.c.b16 %v462, %v458
  %v523 = vpack.c.b16 %v463, %v459
  %v524 = vpack.c.b16 %v464, %v460
  %v525 = vpack.c.b16 %v469, %v465
  %v526 = vpack.c.b16 %v470, %v466
  %v527 = vpack.c.b16 %v471, %v467
  %v528 = vpack.c.b16 %v472, %v468
  %v529 = vpack.c.b16 %v477, %v473
  %v530 = vpack.c.b16 %v478, %v474
  %v531 = vpack.c.b16 %v479, %v475
  %v532 = vpack.c.b16 %v480, %v476
  %v533 = vpack.c.b16 %v485, %v481
  %v534 = vpack.c.b16 %v486, %v482
  %v535 = vpack.c.b16 %v487, %v483
  %v536 = vpack.c.b16 %v488, %v484
  %v537 = vpack.c.b16 %v493, %v489
  %v538 = vpack.c.b16 %v494, %v490
  %v539 = vpack.c.b16 %v495, %v491
  %v540 = vpack.c.b16 %v496, %v492
  %v541 = vpack.c.b16 %v501, %v497
  %v542 = vpack.c.b16 %v502, %v498
  %v543 = vpack.c.b16 %v503, %v499
  %v544 = vpack.c.b16 %v504, %v500
  %v545 = vpack.c.b16 %v509, %v505
  %v546 = vpack.c.b16 %v510, %v506
  %v547 = vpack.c.b16 %v511, %v507
  %v548 = vpack.c.b16 %v512, %v508
  %v549 = vpack.c.b16 %v517, %v513
  %v550 = vpack.c.b16 %v518, %v514
  %v551 = vpack.c.b16 %v519, %v515
  %v552 = vpack.c.b16 %v520, %v516
  %585 = vmatprep.subr.bf16.mxu0 %v522
  %586 = vmatpush1.bf16.msra.mxu0 %v521
  %587 = vmatprep.subr.bf16.mxu0 %v526
  %588 = vmatpush1.bf16.msra.mxu0 %v525
  %589 = vmatprep.subr.bf16.mxu0 %v530
  %590 = vmatpush1.bf16.msra.mxu0 %v529
  %591 = vmatprep.subr.bf16.mxu0 %v534
  %592 = vmatpush1.bf16.msra.mxu0 %v533
  %593 = vmatprep.subr.bf16.mxu0 %v538
  %594 = vmatpush1.bf16.msra.mxu0 %v537
  %595 = vmatprep.subr.bf16.mxu0 %v542
  %596 = vmatpush1.bf16.msra.mxu0 %v541
  %597 = vmatprep.subr.bf16.mxu0 %v546
  %598 = vmatpush1.bf16.msra.mxu0 %v545
  %599 = vmatprep.subr.bf16.mxu0 %v550
  %600 = vmatpush1.bf16.msra.mxu0 %v549
  %601 = vmatprep.subr.bf16.mxu0 0
  %602 = vmatpush1.bf16.msra.mxu0 0
  %603 = vmatprep.subr.bf16.mxu0 0
  %604 = vmatpush1.bf16.msra.mxu0 0
  %605 = vmatprep.subr.bf16.mxu0 0
  %606 = vmatpush1.bf16.msra.mxu0 0
  %607 = vmatprep.subr.bf16.mxu0 0
  %608 = vmatpush1.bf16.msra.mxu0 0
  %609 = vmatprep.subr.bf16.mxu0 0
  %610 = vmatpush1.bf16.msra.mxu0 0
  %611 = vmatprep.subr.bf16.mxu0 0
  %612 = vmatpush1.bf16.msra.mxu0 0
  %613 = vmatprep.subr.bf16.mxu0 0
  %614 = vmatpush1.bf16.msra.mxu0 0
  %615 = vmatprep.subr.bf16.mxu0 0
  %616 = vmatpush1.bf16.msra.mxu0 0
  %617 = vmatprep.mubr.bf16.mxu0 0
  %618 = vmatmul.mubr.bf16.gmra.mrb[0].mxu0 %v392
  %v619 = vpop.f32.mrb[0].mxu0
  %v620 = vadd.f32 0.0, %v619
  %v621 = vpop.f32.mrb[0].mxu0
  %v622 = vadd.f32 0.0, %v621
  %v623 = vpop.f32.mrb[0].mxu0
  %v624 = vadd.f32 0.0, %v623
  %v625 = vpop.f32.mrb[0].mxu0
  %v626 = vadd.f32 0.0, %v625
  %627 = vdwg.mxu0
  %628 = vmatprep.subr.bf16.mxu0 %v524
  %629 = vmatpush1.bf16.msra.mxu0 %v523
  %630 = vmatprep.subr.bf16.mxu0 %v528
  %631 = vmatpush1.bf16.msra.mxu0 %v527
  %632 = vmatprep.subr.bf16.mxu0 %v532
  %633 = vmatpush1.bf16.msra.mxu0 %v531
  %634 = vmatprep.subr.bf16.mxu0 %v536
  %635 = vmatpush1.bf16.msra.mxu0 %v535
  %636 = vmatprep.subr.bf16.mxu0 %v540
  %637 = vmatpush1.bf16.msra.mxu0 %v539
  %638 = vmatprep.subr.bf16.mxu0 %v544
  %639 = vmatpush1.bf16.msra.mxu0 %v543
  %640 = vmatprep.subr.bf16.mxu0 %v548
  %641 = vmatpush1.bf16.msra.mxu0 %v547
  %642 = vmatprep.subr.bf16.mxu0 %v552
  %643 = vmatpush1.bf16.msra.mxu0 %v551
  %644 = vmatprep.subr.bf16.mxu0 0
  %645 = vmatpush1.bf16.msra.mxu0 0
  %646 = vmatprep.subr.bf16.mxu0 0
  %647 = vmatpush1.bf16.msra.mxu0 0
  %648 = vmatprep.subr.bf16.mxu0 0
  %649 = vmatpush1.bf16.msra.mxu0 0
  %650 = vmatprep.subr.bf16.mxu0 0
  %651 = vmatpush1.bf16.msra.mxu0 0
  %652 = vmatprep.subr.bf16.mxu0 0
  %653 = vmatpush1.bf16.msra.mxu0 0
  %654 = vmatprep.subr.bf16.mxu0 0
  %655 = vmatpush1.bf16.msra.mxu0 0
  %656 = vmatprep.subr.bf16.mxu0 0
  %657 = vmatpush1.bf16.msra.mxu0 0
  %658 = vmatprep.subr.bf16.mxu0 0
  %659 = vmatpush1.bf16.msra.mxu0 0
  %660 = vmatprep.mubr.bf16.mxu0 0
  %661 = vmatmul.mubr.bf16.gmra.mrb[0].mxu0 %v392
  %v662 = vpop.f32.mrb[0].mxu0
  %v663 = vadd.f32 0.0, %v662
  %v664 = vpop.f32.mrb[0].mxu0
  %v665 = vadd.f32 0.0, %v664
  %v666 = vpop.f32.mrb[0].mxu0
  %v667 = vadd.f32 0.0, %v666
  %v668 = vpop.f32.mrb[0].mxu0
  %v669 = vadd.f32 0.0, %v668
  %670 = vdwg.mxu0
  %v671 = vadd.f32 %v382, %v620
  %v672 = vadd.f32 %v383, %v622
  %v673 = vadd.f32 %v384, %v663
  %v674 = vadd.f32 %v385, %v665
  %v675 = vadd.f32 %v386, %v624
  %v676 = vadd.f32 %v387, %v626
  %v677 = vadd.f32 %v388, %v667
  %v678 = vadd.f32 %v389, %v669
  %v679 = vmul.f32 %v671, 0.5
  %v680 = vmul.f32 %v675, 0.5
  %v681 = vtanh.pop %v679
  %v682 = vtanh.pop %v680
  %v683 = vmul.f32 %v681, 0.5
  %v684 = vmul.f32 %v682, 0.5
  %v685 = vadd.f32 %v683, 0.5
  %v686 = vadd.f32 %v684, 0.5
  %v687 = vmul.f32 %v672, 0.5
  %v688 = vmul.f32 %v676, 0.5
  %v689 = vtanh.pop %v687
  %v690 = vtanh.pop %v688
  %v691 = vmul.f32 %v689, 0.5
  %v692 = vmul.f32 %v690, 0.5
  %v693 = vadd.f32 %v691, 0.5
  %v694 = vadd.f32 %v692, 0.5
  %v695 = vtanh.pop %v673
  %v696 = vtanh.pop %v677
  %v697 = vmul.f32 %v674, 0.5
  %v698 = vmul.f32 %v678, 0.5
  %v699 = vtanh.pop %v697
  %v700 = vtanh.pop %v698
  %v701 = vmul.f32 %v699, 0.5
  %v702 = vmul.f32 %v700, 0.5
  %v703 = vadd.f32 %v701, 0.5
  %v704 = vadd.f32 %v702, 0.5
  %v705 = vld [vmem:[#allocation3] sm:$0xff]
  %v706 = vld [vmem:[#allocation3 + $0x8] sm:$0xff]
  %v707 = vmul.f32 %v693, %v705
  %v708 = vmul.f32 %v694, %v706
  %v709 = vmul.f32 %v685, %v695
  %v710 = vmul.f32 %v686, %v696
  %v711 = vadd.f32 %v707, %v709
  %v712 = vadd.f32 %v708, %v710
  %v713 = vtanh.pop %v711
  %v714 = vtanh.pop %v712
  %v715 = vmul.f32 %v703, %v713
  %v716 = vmul.f32 %v704, %v714
  %717 = vst [vmem:[#allocation3] sm:$0xff] %v711
  %718 = vst [vmem:[#allocation3 + $0x8] sm:$0xff] %v712
  %719 = vst [vmem:[#allocation2] sm:$0xff] %v715
  %720 = vst [vmem:[#allocation2 + $0x8] sm:$0xff] %v716
  %v721 = vpack.c.bf16 %v716, %v715
  %v723 = vunpack.c.l.b16 %v721
  %v724 = vunpack.c.h.b16 %v721
  %v725 = vpack.c.b16 %v723, %v723
  %v726 = vpack.c.b16 %v724, %v724
  %s729 = scalar_lea.vmem %s3, 8
  %730 = vst [vmem:[%s729] sm:$0xf] %v725
  %731 = vst [vmem:[%s729 + $0x4] sm:$0xf] %v726
  %s732 = scalar_lea.vmem %s0, 64
  %v733 = vld [vmem:[%s732] sm:$0xff]
  %v734 = vld [vmem:[%s732 + $0x8] sm:$0xff]
  %v735 = vld [vmem:[%s732 + $0x10] sm:$0xff]
  %v736 = vld [vmem:[%s732 + $0x18] sm:$0xff]
  %v737 = vunpack.c.l.bf16 %v733
  %v738 = vunpack.c.h.bf16 %v733
  %v739 = vunpack.c.l.bf16 %v734
  %v740 = vunpack.c.h.bf16 %v734
  %v741 = vunpack.c.l.bf16 %v735
  %v742 = vunpack.c.h.bf16 %v735
  %v743 = vunpack.c.l.bf16 %v736
  %v744 = vunpack.c.h.bf16 %v736
  %v745 = vld [vmem:[#allocation2] sm:$0xff]
  %v746 = vld [vmem:[#allocation2 + $0x8] sm:$0xff]
  %v747 = vpack.c.bf16 %v746, %v745
  %v748 = vld [vmem:[%s1] sm:$0xff]
  %v749 = vld [vmem:[%s1 + $0x8] sm:$0xff]
  %v750 = vld [vmem:[%s1 + $0x10] sm:$0xff]
  %v751 = vld [vmem:[%s1 + $0x18] sm:$0xff]
  %v752 = vld [vmem:[%s1 + $0x20] sm:$0xff]
  %v753 = vld [vmem:[%s1 + $0x28] sm:$0xff]
  %v754 = vld [vmem:[%s1 + $0x30] sm:$0xff]
  %v755 = vld [vmem:[%s1 + $0x38] sm:$0xff]
  %v756 = vld [vmem:[%s1 + $0x40] sm:$0xff]
  %v757 = vld [vmem:[%s1 + $0x48] sm:$0xff]
  %v758 = vld [vmem:[%s1 + $0x50] sm:$0xff]
  %v759 = vld [vmem:[%s1 + $0x58] sm:$0xff]
  %v760 = vld [vmem:[%s1 + $0x60] sm:$0xff]
  %v761 = vld [vmem:[%s1 + $0x68] sm:$0xff]
  %v762 = vld [vmem:[%s1 + $0x70] sm:$0xff]
  %v763 = vld [vmem:[%s1 + $0x78] sm:$0xff]
  %v764 = vld [vmem:[%s1 + $0x80] sm:$0xff]
  %v765 = vld [vmem:[%s1 + $0x88] sm:$0xff]
  %v766 = vld [vmem:[%s1 + $0x90] sm:$0xff]
  %v767 = vld [vmem:[%s1 + $0x98] sm:$0xff]
  %v768 = vld [vmem:[%s1 + $0xa0] sm:$0xff]
  %v769 = vld [vmem:[%s1 + $0xa8] sm:$0xff]
  %v770 = vld [vmem:[%s1 + $0xb0] sm:$0xff]
  %v771 = vld [vmem:[%s1 + $0xb8] sm:$0xff]
  %v772 = vld [vmem:[%s1 + $0xc0] sm:$0xff]
  %v773 = vld [vmem:[%s1 + $0xc8] sm:$0xff]
  %v774 = vld [vmem:[%s1 + $0xd0] sm:$0xff]
  %v775 = vld [vmem:[%s1 + $0xd8] sm:$0xff]
  %v776 = vld [vmem:[%s1 + $0xe0] sm:$0xff]
  %v777 = vld [vmem:[%s1 + $0xe8] sm:$0xff]
  %v778 = vld [vmem:[%s1 + $0xf0] sm:$0xff]
  %v779 = vld [vmem:[%s1 + $0xf8] sm:$0xff]
  %v812 = vunpack.c.l.b16 %v748
  %v813 = vunpack.c.h.b16 %v748
  %v814 = vunpack.c.l.b16 %v749
  %v815 = vunpack.c.h.b16 %v749
  %v816 = vunpack.c.l.b16 %v750
  %v817 = vunpack.c.h.b16 %v750
  %v818 = vunpack.c.l.b16 %v751
  %v819 = vunpack.c.h.b16 %v751
  %v820 = vunpack.c.l.b16 %v752
  %v821 = vunpack.c.h.b16 %v752
  %v822 = vunpack.c.l.b16 %v753
  %v823 = vunpack.c.h.b16 %v753
  %v824 = vunpack.c.l.b16 %v754
  %v825 = vunpack.c.h.b16 %v754
  %v826 = vunpack.c.l.b16 %v755
  %v827 = vunpack.c.h.b16 %v755
  %v828 = vunpack.c.l.b16 %v756
  %v829 = vunpack.c.h.b16 %v756
  %v830 = vunpack.c.l.b16 %v757
  %v831 = vunpack.c.h.b16 %v757
  %v832 = vunpack.c.l.b16 %v758
  %v833 = vunpack.c.h.b16 %v758
  %v834 = vunpack.c.l.b16 %v759
  %v835 = vunpack.c.h.b16 %v759
  %v836 = vunpack.c.l.b16 %v760
  %v837 = vunpack.c.h.b16 %v760
  %v838 = vunpack.c.l.b16 %v761
  %v839 = vunpack.c.h.b16 %v761
  %v840 = vunpack.c.l.b16 %v762
  %v841 = vunpack.c.h.b16 %v762
  %v842 = vunpack.c.l.b16 %v763
  %v843 = vunpack.c.h.b16 %v763
  %v844 = vunpack.c.l.b16 %v764
  %v845 = vunpack.c.h.b16 %v764
  %v846 = vunpack.c.l.b16 %v765
  %v847 = vunpack.c.h.b16 %v765
  %v848 = vunpack.c.l.b16 %v766
  %v849 = vunpack.c.h.b16 %v766
  %v850 = vunpack.c.l.b16 %v767
  %v851 = vunpack.c.h.b16 %v767
  %v852 = vunpack.c.l.b16 %v768
  %v853 = vunpack.c.h.b16 %v768
  %v854 = vunpack.c.l.b16 %v769
  %v855 = vunpack.c.h.b16 %v769
  %v856 = vunpack.c.l.b16 %v770
  %v857 = vunpack.c.h.b16 %v770
  %v858 = vunpack.c.l.b16 %v771
  %v859 = vunpack.c.h.b16 %v771
  %v860 = vunpack.c.l.b16 %v772
  %v861 = vunpack.c.h.b16 %v772
  %v862 = vunpack.c.l.b16 %v773
  %v863 = vunpack.c.h.b16 %v773
  %v864 = vunpack.c.l.b16 %v774
  %v865 = vunpack.c.h.b16 %v774
  %v866 = vunpack.c.l.b16 %v775
  %v867 = vunpack.c.h.b16 %v775
  %v868 = vunpack.c.l.b16 %v776
  %v869 = vunpack.c.h.b16 %v776
  %v870 = vunpack.c.l.b16 %v777
  %v871 = vunpack.c.h.b16 %v777
  %v872 = vunpack.c.l.b16 %v778
  %v873 = vunpack.c.h.b16 %v778
  %v874 = vunpack.c.l.b16 %v779
  %v875 = vunpack.c.h.b16 %v779
  %v876 = vpack.c.b16 %v816, %v812
  %v877 = vpack.c.b16 %v817, %v813
  %v878 = vpack.c.b16 %v818, %v814
  %v879 = vpack.c.b16 %v819, %v815
  %v880 = vpack.c.b16 %v824, %v820
  %v881 = vpack.c.b16 %v825, %v821
  %v882 = vpack.c.b16 %v826, %v822
  %v883 = vpack.c.b16 %v827, %v823
  %v884 = vpack.c.b16 %v832, %v828
  %v885 = vpack.c.b16 %v833, %v829
  %v886 = vpack.c.b16 %v834, %v830
  %v887 = vpack.c.b16 %v835, %v831
  %v888 = vpack.c.b16 %v840, %v836
  %v889 = vpack.c.b16 %v841, %v837
  %v890 = vpack.c.b16 %v842, %v838
  %v891 = vpack.c.b16 %v843, %v839
  %v892 = vpack.c.b16 %v848, %v844
  %v893 = vpack.c.b16 %v849, %v845
  %v894 = vpack.c.b16 %v850, %v846
  %v895 = vpack.c.b16 %v851, %v847
  %v896 = vpack.c.b16 %v856, %v852
  %v897 = vpack.c.b16 %v857, %v853
  %v898 = vpack.c.b16 %v858, %v854
  %v899 = vpack.c.b16 %v859, %v855
  %v900 = vpack.c.b16 %v864, %v860
  %v901 = vpack.c.b16 %v865, %v861
  %v902 = vpack.c.b16 %v866, %v862
  %v903 = vpack.c.b16 %v867, %v863
  %v904 = vpack.c.b16 %v872, %v868
  %v905 = vpack.c.b16 %v873, %v869
  %v906 = vpack.c.b16 %v874, %v870
  %v907 = vpack.c.b16 %v875, %v871
  %940 = vmatprep.subr.bf16.mxu0 %v877
  %941 = vmatpush1.bf16.msra.mxu0 %v876
  %942 = vmatprep.subr.bf16.mxu0 %v881
  %943 = vmatpush1.bf16.msra.mxu0 %v880
  %944 = vmatprep.subr.bf16.mxu0 %v885
  %945 = vmatpush1.bf16.msra.mxu0 %v884
  %946 = vmatprep.subr.bf16.mxu0 %v889
  %947 = vmatpush1.bf16.msra.mxu0 %v888
  %948 = vmatprep.subr.bf16.mxu0 %v893
  %949 = vmatpush1.bf16.msra.mxu0 %v892
  %950 = vmatprep.subr.bf16.mxu0 %v897
  %951 = vmatpush1.bf16.msra.mxu0 %v896
  %952 = vmatprep.subr.bf16.mxu0 %v901
  %953 = vmatpush1.bf16.msra.mxu0 %v900
  %954 = vmatprep.subr.bf16.mxu0 %v905
  %955 = vmatpush1.bf16.msra.mxu0 %v904
  %956 = vmatprep.subr.bf16.mxu0 0
  %957 = vmatpush1.bf16.msra.mxu0 0
  %958 = vmatprep.subr.bf16.mxu0 0
  %959 = vmatpush1.bf16.msra.mxu0 0
  %960 = vmatprep.subr.bf16.mxu0 0
  %961 = vmatpush1.bf16.msra.mxu0 0
  %962 = vmatprep.subr.bf16.mxu0 0
  %963 = vmatpush1.bf16.msra.mxu0 0
  %964 = vmatprep.subr.bf16.mxu0 0
  %965 = vmatpush1.bf16.msra.mxu0 0
  %966 = vmatprep.subr.bf16.mxu0 0
  %967 = vmatpush1.bf16.msra.mxu0 0
  %968 = vmatprep.subr.bf16.mxu0 0
  %969 = vmatpush1.bf16.msra.mxu0 0
  %970 = vmatprep.subr.bf16.mxu0 0
  %971 = vmatpush1.bf16.msra.mxu0 0
  %972 = vmatprep.mubr.bf16.mxu0 0
  %973 = vmatmul.mubr.bf16.gmra.mrb[0].mxu0 %v747
  %v974 = vpop.f32.mrb[0].mxu0
  %v975 = vadd.f32 0.0, %v974
  %v976 = vpop.f32.mrb[0].mxu0
  %v977 = vadd.f32 0.0, %v976
  %v978 = vpop.f32.mrb[0].mxu0
  %v979 = vadd.f32 0.0, %v978
  %v980 = vpop.f32.mrb[0].mxu0
  %v981 = vadd.f32 0.0, %v980
  %982 = vdwg.mxu0
  %983 = vmatprep.subr.bf16.mxu0 %v879
  %984 = vmatpush1.bf16.msra.mxu0 %v878
  %985 = vmatprep.subr.bf16.mxu0 %v883
  %986 = vmatpush1.bf16.msra.mxu0 %v882
  %987 = vmatprep.subr.bf16.mxu0 %v887
  %988 = vmatpush1.bf16.msra.mxu0 %v886
  %989 = vmatprep.subr.bf16.mxu0 %v891
  %990 = vmatpush1.bf16.msra.mxu0 %v890
  %991 = vmatprep.subr.bf16.mxu0 %v895
  %992 = vmatpush1.bf16.msra.mxu0 %v894
  %993 = vmatprep.subr.bf16.mxu0 %v899
  %994 = vmatpush1.bf16.msra.mxu0 %v898
  %995 = vmatprep.subr.bf16.mxu0 %v903
  %996 = vmatpush1.bf16.msra.mxu0 %v902
  %997 = vmatprep.subr.bf16.mxu0 %v907
  %998 = vmatpush1.bf16.msra.mxu0 %v906
  %999 = vmatprep.subr.bf16.mxu0 0
  %1000 = vmatpush1.bf16.msra.mxu0 0
  %1001 = vmatprep.subr.bf16.mxu0 0
  %1002 = vmatpush1.bf16.msra.mxu0 0
  %1003 = vmatprep.subr.bf16.mxu0 0
  %1004 = vmatpush1.bf16.msra.mxu0 0
  %1005 = vmatprep.subr.bf16.mxu0 0
  %1006 = vmatpush1.bf16.msra.mxu0 0
  %1007 = vmatprep.subr.bf16.mxu0 0
  %1008 = vmatpush1.bf16.msra.mxu0 0
  %1009 = vmatprep.subr.bf16.mxu0 0
  %1010 = vmatpush1.bf16.msra.mxu0 0
  %1011 = vmatprep.subr.bf16.mxu0 0
  %1012 = vmatpush1.bf16.msra.mxu0 0
  %1013 = vmatprep.subr.bf16.mxu0 0
  %1014 = vmatpush1.bf16.msra.mxu0 0
  %1015 = vmatprep.mubr.bf16.mxu0 0
  %1016 = vmatmul.mubr.bf16.gmra.mrb[0].mxu0 %v747
  %v1017 = vpop.f32.mrb[0].mxu0
  %v1018 = vadd.f32 0.0, %v1017
  %v1019 = vpop.f32.mrb[0].mxu0
  %v1020 = vadd.f32 0.0, %v1019
  %v1021 = vpop.f32.mrb[0].mxu0
  %v1022 = vadd.f32 0.0, %v1021
  %v1023 = vpop.f32.mrb[0].mxu0
  %v1024 = vadd.f32 0.0, %v1023
  %1025 = vdwg.mxu0
  %v1026 = vadd.f32 %v737, %v975
  %v1027 = vadd.f32 %v738, %v977
  %v1028 = vadd.f32 %v739, %v1018
  %v1029 = vadd.f32 %v740, %v1020
  %v1030 = vadd.f32 %v741, %v979
  %v1031 = vadd.f32 %v742, %v981
  %v1032 = vadd.f32 %v743, %v1022
  %v1033 = vadd.f32 %v744, %v1024
  %v1034 = vmul.f32 %v1026, 0.5
  %v1035 = vmul.f32 %v1030, 0.5
  %v1036 = vtanh.pop %v1034
  %v1037 = vtanh.pop %v1035
  %v1038 = vmul.f32 %v1036, 0.5
  %v1039 = vmul.f32 %v1037, 0.5
  %v1040 = vadd.f32 %v1038, 0.5
  %v1041 = vadd.f32 %v1039, 0.5
  %v1042 = vmul.f32 %v1027, 0.5
  %v1043 = vmul.f32 %v1031, 0.5
  %v1044 = vtanh.pop %v1042
  %v1045 = vtanh.pop %v1043
  %v1046 = vmul.f32 %v1044, 0.5
  %v1047 = vmul.f32 %v1045, 0.5
  %v1048 = vadd.f32 %v1046, 0.5
  %v1049 = vadd.f32 %v1047, 0.5
  %v1050 = vtanh.pop %v1028
  %v1051 = vtanh.pop %v1032
  %v1052 = vmul.f32 %v1029, 0.5
  %v1053 = vmul.f32 %v1033, 0.5
  %v1054 = vtanh.pop %v1052
  %v1055 = vtanh.pop %v1053
  %v1056 = vmul.f32 %v1054, 0.5
  %v1057 = vmul.f32 %v1055, 0.5
  %v1058 = vadd.f32 %v1056, 0.5
  %v1059 = vadd.f32 %v1057, 0.5
  %v1060 = vld [vmem:[#allocation3] sm:$0xff]
  %v1061 = vld [vmem:[#allocation3 + $0x8] sm:$0xff]
  %v1062 = vmul.f32 %v1048, %v1060
  %v1063 = vmul.f32 %v1049, %v1061
  %v1064 = vmul.f32 %v1040, %v1050
  %v1065 = vmul.f32 %v1041, %v1051
  %v1066 = vadd.f32 %v1062, %v1064
  %v1067 = vadd.f32 %v1063, %v1065
  %v1068 = vtanh.pop %v1066
  %v1069 = vtanh.pop %v1067
  %v1070 = vmul.f32 %v1058, %v1068
  %v1071 = vmul.f32 %v1059, %v1069
  %1072 = vst [vmem:[#allocation3] sm:$0xff] %v1066
  %1073 = vst [vmem:[#allocation3 + $0x8] sm:$0xff] %v1067
  %1074 = vst [vmem:[#allocation2] sm:$0xff] %v1070
  %1075 = vst [vmem:[#allocation2 + $0x8] sm:$0xff] %v1071
  %v1076 = vpack.c.bf16 %v1071, %v1070
  %v1078 = vunpack.c.l.b16 %v1076
  %v1079 = vunpack.c.h.b16 %v1076
  %v1080 = vpack.c.b16 %v1078, %v1078
  %v1081 = vpack.c.b16 %v1079, %v1079
  %s1084 = scalar_lea.vmem %s3, 16
  %1085 = vst [vmem:[%s1084] sm:$0xf] %v1080
  %1086 = vst [vmem:[%s1084 + $0x4] sm:$0xf] %v1081
  %s1087 = scalar_lea.vmem %s0, 96
  %v1088 = vld [vmem:[%s1087] sm:$0xff]
  %v1089 = vld [vmem:[%s1087 + $0x8] sm:$0xff]
  %v1090 = vld [vmem:[%s1087 + $0x10] sm:$0xff]
  %v1091 = vld [vmem:[%s1087 + $0x18] sm:$0xff]
  %v1092 = vunpack.c.l.bf16 %v1088
  %v1093 = vunpack.c.h.bf16 %v1088
  %v1094 = vunpack.c.l.bf16 %v1089
  %v1095 = vunpack.c.h.bf16 %v1089
  %v1096 = vunpack.c.l.bf16 %v1090
  %v1097 = vunpack.c.h.bf16 %v1090
  %v1098 = vunpack.c.l.bf16 %v1091
  %v1099 = vunpack.c.h.bf16 %v1091
  %v1100 = vld [vmem:[#allocation2] sm:$0xff]
  %v1101 = vld [vmem:[#allocation2 + $0x8] sm:$0xff]
  %v1102 = vpack.c.bf16 %v1101, %v1100
  %v1103 = vld [vmem:[%s1] sm:$0xff]
  %v1104 = vld [vmem:[%s1 + $0x8] sm:$0xff]
  %v1105 = vld [vmem:[%s1 + $0x10] sm:$0xff]
  %v1106 = vld [vmem:[%s1 + $0x18] sm:$0xff]
  %v1107 = vld [vmem:[%s1 + $0x20] sm:$0xff]
  %v1108 = vld [vmem:[%s1 + $0x28] sm:$0xff]
  %v1109 = vld [vmem:[%s1 + $0x30] sm:$0xff]
  %v1110 = vld [vmem:[%s1 + $0x38] sm:$0xff]
  %v1111 = vld [vmem:[%s1 + $0x40] sm:$0xff]
  %v1112 = vld [vmem:[%s1 + $0x48] sm:$0xff]
  %v1113 = vld [vmem:[%s1 + $0x50] sm:$0xff]
  %v1114 = vld [vmem:[%s1 + $0x58] sm:$0xff]
  %v1115 = vld [vmem:[%s1 + $0x60] sm:$0xff]
  %v1116 = vld [vmem:[%s1 + $0x68] sm:$0xff]
  %v1117 = vld [vmem:[%s1 + $0x70] sm:$0xff]
  %v1118 = vld [vmem:[%s1 + $0x78] sm:$0xff]
  %v1119 = vld [vmem:[%s1 + $0x80] sm:$0xff]
  %v1120 = vld [vmem:[%s1 + $0x88] sm:$0xff]
  %v1121 = vld [vmem:[%s1 + $0x90] sm:$0xff]
  %v1122 = vld [vmem:[%s1 + $0x98] sm:$0xff]
  %v1123 = vld [vmem:[%s1 + $0xa0] sm:$0xff]
  %v1124 = vld [vmem:[%s1 + $0xa8] sm:$0xff]
  %v1125 = vld [vmem:[%s1 + $0xb0] sm:$0xff]
  %v1126 = vld [vmem:[%s1 + $0xb8] sm:$0xff]
  %v1127 = vld [vmem:[%s1 + $0xc0] sm:$0xff]
  %v1128 = vld [vmem:[%s1 + $0xc8] sm:$0xff]
  %v1129 = vld [vmem:[%s1 + $0xd0] sm:$0xff]
  %v1130 = vld [vmem:[%s1 + $0xd8] sm:$0xff]
  %v1131 = vld [vmem:[%s1 + $0xe0] sm:$0xff]
  %v1132 = vld [vmem:[%s1 + $0xe8] sm:$0xff]
  %v1133 = vld [vmem:[%s1 + $0xf0] sm:$0xff]
  %v1134 = vld [vmem:[%s1 + $0xf8] sm:$0xff]
  %v1167 = vunpack.c.l.b16 %v1103
  %v1168 = vunpack.c.h.b16 %v1103
  %v1169 = vunpack.c.l.b16 %v1104
  %v1170 = vunpack.c.h.b16 %v1104
  %v1171 = vunpack.c.l.b16 %v1105
  %v1172 = vunpack.c.h.b16 %v1105
  %v1173 = vunpack.c.l.b16 %v1106
  %v1174 = vunpack.c.h.b16 %v1106
  %v1175 = vunpack.c.l.b16 %v1107
  %v1176 = vunpack.c.h.b16 %v1107
  %v1177 = vunpack.c.l.b16 %v1108
  %v1178 = vunpack.c.h.b16 %v1108
  %v1179 = vunpack.c.l.b16 %v1109
  %v1180 = vunpack.c.h.b16 %v1109
  %v1181 = vunpack.c.l.b16 %v1110
  %v1182 = vunpack.c.h.b16 %v1110
  %v1183 = vunpack.c.l.b16 %v1111
  %v1184 = vunpack.c.h.b16 %v1111
  %v1185 = vunpack.c.l.b16 %v1112
  %v1186 = vunpack.c.h.b16 %v1112
  %v1187 = vunpack.c.l.b16 %v1113
  %v1188 = vunpack.c.h.b16 %v1113
  %v1189 = vunpack.c.l.b16 %v1114
  %v1190 = vunpack.c.h.b16 %v1114
  %v1191 = vunpack.c.l.b16 %v1115
  %v1192 = vunpack.c.h.b16 %v1115
  %v1193 = vunpack.c.l.b16 %v1116
  %v1194 = vunpack.c.h.b16 %v1116
  %v1195 = vunpack.c.l.b16 %v1117
  %v1196 = vunpack.c.h.b16 %v1117
  %v1197 = vunpack.c.l.b16 %v1118
  %v1198 = vunpack.c.h.b16 %v1118
  %v1199 = vunpack.c.l.b16 %v1119
  %v1200 = vunpack.c.h.b16 %v1119
  %v1201 = vunpack.c.l.b16 %v1120
  %v1202 = vunpack.c.h.b16 %v1120
  %v1203 = vunpack.c.l.b16 %v1121
  %v1204 = vunpack.c.h.b16 %v1121
  %v1205 = vunpack.c.l.b16 %v1122
  %v1206 = vunpack.c.h.b16 %v1122
  %v1207 = vunpack.c.l.b16 %v1123
  %v1208 = vunpack.c.h.b16 %v1123
  %v1209 = vunpack.c.l.b16 %v1124
  %v1210 = vunpack.c.h.b16 %v1124
  %v1211 = vunpack.c.l.b16 %v1125
  %v1212 = vunpack.c.h.b16 %v1125
  %v1213 = vunpack.c.l.b16 %v1126
  %v1214 = vunpack.c.h.b16 %v1126
  %v1215 = vunpack.c.l.b16 %v1127
  %v1216 = vunpack.c.h.b16 %v1127
  %v1217 = vunpack.c.l.b16 %v1128
  %v1218 = vunpack.c.h.b16 %v1128
  %v1219 = vunpack.c.l.b16 %v1129
  %v1220 = vunpack.c.h.b16 %v1129
  %v1221 = vunpack.c.l.b16 %v1130
  %v1222 = vunpack.c.h.b16 %v1130
  %v1223 = vunpack.c.l.b16 %v1131
  %v1224 = vunpack.c.h.b16 %v1131
  %v1225 = vunpack.c.l.b16 %v1132
  %v1226 = vunpack.c.h.b16 %v1132
  %v1227 = vunpack.c.l.b16 %v1133
  %v1228 = vunpack.c.h.b16 %v1133
  %v1229 = vunpack.c.l.b16 %v1134
  %v1230 = vunpack.c.h.b16 %v1134
  %v1231 = vpack.c.b16 %v1171, %v1167
  %v1232 = vpack.c.b16 %v1172, %v1168
  %v1233 = vpack.c.b16 %v1173, %v1169
  %v1234 = vpack.c.b16 %v1174, %v1170
  %v1235 = vpack.c.b16 %v1179, %v1175
  %v1236 = vpack.c.b16 %v1180, %v1176
  %v1237 = vpack.c.b16 %v1181, %v1177
  %v1238 = vpack.c.b16 %v1182, %v1178
  %v1239 = vpack.c.b16 %v1187, %v1183
  %v1240 = vpack.c.b16 %v1188, %v1184
  %v1241 = vpack.c.b16 %v1189, %v1185
  %v1242 = vpack.c.b16 %v1190, %v1186
  %v1243 = vpack.c.b16 %v1195, %v1191
  %v1244 = vpack.c.b16 %v1196, %v1192
  %v1245 = vpack.c.b16 %v1197, %v1193
  %v1246 = vpack.c.b16 %v1198, %v1194
  %v1247 = vpack.c.b16 %v1203, %v1199
  %v1248 = vpack.c.b16 %v1204, %v1200
  %v1249 = vpack.c.b16 %v1205, %v1201
  %v1250 = vpack.c.b16 %v1206, %v1202
  %v1251 = vpack.c.b16 %v1211, %v1207
  %v1252 = vpack.c.b16 %v1212, %v1208
  %v1253 = vpack.c.b16 %v1213, %v1209
  %v1254 = vpack.c.b16 %v1214, %v1210
  %v1255 = vpack.c.b16 %v1219, %v1215
  %v1256 = vpack.c.b16 %v1220, %v1216
  %v1257 = vpack.c.b16 %v1221, %v1217
  %v1258 = vpack.c.b16 %v1222, %v1218
  %v1259 = vpack.c.b16 %v1227, %v1223
  %v1260 = vpack.c.b16 %v1228, %v1224
  %v1261 = vpack.c.b16 %v1229, %v1225
  %v1262 = vpack.c.b16 %v1230, %v1226
  %1295 = vmatprep.subr.bf16.mxu0 %v1232
  %1296 = vmatpush1.bf16.msra.mxu0 %v1231
  %1297 = vmatprep.subr.bf16.mxu0 %v1236
  %1298 = vmatpush1.bf16.msra.mxu0 %v1235
  %1299 = vmatprep.subr.bf16.mxu0 %v1240
  %1300 = vmatpush1.bf16.msra.mxu0 %v1239
  %1301 = vmatprep.subr.bf16.mxu0 %v1244
  %1302 = vmatpush1.bf16.msra.mxu0 %v1243
  %1303 = vmatprep.subr.bf16.mxu0 %v1248
  %1304 = vmatpush1.bf16.msra.mxu0 %v1247
  %1305 = vmatprep.subr.bf16.mxu0 %v1252
  %1306 = vmatpush1.bf16.msra.mxu0 %v1251
  %1307 = vmatprep.subr.bf16.mxu0 %v1256
  %1308 = vmatpush1.bf16.msra.mxu0 %v1255
  %1309 = vmatprep.subr.bf16.mxu0 %v1260
  %1310 = vmatpush1.bf16.msra.mxu0 %v1259
  %1311 = vmatprep.subr.bf16.mxu0 0
  %1312 = vmatpush1.bf16.msra.mxu0 0
  %1313 = vmatprep.subr.bf16.mxu0 0
  %1314 = vmatpush1.bf16.msra.mxu0 0
  %1315 = vmatprep.subr.bf16.mxu0 0
  %1316 = vmatpush1.bf16.msra.mxu0 0
  %1317 = vmatprep.subr.bf16.mxu0 0
  %1318 = vmatpush1.bf16.msra.mxu0 0
  %1319 = vmatprep.subr.bf16.mxu0 0
  %1320 = vmatpush1.bf16.msra.mxu0 0
  %1321 = vmatprep.subr.bf16.mxu0 0
  %1322 = vmatpush1.bf16.msra.mxu0 0
  %1323 = vmatprep.subr.bf16.mxu0 0
  %1324 = vmatpush1.bf16.msra.mxu0 0
  %1325 = vmatprep.subr.bf16.mxu0 0
  %1326 = vmatpush1.bf16.msra.mxu0 0
  %1327 = vmatprep.mubr.bf16.mxu0 0
  %1328 = vmatmul.mubr.bf16.gmra.mrb[0].mxu0 %v1102
  %v1329 = vpop.f32.mrb[0].mxu0
  %v1330 = vadd.f32 0.0, %v1329
  %v1331 = vpop.f32.mrb[0].mxu0
  %v1332 = vadd.f32 0.0, %v1331
  %v1333 = vpop.f32.mrb[0].mxu0
  %v1334 = vadd.f32 0.0, %v1333
  %v1335 = vpop.f32.mrb[0].mxu0
  %v1336 = vadd.f32 0.0, %v1335
  %1337 = vdwg.mxu0
  %1338 = vmatprep.subr.bf16.mxu0 %v1234
  %1339 = vmatpush1.bf16.msra.mxu0 %v1233
  %1340 = vmatprep.subr.bf16.mxu0 %v1238
  %1341 = vmatpush1.bf16.msra.mxu0 %v1237
  %1342 = vmatprep.subr.bf16.mxu0 %v1242
  %1343 = vmatpush1.bf16.msra.mxu0 %v1241
  %1344 = vmatprep.subr.bf16.mxu0 %v1246
  %1345 = vmatpush1.bf16.msra.mxu0 %v1245
  %1346 = vmatprep.subr.bf16.mxu0 %v1250
  %1347 = vmatpush1.bf16.msra.mxu0 %v1249
  %1348 = vmatprep.subr.bf16.mxu0 %v1254
  %1349 = vmatpush1.bf16.msra.mxu0 %v1253
  %1350 = vmatprep.subr.bf16.mxu0 %v1258
  %1351 = vmatpush1.bf16.msra.mxu0 %v1257
  %1352 = vmatprep.subr.bf16.mxu0 %v1262
  %1353 = vmatpush1.bf16.msra.mxu0 %v1261
  %1354 = vmatprep.subr.bf16.mxu0 0
  %1355 = vmatpush1.bf16.msra.mxu0 0
  %1356 = vmatprep.subr.bf16.mxu0 0
  %1357 = vmatpush1.bf16.msra.mxu0 0
  %1358 = vmatprep.subr.bf16.mxu0 0
  %1359 = vmatpush1.bf16.msra.mxu0 0
  %1360 = vmatprep.subr.bf16.mxu0 0
  %1361 = vmatpush1.bf16.msra.mxu0 0
  %1362 = vmatprep.subr.bf16.mxu0 0
  %1363 = vmatpush1.bf16.msra.mxu0 0
  %1364 = vmatprep.subr.bf16.mxu0 0
  %1365 = vmatpush1.bf16.msra.mxu0 0
  %1366 = vmatprep.subr.bf16.mxu0 0
  %1367 = vmatpush1.bf16.msra.mxu0 0
  %1368 = vmatprep.subr.bf16.mxu0 0
  %1369 = vmatpush1.bf16.msra.mxu0 0
  %1370 = vmatprep.mubr.bf16.mxu0 0
  %1371 = vmatmul.mubr.bf16.gmra.mrb[0].mxu0 %v1102
  %v1372 = vpop.f32.mrb[0].mxu0
  %v1373 = vadd.f32 0.0, %v1372
  %v1374 = vpop.f32.mrb[0].mxu0
  %v1375 = vadd.f32 0.0, %v1374
  %v1376 = vpop.f32.mrb[0].mxu0
  %v1377 = vadd.f32 0.0, %v1376
  %v1378 = vpop.f32.mrb[0].mxu0
  %v1379 = vadd.f32 0.0, %v1378
  %1380 = vdwg.mxu0
  %v1381 = vadd.f32 %v1092, %v1330
  %v1382 = vadd.f32 %v1093, %v1332
  %v1383 = vadd.f32 %v1094, %v1373
  %v1384 = vadd.f32 %v1095, %v1375
  %v1385 = vadd.f32 %v1096, %v1334
  %v1386 = vadd.f32 %v1097, %v1336
  %v1387 = vadd.f32 %v1098, %v1377
  %v1388 = vadd.f32 %v1099, %v1379
  %v1389 = vmul.f32 %v1381, 0.5
  %v1390 = vmul.f32 %v1385, 0.5
  %v1391 = vtanh.pop %v1389
  %v1392 = vtanh.pop %v1390
  %v1393 = vmul.f32 %v1391, 0.5
  %v1394 = vmul.f32 %v1392, 0.5
  %v1395 = vadd.f32 %v1393, 0.5
  %v1396 = vadd.f32 %v1394, 0.5
  %v1397 = vmul.f32 %v1382, 0.5
  %v1398 = vmul.f32 %v1386, 0.5
  %v1399 = vtanh.pop %v1397
  %v1400 = vtanh.pop %v1398
  %v1401 = vmul.f32 %v1399, 0.5
  %v1402 = vmul.f32 %v1400, 0.5
  %v1403 = vadd.f32 %v1401, 0.5
  %v1404 = vadd.f32 %v1402, 0.5
  %v1405 = vtanh.pop %v1383
  %v1406 = vtanh.pop %v1387
  %v1407 = vmul.f32 %v1384, 0.5
  %v1408 = vmul.f32 %v1388, 0.5
  %v1409 = vtanh.pop %v1407
  %v1410 = vtanh.pop %v1408
  %v1411 = vmul.f32 %v1409, 0.5
  %v1412 = vmul.f32 %v1410, 0.5
  %v1413 = vadd.f32 %v1411, 0.5
  %v1414 = vadd.f32 %v1412, 0.5
  %v1415 = vld [vmem:[#allocation3] sm:$0xff]
  %v1416 = vld [vmem:[#allocation3 + $0x8] sm:$0xff]
  %v1417 = vmul.f32 %v1403, %v1415
  %v1418 = vmul.f32 %v1404, %v1416
  %v1419 = vmul.f32 %v1395, %v1405
  %v1420 = vmul.f32 %v1396, %v1406
  %v1421 = vadd.f32 %v1417, %v1419
  %v1422 = vadd.f32 %v1418, %v1420
  %v1423 = vtanh.pop %v1421
  %v1424 = vtanh.pop %v1422
  %v1425 = vmul.f32 %v1413, %v1423
  %v1426 = vmul.f32 %v1414, %v1424
  %1427 = vst [vmem:[#allocation3] sm:$0xff] %v1421
  %1428 = vst [vmem:[#allocation3 + $0x8] sm:$0xff] %v1422
  %1429 = vst [vmem:[#allocation2] sm:$0xff] %v1425
  %1430 = vst [vmem:[#allocation2 + $0x8] sm:$0xff] %v1426
  %v1431 = vpack.c.bf16 %v1426, %v1425
  %v1433 = vunpack.c.l.b16 %v1431
  %v1434 = vunpack.c.h.b16 %v1431
  %v1435 = vpack.c.b16 %v1433, %v1433
  %v1436 = vpack.c.b16 %v1434, %v1434
  %s1439 = scalar_lea.vmem %s3, 24
  %1440 = vst [vmem:[%s1439] sm:$0xf] %v1435
  %1441 = vst [vmem:[%s1439 + $0x4] sm:$0xf] %v1436
  %s1442 = scalar_lea.vmem %s0, 128
  %v1443 = vld [vmem:[%s1442] sm:$0xff]
  %v1444 = vld [vmem:[%s1442 + $0x8] sm:$0xff]
  %v1445 = vld [vmem:[%s1442 + $0x10] sm:$0xff]
  %v1446 = vld [vmem:[%s1442 + $0x18] sm:$0xff]
  %v1447 = vunpack.c.l.bf16 %v1443
  %v1448 = vunpack.c.h.bf16 %v1443
  %v1449 = vunpack.c.l.bf16 %v1444
  %v1450 = vunpack.c.h.bf16 %v1444
  %v1451 = vunpack.c.l.bf16 %v1445
  %v1452 = vunpack.c.h.bf16 %v1445
  %v1453 = vunpack.c.l.bf16 %v1446
  %v1454 = vunpack.c.h.bf16 %v1446
  %v1455 = vld [vmem:[#allocation2] sm:$0xff]
  %v1456 = vld [vmem:[#allocation2 + $0x8] sm:$0xff]
  %v1457 = vpack.c.bf16 %v1456, %v1455
  %v1458 = vld [vmem:[%s1] sm:$0xff]
  %v1459 = vld [vmem:[%s1 + $0x8] sm:$0xff]
  %v1460 = vld [vmem:[%s1 + $0x10] sm:$0xff]
  %v1461 = vld [vmem:[%s1 + $0x18] sm:$0xff]
  %v1462 = vld [vmem:[%s1 + $0x20] sm:$0xff]
  %v1463 = vld [vmem:[%s1 + $0x28] sm:$0xff]
  %v1464 = vld [vmem:[%s1 + $0x30] sm:$0xff]
  %v1465 = vld [vmem:[%s1 + $0x38] sm:$0xff]
  %v1466 = vld [vmem:[%s1 + $0x40] sm:$0xff]
  %v1467 = vld [vmem:[%s1 + $0x48] sm:$0xff]
  %v1468 = vld [vmem:[%s1 + $0x50] sm:$0xff]
  %v1469 = vld [vmem:[%s1 + $0x58] sm:$0xff]
  %v1470 = vld [vmem:[%s1 + $0x60] sm:$0xff]
  %v1471 = vld [vmem:[%s1 + $0x68] sm:$0xff]
  %v1472 = vld [vmem:[%s1 + $0x70] sm:$0xff]
  %v1473 = vld [vmem:[%s1 + $0x78] sm:$0xff]
  %v1474 = vld [vmem:[%s1 + $0x80] sm:$0xff]
  %v1475 = vld [vmem:[%s1 + $0x88] sm:$0xff]
  %v1476 = vld [vmem:[%s1 + $0x90] sm:$0xff]
  %v1477 = vld [vmem:[%s1 + $0x98] sm:$0xff]
  %v1478 = vld [vmem:[%s1 + $0xa0] sm:$0xff]
  %v1479 = vld [vmem:[%s1 + $0xa8] sm:$0xff]
  %v1480 = vld [vmem:[%s1 + $0xb0] sm:$0xff]
  %v1481 = vld [vmem:[%s1 + $0xb8] sm:$0xff]
  %v1482 = vld [vmem:[%s1 + $0xc0] sm:$0xff]
  %v1483 = vld [vmem:[%s1 + $0xc8] sm:$0xff]
  %v1484 = vld [vmem:[%s1 + $0xd0] sm:$0xff]
  %v1485 = vld [vmem:[%s1 + $0xd8] sm:$0xff]
  %v1486 = vld [vmem:[%s1 + $0xe0] sm:$0xff]
  %v1487 = vld [vmem:[%s1 + $0xe8] sm:$0xff]
  %v1488 = vld [vmem:[%s1 + $0xf0] sm:$0xff]
  %v1489 = vld [vmem:[%s1 + $0xf8] sm:$0xff]
  %v1522 = vunpack.c.l.b16 %v1458
  %v1523 = vunpack.c.h.b16 %v1458
  %v1524 = vunpack.c.l.b16 %v1459
  %v1525 = vunpack.c.h.b16 %v1459
  %v1526 = vunpack.c.l.b16 %v1460
  %v1527 = vunpack.c.h.b16 %v1460
  %v1528 = vunpack.c.l.b16 %v1461
  %v1529 = vunpack.c.h.b16 %v1461
  %v1530 = vunpack.c.l.b16 %v1462
  %v1531 = vunpack.c.h.b16 %v1462
  %v1532 = vunpack.c.l.b16 %v1463
  %v1533 = vunpack.c.h.b16 %v1463
  %v1534 = vunpack.c.l.b16 %v1464
  %v1535 = vunpack.c.h.b16 %v1464
  %v1536 = vunpack.c.l.b16 %v1465
  %v1537 = vunpack.c.h.b16 %v1465
  %v1538 = vunpack.c.l.b16 %v1466
  %v1539 = vunpack.c.h.b16 %v1466
  %v1540 = vunpack.c.l.b16 %v1467
  %v1541 = vunpack.c.h.b16 %v1467
  %v1542 = vunpack.c.l.b16 %v1468
  %v1543 = vunpack.c.h.b16 %v1468
  %v1544 = vunpack.c.l.b16 %v1469
  %v1545 = vunpack.c.h.b16 %v1469
  %v1546 = vunpack.c.l.b16 %v1470
  %v1547 = vunpack.c.h.b16 %v1470
  %v1548 = vunpack.c.l.b16 %v1471
  %v1549 = vunpack.c.h.b16 %v1471
  %v1550 = vunpack.c.l.b16 %v1472
  %v1551 = vunpack.c.h.b16 %v1472
  %v1552 = vunpack.c.l.b16 %v1473
  %v1553 = vunpack.c.h.b16 %v1473
  %v1554 = vunpack.c.l.b16 %v1474
  %v1555 = vunpack.c.h.b16 %v1474
  %v1556 = vunpack.c.l.b16 %v1475
  %v1557 = vunpack.c.h.b16 %v1475
  %v1558 = vunpack.c.l.b16 %v1476
  %v1559 = vunpack.c.h.b16 %v1476
  %v1560 = vunpack.c.l.b16 %v1477
  %v1561 = vunpack.c.h.b16 %v1477
  %v1562 = vunpack.c.l.b16 %v1478
  %v1563 = vunpack.c.h.b16 %v1478
  %v1564 = vunpack.c.l.b16 %v1479
  %v1565 = vunpack.c.h.b16 %v1479
  %v1566 = vunpack.c.l.b16 %v1480
  %v1567 = vunpack.c.h.b16 %v1480
  %v1568 = vunpack.c.l.b16 %v1481
  %v1569 = vunpack.c.h.b16 %v1481
  %v1570 = vunpack.c.l.b16 %v1482
  %v1571 = vunpack.c.h.b16 %v1482
  %v1572 = vunpack.c.l.b16 %v1483
  %v1573 = vunpack.c.h.b16 %v1483
  %v1574 = vunpack.c.l.b16 %v1484
  %v1575 = vunpack.c.h.b16 %v1484
  %v1576 = vunpack.c.l.b16 %v1485
  %v1577 = vunpack.c.h.b16 %v1485
  %v1578 = vunpack.c.l.b16 %v1486
  %v1579 = vunpack.c.h.b16 %v1486
  %v1580 = vunpack.c.l.b16 %v1487
  %v1581 = vunpack.c.h.b16 %v1487
  %v1582 = vunpack.c.l.b16 %v1488
  %v1583 = vunpack.c.h.b16 %v1488
  %v1584 = vunpack.c.l.b16 %v1489
  %v1585 = vunpack.c.h.b16 %v1489
  %v1586 = vpack.c.b16 %v1526, %v1522
  %v1587 = vpack.c.b16 %v1527, %v1523
  %v1588 = vpack.c.b16 %v1528, %v1524
  %v1589 = vpack.c.b16 %v1529, %v1525
  %v1590 = vpack.c.b16 %v1534, %v1530
  %v1591 = vpack.c.b16 %v1535, %v1531
  %v1592 = vpack.c.b16 %v1536, %v1532
  %v1593 = vpack.c.b16 %v1537, %v1533
  %v1594 = vpack.c.b16 %v1542, %v1538
  %v1595 = vpack.c.b16 %v1543, %v1539
  %v1596 = vpack.c.b16 %v1544, %v1540
  %v1597 = vpack.c.b16 %v1545, %v1541
  %v1598 = vpack.c.b16 %v1550, %v1546
  %v1599 = vpack.c.b16 %v1551, %v1547
  %v1600 = vpack.c.b16 %v1552, %v1548
  %v1601 = vpack.c.b16 %v1553, %v1549
  %v1602 = vpack.c.b16 %v1558, %v1554
  %v1603 = vpack.c.b16 %v1559, %v1555
  %v1604 = vpack.c.b16 %v1560, %v1556
  %v1605 = vpack.c.b16 %v1561, %v1557
  %v1606 = vpack.c.b16 %v1566, %v1562
  %v1607 = vpack.c.b16 %v1567, %v1563
  %v1608 = vpack.c.b16 %v1568, %v1564
  %v1609 = vpack.c.b16 %v1569, %v1565
  %v1610 = vpack.c.b16 %v1574, %v1570
  %v1611 = vpack.c.b16 %v1575, %v1571
  %v1612 = vpack.c.b16 %v1576, %v1572
  %v1613 = vpack.c.b16 %v1577, %v1573
  %v1614 = vpack.c.b16 %v1582, %v1578
  %v1615 = vpack.c.b16 %v1583, %v1579
  %v1616 = vpack.c.b16 %v1584, %v1580
  %v1617 = vpack.c.b16 %v1585, %v1581
  %1650 = vmatprep.subr.bf16.mxu0 %v1587
  %1651 = vmatpush1.bf16.msra.mxu0 %v1586
  %1652 = vmatprep.subr.bf16.mxu0 %v1591
  %1653 = vmatpush1.bf16.msra.mxu0 %v1590
  %1654 = vmatprep.subr.bf16.mxu0 %v1595
  %1655 = vmatpush1.bf16.msra.mxu0 %v1594
  %1656 = vmatprep.subr.bf16.mxu0 %v1599
  %1657 = vmatpush1.bf16.msra.mxu0 %v1598
  %1658 = vmatprep.subr.bf16.mxu0 %v1603
  %1659 = vmatpush1.bf16.msra.mxu0 %v1602
  %1660 = vmatprep.subr.bf16.mxu0 %v1607
  %1661 = vmatpush1.bf16.msra.mxu0 %v1606
  %1662 = vmatprep.subr.bf16.mxu0 %v1611
  %1663 = vmatpush1.bf16.msra.mxu0 %v1610
  %1664 = vmatprep.subr.bf16.mxu0 %v1615
  %1665 = vmatpush1.bf16.msra.mxu0 %v1614
  %1666 = vmatprep.subr.bf16.mxu0 0
  %1667 = vmatpush1.bf16.msra.mxu0 0
  %1668 = vmatprep.subr.bf16.mxu0 0
  %1669 = vmatpush1.bf16.msra.mxu0 0
  %1670 = vmatprep.subr.bf16.mxu0 0
  %1671 = vmatpush1.bf16.msra.mxu0 0
  %1672 = vmatprep.subr.bf16.mxu0 0
  %1673 = vmatpush1.bf16.msra.mxu0 0
  %1674 = vmatprep.subr.bf16.mxu0 0
  %1675 = vmatpush1.bf16.msra.mxu0 0
  %1676 = vmatprep.subr.bf16.mxu0 0
  %1677 = vmatpush1.bf16.msra.mxu0 0
  %1678 = vmatprep.subr.bf16.mxu0 0
  %1679 = vmatpush1.bf16.msra.mxu0 0
  %1680 = vmatprep.subr.bf16.mxu0 0
  %1681 = vmatpush1.bf16.msra.mxu0 0
  %1682 = vmatprep.mubr.bf16.mxu0 0
  %1683 = vmatmul.mubr.bf16.gmra.mrb[0].mxu0 %v1457
  %v1684 = vpop.f32.mrb[0].mxu0
  %v1685 = vadd.f32 0.0, %v1684
  %v1686 = vpop.f32.mrb[0].mxu0
  %v1687 = vadd.f32 0.0, %v1686
  %v1688 = vpop.f32.mrb[0].mxu0
  %v1689 = vadd.f32 0.0, %v1688
  %v1690 = vpop.f32.mrb[0].mxu0
  %v1691 = vadd.f32 0.0, %v1690
  %1692 = vdwg.mxu0
  %1693 = vmatprep.subr.bf16.mxu0 %v1589
  %1694 = vmatpush1.bf16.msra.mxu0 %v1588
  %1695 = vmatprep.subr.bf16.mxu0 %v1593
  %1696 = vmatpush1.bf16.msra.mxu0 %v1592
  %1697 = vmatprep.subr.bf16.mxu0 %v1597
  %1698 = vmatpush1.bf16.msra.mxu0 %v1596
  %1699 = vmatprep.subr.bf16.mxu0 %v1601
  %1700 = vmatpush1.bf16.msra.mxu0 %v1600
  %1701 = vmatprep.subr.bf16.mxu0 %v1605
  %1702 = vmatpush1.bf16.msra.mxu0 %v1604
  %1703 = vmatprep.subr.bf16.mxu0 %v1609
  %1704 = vmatpush1.bf16.msra.mxu0 %v1608
  %1705 = vmatprep.subr.bf16.mxu0 %v1613
  %1706 = vmatpush1.bf16.msra.mxu0 %v1612
  %1707 = vmatprep.subr.bf16.mxu0 %v1617
  %1708 = vmatpush1.bf16.msra.mxu0 %v1616
  %1709 = vmatprep.subr.bf16.mxu0 0
  %1710 = vmatpush1.bf16.msra.mxu0 0
  %1711 = vmatprep.subr.bf16.mxu0 0
  %1712 = vmatpush1.bf16.msra.mxu0 0
  %1713 = vmatprep.subr.bf16.mxu0 0
  %1714 = vmatpush1.bf16.msra.mxu0 0
  %1715 = vmatprep.subr.bf16.mxu0 0
  %1716 = vmatpush1.bf16.msra.mxu0 0
  %1717 = vmatprep.subr.bf16.mxu0 0
  %1718 = vmatpush1.bf16.msra.mxu0 0
  %1719 = vmatprep.subr.bf16.mxu0 0
  %1720 = vmatpush1.bf16.msra.mxu0 0
  %1721 = vmatprep.subr.bf16.mxu0 0
  %1722 = vmatpush1.bf16.msra.mxu0 0
  %1723 = vmatprep.subr.bf16.mxu0 0
  %1724 = vmatpush1.bf16.msra.mxu0 0
  %1725 = vmatprep.mubr.bf16.mxu0 0
  %1726 = vmatmul.mubr.bf16.gmra.mrb[0].mxu0 %v1457
  %v1727 = vpop.f32.mrb[0].mxu0
  %v1728 = vadd.f32 0.0, %v1727
  %v1729 = vpop.f32.mrb[0].mxu0
  %v1730 = vadd.f32 0.0, %v1729
  %v1731 = vpop.f32.mrb[0].mxu0
  %v1732 = vadd.f32 0.0, %v1731
  %v1733 = vpop.f32.mrb[0].mxu0
  %v1734 = vadd.f32 0.0, %v1733
  %1735 = vdwg.mxu0
  %v1736 = vadd.f32 %v1447, %v1685
  %v1737 = vadd.f32 %v1448, %v1687
  %v1738 = vadd.f32 %v1449, %v1728
  %v1739 = vadd.f32 %v1450, %v1730
  %v1740 = vadd.f32 %v1451, %v1689
  %v1741 = vadd.f32 %v1452, %v1691
  %v1742 = vadd.f32 %v1453, %v1732
  %v1743 = vadd.f32 %v1454, %v1734
  %v1744 = vmul.f32 %v1736, 0.5
  %v1745 = vmul.f32 %v1740, 0.5
  %v1746 = vtanh.pop %v1744
  %v1747 = vtanh.pop %v1745
  %v1748 = vmul.f32 %v1746, 0.5
  %v1749 = vmul.f32 %v1747, 0.5
  %v1750 = vadd.f32 %v1748, 0.5
  %v1751 = vadd.f32 %v1749, 0.5
  %v1752 = vmul.f32 %v1737, 0.5
  %v1753 = vmul.f32 %v1741, 0.5
  %v1754 = vtanh.pop %v1752
  %v1755 = vtanh.pop %v1753
  %v1756 = vmul.f32 %v1754, 0.5
  %v1757 = vmul.f32 %v1755, 0.5
  %v1758 = vadd.f32 %v1756, 0.5
  %v1759 = vadd.f32 %v1757, 0.5
  %v1760 = vtanh.pop %v1738
  %v1761 = vtanh.pop %v1742
  %v1762 = vmul.f32 %v1739, 0.5
  %v1763 = vmul.f32 %v1743, 0.5
  %v1764 = vtanh.pop %v1762
  %v1765 = vtanh.pop %v1763
  %v1766 = vmul.f32 %v1764, 0.5
  %v1767 = vmul.f32 %v1765, 0.5
  %v1768 = vadd.f32 %v1766, 0.5
  %v1769 = vadd.f32 %v1767, 0.5
  %v1770 = vld [vmem:[#allocation3] sm:$0xff]
  %v1771 = vld [vmem:[#allocation3 + $0x8] sm:$0xff]
  %v1772 = vmul.f32 %v1758, %v1770
  %v1773 = vmul.f32 %v1759, %v1771
  %v1774 = vmul.f32 %v1750, %v1760
  %v1775 = vmul.f32 %v1751, %v1761
  %v1776 = vadd.f32 %v1772, %v1774
  %v1777 = vadd.f32 %v1773, %v1775
  %v1778 = vtanh.pop %v1776
  %v1779 = vtanh.pop %v1777
  %v1780 = vmul.f32 %v1768, %v1778
  %v1781 = vmul.f32 %v1769, %v1779
  %1782 = vst [vmem:[#allocation3] sm:$0xff] %v1776
  %1783 = vst [vmem:[#allocation3 + $0x8] sm:$0xff] %v1777
  %1784 = vst [vmem:[#allocation2] sm:$0xff] %v1780
  %1785 = vst [vmem:[#allocation2 + $0x8] sm:$0xff] %v1781
  %v1786 = vpack.c.bf16 %v1781, %v1780
  %v1788 = vunpack.c.l.b16 %v1786
  %v1789 = vunpack.c.h.b16 %v1786
  %v1790 = vpack.c.b16 %v1788, %v1788
  %v1791 = vpack.c.b16 %v1789, %v1789
  %s1794 = scalar_lea.vmem %s3, 32
  %1795 = vst [vmem:[%s1794] sm:$0xf] %v1790
  %1796 = vst [vmem:[%s1794 + $0x4] sm:$0xf] %v1791
  %s1797 = scalar_lea.vmem %s0, 160
  %v1798 = vld [vmem:[%s1797] sm:$0xff]
  %v1799 = vld [vmem:[%s1797 + $0x8] sm:$0xff]
  %v1800 = vld [vmem:[%s1797 + $0x10] sm:$0xff]
  %v1801 = vld [vmem:[%s1797 + $0x18] sm:$0xff]
  %v1802 = vunpack.c.l.bf16 %v1798
  %v1803 = vunpack.c.h.bf16 %v1798
  %v1804 = vunpack.c.l.bf16 %v1799
  %v1805 = vunpack.c.h.bf16 %v1799
  %v1806 = vunpack.c.l.bf16 %v1800
  %v1807 = vunpack.c.h.bf16 %v1800
  %v1808 = vunpack.c.l.bf16 %v1801
  %v1809 = vunpack.c.h.bf16 %v1801
  %v1810 = vld [vmem:[#allocation2] sm:$0xff]
  %v1811 = vld [vmem:[#allocation2 + $0x8] sm:$0xff]
  %v1812 = vpack.c.bf16 %v1811, %v1810
  %v1813 = vld [vmem:[%s1] sm:$0xff]
  %v1814 = vld [vmem:[%s1 + $0x8] sm:$0xff]
  %v1815 = vld [vmem:[%s1 + $0x10] sm:$0xff]
  %v1816 = vld [vmem:[%s1 + $0x18] sm:$0xff]
  %v1817 = vld [vmem:[%s1 + $0x20] sm:$0xff]
  %v1818 = vld [vmem:[%s1 + $0x28] sm:$0xff]
  %v1819 = vld [vmem:[%s1 + $0x30] sm:$0xff]
  %v1820 = vld [vmem:[%s1 + $0x38] sm:$0xff]
  %v1821 = vld [vmem:[%s1 + $0x40] sm:$0xff]
  %v1822 = vld [vmem:[%s1 + $0x48] sm:$0xff]
  %v1823 = vld [vmem:[%s1 + $0x50] sm:$0xff]
  %v1824 = vld [vmem:[%s1 + $0x58] sm:$0xff]
  %v1825 = vld [vmem:[%s1 + $0x60] sm:$0xff]
  %v1826 = vld [vmem:[%s1 + $0x68] sm:$0xff]
  %v1827 = vld [vmem:[%s1 + $0x70] sm:$0xff]
  %v1828 = vld [vmem:[%s1 + $0x78] sm:$0xff]
  %v1829 = vld [vmem:[%s1 + $0x80] sm:$0xff]
  %v1830 = vld [vmem:[%s1 + $0x88] sm:$0xff]
  %v1831 = vld [vmem:[%s1 + $0x90] sm:$0xff]
  %v1832 = vld [vmem:[%s1 + $0x98] sm:$0xff]
  %v1833 = vld [vmem:[%s1 + $0xa0] sm:$0xff]
  %v1834 = vld [vmem:[%s1 + $0xa8] sm:$0xff]
  %v1835 = vld [vmem:[%s1 + $0xb0] sm:$0xff]
  %v1836 = vld [vmem:[%s1 + $0xb8] sm:$0xff]
  %v1837 = vld [vmem:[%s1 + $0xc0] sm:$0xff]
  %v1838 = vld [vmem:[%s1 + $0xc8] sm:$0xff]
  %v1839 = vld [vmem:[%s1 + $0xd0] sm:$0xff]
  %v1840 = vld [vmem:[%s1 + $0xd8] sm:$0xff]
  %v1841 = vld [vmem:[%s1 + $0xe0] sm:$0xff]
  %v1842 = vld [vmem:[%s1 + $0xe8] sm:$0xff]
  %v1843 = vld [vmem:[%s1 + $0xf0] sm:$0xff]
  %v1844 = vld [vmem:[%s1 + $0xf8] sm:$0xff]
  %v1877 = vunpack.c.l.b16 %v1813
  %v1878 = vunpack.c.h.b16 %v1813
  %v1879 = vunpack.c.l.b16 %v1814
  %v1880 = vunpack.c.h.b16 %v1814
  %v1881 = vunpack.c.l.b16 %v1815
  %v1882 = vunpack.c.h.b16 %v1815
  %v1883 = vunpack.c.l.b16 %v1816
  %v1884 = vunpack.c.h.b16 %v1816
  %v1885 = vunpack.c.l.b16 %v1817
  %v1886 = vunpack.c.h.b16 %v1817
  %v1887 = vunpack.c.l.b16 %v1818
  %v1888 = vunpack.c.h.b16 %v1818
  %v1889 = vunpack.c.l.b16 %v1819
  %v1890 = vunpack.c.h.b16 %v1819
  %v1891 = vunpack.c.l.b16 %v1820
  %v1892 = vunpack.c.h.b16 %v1820
  %v1893 = vunpack.c.l.b16 %v1821
  %v1894 = vunpack.c.h.b16 %v1821
  %v1895 = vunpack.c.l.b16 %v1822
  %v1896 = vunpack.c.h.b16 %v1822
  %v1897 = vunpack.c.l.b16 %v1823
  %v1898 = vunpack.c.h.b16 %v1823
  %v1899 = vunpack.c.l.b16 %v1824
  %v1900 = vunpack.c.h.b16 %v1824
  %v1901 = vunpack.c.l.b16 %v1825
  %v1902 = vunpack.c.h.b16 %v1825
  %v1903 = vunpack.c.l.b16 %v1826
  %v1904 = vunpack.c.h.b16 %v1826
  %v1905 = vunpack.c.l.b16 %v1827
  %v1906 = vunpack.c.h.b16 %v1827
  %v1907 = vunpack.c.l.b16 %v1828
  %v1908 = vunpack.c.h.b16 %v1828
  %v1909 = vunpack.c.l.b16 %v1829
  %v1910 = vunpack.c.h.b16 %v1829
  %v1911 = vunpack.c.l.b16 %v1830
  %v1912 = vunpack.c.h.b16 %v1830
  %v1913 = vunpack.c.l.b16 %v1831
  %v1914 = vunpack.c.h.b16 %v1831
  %v1915 = vunpack.c.l.b16 %v1832
  %v1916 = vunpack.c.h.b16 %v1832
  %v1917 = vunpack.c.l.b16 %v1833
  %v1918 = vunpack.c.h.b16 %v1833
  %v1919 = vunpack.c.l.b16 %v1834
  %v1920 = vunpack.c.h.b16 %v1834
  %v1921 = vunpack.c.l.b16 %v1835
  %v1922 = vunpack.c.h.b16 %v1835
  %v1923 = vunpack.c.l.b16 %v1836
  %v1924 = vunpack.c.h.b16 %v1836
  %v1925 = vunpack.c.l.b16 %v1837
  %v1926 = vunpack.c.h.b16 %v1837
  %v1927 = vunpack.c.l.b16 %v1838
  %v1928 = vunpack.c.h.b16 %v1838
  %v1929 = vunpack.c.l.b16 %v1839
  %v1930 = vunpack.c.h.b16 %v1839
  %v1931 = vunpack.c.l.b16 %v1840
  %v1932 = vunpack.c.h.b16 %v1840
  %v1933 = vunpack.c.l.b16 %v1841
  %v1934 = vunpack.c.h.b16 %v1841
  %v1935 = vunpack.c.l.b16 %v1842
  %v1936 = vunpack.c.h.b16 %v1842
  %v1937 = vunpack.c.l.b16 %v1843
  %v1938 = vunpack.c.h.b16 %v1843
  %v1939 = vunpack.c.l.b16 %v1844
  %v1940 = vunpack.c.h.b16 %v1844
  %v1941 = vpack.c.b16 %v1881, %v1877
  %v1942 = vpack.c.b16 %v1882, %v1878
  %v1943 = vpack.c.b16 %v1883, %v1879
  %v1944 = vpack.c.b16 %v1884, %v1880
  %v1945 = vpack.c.b16 %v1889, %v1885
  %v1946 = vpack.c.b16 %v1890, %v1886
  %v1947 = vpack.c.b16 %v1891, %v1887
  %v1948 = vpack.c.b16 %v1892, %v1888
  %v1949 = vpack.c.b16 %v1897, %v1893
  %v1950 = vpack.c.b16 %v1898, %v1894
  %v1951 = vpack.c.b16 %v1899, %v1895
  %v1952 = vpack.c.b16 %v1900, %v1896
  %v1953 = vpack.c.b16 %v1905, %v1901
  %v1954 = vpack.c.b16 %v1906, %v1902
  %v1955 = vpack.c.b16 %v1907, %v1903
  %v1956 = vpack.c.b16 %v1908, %v1904
  %v1957 = vpack.c.b16 %v1913, %v1909
  %v1958 = vpack.c.b16 %v1914, %v1910
  %v1959 = vpack.c.b16 %v1915, %v1911
  %v1960 = vpack.c.b16 %v1916, %v1912
  %v1961 = vpack.c.b16 %v1921, %v1917
  %v1962 = vpack.c.b16 %v1922, %v1918
  %v1963 = vpack.c.b16 %v1923, %v1919
  %v1964 = vpack.c.b16 %v1924, %v1920
  %v1965 = vpack.c.b16 %v1929, %v1925
  %v1966 = vpack.c.b16 %v1930, %v1926
  %v1967 = vpack.c.b16 %v1931, %v1927
  %v1968 = vpack.c.b16 %v1932, %v1928
  %v1969 = vpack.c.b16 %v1937, %v1933
  %v1970 = vpack.c.b16 %v1938, %v1934
  %v1971 = vpack.c.b16 %v1939, %v1935
  %v1972 = vpack.c.b16 %v1940, %v1936
  %2005 = vmatprep.subr.bf16.mxu0 %v1942
  %2006 = vmatpush1.bf16.msra.mxu0 %v1941
  %2007 = vmatprep.subr.bf16.mxu0 %v1946
  %2008 = vmatpush1.bf16.msra.mxu0 %v1945
  %2009 = vmatprep.subr.bf16.mxu0 %v1950
  %2010 = vmatpush1.bf16.msra.mxu0 %v1949
  %2011 = vmatprep.subr.bf16.mxu0 %v1954
  %2012 = vmatpush1.bf16.msra.mxu0 %v1953
  %2013 = vmatprep.subr.bf16.mxu0 %v1958
  %2014 = vmatpush1.bf16.msra.mxu0 %v1957
  %2015 = vmatprep.subr.bf16.mxu0 %v1962
  %2016 = vmatpush1.bf16.msra.mxu0 %v1961
  %2017 = vmatprep.subr.bf16.mxu0 %v1966
  %2018 = vmatpush1.bf16.msra.mxu0 %v1965
  %2019 = vmatprep.subr.bf16.mxu0 %v1970
  %2020 = vmatpush1.bf16.msra.mxu0 %v1969
  %2021 = vmatprep.subr.bf16.mxu0 0
  %2022 = vmatpush1.bf16.msra.mxu0 0
  %2023 = vmatprep.subr.bf16.mxu0 0
  %2024 = vmatpush1.bf16.msra.mxu0 0
  %2025 = vmatprep.subr.bf16.mxu0 0
  %2026 = vmatpush1.bf16.msra.mxu0 0
  %2027 = vmatprep.subr.bf16.mxu0 0
  %2028 = vmatpush1.bf16.msra.mxu0 0
  %2029 = vmatprep.subr.bf16.mxu0 0
  %2030 = vmatpush1.bf16.msra.mxu0 0
  %2031 = vmatprep.subr.bf16.mxu0 0
  %2032 = vmatpush1.bf16.msra.mxu0 0
  %2033 = vmatprep.subr.bf16.mxu0 0
  %2034 = vmatpush1.bf16.msra.mxu0 0
  %2035 = vmatprep.subr.bf16.mxu0 0
  %2036 = vmatpush1.bf16.msra.mxu0 0
  %2037 = vmatprep.mubr.bf16.mxu0 0
  %2038 = vmatmul.mubr.bf16.gmra.mrb[0].mxu0 %v1812
  %v2039 = vpop.f32.mrb[0].mxu0
  %v2040 = vadd.f32 0.0, %v2039
  %v2041 = vpop.f32.mrb[0].mxu0
  %v2042 = vadd.f32 0.0, %v2041
  %v2043 = vpop.f32.mrb[0].mxu0
  %v2044 = vadd.f32 0.0, %v2043
  %v2045 = vpop.f32.mrb[0].mxu0
  %v2046 = vadd.f32 0.0, %v2045
  %2047 = vdwg.mxu0
  %2048 = vmatprep.subr.bf16.mxu0 %v1944
  %2049 = vmatpush1.bf16.msra.mxu0 %v1943
  %2050 = vmatprep.subr.bf16.mxu0 %v1948
  %2051 = vmatpush1.bf16.msra.mxu0 %v1947
  %2052 = vmatprep.subr.bf16.mxu0 %v1952
  %2053 = vmatpush1.bf16.msra.mxu0 %v1951
  %2054 = vmatprep.subr.bf16.mxu0 %v1956
  %2055 = vmatpush1.bf16.msra.mxu0 %v1955
  %2056 = vmatprep.subr.bf16.mxu0 %v1960
  %2057 = vmatpush1.bf16.msra.mxu0 %v1959
  %2058 = vmatprep.subr.bf16.mxu0 %v1964
  %2059 = vmatpush1.bf16.msra.mxu0 %v1963
  %2060 = vmatprep.subr.bf16.mxu0 %v1968
  %2061 = vmatpush1.bf16.msra.mxu0 %v1967
  %2062 = vmatprep.subr.bf16.mxu0 %v1972
  %2063 = vmatpush1.bf16.msra.mxu0 %v1971
  %2064 = vmatprep.subr.bf16.mxu0 0
  %2065 = vmatpush1.bf16.msra.mxu0 0
  %2066 = vmatprep.subr.bf16.mxu0 0
  %2067 = vmatpush1.bf16.msra.mxu0 0
  %2068 = vmatprep.subr.bf16.mxu0 0
  %2069 = vmatpush1.bf16.msra.mxu0 0
  %2070 = vmatprep.subr.bf16.mxu0 0
  %2071 = vmatpush1.bf16.msra.mxu0 0
  %2072 = vmatprep.subr.bf16.mxu0 0
  %2073 = vmatpush1.bf16.msra.mxu0 0
  %2074 = vmatprep.subr.bf16.mxu0 0
  %2075 = vmatpush1.bf16.msra.mxu0 0
  %2076 = vmatprep.subr.bf16.mxu0 0
  %2077 = vmatpush1.bf16.msra.mxu0 0
  %2078 = vmatprep.subr.bf16.mxu0 0
  %2079 = vmatpush1.bf16.msra.mxu0 0
  %2080 = vmatprep.mubr.bf16.mxu0 0
  %2081 = vmatmul.mubr.bf16.gmra.mrb[0].mxu0 %v1812
  %v2082 = vpop.f32.mrb[0].mxu0
  %v2083 = vadd.f32 0.0, %v2082
  %v2084 = vpop.f32.mrb[0].mxu0
  %v2085 = vadd.f32 0.0, %v2084
  %v2086 = vpop.f32.mrb[0].mxu0
  %v2087 = vadd.f32 0.0, %v2086
  %v2088 = vpop.f32.mrb[0].mxu0
  %v2089 = vadd.f32 0.0, %v2088
  %2090 = vdwg.mxu0
  %v2091 = vadd.f32 %v1802, %v2040
  %v2092 = vadd.f32 %v1803, %v2042
  %v2093 = vadd.f32 %v1804, %v2083
  %v2094 = vadd.f32 %v1805, %v2085
  %v2095 = vadd.f32 %v1806, %v2044
  %v2096 = vadd.f32 %v1807, %v2046
  %v2097 = vadd.f32 %v1808, %v2087
  %v2098 = vadd.f32 %v1809, %v2089
  %v2099 = vmul.f32 %v2091, 0.5
  %v2100 = vmul.f32 %v2095, 0.5
  %v2101 = vtanh.pop %v2099
  %v2102 = vtanh.pop %v2100
  %v2103 = vmul.f32 %v2101, 0.5
  %v2104 = vmul.f32 %v2102, 0.5
  %v2105 = vadd.f32 %v2103, 0.5
  %v2106 = vadd.f32 %v2104, 0.5
  %v2107 = vmul.f32 %v2092, 0.5
  %v2108 = vmul.f32 %v2096, 0.5
  %v2109 = vtanh.pop %v2107
  %v2110 = vtanh.pop %v2108
  %v2111 = vmul.f32 %v2109, 0.5
  %v2112 = vmul.f32 %v2110, 0.5
  %v2113 = vadd.f32 %v2111, 0.5
  %v2114 = vadd.f32 %v2112, 0.5
  %v2115 = vtanh.pop %v2093
  %v2116 = vtanh.pop %v2097
  %v2117 = vmul.f32 %v2094, 0.5
  %v2118 = vmul.f32 %v2098, 0.5
  %v2119 = vtanh.pop %v2117
  %v2120 = vtanh.pop %v2118
  %v2121 = vmul.f32 %v2119, 0.5
  %v2122 = vmul.f32 %v2120, 0.5
  %v2123 = vadd.f32 %v2121, 0.5
  %v2124 = vadd.f32 %v2122, 0.5
  %v2125 = vld [vmem:[#allocation3] sm:$0xff]
  %v2126 = vld [vmem:[#allocation3 + $0x8] sm:$0xff]
  %v2127 = vmul.f32 %v2113, %v2125
  %v2128 = vmul.f32 %v2114, %v2126
  %v2129 = vmul.f32 %v2105, %v2115
  %v2130 = vmul.f32 %v2106, %v2116
  %v2131 = vadd.f32 %v2127, %v2129
  %v2132 = vadd.f32 %v2128, %v2130
  %v2133 = vtanh.pop %v2131
  %v2134 = vtanh.pop %v2132
  %v2135 = vmul.f32 %v2123, %v2133
  %v2136 = vmul.f32 %v2124, %v2134
  %2137 = vst [vmem:[#allocation3] sm:$0xff] %v2131
  %2138 = vst [vmem:[#allocation3 + $0x8] sm:$0xff] %v2132
  %2139 = vst [vmem:[#allocation2] sm:$0xff] %v2135
  %2140 = vst [vmem:[#allocation2 + $0x8] sm:$0xff] %v2136
  %v2141 = vpack.c.bf16 %v2136, %v2135
  %v2143 = vunpack.c.l.b16 %v2141
  %v2144 = vunpack.c.h.b16 %v2141
  %v2145 = vpack.c.b16 %v2143, %v2143
  %v2146 = vpack.c.b16 %v2144, %v2144
  %s2149 = scalar_lea.vmem %s3, 40
  %2150 = vst [vmem:[%s2149] sm:$0xf] %v2145
  %2151 = vst [vmem:[%s2149 + $0x4] sm:$0xf] %v2146
  %s2152 = scalar_lea.vmem %s0, 192
  %v2153 = vld [vmem:[%s2152] sm:$0xff]
  %v2154 = vld [vmem:[%s2152 + $0x8] sm:$0xff]
  %v2155 = vld [vmem:[%s2152 + $0x10] sm:$0xff]
  %v2156 = vld [vmem:[%s2152 + $0x18] sm:$0xff]
  %v2157 = vunpack.c.l.bf16 %v2153
  %v2158 = vunpack.c.h.bf16 %v2153
  %v2159 = vunpack.c.l.bf16 %v2154
  %v2160 = vunpack.c.h.bf16 %v2154
  %v2161 = vunpack.c.l.bf16 %v2155
  %v2162 = vunpack.c.h.bf16 %v2155
  %v2163 = vunpack.c.l.bf16 %v2156
  %v2164 = vunpack.c.h.bf16 %v2156
  %v2165 = vld [vmem:[#allocation2] sm:$0xff]
  %v2166 = vld [vmem:[#allocation2 + $0x8] sm:$0xff]
  %v2167 = vpack.c.bf16 %v2166, %v2165
  %v2168 = vld [vmem:[%s1] sm:$0xff]
  %v2169 = vld [vmem:[%s1 + $0x8] sm:$0xff]
  %v2170 = vld [vmem:[%s1 + $0x10] sm:$0xff]
  %v2171 = vld [vmem:[%s1 + $0x18] sm:$0xff]
  %v2172 = vld [vmem:[%s1 + $0x20] sm:$0xff]
  %v2173 = vld [vmem:[%s1 + $0x28] sm:$0xff]
  %v2174 = vld [vmem:[%s1 + $0x30] sm:$0xff]
  %v2175 = vld [vmem:[%s1 + $0x38] sm:$0xff]
  %v2176 = vld [vmem:[%s1 + $0x40] sm:$0xff]
  %v2177 = vld [vmem:[%s1 + $0x48] sm:$0xff]
  %v2178 = vld [vmem:[%s1 + $0x50] sm:$0xff]
  %v2179 = vld [vmem:[%s1 + $0x58] sm:$0xff]
  %v2180 = vld [vmem:[%s1 + $0x60] sm:$0xff]
  %v2181 = vld [vmem:[%s1 + $0x68] sm:$0xff]
  %v2182 = vld [vmem:[%s1 + $0x70] sm:$0xff]
  %v2183 = vld [vmem:[%s1 + $0x78] sm:$0xff]
  %v2184 = vld [vmem:[%s1 + $0x80] sm:$0xff]
  %v2185 = vld [vmem:[%s1 + $0x88] sm:$0xff]
  %v2186 = vld [vmem:[%s1 + $0x90] sm:$0xff]
  %v2187 = vld [vmem:[%s1 + $0x98] sm:$0xff]
  %v2188 = vld [vmem:[%s1 + $0xa0] sm:$0xff]
  %v2189 = vld [vmem:[%s1 + $0xa8] sm:$0xff]
  %v2190 = vld [vmem:[%s1 + $0xb0] sm:$0xff]
  %v2191 = vld [vmem:[%s1 + $0xb8] sm:$0xff]
  %v2192 = vld [vmem:[%s1 + $0xc0] sm:$0xff]
  %v2193 = vld [vmem:[%s1 + $0xc8] sm:$0xff]
  %v2194 = vld [vmem:[%s1 + $0xd0] sm:$0xff]
  %v2195 = vld [vmem:[%s1 + $0xd8] sm:$0xff]
  %v2196 = vld [vmem:[%s1 + $0xe0] sm:$0xff]
  %v2197 = vld [vmem:[%s1 + $0xe8] sm:$0xff]
  %v2198 = vld [vmem:[%s1 + $0xf0] sm:$0xff]
  %v2199 = vld [vmem:[%s1 + $0xf8] sm:$0xff]
  %v2232 = vunpack.c.l.b16 %v2168
  %v2233 = vunpack.c.h.b16 %v2168
  %v2234 = vunpack.c.l.b16 %v2169
  %v2235 = vunpack.c.h.b16 %v2169
  %v2236 = vunpack.c.l.b16 %v2170
  %v2237 = vunpack.c.h.b16 %v2170
  %v2238 = vunpack.c.l.b16 %v2171
  %v2239 = vunpack.c.h.b16 %v2171
  %v2240 = vunpack.c.l.b16 %v2172
  %v2241 = vunpack.c.h.b16 %v2172
  %v2242 = vunpack.c.l.b16 %v2173
  %v2243 = vunpack.c.h.b16 %v2173
  %v2244 = vunpack.c.l.b16 %v2174
  %v2245 = vunpack.c.h.b16 %v2174
  %v2246 = vunpack.c.l.b16 %v2175
  %v2247 = vunpack.c.h.b16 %v2175
  %v2248 = vunpack.c.l.b16 %v2176
  %v2249 = vunpack.c.h.b16 %v2176
  %v2250 = vunpack.c.l.b16 %v2177
  %v2251 = vunpack.c.h.b16 %v2177
  %v2252 = vunpack.c.l.b16 %v2178
  %v2253 = vunpack.c.h.b16 %v2178
  %v2254 = vunpack.c.l.b16 %v2179
  %v2255 = vunpack.c.h.b16 %v2179
  %v2256 = vunpack.c.l.b16 %v2180
  %v2257 = vunpack.c.h.b16 %v2180
  %v2258 = vunpack.c.l.b16 %v2181
  %v2259 = vunpack.c.h.b16 %v2181
  %v2260 = vunpack.c.l.b16 %v2182
  %v2261 = vunpack.c.h.b16 %v2182
  %v2262 = vunpack.c.l.b16 %v2183
  %v2263 = vunpack.c.h.b16 %v2183
  %v2264 = vunpack.c.l.b16 %v2184
  %v2265 = vunpack.c.h.b16 %v2184
  %v2266 = vunpack.c.l.b16 %v2185
  %v2267 = vunpack.c.h.b16 %v2185
  %v2268 = vunpack.c.l.b16 %v2186
  %v2269 = vunpack.c.h.b16 %v2186
  %v2270 = vunpack.c.l.b16 %v2187
  %v2271 = vunpack.c.h.b16 %v2187
  %v2272 = vunpack.c.l.b16 %v2188
  %v2273 = vunpack.c.h.b16 %v2188
  %v2274 = vunpack.c.l.b16 %v2189
  %v2275 = vunpack.c.h.b16 %v2189
  %v2276 = vunpack.c.l.b16 %v2190
  %v2277 = vunpack.c.h.b16 %v2190
  %v2278 = vunpack.c.l.b16 %v2191
  %v2279 = vunpack.c.h.b16 %v2191
  %v2280 = vunpack.c.l.b16 %v2192
  %v2281 = vunpack.c.h.b16 %v2192
  %v2282 = vunpack.c.l.b16 %v2193
  %v2283 = vunpack.c.h.b16 %v2193
  %v2284 = vunpack.c.l.b16 %v2194
  %v2285 = vunpack.c.h.b16 %v2194
  %v2286 = vunpack.c.l.b16 %v2195
  %v2287 = vunpack.c.h.b16 %v2195
  %v2288 = vunpack.c.l.b16 %v2196
  %v2289 = vunpack.c.h.b16 %v2196
  %v2290 = vunpack.c.l.b16 %v2197
  %v2291 = vunpack.c.h.b16 %v2197
  %v2292 = vunpack.c.l.b16 %v2198
  %v2293 = vunpack.c.h.b16 %v2198
  %v2294 = vunpack.c.l.b16 %v2199
  %v2295 = vunpack.c.h.b16 %v2199
  %v2296 = vpack.c.b16 %v2236, %v2232
  %v2297 = vpack.c.b16 %v2237, %v2233
  %v2298 = vpack.c.b16 %v2238, %v2234
  %v2299 = vpack.c.b16 %v2239, %v2235
  %v2300 = vpack.c.b16 %v2244, %v2240
  %v2301 = vpack.c.b16 %v2245, %v2241
  %v2302 = vpack.c.b16 %v2246, %v2242
  %v2303 = vpack.c.b16 %v2247, %v2243
  %v2304 = vpack.c.b16 %v2252, %v2248
  %v2305 = vpack.c.b16 %v2253, %v2249
  %v2306 = vpack.c.b16 %v2254, %v2250
  %v2307 = vpack.c.b16 %v2255, %v2251
  %v2308 = vpack.c.b16 %v2260, %v2256
  %v2309 = vpack.c.b16 %v2261, %v2257
  %v2310 = vpack.c.b16 %v2262, %v2258
  %v2311 = vpack.c.b16 %v2263, %v2259
  %v2312 = vpack.c.b16 %v2268, %v2264
  %v2313 = vpack.c.b16 %v2269, %v2265
  %v2314 = vpack.c.b16 %v2270, %v2266
  %v2315 = vpack.c.b16 %v2271, %v2267
  %v2316 = vpack.c.b16 %v2276, %v2272
  %v2317 = vpack.c.b16 %v2277, %v2273
  %v2318 = vpack.c.b16 %v2278, %v2274
  %v2319 = vpack.c.b16 %v2279, %v2275
  %v2320 = vpack.c.b16 %v2284, %v2280
  %v2321 = vpack.c.b16 %v2285, %v2281
  %v2322 = vpack.c.b16 %v2286, %v2282
  %v2323 = vpack.c.b16 %v2287, %v2283
  %v2324 = vpack.c.b16 %v2292, %v2288
  %v2325 = vpack.c.b16 %v2293, %v2289
  %v2326 = vpack.c.b16 %v2294, %v2290
  %v2327 = vpack.c.b16 %v2295, %v2291
  %2360 = vmatprep.subr.bf16.mxu0 %v2297
  %2361 = vmatpush1.bf16.msra.mxu0 %v2296
  %2362 = vmatprep.subr.bf16.mxu0 %v2301
  %2363 = vmatpush1.bf16.msra.mxu0 %v2300
  %2364 = vmatprep.subr.bf16.mxu0 %v2305
  %2365 = vmatpush1.bf16.msra.mxu0 %v2304
  %2366 = vmatprep.subr.bf16.mxu0 %v2309
  %2367 = vmatpush1.bf16.msra.mxu0 %v2308
  %2368 = vmatprep.subr.bf16.mxu0 %v2313
  %2369 = vmatpush1.bf16.msra.mxu0 %v2312
  %2370 = vmatprep.subr.bf16.mxu0 %v2317
  %2371 = vmatpush1.bf16.msra.mxu0 %v2316
  %2372 = vmatprep.subr.bf16.mxu0 %v2321
  %2373 = vmatpush1.bf16.msra.mxu0 %v2320
  %2374 = vmatprep.subr.bf16.mxu0 %v2325
  %2375 = vmatpush1.bf16.msra.mxu0 %v2324
  %2376 = vmatprep.subr.bf16.mxu0 0
  %2377 = vmatpush1.bf16.msra.mxu0 0
  %2378 = vmatprep.subr.bf16.mxu0 0
  %2379 = vmatpush1.bf16.msra.mxu0 0
  %2380 = vmatprep.subr.bf16.mxu0 0
  %2381 = vmatpush1.bf16.msra.mxu0 0
  %2382 = vmatprep.subr.bf16.mxu0 0
  %2383 = vmatpush1.bf16.msra.mxu0 0
  %2384 = vmatprep.subr.bf16.mxu0 0
  %2385 = vmatpush1.bf16.msra.mxu0 0
  %2386 = vmatprep.subr.bf16.mxu0 0
  %2387 = vmatpush1.bf16.msra.mxu0 0
  %2388 = vmatprep.subr.bf16.mxu0 0
  %2389 = vmatpush1.bf16.msra.mxu0 0
  %2390 = vmatprep.subr.bf16.mxu0 0
  %2391 = vmatpush1.bf16.msra.mxu0 0
  %2392 = vmatprep.mubr.bf16.mxu0 0
  %2393 = vmatmul.mubr.bf16.gmra.mrb[0].mxu0 %v2167
  %v2394 = vpop.f32.mrb[0].mxu0
  %v2395 = vadd.f32 0.0, %v2394
  %v2396 = vpop.f32.mrb[0].mxu0
  %v2397 = vadd.f32 0.0, %v2396
  %v2398 = vpop.f32.mrb[0].mxu0
  %v2399 = vadd.f32 0.0, %v2398
  %v2400 = vpop.f32.mrb[0].mxu0
  %v2401 = vadd.f32 0.0, %v2400
  %2402 = vdwg.mxu0
  %2403 = vmatprep.subr.bf16.mxu0 %v2299
  %2404 = vmatpush1.bf16.msra.mxu0 %v2298
  %2405 = vmatprep.subr.bf16.mxu0 %v2303
  %2406 = vmatpush1.bf16.msra.mxu0 %v2302
  %2407 = vmatprep.subr.bf16.mxu0 %v2307
  %2408 = vmatpush1.bf16.msra.mxu0 %v2306
  %2409 = vmatprep.subr.bf16.mxu0 %v2311
  %2410 = vmatpush1.bf16.msra.mxu0 %v2310
  %2411 = vmatprep.subr.bf16.mxu0 %v2315
  %2412 = vmatpush1.bf16.msra.mxu0 %v2314
  %2413 = vmatprep.subr.bf16.mxu0 %v2319
  %2414 = vmatpush1.bf16.msra.mxu0 %v2318
  %2415 = vmatprep.subr.bf16.mxu0 %v2323
  %2416 = vmatpush1.bf16.msra.mxu0 %v2322
  %2417 = vmatprep.subr.bf16.mxu0 %v2327
  %2418 = vmatpush1.bf16.msra.mxu0 %v2326
  %2419 = vmatprep.subr.bf16.mxu0 0
  %2420 = vmatpush1.bf16.msra.mxu0 0
  %2421 = vmatprep.subr.bf16.mxu0 0
  %2422 = vmatpush1.bf16.msra.mxu0 0
  %2423 = vmatprep.subr.bf16.mxu0 0
  %2424 = vmatpush1.bf16.msra.mxu0 0
  %2425 = vmatprep.subr.bf16.mxu0 0
  %2426 = vmatpush1.bf16.msra.mxu0 0
  %2427 = vmatprep.subr.bf16.mxu0 0
  %2428 = vmatpush1.bf16.msra.mxu0 0
  %2429 = vmatprep.subr.bf16.mxu0 0
  %2430 = vmatpush1.bf16.msra.mxu0 0
  %2431 = vmatprep.subr.bf16.mxu0 0
  %2432 = vmatpush1.bf16.msra.mxu0 0
  %2433 = vmatprep.subr.bf16.mxu0 0
  %2434 = vmatpush1.bf16.msra.mxu0 0
  %2435 = vmatprep.mubr.bf16.mxu0 0
  %2436 = vmatmul.mubr.bf16.gmra.mrb[0].mxu0 %v2167
  %v2437 = vpop.f32.mrb[0].mxu0
  %v2438 = vadd.f32 0.0, %v2437
  %v2439 = vpop.f32.mrb[0].mxu0
  %v2440 = vadd.f32 0.0, %v2439
  %v2441 = vpop.f32.mrb[0].mxu0
  %v2442 = vadd.f32 0.0, %v2441
  %v2443 = vpop.f32.mrb[0].mxu0
  %v2444 = vadd.f32 0.0, %v2443
  %2445 = vdwg.mxu0
  %v2446 = vadd.f32 %v2157, %v2395
  %v2447 = vadd.f32 %v2158, %v2397
  %v2448 = vadd.f32 %v2159, %v2438
  %v2449 = vadd.f32 %v2160, %v2440
  %v2450 = vadd.f32 %v2161, %v2399
  %v2451 = vadd.f32 %v2162, %v2401
  %v2452 = vadd.f32 %v2163, %v2442
  %v2453 = vadd.f32 %v2164, %v2444
  %v2454 = vmul.f32 %v2446, 0.5
  %v2455 = vmul.f32 %v2450, 0.5
  %v2456 = vtanh.pop %v2454
  %v2457 = vtanh.pop %v2455
  %v2458 = vmul.f32 %v2456, 0.5
  %v2459 = vmul.f32 %v2457, 0.5
  %v2460 = vadd.f32 %v2458, 0.5
  %v2461 = vadd.f32 %v2459, 0.5
  %v2462 = vmul.f32 %v2447, 0.5
  %v2463 = vmul.f32 %v2451, 0.5
  %v2464 = vtanh.pop %v2462
  %v2465 = vtanh.pop %v2463
  %v2466 = vmul.f32 %v2464, 0.5
  %v2467 = vmul.f32 %v2465, 0.5
  %v2468 = vadd.f32 %v2466, 0.5
  %v2469 = vadd.f32 %v2467, 0.5
  %v2470 = vtanh.pop %v2448
  %v2471 = vtanh.pop %v2452
  %v2472 = vmul.f32 %v2449, 0.5
  %v2473 = vmul.f32 %v2453, 0.5
  %v2474 = vtanh.pop %v2472
  %v2475 = vtanh.pop %v2473
  %v2476 = vmul.f32 %v2474, 0.5
  %v2477 = vmul.f32 %v2475, 0.5
  %v2478 = vadd.f32 %v2476, 0.5
  %v2479 = vadd.f32 %v2477, 0.5
  %v2480 = vld [vmem:[#allocation3] sm:$0xff]
  %v2481 = vld [vmem:[#allocation3 + $0x8] sm:$0xff]
  %v2482 = vmul.f32 %v2468, %v2480
  %v2483 = vmul.f32 %v2469, %v2481
  %v2484 = vmul.f32 %v2460, %v2470
  %v2485 = vmul.f32 %v2461, %v2471
  %v2486 = vadd.f32 %v2482, %v2484
  %v2487 = vadd.f32 %v2483, %v2485
  %v2488 = vtanh.pop %v2486
  %v2489 = vtanh.pop %v2487
  %v2490 = vmul.f32 %v2478, %v2488
  %v2491 = vmul.f32 %v2479, %v2489
  %2492 = vst [vmem:[#allocation3] sm:$0xff] %v2486
  %2493 = vst [vmem:[#allocation3 + $0x8] sm:$0xff] %v2487
  %2494 = vst [vmem:[#allocation2] sm:$0xff] %v2490
  %2495 = vst [vmem:[#allocation2 + $0x8] sm:$0xff] %v2491
  %v2496 = vpack.c.bf16 %v2491, %v2490
  %v2498 = vunpack.c.l.b16 %v2496
  %v2499 = vunpack.c.h.b16 %v2496
  %v2500 = vpack.c.b16 %v2498, %v2498
  %v2501 = vpack.c.b16 %v2499, %v2499
  %s2504 = scalar_lea.vmem %s3, 48
  %2505 = vst [vmem:[%s2504] sm:$0xf] %v2500
  %2506 = vst [vmem:[%s2504 + $0x4] sm:$0xf] %v2501
  %s2507 = scalar_lea.vmem %s0, 224
  %v2508 = vld [vmem:[%s2507] sm:$0xff]
  %v2509 = vld [vmem:[%s2507 + $0x8] sm:$0xff]
  %v2510 = vld [vmem:[%s2507 + $0x10] sm:$0xff]
  %v2511 = vld [vmem:[%s2507 + $0x18] sm:$0xff]
  %v2512 = vunpack.c.l.bf16 %v2508
  %v2513 = vunpack.c.h.bf16 %v2508
  %v2514 = vunpack.c.l.bf16 %v2509
  %v2515 = vunpack.c.h.bf16 %v2509
  %v2516 = vunpack.c.l.bf16 %v2510
  %v2517 = vunpack.c.h.bf16 %v2510
  %v2518 = vunpack.c.l.bf16 %v2511
  %v2519 = vunpack.c.h.bf16 %v2511
  %v2520 = vld [vmem:[#allocation2] sm:$0xff]
  %v2521 = vld [vmem:[#allocation2 + $0x8] sm:$0xff]
  %v2522 = vpack.c.bf16 %v2521, %v2520
  %v2523 = vld [vmem:[%s1] sm:$0xff]
  %v2524 = vld [vmem:[%s1 + $0x8] sm:$0xff]
  %v2525 = vld [vmem:[%s1 + $0x10] sm:$0xff]
  %v2526 = vld [vmem:[%s1 + $0x18] sm:$0xff]
  %v2527 = vld [vmem:[%s1 + $0x20] sm:$0xff]
  %v2528 = vld [vmem:[%s1 + $0x28] sm:$0xff]
  %v2529 = vld [vmem:[%s1 + $0x30] sm:$0xff]
  %v2530 = vld [vmem:[%s1 + $0x38] sm:$0xff]
  %v2531 = vld [vmem:[%s1 + $0x40] sm:$0xff]
  %v2532 = vld [vmem:[%s1 + $0x48] sm:$0xff]
  %v2533 = vld [vmem:[%s1 + $0x50] sm:$0xff]
  %v2534 = vld [vmem:[%s1 + $0x58] sm:$0xff]
  %v2535 = vld [vmem:[%s1 + $0x60] sm:$0xff]
  %v2536 = vld [vmem:[%s1 + $0x68] sm:$0xff]
  %v2537 = vld [vmem:[%s1 + $0x70] sm:$0xff]
  %v2538 = vld [vmem:[%s1 + $0x78] sm:$0xff]
  %v2539 = vld [vmem:[%s1 + $0x80] sm:$0xff]
  %v2540 = vld [vmem:[%s1 + $0x88] sm:$0xff]
  %v2541 = vld [vmem:[%s1 + $0x90] sm:$0xff]
  %v2542 = vld [vmem:[%s1 + $0x98] sm:$0xff]
  %v2543 = vld [vmem:[%s1 + $0xa0] sm:$0xff]
  %v2544 = vld [vmem:[%s1 + $0xa8] sm:$0xff]
  %v2545 = vld [vmem:[%s1 + $0xb0] sm:$0xff]
  %v2546 = vld [vmem:[%s1 + $0xb8] sm:$0xff]
  %v2547 = vld [vmem:[%s1 + $0xc0] sm:$0xff]
  %v2548 = vld [vmem:[%s1 + $0xc8] sm:$0xff]
  %v2549 = vld [vmem:[%s1 + $0xd0] sm:$0xff]
  %v2550 = vld [vmem:[%s1 + $0xd8] sm:$0xff]
  %v2551 = vld [vmem:[%s1 + $0xe0] sm:$0xff]
  %v2552 = vld [vmem:[%s1 + $0xe8] sm:$0xff]
  %v2553 = vld [vmem:[%s1 + $0xf0] sm:$0xff]
  %v2554 = vld [vmem:[%s1 + $0xf8] sm:$0xff]
  %v2587 = vunpack.c.l.b16 %v2523
  %v2588 = vunpack.c.h.b16 %v2523
  %v2589 = vunpack.c.l.b16 %v2524
  %v2590 = vunpack.c.h.b16 %v2524
  %v2591 = vunpack.c.l.b16 %v2525
  %v2592 = vunpack.c.h.b16 %v2525
  %v2593 = vunpack.c.l.b16 %v2526
  %v2594 = vunpack.c.h.b16 %v2526
  %v2595 = vunpack.c.l.b16 %v2527
  %v2596 = vunpack.c.h.b16 %v2527
  %v2597 = vunpack.c.l.b16 %v2528
  %v2598 = vunpack.c.h.b16 %v2528
  %v2599 = vunpack.c.l.b16 %v2529
  %v2600 = vunpack.c.h.b16 %v2529
  %v2601 = vunpack.c.l.b16 %v2530
  %v2602 = vunpack.c.h.b16 %v2530
  %v2603 = vunpack.c.l.b16 %v2531
  %v2604 = vunpack.c.h.b16 %v2531
  %v2605 = vunpack.c.l.b16 %v2532
  %v2606 = vunpack.c.h.b16 %v2532
  %v2607 = vunpack.c.l.b16 %v2533
  %v2608 = vunpack.c.h.b16 %v2533
  %v2609 = vunpack.c.l.b16 %v2534
  %v2610 = vunpack.c.h.b16 %v2534
  %v2611 = vunpack.c.l.b16 %v2535
  %v2612 = vunpack.c.h.b16 %v2535
  %v2613 = vunpack.c.l.b16 %v2536
  %v2614 = vunpack.c.h.b16 %v2536
  %v2615 = vunpack.c.l.b16 %v2537
  %v2616 = vunpack.c.h.b16 %v2537
  %v2617 = vunpack.c.l.b16 %v2538
  %v2618 = vunpack.c.h.b16 %v2538
  %v2619 = vunpack.c.l.b16 %v2539
  %v2620 = vunpack.c.h.b16 %v2539
  %v2621 = vunpack.c.l.b16 %v2540
  %v2622 = vunpack.c.h.b16 %v2540
  %v2623 = vunpack.c.l.b16 %v2541
  %v2624 = vunpack.c.h.b16 %v2541
  %v2625 = vunpack.c.l.b16 %v2542
  %v2626 = vunpack.c.h.b16 %v2542
  %v2627 = vunpack.c.l.b16 %v2543
  %v2628 = vunpack.c.h.b16 %v2543
  %v2629 = vunpack.c.l.b16 %v2544
  %v2630 = vunpack.c.h.b16 %v2544
  %v2631 = vunpack.c.l.b16 %v2545
  %v2632 = vunpack.c.h.b16 %v2545
  %v2633 = vunpack.c.l.b16 %v2546
  %v2634 = vunpack.c.h.b16 %v2546
  %v2635 = vunpack.c.l.b16 %v2547
  %v2636 = vunpack.c.h.b16 %v2547
  %v2637 = vunpack.c.l.b16 %v2548
  %v2638 = vunpack.c.h.b16 %v2548
  %v2639 = vunpack.c.l.b16 %v2549
  %v2640 = vunpack.c.h.b16 %v2549
  %v2641 = vunpack.c.l.b16 %v2550
  %v2642 = vunpack.c.h.b16 %v2550
  %v2643 = vunpack.c.l.b16 %v2551
  %v2644 = vunpack.c.h.b16 %v2551
  %v2645 = vunpack.c.l.b16 %v2552
  %v2646 = vunpack.c.h.b16 %v2552
  %v2647 = vunpack.c.l.b16 %v2553
  %v2648 = vunpack.c.h.b16 %v2553
  %v2649 = vunpack.c.l.b16 %v2554
  %v2650 = vunpack.c.h.b16 %v2554
  %v2651 = vpack.c.b16 %v2591, %v2587
  %v2652 = vpack.c.b16 %v2592, %v2588
  %v2653 = vpack.c.b16 %v2593, %v2589
  %v2654 = vpack.c.b16 %v2594, %v2590
  %v2655 = vpack.c.b16 %v2599, %v2595
  %v2656 = vpack.c.b16 %v2600, %v2596
  %v2657 = vpack.c.b16 %v2601, %v2597
  %v2658 = vpack.c.b16 %v2602, %v2598
  %v2659 = vpack.c.b16 %v2607, %v2603
  %v2660 = vpack.c.b16 %v2608, %v2604
  %v2661 = vpack.c.b16 %v2609, %v2605
  %v2662 = vpack.c.b16 %v2610, %v2606
  %v2663 = vpack.c.b16 %v2615, %v2611
  %v2664 = vpack.c.b16 %v2616, %v2612
  %v2665 = vpack.c.b16 %v2617, %v2613
  %v2666 = vpack.c.b16 %v2618, %v2614
  %v2667 = vpack.c.b16 %v2623, %v2619
  %v2668 = vpack.c.b16 %v2624, %v2620
  %v2669 = vpack.c.b16 %v2625, %v2621
  %v2670 = vpack.c.b16 %v2626, %v2622
  %v2671 = vpack.c.b16 %v2631, %v2627
  %v2672 = vpack.c.b16 %v2632, %v2628
  %v2673 = vpack.c.b16 %v2633, %v2629
  %v2674 = vpack.c.b16 %v2634, %v2630
  %v2675 = vpack.c.b16 %v2639, %v2635
  %v2676 = vpack.c.b16 %v2640, %v2636
  %v2677 = vpack.c.b16 %v2641, %v2637
  %v2678 = vpack.c.b16 %v2642, %v2638
  %v2679 = vpack.c.b16 %v2647, %v2643
  %v2680 = vpack.c.b16 %v2648, %v2644
  %v2681 = vpack.c.b16 %v2649, %v2645
  %v2682 = vpack.c.b16 %v2650, %v2646
  %2715 = vmatprep.subr.bf16.mxu0 %v2652
  %2716 = vmatpush1.bf16.msra.mxu0 %v2651
  %2717 = vmatprep.subr.bf16.mxu0 %v2656
  %2718 = vmatpush1.bf16.msra.mxu0 %v2655
  %2719 = vmatprep.subr.bf16.mxu0 %v2660
  %2720 = vmatpush1.bf16.msra.mxu0 %v2659
  %2721 = vmatprep.subr.bf16.mxu0 %v2664
  %2722 = vmatpush1.bf16.msra.mxu0 %v2663
  %2723 = vmatprep.subr.bf16.mxu0 %v2668
  %2724 = vmatpush1.bf16.msra.mxu0 %v2667
  %2725 = vmatprep.subr.bf16.mxu0 %v2672
  %2726 = vmatpush1.bf16.msra.mxu0 %v2671
  %2727 = vmatprep.subr.bf16.mxu0 %v2676
  %2728 = vmatpush1.bf16.msra.mxu0 %v2675
  %2729 = vmatprep.subr.bf16.mxu0 %v2680
  %2730 = vmatpush1.bf16.msra.mxu0 %v2679
  %2731 = vmatprep.subr.bf16.mxu0 0
  %2732 = vmatpush1.bf16.msra.mxu0 0
  %2733 = vmatprep.subr.bf16.mxu0 0
  %2734 = vmatpush1.bf16.msra.mxu0 0
  %2735 = vmatprep.subr.bf16.mxu0 0
  %2736 = vmatpush1.bf16.msra.mxu0 0
  %2737 = vmatprep.subr.bf16.mxu0 0
  %2738 = vmatpush1.bf16.msra.mxu0 0
  %2739 = vmatprep.subr.bf16.mxu0 0
  %2740 = vmatpush1.bf16.msra.mxu0 0
  %2741 = vmatprep.subr.bf16.mxu0 0
  %2742 = vmatpush1.bf16.msra.mxu0 0
  %2743 = vmatprep.subr.bf16.mxu0 0
  %2744 = vmatpush1.bf16.msra.mxu0 0
  %2745 = vmatprep.subr.bf16.mxu0 0
  %2746 = vmatpush1.bf16.msra.mxu0 0
  %2747 = vmatprep.mubr.bf16.mxu0 0
  %2748 = vmatmul.mubr.bf16.gmra.mrb[0].mxu0 %v2522
  %v2749 = vpop.f32.mrb[0].mxu0
  %v2750 = vadd.f32 0.0, %v2749
  %v2751 = vpop.f32.mrb[0].mxu0
  %v2752 = vadd.f32 0.0, %v2751
  %v2753 = vpop.f32.mrb[0].mxu0
  %v2754 = vadd.f32 0.0, %v2753
  %v2755 = vpop.f32.mrb[0].mxu0
  %v2756 = vadd.f32 0.0, %v2755
  %2757 = vdwg.mxu0
  %2758 = vmatprep.subr.bf16.mxu0 %v2654
  %2759 = vmatpush1.bf16.msra.mxu0 %v2653
  %2760 = vmatprep.subr.bf16.mxu0 %v2658
  %2761 = vmatpush1.bf16.msra.mxu0 %v2657
  %2762 = vmatprep.subr.bf16.mxu0 %v2662
  %2763 = vmatpush1.bf16.msra.mxu0 %v2661
  %2764 = vmatprep.subr.bf16.mxu0 %v2666
  %2765 = vmatpush1.bf16.msra.mxu0 %v2665
  %2766 = vmatprep.subr.bf16.mxu0 %v2670
  %2767 = vmatpush1.bf16.msra.mxu0 %v2669
  %2768 = vmatprep.subr.bf16.mxu0 %v2674
  %2769 = vmatpush1.bf16.msra.mxu0 %v2673
  %2770 = vmatprep.subr.bf16.mxu0 %v2678
  %2771 = vmatpush1.bf16.msra.mxu0 %v2677
  %2772 = vmatprep.subr.bf16.mxu0 %v2682
  %2773 = vmatpush1.bf16.msra.mxu0 %v2681
  %2774 = vmatprep.subr.bf16.mxu0 0
  %2775 = vmatpush1.bf16.msra.mxu0 0
  %2776 = vmatprep.subr.bf16.mxu0 0
  %2777 = vmatpush1.bf16.msra.mxu0 0
  %2778 = vmatprep.subr.bf16.mxu0 0
  %2779 = vmatpush1.bf16.msra.mxu0 0
  %2780 = vmatprep.subr.bf16.mxu0 0
  %2781 = vmatpush1.bf16.msra.mxu0 0
  %2782 = vmatprep.subr.bf16.mxu0 0
  %2783 = vmatpush1.bf16.msra.mxu0 0
  %2784 = vmatprep.subr.bf16.mxu0 0
  %2785 = vmatpush1.bf16.msra.mxu0 0
  %2786 = vmatprep.subr.bf16.mxu0 0
  %2787 = vmatpush1.bf16.msra.mxu0 0
  %2788 = vmatprep.subr.bf16.mxu0 0
  %2789 = vmatpush1.bf16.msra.mxu0 0
  %2790 = vmatprep.mubr.bf16.mxu0 0
  %2791 = vmatmul.mubr.bf16.gmra.mrb[0].mxu0 %v2522
  %v2792 = vpop.f32.mrb[0].mxu0
  %v2793 = vadd.f32 0.0, %v2792
  %v2794 = vpop.f32.mrb[0].mxu0
  %v2795 = vadd.f32 0.0, %v2794
  %v2796 = vpop.f32.mrb[0].mxu0
  %v2797 = vadd.f32 0.0, %v2796
  %v2798 = vpop.f32.mrb[0].mxu0
  %v2799 = vadd.f32 0.0, %v2798
  %2800 = vdwg.mxu0
  %v2801 = vadd.f32 %v2512, %v2750
  %v2802 = vadd.f32 %v2513, %v2752
  %v2803 = vadd.f32 %v2514, %v2793
  %v2804 = vadd.f32 %v2515, %v2795
  %v2805 = vadd.f32 %v2516, %v2754
  %v2806 = vadd.f32 %v2517, %v2756
  %v2807 = vadd.f32 %v2518, %v2797
  %v2808 = vadd.f32 %v2519, %v2799
  %v2809 = vmul.f32 %v2801, 0.5
  %v2810 = vmul.f32 %v2805, 0.5
  %v2811 = vtanh.pop %v2809
  %v2812 = vtanh.pop %v2810
  %v2813 = vmul.f32 %v2811, 0.5
  %v2814 = vmul.f32 %v2812, 0.5
  %v2815 = vadd.f32 %v2813, 0.5
  %v2816 = vadd.f32 %v2814, 0.5
  %v2817 = vmul.f32 %v2802, 0.5
  %v2818 = vmul.f32 %v2806, 0.5
  %v2819 = vtanh.pop %v2817
  %v2820 = vtanh.pop %v2818
  %v2821 = vmul.f32 %v2819, 0.5
  %v2822 = vmul.f32 %v2820, 0.5
  %v2823 = vadd.f32 %v2821, 0.5
  %v2824 = vadd.f32 %v2822, 0.5
  %v2825 = vtanh.pop %v2803
  %v2826 = vtanh.pop %v2807
  %v2827 = vmul.f32 %v2804, 0.5
  %v2828 = vmul.f32 %v2808, 0.5
  %v2829 = vtanh.pop %v2827
  %v2830 = vtanh.pop %v2828
  %v2831 = vmul.f32 %v2829, 0.5
  %v2832 = vmul.f32 %v2830, 0.5
  %v2833 = vadd.f32 %v2831, 0.5
  %v2834 = vadd.f32 %v2832, 0.5
  %v2835 = vld [vmem:[#allocation3] sm:$0xff]
  %v2836 = vld [vmem:[#allocation3 + $0x8] sm:$0xff]
  %v2837 = vmul.f32 %v2823, %v2835
  %v2838 = vmul.f32 %v2824, %v2836
  %v2839 = vmul.f32 %v2815, %v2825
  %v2840 = vmul.f32 %v2816, %v2826
  %v2841 = vadd.f32 %v2837, %v2839
  %v2842 = vadd.f32 %v2838, %v2840
  %v2843 = vtanh.pop %v2841
  %v2844 = vtanh.pop %v2842
  %v2845 = vmul.f32 %v2833, %v2843
  %v2846 = vmul.f32 %v2834, %v2844
  %2847 = vst [vmem:[#allocation3] sm:$0xff] %v2841
  %2848 = vst [vmem:[#allocation3 + $0x8] sm:$0xff] %v2842
  %2849 = vst [vmem:[#allocation2] sm:$0xff] %v2845
  %2850 = vst [vmem:[#allocation2 + $0x8] sm:$0xff] %v2846
  %v2851 = vpack.c.bf16 %v2846, %v2845
  %v2853 = vunpack.c.l.b16 %v2851
  %v2854 = vunpack.c.h.b16 %v2851
  %v2855 = vpack.c.b16 %v2853, %v2853
  %v2856 = vpack.c.b16 %v2854, %v2854
  %s2859 = scalar_lea.vmem %s3, 56
  %2860 = vst [vmem:[%s2859] sm:$0xf] %v2855
  %2861 = vst [vmem:[%s2859 + $0x4] sm:$0xf] %v2856
  %s2862 = scalar_lea.vmem %s0, 256
  %v2863 = vld [vmem:[%s2862] sm:$0xff]
  %v2864 = vld [vmem:[%s2862 + $0x8] sm:$0xff]
  %v2865 = vld [vmem:[%s2862 + $0x10] sm:$0xff]
  %v2866 = vld [vmem:[%s2862 + $0x18] sm:$0xff]
  %v2867 = vunpack.c.l.bf16 %v2863
  %v2868 = vunpack.c.h.bf16 %v2863
  %v2869 = vunpack.c.l.bf16 %v2864
  %v2870 = vunpack.c.h.bf16 %v2864
  %v2871 = vunpack.c.l.bf16 %v2865
  %v2872 = vunpack.c.h.bf16 %v2865
  %v2873 = vunpack.c.l.bf16 %v2866
  %v2874 = vunpack.c.h.bf16 %v2866
  %v2875 = vld [vmem:[#allocation2] sm:$0xff]
  %v2876 = vld [vmem:[#allocation2 + $0x8] sm:$0xff]
  %v2877 = vpack.c.bf16 %v2876, %v2875
  %v2878 = vld [vmem:[%s1] sm:$0xff]
  %v2879 = vld [vmem:[%s1 + $0x8] sm:$0xff]
  %v2880 = vld [vmem:[%s1 + $0x10] sm:$0xff]
  %v2881 = vld [vmem:[%s1 + $0x18] sm:$0xff]
  %v2882 = vld [vmem:[%s1 + $0x20] sm:$0xff]
  %v2883 = vld [vmem:[%s1 + $0x28] sm:$0xff]
  %v2884 = vld [vmem:[%s1 + $0x30] sm:$0xff]
  %v2885 = vld [vmem:[%s1 + $0x38] sm:$0xff]
  %v2886 = vld [vmem:[%s1 + $0x40] sm:$0xff]
  %v2887 = vld [vmem:[%s1 + $0x48] sm:$0xff]
  %v2888 = vld [vmem:[%s1 + $0x50] sm:$0xff]
  %v2889 = vld [vmem:[%s1 + $0x58] sm:$0xff]
  %v2890 = vld [vmem:[%s1 + $0x60] sm:$0xff]
  %v2891 = vld [vmem:[%s1 + $0x68] sm:$0xff]
  %v2892 = vld [vmem:[%s1 + $0x70] sm:$0xff]
  %v2893 = vld [vmem:[%s1 + $0x78] sm:$0xff]
  %v2894 = vld [vmem:[%s1 + $0x80] sm:$0xff]
  %v2895 = vld [vmem:[%s1 + $0x88] sm:$0xff]
  %v2896 = vld [vmem:[%s1 + $0x90] sm:$0xff]
  %v2897 = vld [vmem:[%s1 + $0x98] sm:$0xff]
  %v2898 = vld [vmem:[%s1 + $0xa0] sm:$0xff]
  %v2899 = vld [vmem:[%s1 + $0xa8] sm:$0xff]
  %v2900 = vld [vmem:[%s1 + $0xb0] sm:$0xff]
  %v2901 = vld [vmem:[%s1 + $0xb8] sm:$0xff]
  %v2902 = vld [vmem:[%s1 + $0xc0] sm:$0xff]
  %v2903 = vld [vmem:[%s1 + $0xc8] sm:$0xff]
  %v2904 = vld [vmem:[%s1 + $0xd0] sm:$0xff]
  %v2905 = vld [vmem:[%s1 + $0xd8] sm:$0xff]
  %v2906 = vld [vmem:[%s1 + $0xe0] sm:$0xff]
  %v2907 = vld [vmem:[%s1 + $0xe8] sm:$0xff]
  %v2908 = vld [vmem:[%s1 + $0xf0] sm:$0xff]
  %v2909 = vld [vmem:[%s1 + $0xf8] sm:$0xff]
  %v2942 = vunpack.c.l.b16 %v2878
  %v2943 = vunpack.c.h.b16 %v2878
  %v2944 = vunpack.c.l.b16 %v2879
  %v2945 = vunpack.c.h.b16 %v2879
  %v2946 = vunpack.c.l.b16 %v2880
  %v2947 = vunpack.c.h.b16 %v2880
  %v2948 = vunpack.c.l.b16 %v2881
  %v2949 = vunpack.c.h.b16 %v2881
  %v2950 = vunpack.c.l.b16 %v2882
  %v2951 = vunpack.c.h.b16 %v2882
  %v2952 = vunpack.c.l.b16 %v2883
  %v2953 = vunpack.c.h.b16 %v2883
  %v2954 = vunpack.c.l.b16 %v2884
  %v2955 = vunpack.c.h.b16 %v2884
  %v2956 = vunpack.c.l.b16 %v2885
  %v2957 = vunpack.c.h.b16 %v2885
  %v2958 = vunpack.c.l.b16 %v2886
  %v2959 = vunpack.c.h.b16 %v2886
  %v2960 = vunpack.c.l.b16 %v2887
  %v2961 = vunpack.c.h.b16 %v2887
  %v2962 = vunpack.c.l.b16 %v2888
  %v2963 = vunpack.c.h.b16 %v2888
  %v2964 = vunpack.c.l.b16 %v2889
  %v2965 = vunpack.c.h.b16 %v2889
  %v2966 = vunpack.c.l.b16 %v2890
  %v2967 = vunpack.c.h.b16 %v2890
  %v2968 = vunpack.c.l.b16 %v2891
  %v2969 = vunpack.c.h.b16 %v2891
  %v2970 = vunpack.c.l.b16 %v2892
  %v2971 = vunpack.c.h.b16 %v2892
  %v2972 = vunpack.c.l.b16 %v2893
  %v2973 = vunpack.c.h.b16 %v2893
  %v2974 = vunpack.c.l.b16 %v2894
  %v2975 = vunpack.c.h.b16 %v2894
  %v2976 = vunpack.c.l.b16 %v2895
  %v2977 = vunpack.c.h.b16 %v2895
  %v2978 = vunpack.c.l.b16 %v2896
  %v2979 = vunpack.c.h.b16 %v2896
  %v2980 = vunpack.c.l.b16 %v2897
  %v2981 = vunpack.c.h.b16 %v2897
  %v2982 = vunpack.c.l.b16 %v2898
  %v2983 = vunpack.c.h.b16 %v2898
  %v2984 = vunpack.c.l.b16 %v2899
  %v2985 = vunpack.c.h.b16 %v2899
  %v2986 = vunpack.c.l.b16 %v2900
  %v2987 = vunpack.c.h.b16 %v2900
  %v2988 = vunpack.c.l.b16 %v2901
  %v2989 = vunpack.c.h.b16 %v2901
  %v2990 = vunpack.c.l.b16 %v2902
  %v2991 = vunpack.c.h.b16 %v2902
  %v2992 = vunpack.c.l.b16 %v2903
  %v2993 = vunpack.c.h.b16 %v2903
  %v2994 = vunpack.c.l.b16 %v2904
  %v2995 = vunpack.c.h.b16 %v2904
  %v2996 = vunpack.c.l.b16 %v2905
  %v2997 = vunpack.c.h.b16 %v2905
  %v2998 = vunpack.c.l.b16 %v2906
  %v2999 = vunpack.c.h.b16 %v2906
  %v3000 = vunpack.c.l.b16 %v2907
  %v3001 = vunpack.c.h.b16 %v2907
  %v3002 = vunpack.c.l.b16 %v2908
  %v3003 = vunpack.c.h.b16 %v2908
  %v3004 = vunpack.c.l.b16 %v2909
  %v3005 = vunpack.c.h.b16 %v2909
  %v3006 = vpack.c.b16 %v2946, %v2942
  %v3007 = vpack.c.b16 %v2947, %v2943
  %v3008 = vpack.c.b16 %v2948, %v2944
  %v3009 = vpack.c.b16 %v2949, %v2945
  %v3010 = vpack.c.b16 %v2954, %v2950
  %v3011 = vpack.c.b16 %v2955, %v2951
  %v3012 = vpack.c.b16 %v2956, %v2952
  %v3013 = vpack.c.b16 %v2957, %v2953
  %v3014 = vpack.c.b16 %v2962, %v2958
  %v3015 = vpack.c.b16 %v2963, %v2959
  %v3016 = vpack.c.b16 %v2964, %v2960
  %v3017 = vpack.c.b16 %v2965, %v2961
  %v3018 = vpack.c.b16 %v2970, %v2966
  %v3019 = vpack.c.b16 %v2971, %v2967
  %v3020 = vpack.c.b16 %v2972, %v2968
  %v3021 = vpack.c.b16 %v2973, %v2969
  %v3022 = vpack.c.b16 %v2978, %v2974
  %v3023 = vpack.c.b16 %v2979, %v2975
  %v3024 = vpack.c.b16 %v2980, %v2976
  %v3025 = vpack.c.b16 %v2981, %v2977
  %v3026 = vpack.c.b16 %v2986, %v2982
  %v3027 = vpack.c.b16 %v2987, %v2983
  %v3028 = vpack.c.b16 %v2988, %v2984
  %v3029 = vpack.c.b16 %v2989, %v2985
  %v3030 = vpack.c.b16 %v2994, %v2990
  %v3031 = vpack.c.b16 %v2995, %v2991
  %v3032 = vpack.c.b16 %v2996, %v2992
  %v3033 = vpack.c.b16 %v2997, %v2993
  %v3034 = vpack.c.b16 %v3002, %v2998
  %v3035 = vpack.c.b16 %v3003, %v2999
  %v3036 = vpack.c.b16 %v3004, %v3000
  %v3037 = vpack.c.b16 %v3005, %v3001
  %3070 = vmatprep.subr.bf16.mxu0 %v3007
  %3071 = vmatpush1.bf16.msra.mxu0 %v3006
  %3072 = vmatprep.subr.bf16.mxu0 %v3011
  %3073 = vmatpush1.bf16.msra.mxu0 %v3010
  %3074 = vmatprep.subr.bf16.mxu0 %v3015
  %3075 = vmatpush1.bf16.msra.mxu0 %v3014
  %3076 = vmatprep.subr.bf16.mxu0 %v3019
  %3077 = vmatpush1.bf16.msra.mxu0 %v3018
  %3078 = vmatprep.subr.bf16.mxu0 %v3023
  %3079 = vmatpush1.bf16.msra.mxu0 %v3022
  %3080 = vmatprep.subr.bf16.mxu0 %v3027
  %3081 = vmatpush1.bf16.msra.mxu0 %v3026
  %3082 = vmatprep.subr.bf16.mxu0 %v3031
  %3083 = vmatpush1.bf16.msra.mxu0 %v3030
  %3084 = vmatprep.subr.bf16.mxu0 %v3035
  %3085 = vmatpush1.bf16.msra.mxu0 %v3034
  %3086 = vmatprep.subr.bf16.mxu0 0
  %3087 = vmatpush1.bf16.msra.mxu0 0
  %3088 = vmatprep.subr.bf16.mxu0 0
  %3089 = vmatpush1.bf16.msra.mxu0 0
  %3090 = vmatprep.subr.bf16.mxu0 0
  %3091 = vmatpush1.bf16.msra.mxu0 0
  %3092 = vmatprep.subr.bf16.mxu0 0
  %3093 = vmatpush1.bf16.msra.mxu0 0
  %3094 = vmatprep.subr.bf16.mxu0 0
  %3095 = vmatpush1.bf16.msra.mxu0 0
  %3096 = vmatprep.subr.bf16.mxu0 0
  %3097 = vmatpush1.bf16.msra.mxu0 0
  %3098 = vmatprep.subr.bf16.mxu0 0
  %3099 = vmatpush1.bf16.msra.mxu0 0
  %3100 = vmatprep.subr.bf16.mxu0 0
  %3101 = vmatpush1.bf16.msra.mxu0 0
  %3102 = vmatprep.mubr.bf16.mxu0 0
  %3103 = vmatmul.mubr.bf16.gmra.mrb[0].mxu0 %v2877
  %v3104 = vpop.f32.mrb[0].mxu0
  %v3105 = vadd.f32 0.0, %v3104
  %v3106 = vpop.f32.mrb[0].mxu0
  %v3107 = vadd.f32 0.0, %v3106
  %v3108 = vpop.f32.mrb[0].mxu0
  %v3109 = vadd.f32 0.0, %v3108
  %v3110 = vpop.f32.mrb[0].mxu0
  %v3111 = vadd.f32 0.0, %v3110
  %3112 = vdwg.mxu0
  %3113 = vmatprep.subr.bf16.mxu0 %v3009
  %3114 = vmatpush1.bf16.msra.mxu0 %v3008
  %3115 = vmatprep.subr.bf16.mxu0 %v3013
  %3116 = vmatpush1.bf16.msra.mxu0 %v3012
  %3117 = vmatprep.subr.bf16.mxu0 %v3017
  %3118 = vmatpush1.bf16.msra.mxu0 %v3016
  %3119 = vmatprep.subr.bf16.mxu0 %v3021
  %3120 = vmatpush1.bf16.msra.mxu0 %v3020
  %3121 = vmatprep.subr.bf16.mxu0 %v3025
  %3122 = vmatpush1.bf16.msra.mxu0 %v3024
  %3123 = vmatprep.subr.bf16.mxu0 %v3029
  %3124 = vmatpush1.bf16.msra.mxu0 %v3028
  %3125 = vmatprep.subr.bf16.mxu0 %v3033
  %3126 = vmatpush1.bf16.msra.mxu0 %v3032
  %3127 = vmatprep.subr.bf16.mxu0 %v3037
  %3128 = vmatpush1.bf16.msra.mxu0 %v3036
  %3129 = vmatprep.subr.bf16.mxu0 0
  %3130 = vmatpush1.bf16.msra.mxu0 0
  %3131 = vmatprep.subr.bf16.mxu0 0
  %3132 = vmatpush1.bf16.msra.mxu0 0
  %3133 = vmatprep.subr.bf16.mxu0 0
  %3134 = vmatpush1.bf16.msra.mxu0 0
  %3135 = vmatprep.subr.bf16.mxu0 0
  %3136 = vmatpush1.bf16.msra.mxu0 0
  %3137 = vmatprep.subr.bf16.mxu0 0
  %3138 = vmatpush1.bf16.msra.mxu0 0
  %3139 = vmatprep.subr.bf16.mxu0 0
  %3140 = vmatpush1.bf16.msra.mxu0 0
  %3141 = vmatprep.subr.bf16.mxu0 0
  %3142 = vmatpush1.bf16.msra.mxu0 0
  %3143 = vmatprep.subr.bf16.mxu0 0
  %3144 = vmatpush1.bf16.msra.mxu0 0
  %3145 = vmatprep.mubr.bf16.mxu0 0
  %3146 = vmatmul.mubr.bf16.gmra.mrb[0].mxu0 %v2877
  %v3147 = vpop.f32.mrb[0].mxu0
  %v3148 = vadd.f32 0.0, %v3147
  %v3149 = vpop.f32.mrb[0].mxu0
  %v3150 = vadd.f32 0.0, %v3149
  %v3151 = vpop.f32.mrb[0].mxu0
  %v3152 = vadd.f32 0.0, %v3151
  %v3153 = vpop.f32.mrb[0].mxu0
  %v3154 = vadd.f32 0.0, %v3153
  %3155 = vdwg.mxu0
  %v3156 = vadd.f32 %v2867, %v3105
  %v3157 = vadd.f32 %v2868, %v3107
  %v3158 = vadd.f32 %v2869, %v3148
  %v3159 = vadd.f32 %v2870, %v3150
  %v3160 = vadd.f32 %v2871, %v3109
  %v3161 = vadd.f32 %v2872, %v3111
  %v3162 = vadd.f32 %v2873, %v3152
  %v3163 = vadd.f32 %v2874, %v3154
  %v3164 = vmul.f32 %v3156, 0.5
  %v3165 = vmul.f32 %v3160, 0.5
  %v3166 = vtanh.pop %v3164
  %v3167 = vtanh.pop %v3165
  %v3168 = vmul.f32 %v3166, 0.5
  %v3169 = vmul.f32 %v3167, 0.5
  %v3170 = vadd.f32 %v3168, 0.5
  %v3171 = vadd.f32 %v3169, 0.5
  %v3172 = vmul.f32 %v3157, 0.5
  %v3173 = vmul.f32 %v3161, 0.5
  %v3174 = vtanh.pop %v3172
  %v3175 = vtanh.pop %v3173
  %v3176 = vmul.f32 %v3174, 0.5
  %v3177 = vmul.f32 %v3175, 0.5
  %v3178 = vadd.f32 %v3176, 0.5
  %v3179 = vadd.f32 %v3177, 0.5
  %v3180 = vtanh.pop %v3158
  %v3181 = vtanh.pop %v3162
  %v3182 = vmul.f32 %v3159, 0.5
  %v3183 = vmul.f32 %v3163, 0.5
  %v3184 = vtanh.pop %v3182
  %v3185 = vtanh.pop %v3183
  %v3186 = vmul.f32 %v3184, 0.5
  %v3187 = vmul.f32 %v3185, 0.5
  %v3188 = vadd.f32 %v3186, 0.5
  %v3189 = vadd.f32 %v3187, 0.5
  %v3190 = vld [vmem:[#allocation3] sm:$0xff]
  %v3191 = vld [vmem:[#allocation3 + $0x8] sm:$0xff]
  %v3192 = vmul.f32 %v3178, %v3190
  %v3193 = vmul.f32 %v3179, %v3191
  %v3194 = vmul.f32 %v3170, %v3180
  %v3195 = vmul.f32 %v3171, %v3181
  %v3196 = vadd.f32 %v3192, %v3194
  %v3197 = vadd.f32 %v3193, %v3195
  %v3198 = vtanh.pop %v3196
  %v3199 = vtanh.pop %v3197
  %v3200 = vmul.f32 %v3188, %v3198
  %v3201 = vmul.f32 %v3189, %v3199
  %3202 = vst [vmem:[#allocation3] sm:$0xff] %v3196
  %3203 = vst [vmem:[#allocation3 + $0x8] sm:$0xff] %v3197
  %3204 = vst [vmem:[#allocation2] sm:$0xff] %v3200
  %3205 = vst [vmem:[#allocation2 + $0x8] sm:$0xff] %v3201
  %v3206 = vpack.c.bf16 %v3201, %v3200
  %v3208 = vunpack.c.l.b16 %v3206
  %v3209 = vunpack.c.h.b16 %v3206
  %v3210 = vpack.c.b16 %v3208, %v3208
  %v3211 = vpack.c.b16 %v3209, %v3209
  %s3214 = scalar_lea.vmem %s3, 64
  %3215 = vst [vmem:[%s3214] sm:$0xf] %v3210
  %3216 = vst [vmem:[%s3214 + $0x4] sm:$0xf] %v3211
  %s3217 = scalar_lea.vmem %s0, 288
  %v3218 = vld [vmem:[%s3217] sm:$0xff]
  %v3219 = vld [vmem:[%s3217 + $0x8] sm:$0xff]
  %v3220 = vld [vmem:[%s3217 + $0x10] sm:$0xff]
  %v3221 = vld [vmem:[%s3217 + $0x18] sm:$0xff]
  %v3222 = vunpack.c.l.bf16 %v3218
  %v3223 = vunpack.c.h.bf16 %v3218
  %v3224 = vunpack.c.l.bf16 %v3219
  %v3225 = vunpack.c.h.bf16 %v3219
  %v3226 = vunpack.c.l.bf16 %v3220
  %v3227 = vunpack.c.h.bf16 %v3220
  %v3228 = vunpack.c.l.bf16 %v3221
  %v3229 = vunpack.c.h.bf16 %v3221
  %v3230 = vld [vmem:[#allocation2] sm:$0xff]
  %v3231 = vld [vmem:[#allocation2 + $0x8] sm:$0xff]
  %v3232 = vpack.c.bf16 %v3231, %v3230
  %v3233 = vld [vmem:[%s1] sm:$0xff]
  %v3234 = vld [vmem:[%s1 + $0x8] sm:$0xff]
  %v3235 = vld [vmem:[%s1 + $0x10] sm:$0xff]
  %v3236 = vld [vmem:[%s1 + $0x18] sm:$0xff]
  %v3237 = vld [vmem:[%s1 + $0x20] sm:$0xff]
  %v3238 = vld [vmem:[%s1 + $0x28] sm:$0xff]
  %v3239 = vld [vmem:[%s1 + $0x30] sm:$0xff]
  %v3240 = vld [vmem:[%s1 + $0x38] sm:$0xff]
  %v3241 = vld [vmem:[%s1 + $0x40] sm:$0xff]
  %v3242 = vld [vmem:[%s1 + $0x48] sm:$0xff]
  %v3243 = vld [vmem:[%s1 + $0x50] sm:$0xff]
  %v3244 = vld [vmem:[%s1 + $0x58] sm:$0xff]
  %v3245 = vld [vmem:[%s1 + $0x60] sm:$0xff]
  %v3246 = vld [vmem:[%s1 + $0x68] sm:$0xff]
  %v3247 = vld [vmem:[%s1 + $0x70] sm:$0xff]
  %v3248 = vld [vmem:[%s1 + $0x78] sm:$0xff]
  %v3249 = vld [vmem:[%s1 + $0x80] sm:$0xff]
  %v3250 = vld [vmem:[%s1 + $0x88] sm:$0xff]
  %v3251 = vld [vmem:[%s1 + $0x90] sm:$0xff]
  %v3252 = vld [vmem:[%s1 + $0x98] sm:$0xff]
  %v3253 = vld [vmem:[%s1 + $0xa0] sm:$0xff]
  %v3254 = vld [vmem:[%s1 + $0xa8] sm:$0xff]
  %v3255 = vld [vmem:[%s1 + $0xb0] sm:$0xff]
  %v3256 = vld [vmem:[%s1 + $0xb8] sm:$0xff]
  %v3257 = vld [vmem:[%s1 + $0xc0] sm:$0xff]
  %v3258 = vld [vmem:[%s1 + $0xc8] sm:$0xff]
  %v3259 = vld [vmem:[%s1 + $0xd0] sm:$0xff]
  %v3260 = vld [vmem:[%s1 + $0xd8] sm:$0xff]
  %v3261 = vld [vmem:[%s1 + $0xe0] sm:$0xff]
  %v3262 = vld [vmem:[%s1 + $0xe8] sm:$0xff]
  %v3263 = vld [vmem:[%s1 + $0xf0] sm:$0xff]
  %v3264 = vld [vmem:[%s1 + $0xf8] sm:$0xff]
  %v3297 = vunpack.c.l.b16 %v3233
  %v3298 = vunpack.c.h.b16 %v3233
  %v3299 = vunpack.c.l.b16 %v3234
  %v3300 = vunpack.c.h.b16 %v3234
  %v3301 = vunpack.c.l.b16 %v3235
  %v3302 = vunpack.c.h.b16 %v3235
  %v3303 = vunpack.c.l.b16 %v3236
  %v3304 = vunpack.c.h.b16 %v3236
  %v3305 = vunpack.c.l.b16 %v3237
  %v3306 = vunpack.c.h.b16 %v3237
  %v3307 = vunpack.c.l.b16 %v3238
  %v3308 = vunpack.c.h.b16 %v3238
  %v3309 = vunpack.c.l.b16 %v3239
  %v3310 = vunpack.c.h.b16 %v3239
  %v3311 = vunpack.c.l.b16 %v3240
  %v3312 = vunpack.c.h.b16 %v3240
  %v3313 = vunpack.c.l.b16 %v3241
  %v3314 = vunpack.c.h.b16 %v3241
  %v3315 = vunpack.c.l.b16 %v3242
  %v3316 = vunpack.c.h.b16 %v3242
  %v3317 = vunpack.c.l.b16 %v3243
  %v3318 = vunpack.c.h.b16 %v3243
  %v3319 = vunpack.c.l.b16 %v3244
  %v3320 = vunpack.c.h.b16 %v3244
  %v3321 = vunpack.c.l.b16 %v3245
  %v3322 = vunpack.c.h.b16 %v3245
  %v3323 = vunpack.c.l.b16 %v3246
  %v3324 = vunpack.c.h.b16 %v3246
  %v3325 = vunpack.c.l.b16 %v3247
  %v3326 = vunpack.c.h.b16 %v3247
  %v3327 = vunpack.c.l.b16 %v3248
  %v3328 = vunpack.c.h.b16 %v3248
  %v3329 = vunpack.c.l.b16 %v3249
  %v3330 = vunpack.c.h.b16 %v3249
  %v3331 = vunpack.c.l.b16 %v3250
  %v3332 = vunpack.c.h.b16 %v3250
  %v3333 = vunpack.c.l.b16 %v3251
  %v3334 = vunpack.c.h.b16 %v3251
  %v3335 = vunpack.c.l.b16 %v3252
  %v3336 = vunpack.c.h.b16 %v3252
  %v3337 = vunpack.c.l.b16 %v3253
  %v3338 = vunpack.c.h.b16 %v3253
  %v3339 = vunpack.c.l.b16 %v3254
  %v3340 = vunpack.c.h.b16 %v3254
  %v3341 = vunpack.c.l.b16 %v3255
  %v3342 = vunpack.c.h.b16 %v3255
  %v3343 = vunpack.c.l.b16 %v3256
  %v3344 = vunpack.c.h.b16 %v3256
  %v3345 = vunpack.c.l.b16 %v3257
  %v3346 = vunpack.c.h.b16 %v3257
  %v3347 = vunpack.c.l.b16 %v3258
  %v3348 = vunpack.c.h.b16 %v3258
  %v3349 = vunpack.c.l.b16 %v3259
  %v3350 = vunpack.c.h.b16 %v3259
  %v3351 = vunpack.c.l.b16 %v3260
  %v3352 = vunpack.c.h.b16 %v3260
  %v3353 = vunpack.c.l.b16 %v3261
  %v3354 = vunpack.c.h.b16 %v3261
  %v3355 = vunpack.c.l.b16 %v3262
  %v3356 = vunpack.c.h.b16 %v3262
  %v3357 = vunpack.c.l.b16 %v3263
  %v3358 = vunpack.c.h.b16 %v3263
  %v3359 = vunpack.c.l.b16 %v3264
  %v3360 = vunpack.c.h.b16 %v3264
  %v3361 = vpack.c.b16 %v3301, %v3297
  %v3362 = vpack.c.b16 %v3302, %v3298
  %v3363 = vpack.c.b16 %v3303, %v3299
  %v3364 = vpack.c.b16 %v3304, %v3300
  %v3365 = vpack.c.b16 %v3309, %v3305
  %v3366 = vpack.c.b16 %v3310, %v3306
  %v3367 = vpack.c.b16 %v3311, %v3307
  %v3368 = vpack.c.b16 %v3312, %v3308
  %v3369 = vpack.c.b16 %v3317, %v3313
  %v3370 = vpack.c.b16 %v3318, %v3314
  %v3371 = vpack.c.b16 %v3319, %v3315
  %v3372 = vpack.c.b16 %v3320, %v3316
  %v3373 = vpack.c.b16 %v3325, %v3321
  %v3374 = vpack.c.b16 %v3326, %v3322
  %v3375 = vpack.c.b16 %v3327, %v3323
  %v3376 = vpack.c.b16 %v3328, %v3324
  %v3377 = vpack.c.b16 %v3333, %v3329
  %v3378 = vpack.c.b16 %v3334, %v3330
  %v3379 = vpack.c.b16 %v3335, %v3331
  %v3380 = vpack.c.b16 %v3336, %v3332
  %v3381 = vpack.c.b16 %v3341, %v3337
  %v3382 = vpack.c.b16 %v3342, %v3338
  %v3383 = vpack.c.b16 %v3343, %v3339
  %v3384 = vpack.c.b16 %v3344, %v3340
  %v3385 = vpack.c.b16 %v3349, %v3345
  %v3386 = vpack.c.b16 %v3350, %v3346
  %v3387 = vpack.c.b16 %v3351, %v3347
  %v3388 = vpack.c.b16 %v3352, %v3348
  %v3389 = vpack.c.b16 %v3357, %v3353
  %v3390 = vpack.c.b16 %v3358, %v3354
  %v3391 = vpack.c.b16 %v3359, %v3355
  %v3392 = vpack.c.b16 %v3360, %v3356
  %3425 = vmatprep.subr.bf16.mxu0 %v3362
  %3426 = vmatpush1.bf16.msra.mxu0 %v3361
  %3427 = vmatprep.subr.bf16.mxu0 %v3366
  %3428 = vmatpush1.bf16.msra.mxu0 %v3365
  %3429 = vmatprep.subr.bf16.mxu0 %v3370
  %3430 = vmatpush1.bf16.msra.mxu0 %v3369
  %3431 = vmatprep.subr.bf16.mxu0 %v3374
  %3432 = vmatpush1.bf16.msra.mxu0 %v3373
  %3433 = vmatprep.subr.bf16.mxu0 %v3378
  %3434 = vmatpush1.bf16.msra.mxu0 %v3377
  %3435 = vmatprep.subr.bf16.mxu0 %v3382
  %3436 = vmatpush1.bf16.msra.mxu0 %v3381
  %3437 = vmatprep.subr.bf16.mxu0 %v3386
  %3438 = vmatpush1.bf16.msra.mxu0 %v3385
  %3439 = vmatprep.subr.bf16.mxu0 %v3390
  %3440 = vmatpush1.bf16.msra.mxu0 %v3389
  %3441 = vmatprep.subr.bf16.mxu0 0
  %3442 = vmatpush1.bf16.msra.mxu0 0
  %3443 = vmatprep.subr.bf16.mxu0 0
  %3444 = vmatpush1.bf16.msra.mxu0 0
  %3445 = vmatprep.subr.bf16.mxu0 0
  %3446 = vmatpush1.bf16.msra.mxu0 0
  %3447 = vmatprep.subr.bf16.mxu0 0
  %3448 = vmatpush1.bf16.msra.mxu0 0
  %3449 = vmatprep.subr.bf16.mxu0 0
  %3450 = vmatpush1.bf16.msra.mxu0 0
  %3451 = vmatprep.subr.bf16.mxu0 0
  %3452 = vmatpush1.bf16.msra.mxu0 0
  %3453 = vmatprep.subr.bf16.mxu0 0
  %3454 = vmatpush1.bf16.msra.mxu0 0
  %3455 = vmatprep.subr.bf16.mxu0 0
  %3456 = vmatpush1.bf16.msra.mxu0 0
  %3457 = vmatprep.mubr.bf16.mxu0 0
  %3458 = vmatmul.mubr.bf16.gmra.mrb[0].mxu0 %v3232
  %v3459 = vpop.f32.mrb[0].mxu0
  %v3460 = vadd.f32 0.0, %v3459
  %v3461 = vpop.f32.mrb[0].mxu0
  %v3462 = vadd.f32 0.0, %v3461
  %v3463 = vpop.f32.mrb[0].mxu0
  %v3464 = vadd.f32 0.0, %v3463
  %v3465 = vpop.f32.mrb[0].mxu0
  %v3466 = vadd.f32 0.0, %v3465
  %3467 = vdwg.mxu0
  %3468 = vmatprep.subr.bf16.mxu0 %v3364
  %3469 = vmatpush1.bf16.msra.mxu0 %v3363
  %3470 = vmatprep.subr.bf16.mxu0 %v3368
  %3471 = vmatpush1.bf16.msra.mxu0 %v3367
  %3472 = vmatprep.subr.bf16.mxu0 %v3372
  %3473 = vmatpush1.bf16.msra.mxu0 %v3371
  %3474 = vmatprep.subr.bf16.mxu0 %v3376
  %3475 = vmatpush1.bf16.msra.mxu0 %v3375
  %3476 = vmatprep.subr.bf16.mxu0 %v3380
  %3477 = vmatpush1.bf16.msra.mxu0 %v3379
  %3478 = vmatprep.subr.bf16.mxu0 %v3384
  %3479 = vmatpush1.bf16.msra.mxu0 %v3383
  %3480 = vmatprep.subr.bf16.mxu0 %v3388
  %3481 = vmatpush1.bf16.msra.mxu0 %v3387
  %3482 = vmatprep.subr.bf16.mxu0 %v3392
  %3483 = vmatpush1.bf16.msra.mxu0 %v3391
  %3484 = vmatprep.subr.bf16.mxu0 0
  %3485 = vmatpush1.bf16.msra.mxu0 0
  %3486 = vmatprep.subr.bf16.mxu0 0
  %3487 = vmatpush1.bf16.msra.mxu0 0
  %3488 = vmatprep.subr.bf16.mxu0 0
  %3489 = vmatpush1.bf16.msra.mxu0 0
  %3490 = vmatprep.subr.bf16.mxu0 0
  %3491 = vmatpush1.bf16.msra.mxu0 0
  %3492 = vmatprep.subr.bf16.mxu0 0
  %3493 = vmatpush1.bf16.msra.mxu0 0
  %3494 = vmatprep.subr.bf16.mxu0 0
  %3495 = vmatpush1.bf16.msra.mxu0 0
  %3496 = vmatprep.subr.bf16.mxu0 0
  %3497 = vmatpush1.bf16.msra.mxu0 0
  %3498 = vmatprep.subr.bf16.mxu0 0
  %3499 = vmatpush1.bf16.msra.mxu0 0
  %3500 = vmatprep.mubr.bf16.mxu0 0
  %3501 = vmatmul.mubr.bf16.gmra.mrb[0].mxu0 %v3232
  %v3502 = vpop.f32.mrb[0].mxu0
  %v3503 = vadd.f32 0.0, %v3502
  %v3504 = vpop.f32.mrb[0].mxu0
  %v3505 = vadd.f32 0.0, %v3504
  %v3506 = vpop.f32.mrb[0].mxu0
  %v3507 = vadd.f32 0.0, %v3506
  %v3508 = vpop.f32.mrb[0].mxu0
  %v3509 = vadd.f32 0.0, %v3508
  %3510 = vdwg.mxu0
  %v3511 = vadd.f32 %v3222, %v3460
  %v3512 = vadd.f32 %v3223, %v3462
  %v3513 = vadd.f32 %v3224, %v3503
  %v3514 = vadd.f32 %v3225, %v3505
  %v3515 = vadd.f32 %v3226, %v3464
  %v3516 = vadd.f32 %v3227, %v3466
  %v3517 = vadd.f32 %v3228, %v3507
  %v3518 = vadd.f32 %v3229, %v3509
  %v3519 = vmul.f32 %v3511, 0.5
  %v3520 = vmul.f32 %v3515, 0.5
  %v3521 = vtanh.pop %v3519
  %v3522 = vtanh.pop %v3520
  %v3523 = vmul.f32 %v3521, 0.5
  %v3524 = vmul.f32 %v3522, 0.5
  %v3525 = vadd.f32 %v3523, 0.5
  %v3526 = vadd.f32 %v3524, 0.5
  %v3527 = vmul.f32 %v3512, 0.5
  %v3528 = vmul.f32 %v3516, 0.5
  %v3529 = vtanh.pop %v3527
  %v3530 = vtanh.pop %v3528
  %v3531 = vmul.f32 %v3529, 0.5
  %v3532 = vmul.f32 %v3530, 0.5
  %v3533 = vadd.f32 %v3531, 0.5
  %v3534 = vadd.f32 %v3532, 0.5
  %v3535 = vtanh.pop %v3513
  %v3536 = vtanh.pop %v3517
  %v3537 = vmul.f32 %v3514, 0.5
  %v3538 = vmul.f32 %v3518, 0.5
  %v3539 = vtanh.pop %v3537
  %v3540 = vtanh.pop %v3538
  %v3541 = vmul.f32 %v3539, 0.5
  %v3542 = vmul.f32 %v3540, 0.5
  %v3543 = vadd.f32 %v3541, 0.5
  %v3544 = vadd.f32 %v3542, 0.5
  %v3545 = vld [vmem:[#allocation3] sm:$0xff]
  %v3546 = vld [vmem:[#allocation3 + $0x8] sm:$0xff]
  %v3547 = vmul.f32 %v3533, %v3545
  %v3548 = vmul.f32 %v3534, %v3546
  %v3549 = vmul.f32 %v3525, %v3535
  %v3550 = vmul.f32 %v3526, %v3536
  %v3551 = vadd.f32 %v3547, %v3549
  %v3552 = vadd.f32 %v3548, %v3550
  %v3553 = vtanh.pop %v3551
  %v3554 = vtanh.pop %v3552
  %v3555 = vmul.f32 %v3543, %v3553
  %v3556 = vmul.f32 %v3544, %v3554
  %3557 = vst [vmem:[#allocation3] sm:$0xff] %v3551
  %3558 = vst [vmem:[#allocation3 + $0x8] sm:$0xff] %v3552
  %3559 = vst [vmem:[#allocation2] sm:$0xff] %v3555
  %3560 = vst [vmem:[#allocation2 + $0x8] sm:$0xff] %v3556
  %v3561 = vpack.c.bf16 %v3556, %v3555
  %v3563 = vunpack.c.l.b16 %v3561
  %v3564 = vunpack.c.h.b16 %v3561
  %v3565 = vpack.c.b16 %v3563, %v3563
  %v3566 = vpack.c.b16 %v3564, %v3564
  %s3569 = scalar_lea.vmem %s3, 72
  %3570 = vst [vmem:[%s3569] sm:$0xf] %v3565
  %3571 = vst [vmem:[%s3569 + $0x4] sm:$0xf] %v3566
  %s3572 = scalar_lea.vmem %s0, 320
  %v3573 = vld [vmem:[%s3572] sm:$0xff]
  %v3574 = vld [vmem:[%s3572 + $0x8] sm:$0xff]
  %v3575 = vld [vmem:[%s3572 + $0x10] sm:$0xff]
  %v3576 = vld [vmem:[%s3572 + $0x18] sm:$0xff]
  %v3577 = vunpack.c.l.bf16 %v3573
  %v3578 = vunpack.c.h.bf16 %v3573
  %v3579 = vunpack.c.l.bf16 %v3574
  %v3580 = vunpack.c.h.bf16 %v3574
  %v3581 = vunpack.c.l.bf16 %v3575
  %v3582 = vunpack.c.h.bf16 %v3575
  %v3583 = vunpack.c.l.bf16 %v3576
  %v3584 = vunpack.c.h.bf16 %v3576
  %v3585 = vld [vmem:[#allocation2] sm:$0xff]
  %v3586 = vld [vmem:[#allocation2 + $0x8] sm:$0xff]
  %v3587 = vpack.c.bf16 %v3586, %v3585
  %v3588 = vld [vmem:[%s1] sm:$0xff]
  %v3589 = vld [vmem:[%s1 + $0x8] sm:$0xff]
  %v3590 = vld [vmem:[%s1 + $0x10] sm:$0xff]
  %v3591 = vld [vmem:[%s1 + $0x18] sm:$0xff]
  %v3592 = vld [vmem:[%s1 + $0x20] sm:$0xff]
  %v3593 = vld [vmem:[%s1 + $0x28] sm:$0xff]
  %v3594 = vld [vmem:[%s1 + $0x30] sm:$0xff]
  %v3595 = vld [vmem:[%s1 + $0x38] sm:$0xff]
  %v3596 = vld [vmem:[%s1 + $0x40] sm:$0xff]
  %v3597 = vld [vmem:[%s1 + $0x48] sm:$0xff]
  %v3598 = vld [vmem:[%s1 + $0x50] sm:$0xff]
  %v3599 = vld [vmem:[%s1 + $0x58] sm:$0xff]
  %v3600 = vld [vmem:[%s1 + $0x60] sm:$0xff]
  %v3601 = vld [vmem:[%s1 + $0x68] sm:$0xff]
  %v3602 = vld [vmem:[%s1 + $0x70] sm:$0xff]
  %v3603 = vld [vmem:[%s1 + $0x78] sm:$0xff]
  %v3604 = vld [vmem:[%s1 + $0x80] sm:$0xff]
  %v3605 = vld [vmem:[%s1 + $0x88] sm:$0xff]
  %v3606 = vld [vmem:[%s1 + $0x90] sm:$0xff]
  %v3607 = vld [vmem:[%s1 + $0x98] sm:$0xff]
  %v3608 = vld [vmem:[%s1 + $0xa0] sm:$0xff]
  %v3609 = vld [vmem:[%s1 + $0xa8] sm:$0xff]
  %v3610 = vld [vmem:[%s1 + $0xb0] sm:$0xff]
  %v3611 = vld [vmem:[%s1 + $0xb8] sm:$0xff]
  %v3612 = vld [vmem:[%s1 + $0xc0] sm:$0xff]
  %v3613 = vld [vmem:[%s1 + $0xc8] sm:$0xff]
  %v3614 = vld [vmem:[%s1 + $0xd0] sm:$0xff]
  %v3615 = vld [vmem:[%s1 + $0xd8] sm:$0xff]
  %v3616 = vld [vmem:[%s1 + $0xe0] sm:$0xff]
  %v3617 = vld [vmem:[%s1 + $0xe8] sm:$0xff]
  %v3618 = vld [vmem:[%s1 + $0xf0] sm:$0xff]
  %v3619 = vld [vmem:[%s1 + $0xf8] sm:$0xff]
  %v3652 = vunpack.c.l.b16 %v3588
  %v3653 = vunpack.c.h.b16 %v3588
  %v3654 = vunpack.c.l.b16 %v3589
  %v3655 = vunpack.c.h.b16 %v3589
  %v3656 = vunpack.c.l.b16 %v3590
  %v3657 = vunpack.c.h.b16 %v3590
  %v3658 = vunpack.c.l.b16 %v3591
  %v3659 = vunpack.c.h.b16 %v3591
  %v3660 = vunpack.c.l.b16 %v3592
  %v3661 = vunpack.c.h.b16 %v3592
  %v3662 = vunpack.c.l.b16 %v3593
  %v3663 = vunpack.c.h.b16 %v3593
  %v3664 = vunpack.c.l.b16 %v3594
  %v3665 = vunpack.c.h.b16 %v3594
  %v3666 = vunpack.c.l.b16 %v3595
  %v3667 = vunpack.c.h.b16 %v3595
  %v3668 = vunpack.c.l.b16 %v3596
  %v3669 = vunpack.c.h.b16 %v3596
  %v3670 = vunpack.c.l.b16 %v3597
  %v3671 = vunpack.c.h.b16 %v3597
  %v3672 = vunpack.c.l.b16 %v3598
  %v3673 = vunpack.c.h.b16 %v3598
  %v3674 = vunpack.c.l.b16 %v3599
  %v3675 = vunpack.c.h.b16 %v3599
  %v3676 = vunpack.c.l.b16 %v3600
  %v3677 = vunpack.c.h.b16 %v3600
  %v3678 = vunpack.c.l.b16 %v3601
  %v3679 = vunpack.c.h.b16 %v3601
  %v3680 = vunpack.c.l.b16 %v3602
  %v3681 = vunpack.c.h.b16 %v3602
  %v3682 = vunpack.c.l.b16 %v3603
  %v3683 = vunpack.c.h.b16 %v3603
  %v3684 = vunpack.c.l.b16 %v3604
  %v3685 = vunpack.c.h.b16 %v3604
  %v3686 = vunpack.c.l.b16 %v3605
  %v3687 = vunpack.c.h.b16 %v3605
  %v3688 = vunpack.c.l.b16 %v3606
  %v3689 = vunpack.c.h.b16 %v3606
  %v3690 = vunpack.c.l.b16 %v3607
  %v3691 = vunpack.c.h.b16 %v3607
  %v3692 = vunpack.c.l.b16 %v3608
  %v3693 = vunpack.c.h.b16 %v3608
  %v3694 = vunpack.c.l.b16 %v3609
  %v3695 = vunpack.c.h.b16 %v3609
  %v3696 = vunpack.c.l.b16 %v3610
  %v3697 = vunpack.c.h.b16 %v3610
  %v3698 = vunpack.c.l.b16 %v3611
  %v3699 = vunpack.c.h.b16 %v3611
  %v3700 = vunpack.c.l.b16 %v3612
  %v3701 = vunpack.c.h.b16 %v3612
  %v3702 = vunpack.c.l.b16 %v3613
  %v3703 = vunpack.c.h.b16 %v3613
  %v3704 = vunpack.c.l.b16 %v3614
  %v3705 = vunpack.c.h.b16 %v3614
  %v3706 = vunpack.c.l.b16 %v3615
  %v3707 = vunpack.c.h.b16 %v3615
  %v3708 = vunpack.c.l.b16 %v3616
  %v3709 = vunpack.c.h.b16 %v3616
  %v3710 = vunpack.c.l.b16 %v3617
  %v3711 = vunpack.c.h.b16 %v3617
  %v3712 = vunpack.c.l.b16 %v3618
  %v3713 = vunpack.c.h.b16 %v3618
  %v3714 = vunpack.c.l.b16 %v3619
  %v3715 = vunpack.c.h.b16 %v3619
  %v3716 = vpack.c.b16 %v3656, %v3652
  %v3717 = vpack.c.b16 %v3657, %v3653
  %v3718 = vpack.c.b16 %v3658, %v3654
  %v3719 = vpack.c.b16 %v3659, %v3655
  %v3720 = vpack.c.b16 %v3664, %v3660
  %v3721 = vpack.c.b16 %v3665, %v3661
  %v3722 = vpack.c.b16 %v3666, %v3662
  %v3723 = vpack.c.b16 %v3667, %v3663
  %v3724 = vpack.c.b16 %v3672, %v3668
  %v3725 = vpack.c.b16 %v3673, %v3669
  %v3726 = vpack.c.b16 %v3674, %v3670
  %v3727 = vpack.c.b16 %v3675, %v3671
  %v3728 = vpack.c.b16 %v3680, %v3676
  %v3729 = vpack.c.b16 %v3681, %v3677
  %v3730 = vpack.c.b16 %v3682, %v3678
  %v3731 = vpack.c.b16 %v3683, %v3679
  %v3732 = vpack.c.b16 %v3688, %v3684
  %v3733 = vpack.c.b16 %v3689, %v3685
  %v3734 = vpack.c.b16 %v3690, %v3686
  %v3735 = vpack.c.b16 %v3691, %v3687
  %v3736 = vpack.c.b16 %v3696, %v3692
  %v3737 = vpack.c.b16 %v3697, %v3693
  %v3738 = vpack.c.b16 %v3698, %v3694
  %v3739 = vpack.c.b16 %v3699, %v3695
  %v3740 = vpack.c.b16 %v3704, %v3700
  %v3741 = vpack.c.b16 %v3705, %v3701
  %v3742 = vpack.c.b16 %v3706, %v3702
  %v3743 = vpack.c.b16 %v3707, %v3703
  %v3744 = vpack.c.b16 %v3712, %v3708
  %v3745 = vpack.c.b16 %v3713, %v3709
  %v3746 = vpack.c.b16 %v3714, %v3710
  %v3747 = vpack.c.b16 %v3715, %v3711
  %3780 = vmatprep.subr.bf16.mxu0 %v3717
  %3781 = vmatpush1.bf16.msra.mxu0 %v3716
  %3782 = vmatprep.subr.bf16.mxu0 %v3721
  %3783 = vmatpush1.bf16.msra.mxu0 %v3720
  %3784 = vmatprep.subr.bf16.mxu0 %v3725
  %3785 = vmatpush1.bf16.msra.mxu0 %v3724
  %3786 = vmatprep.subr.bf16.mxu0 %v3729
  %3787 = vmatpush1.bf16.msra.mxu0 %v3728
  %3788 = vmatprep.subr.bf16.mxu0 %v3733
  %3789 = vmatpush1.bf16.msra.mxu0 %v3732
  %3790 = vmatprep.subr.bf16.mxu0 %v3737
  %3791 = vmatpush1.bf16.msra.mxu0 %v3736
  %3792 = vmatprep.subr.bf16.mxu0 %v3741
  %3793 = vmatpush1.bf16.msra.mxu0 %v3740
  %3794 = vmatprep.subr.bf16.mxu0 %v3745
  %3795 = vmatpush1.bf16.msra.mxu0 %v3744
  %3796 = vmatprep.subr.bf16.mxu0 0
  %3797 = vmatpush1.bf16.msra.mxu0 0
  %3798 = vmatprep.subr.bf16.mxu0 0
  %3799 = vmatpush1.bf16.msra.mxu0 0
  %3800 = vmatprep.subr.bf16.mxu0 0
  %3801 = vmatpush1.bf16.msra.mxu0 0
  %3802 = vmatprep.subr.bf16.mxu0 0
  %3803 = vmatpush1.bf16.msra.mxu0 0
  %3804 = vmatprep.subr.bf16.mxu0 0
  %3805 = vmatpush1.bf16.msra.mxu0 0
  %3806 = vmatprep.subr.bf16.mxu0 0
  %3807 = vmatpush1.bf16.msra.mxu0 0
  %3808 = vmatprep.subr.bf16.mxu0 0
  %3809 = vmatpush1.bf16.msra.mxu0 0
  %3810 = vmatprep.subr.bf16.mxu0 0
  %3811 = vmatpush1.bf16.msra.mxu0 0
  %3812 = vmatprep.mubr.bf16.mxu0 0
  %3813 = vmatmul.mubr.bf16.gmra.mrb[0].mxu0 %v3587
  %v3814 = vpop.f32.mrb[0].mxu0
  %v3815 = vadd.f32 0.0, %v3814
  %v3816 = vpop.f32.mrb[0].mxu0
  %v3817 = vadd.f32 0.0, %v3816
  %v3818 = vpop.f32.mrb[0].mxu0
  %v3819 = vadd.f32 0.0, %v3818
  %v3820 = vpop.f32.mrb[0].mxu0
  %v3821 = vadd.f32 0.0, %v3820
  %3822 = vdwg.mxu0
  %3823 = vmatprep.subr.bf16.mxu0 %v3719
  %3824 = vmatpush1.bf16.msra.mxu0 %v3718
  %3825 = vmatprep.subr.bf16.mxu0 %v3723
  %3826 = vmatpush1.bf16.msra.mxu0 %v3722
  %3827 = vmatprep.subr.bf16.mxu0 %v3727
  %3828 = vmatpush1.bf16.msra.mxu0 %v3726
  %3829 = vmatprep.subr.bf16.mxu0 %v3731
  %3830 = vmatpush1.bf16.msra.mxu0 %v3730
  %3831 = vmatprep.subr.bf16.mxu0 %v3735
  %3832 = vmatpush1.bf16.msra.mxu0 %v3734
  %3833 = vmatprep.subr.bf16.mxu0 %v3739
  %3834 = vmatpush1.bf16.msra.mxu0 %v3738
  %3835 = vmatprep.subr.bf16.mxu0 %v3743
  %3836 = vmatpush1.bf16.msra.mxu0 %v3742
  %3837 = vmatprep.subr.bf16.mxu0 %v3747
  %3838 = vmatpush1.bf16.msra.mxu0 %v3746
  %3839 = vmatprep.subr.bf16.mxu0 0
  %3840 = vmatpush1.bf16.msra.mxu0 0
  %3841 = vmatprep.subr.bf16.mxu0 0
  %3842 = vmatpush1.bf16.msra.mxu0 0
  %3843 = vmatprep.subr.bf16.mxu0 0
  %3844 = vmatpush1.bf16.msra.mxu0 0
  %3845 = vmatprep.subr.bf16.mxu0 0
  %3846 = vmatpush1.bf16.msra.mxu0 0
  %3847 = vmatprep.subr.bf16.mxu0 0
  %3848 = vmatpush1.bf16.msra.mxu0 0
  %3849 = vmatprep.subr.bf16.mxu0 0
  %3850 = vmatpush1.bf16.msra.mxu0 0
  %3851 = vmatprep.subr.bf16.mxu0 0
  %3852 = vmatpush1.bf16.msra.mxu0 0
  %3853 = vmatprep.subr.bf16.mxu0 0
  %3854 = vmatpush1.bf16.msra.mxu0 0
  %3855 = vmatprep.mubr.bf16.mxu0 0
  %3856 = vmatmul.mubr.bf16.gmra.mrb[0].mxu0 %v3587
  %v3857 = vpop.f32.mrb[0].mxu0
  %v3858 = vadd.f32 0.0, %v3857
  %v3859 = vpop.f32.mrb[0].mxu0
  %v3860 = vadd.f32 0.0, %v3859
  %v3861 = vpop.f32.mrb[0].mxu0
  %v3862 = vadd.f32 0.0, %v3861
  %v3863 = vpop.f32.mrb[0].mxu0
  %v3864 = vadd.f32 0.0, %v3863
  %3865 = vdwg.mxu0
  %v3866 = vadd.f32 %v3577, %v3815
  %v3867 = vadd.f32 %v3578, %v3817
  %v3868 = vadd.f32 %v3579, %v3858
  %v3869 = vadd.f32 %v3580, %v3860
  %v3870 = vadd.f32 %v3581, %v3819
  %v3871 = vadd.f32 %v3582, %v3821
  %v3872 = vadd.f32 %v3583, %v3862
  %v3873 = vadd.f32 %v3584, %v3864
  %v3874 = vmul.f32 %v3866, 0.5
  %v3875 = vmul.f32 %v3870, 0.5
  %v3876 = vtanh.pop %v3874
  %v3877 = vtanh.pop %v3875
  %v3878 = vmul.f32 %v3876, 0.5
  %v3879 = vmul.f32 %v3877, 0.5
  %v3880 = vadd.f32 %v3878, 0.5
  %v3881 = vadd.f32 %v3879, 0.5
  %v3882 = vmul.f32 %v3867, 0.5
  %v3883 = vmul.f32 %v3871, 0.5
  %v3884 = vtanh.pop %v3882
  %v3885 = vtanh.pop %v3883
  %v3886 = vmul.f32 %v3884, 0.5
  %v3887 = vmul.f32 %v3885, 0.5
  %v3888 = vadd.f32 %v3886, 0.5
  %v3889 = vadd.f32 %v3887, 0.5
  %v3890 = vtanh.pop %v3868
  %v3891 = vtanh.pop %v3872
  %v3892 = vmul.f32 %v3869, 0.5
  %v3893 = vmul.f32 %v3873, 0.5
  %v3894 = vtanh.pop %v3892
  %v3895 = vtanh.pop %v3893
  %v3896 = vmul.f32 %v3894, 0.5
  %v3897 = vmul.f32 %v3895, 0.5
  %v3898 = vadd.f32 %v3896, 0.5
  %v3899 = vadd.f32 %v3897, 0.5
  %v3900 = vld [vmem:[#allocation3] sm:$0xff]
  %v3901 = vld [vmem:[#allocation3 + $0x8] sm:$0xff]
  %v3902 = vmul.f32 %v3888, %v3900
  %v3903 = vmul.f32 %v3889, %v3901
  %v3904 = vmul.f32 %v3880, %v3890
  %v3905 = vmul.f32 %v3881, %v3891
  %v3906 = vadd.f32 %v3902, %v3904
  %v3907 = vadd.f32 %v3903, %v3905
  %v3908 = vtanh.pop %v3906
  %v3909 = vtanh.pop %v3907
  %v3910 = vmul.f32 %v3898, %v3908
  %v3911 = vmul.f32 %v3899, %v3909
  %3912 = vst [vmem:[#allocation3] sm:$0xff] %v3906
  %3913 = vst [vmem:[#allocation3 + $0x8] sm:$0xff] %v3907
  %3914 = vst [vmem:[#allocation2] sm:$0xff] %v3910
  %3915 = vst [vmem:[#allocation2 + $0x8] sm:$0xff] %v3911
  %v3916 = vpack.c.bf16 %v3911, %v3910
  %v3918 = vunpack.c.l.b16 %v3916
  %v3919 = vunpack.c.h.b16 %v3916
  %v3920 = vpack.c.b16 %v3918, %v3918
  %v3921 = vpack.c.b16 %v3919, %v3919
  %s3924 = scalar_lea.vmem %s3, 80
  %3925 = vst [vmem:[%s3924] sm:$0xf] %v3920
  %3926 = vst [vmem:[%s3924 + $0x4] sm:$0xf] %v3921
  %s3927 = scalar_lea.vmem %s0, 352
  %v3928 = vld [vmem:[%s3927] sm:$0xff]
  %v3929 = vld [vmem:[%s3927 + $0x8] sm:$0xff]
  %v3930 = vld [vmem:[%s3927 + $0x10] sm:$0xff]
  %v3931 = vld [vmem:[%s3927 + $0x18] sm:$0xff]
  %v3932 = vunpack.c.l.bf16 %v3928
  %v3933 = vunpack.c.h.bf16 %v3928
  %v3934 = vunpack.c.l.bf16 %v3929
  %v3935 = vunpack.c.h.bf16 %v3929
  %v3936 = vunpack.c.l.bf16 %v3930
  %v3937 = vunpack.c.h.bf16 %v3930
  %v3938 = vunpack.c.l.bf16 %v3931
  %v3939 = vunpack.c.h.bf16 %v3931
  %v3940 = vld [vmem:[#allocation2] sm:$0xff]
  %v3941 = vld [vmem:[#allocation2 + $0x8] sm:$0xff]
  %v3942 = vpack.c.bf16 %v3941, %v3940
  %v3943 = vld [vmem:[%s1] sm:$0xff]
  %v3944 = vld [vmem:[%s1 + $0x8] sm:$0xff]
  %v3945 = vld [vmem:[%s1 + $0x10] sm:$0xff]
  %v3946 = vld [vmem:[%s1 + $0x18] sm:$0xff]
  %v3947 = vld [vmem:[%s1 + $0x20] sm:$0xff]
  %v3948 = vld [vmem:[%s1 + $0x28] sm:$0xff]
  %v3949 = vld [vmem:[%s1 + $0x30] sm:$0xff]
  %v3950 = vld [vmem:[%s1 + $0x38] sm:$0xff]
  %v3951 = vld [vmem:[%s1 + $0x40] sm:$0xff]
  %v3952 = vld [vmem:[%s1 + $0x48] sm:$0xff]
  %v3953 = vld [vmem:[%s1 + $0x50] sm:$0xff]
  %v3954 = vld [vmem:[%s1 + $0x58] sm:$0xff]
  %v3955 = vld [vmem:[%s1 + $0x60] sm:$0xff]
  %v3956 = vld [vmem:[%s1 + $0x68] sm:$0xff]
  %v3957 = vld [vmem:[%s1 + $0x70] sm:$0xff]
  %v3958 = vld [vmem:[%s1 + $0x78] sm:$0xff]
  %v3959 = vld [vmem:[%s1 + $0x80] sm:$0xff]
  %v3960 = vld [vmem:[%s1 + $0x88] sm:$0xff]
  %v3961 = vld [vmem:[%s1 + $0x90] sm:$0xff]
  %v3962 = vld [vmem:[%s1 + $0x98] sm:$0xff]
  %v3963 = vld [vmem:[%s1 + $0xa0] sm:$0xff]
  %v3964 = vld [vmem:[%s1 + $0xa8] sm:$0xff]
  %v3965 = vld [vmem:[%s1 + $0xb0] sm:$0xff]
  %v3966 = vld [vmem:[%s1 + $0xb8] sm:$0xff]
  %v3967 = vld [vmem:[%s1 + $0xc0] sm:$0xff]
  %v3968 = vld [vmem:[%s1 + $0xc8] sm:$0xff]
  %v3969 = vld [vmem:[%s1 + $0xd0] sm:$0xff]
  %v3970 = vld [vmem:[%s1 + $0xd8] sm:$0xff]
  %v3971 = vld [vmem:[%s1 + $0xe0] sm:$0xff]
  %v3972 = vld [vmem:[%s1 + $0xe8] sm:$0xff]
  %v3973 = vld [vmem:[%s1 + $0xf0] sm:$0xff]
  %v3974 = vld [vmem:[%s1 + $0xf8] sm:$0xff]
  %v4007 = vunpack.c.l.b16 %v3943
  %v4008 = vunpack.c.h.b16 %v3943
  %v4009 = vunpack.c.l.b16 %v3944
  %v4010 = vunpack.c.h.b16 %v3944
  %v4011 = vunpack.c.l.b16 %v3945
  %v4012 = vunpack.c.h.b16 %v3945
  %v4013 = vunpack.c.l.b16 %v3946
  %v4014 = vunpack.c.h.b16 %v3946
  %v4015 = vunpack.c.l.b16 %v3947
  %v4016 = vunpack.c.h.b16 %v3947
  %v4017 = vunpack.c.l.b16 %v3948
  %v4018 = vunpack.c.h.b16 %v3948
  %v4019 = vunpack.c.l.b16 %v3949
  %v4020 = vunpack.c.h.b16 %v3949
  %v4021 = vunpack.c.l.b16 %v3950
  %v4022 = vunpack.c.h.b16 %v3950
  %v4023 = vunpack.c.l.b16 %v3951
  %v4024 = vunpack.c.h.b16 %v3951
  %v4025 = vunpack.c.l.b16 %v3952
  %v4026 = vunpack.c.h.b16 %v3952
  %v4027 = vunpack.c.l.b16 %v3953
  %v4028 = vunpack.c.h.b16 %v3953
  %v4029 = vunpack.c.l.b16 %v3954
  %v4030 = vunpack.c.h.b16 %v3954
  %v4031 = vunpack.c.l.b16 %v3955
  %v4032 = vunpack.c.h.b16 %v3955
  %v4033 = vunpack.c.l.b16 %v3956
  %v4034 = vunpack.c.h.b16 %v3956
  %v4035 = vunpack.c.l.b16 %v3957
  %v4036 = vunpack.c.h.b16 %v3957
  %v4037 = vunpack.c.l.b16 %v3958
  %v4038 = vunpack.c.h.b16 %v3958
  %v4039 = vunpack.c.l.b16 %v3959
  %v4040 = vunpack.c.h.b16 %v3959
  %v4041 = vunpack.c.l.b16 %v3960
  %v4042 = vunpack.c.h.b16 %v3960
  %v4043 = vunpack.c.l.b16 %v3961
  %v4044 = vunpack.c.h.b16 %v3961
  %v4045 = vunpack.c.l.b16 %v3962
  %v4046 = vunpack.c.h.b16 %v3962
  %v4047 = vunpack.c.l.b16 %v3963
  %v4048 = vunpack.c.h.b16 %v3963
  %v4049 = vunpack.c.l.b16 %v3964
  %v4050 = vunpack.c.h.b16 %v3964
  %v4051 = vunpack.c.l.b16 %v3965
  %v4052 = vunpack.c.h.b16 %v3965
  %v4053 = vunpack.c.l.b16 %v3966
  %v4054 = vunpack.c.h.b16 %v3966
  %v4055 = vunpack.c.l.b16 %v3967
  %v4056 = vunpack.c.h.b16 %v3967
  %v4057 = vunpack.c.l.b16 %v3968
  %v4058 = vunpack.c.h.b16 %v3968
  %v4059 = vunpack.c.l.b16 %v3969
  %v4060 = vunpack.c.h.b16 %v3969
  %v4061 = vunpack.c.l.b16 %v3970
  %v4062 = vunpack.c.h.b16 %v3970
  %v4063 = vunpack.c.l.b16 %v3971
  %v4064 = vunpack.c.h.b16 %v3971
  %v4065 = vunpack.c.l.b16 %v3972
  %v4066 = vunpack.c.h.b16 %v3972
  %v4067 = vunpack.c.l.b16 %v3973
  %v4068 = vunpack.c.h.b16 %v3973
  %v4069 = vunpack.c.l.b16 %v3974
  %v4070 = vunpack.c.h.b16 %v3974
  %v4071 = vpack.c.b16 %v4011, %v4007
  %v4072 = vpack.c.b16 %v4012, %v4008
  %v4073 = vpack.c.b16 %v4013, %v4009
  %v4074 = vpack.c.b16 %v4014, %v4010
  %v4075 = vpack.c.b16 %v4019, %v4015
  %v4076 = vpack.c.b16 %v4020, %v4016
  %v4077 = vpack.c.b16 %v4021, %v4017
  %v4078 = vpack.c.b16 %v4022, %v4018
  %v4079 = vpack.c.b16 %v4027, %v4023
  %v4080 = vpack.c.b16 %v4028, %v4024
  %v4081 = vpack.c.b16 %v4029, %v4025
  %v4082 = vpack.c.b16 %v4030, %v4026
  %v4083 = vpack.c.b16 %v4035, %v4031
  %v4084 = vpack.c.b16 %v4036, %v4032
  %v4085 = vpack.c.b16 %v4037, %v4033
  %v4086 = vpack.c.b16 %v4038, %v4034
  %v4087 = vpack.c.b16 %v4043, %v4039
  %v4088 = vpack.c.b16 %v4044, %v4040
  %v4089 = vpack.c.b16 %v4045, %v4041
  %v4090 = vpack.c.b16 %v4046, %v4042
  %v4091 = vpack.c.b16 %v4051, %v4047
  %v4092 = vpack.c.b16 %v4052, %v4048
  %v4093 = vpack.c.b16 %v4053, %v4049
  %v4094 = vpack.c.b16 %v4054, %v4050
  %v4095 = vpack.c.b16 %v4059, %v4055
  %v4096 = vpack.c.b16 %v4060, %v4056
  %v4097 = vpack.c.b16 %v4061, %v4057
  %v4098 = vpack.c.b16 %v4062, %v4058
  %v4099 = vpack.c.b16 %v4067, %v4063
  %v4100 = vpack.c.b16 %v4068, %v4064
  %v4101 = vpack.c.b16 %v4069, %v4065
  %v4102 = vpack.c.b16 %v4070, %v4066
  %4135 = vmatprep.subr.bf16.mxu0 %v4072
  %4136 = vmatpush1.bf16.msra.mxu0 %v4071
  %4137 = vmatprep.subr.bf16.mxu0 %v4076
  %4138 = vmatpush1.bf16.msra.mxu0 %v4075
  %4139 = vmatprep.subr.bf16.mxu0 %v4080
  %4140 = vmatpush1.bf16.msra.mxu0 %v4079
  %4141 = vmatprep.subr.bf16.mxu0 %v4084
  %4142 = vmatpush1.bf16.msra.mxu0 %v4083
  %4143 = vmatprep.subr.bf16.mxu0 %v4088
  %4144 = vmatpush1.bf16.msra.mxu0 %v4087
  %4145 = vmatprep.subr.bf16.mxu0 %v4092
  %4146 = vmatpush1.bf16.msra.mxu0 %v4091
  %4147 = vmatprep.subr.bf16.mxu0 %v4096
  %4148 = vmatpush1.bf16.msra.mxu0 %v4095
  %4149 = vmatprep.subr.bf16.mxu0 %v4100
  %4150 = vmatpush1.bf16.msra.mxu0 %v4099
  %4151 = vmatprep.subr.bf16.mxu0 0
  %4152 = vmatpush1.bf16.msra.mxu0 0
  %4153 = vmatprep.subr.bf16.mxu0 0
  %4154 = vmatpush1.bf16.msra.mxu0 0
  %4155 = vmatprep.subr.bf16.mxu0 0
  %4156 = vmatpush1.bf16.msra.mxu0 0
  %4157 = vmatprep.subr.bf16.mxu0 0
  %4158 = vmatpush1.bf16.msra.mxu0 0
  %4159 = vmatprep.subr.bf16.mxu0 0
  %4160 = vmatpush1.bf16.msra.mxu0 0
  %4161 = vmatprep.subr.bf16.mxu0 0
  %4162 = vmatpush1.bf16.msra.mxu0 0
  %4163 = vmatprep.subr.bf16.mxu0 0
  %4164 = vmatpush1.bf16.msra.mxu0 0
  %4165 = vmatprep.subr.bf16.mxu0 0
  %4166 = vmatpush1.bf16.msra.mxu0 0
  %4167 = vmatprep.mubr.bf16.mxu0 0
  %4168 = vmatmul.mubr.bf16.gmra.mrb[0].mxu0 %v3942
  %v4169 = vpop.f32.mrb[0].mxu0
  %v4170 = vadd.f32 0.0, %v4169
  %v4171 = vpop.f32.mrb[0].mxu0
  %v4172 = vadd.f32 0.0, %v4171
  %v4173 = vpop.f32.mrb[0].mxu0
  %v4174 = vadd.f32 0.0, %v4173
  %v4175 = vpop.f32.mrb[0].mxu0
  %v4176 = vadd.f32 0.0, %v4175
  %4177 = vdwg.mxu0
  %4178 = vmatprep.subr.bf16.mxu0 %v4074
  %4179 = vmatpush1.bf16.msra.mxu0 %v4073
  %4180 = vmatprep.subr.bf16.mxu0 %v4078
  %4181 = vmatpush1.bf16.msra.mxu0 %v4077
  %4182 = vmatprep.subr.bf16.mxu0 %v4082
  %4183 = vmatpush1.bf16.msra.mxu0 %v4081
  %4184 = vmatprep.subr.bf16.mxu0 %v4086
  %4185 = vmatpush1.bf16.msra.mxu0 %v4085
  %4186 = vmatprep.subr.bf16.mxu0 %v4090
  %4187 = vmatpush1.bf16.msra.mxu0 %v4089
  %4188 = vmatprep.subr.bf16.mxu0 %v4094
  %4189 = vmatpush1.bf16.msra.mxu0 %v4093
  %4190 = vmatprep.subr.bf16.mxu0 %v4098
  %4191 = vmatpush1.bf16.msra.mxu0 %v4097
  %4192 = vmatprep.subr.bf16.mxu0 %v4102
  %4193 = vmatpush1.bf16.msra.mxu0 %v4101
  %4194 = vmatprep.subr.bf16.mxu0 0
  %4195 = vmatpush1.bf16.msra.mxu0 0
  %4196 = vmatprep.subr.bf16.mxu0 0
  %4197 = vmatpush1.bf16.msra.mxu0 0
  %4198 = vmatprep.subr.bf16.mxu0 0
  %4199 = vmatpush1.bf16.msra.mxu0 0
  %4200 = vmatprep.subr.bf16.mxu0 0
  %4201 = vmatpush1.bf16.msra.mxu0 0
  %4202 = vmatprep.subr.bf16.mxu0 0
  %4203 = vmatpush1.bf16.msra.mxu0 0
  %4204 = vmatprep.subr.bf16.mxu0 0
  %4205 = vmatpush1.bf16.msra.mxu0 0
  %4206 = vmatprep.subr.bf16.mxu0 0
  %4207 = vmatpush1.bf16.msra.mxu0 0
  %4208 = vmatprep.subr.bf16.mxu0 0
  %4209 = vmatpush1.bf16.msra.mxu0 0
  %4210 = vmatprep.mubr.bf16.mxu0 0
  %4211 = vmatmul.mubr.bf16.gmra.mrb[0].mxu0 %v3942
  %v4212 = vpop.f32.mrb[0].mxu0
  %v4213 = vadd.f32 0.0, %v4212
  %v4214 = vpop.f32.mrb[0].mxu0
  %v4215 = vadd.f32 0.0, %v4214
  %v4216 = vpop.f32.mrb[0].mxu0
  %v4217 = vadd.f32 0.0, %v4216
  %v4218 = vpop.f32.mrb[0].mxu0
  %v4219 = vadd.f32 0.0, %v4218
  %4220 = vdwg.mxu0
  %v4221 = vadd.f32 %v3932, %v4170
  %v4222 = vadd.f32 %v3933, %v4172
  %v4223 = vadd.f32 %v3934, %v4213
  %v4224 = vadd.f32 %v3935, %v4215
  %v4225 = vadd.f32 %v3936, %v4174
  %v4226 = vadd.f32 %v3937, %v4176
  %v4227 = vadd.f32 %v3938, %v4217
  %v4228 = vadd.f32 %v3939, %v4219
  %v4229 = vmul.f32 %v4221, 0.5
  %v4230 = vmul.f32 %v4225, 0.5
  %v4231 = vtanh.pop %v4229
  %v4232 = vtanh.pop %v4230
  %v4233 = vmul.f32 %v4231, 0.5
  %v4234 = vmul.f32 %v4232, 0.5
  %v4235 = vadd.f32 %v4233, 0.5
  %v4236 = vadd.f32 %v4234, 0.5
  %v4237 = vmul.f32 %v4222, 0.5
  %v4238 = vmul.f32 %v4226, 0.5
  %v4239 = vtanh.pop %v4237
  %v4240 = vtanh.pop %v4238
  %v4241 = vmul.f32 %v4239, 0.5
  %v4242 = vmul.f32 %v4240, 0.5
  %v4243 = vadd.f32 %v4241, 0.5
  %v4244 = vadd.f32 %v4242, 0.5
  %v4245 = vtanh.pop %v4223
  %v4246 = vtanh.pop %v4227
  %v4247 = vmul.f32 %v4224, 0.5
  %v4248 = vmul.f32 %v4228, 0.5
  %v4249 = vtanh.pop %v4247
  %v4250 = vtanh.pop %v4248
  %v4251 = vmul.f32 %v4249, 0.5
  %v4252 = vmul.f32 %v4250, 0.5
  %v4253 = vadd.f32 %v4251, 0.5
  %v4254 = vadd.f32 %v4252, 0.5
  %v4255 = vld [vmem:[#allocation3] sm:$0xff]
  %v4256 = vld [vmem:[#allocation3 + $0x8] sm:$0xff]
  %v4257 = vmul.f32 %v4243, %v4255
  %v4258 = vmul.f32 %v4244, %v4256
  %v4259 = vmul.f32 %v4235, %v4245
  %v4260 = vmul.f32 %v4236, %v4246
  %v4261 = vadd.f32 %v4257, %v4259
  %v4262 = vadd.f32 %v4258, %v4260
  %v4263 = vtanh.pop %v4261
  %v4264 = vtanh.pop %v4262
  %v4265 = vmul.f32 %v4253, %v4263
  %v4266 = vmul.f32 %v4254, %v4264
  %4267 = vst [vmem:[#allocation3] sm:$0xff] %v4261
  %4268 = vst [vmem:[#allocation3 + $0x8] sm:$0xff] %v4262
  %4269 = vst [vmem:[#allocation2] sm:$0xff] %v4265
  %4270 = vst [vmem:[#allocation2 + $0x8] sm:$0xff] %v4266
  %v4271 = vpack.c.bf16 %v4266, %v4265
  %v4273 = vunpack.c.l.b16 %v4271
  %v4274 = vunpack.c.h.b16 %v4271
  %v4275 = vpack.c.b16 %v4273, %v4273
  %v4276 = vpack.c.b16 %v4274, %v4274
  %s4279 = scalar_lea.vmem %s3, 88
  %4280 = vst [vmem:[%s4279] sm:$0xf] %v4275
  %4281 = vst [vmem:[%s4279 + $0x4] sm:$0xf] %v4276
  %s4282 = scalar_lea.vmem %s0, 384
  %v4283 = vld [vmem:[%s4282] sm:$0xff]
  %v4284 = vld [vmem:[%s4282 + $0x8] sm:$0xff]
  %v4285 = vld [vmem:[%s4282 + $0x10] sm:$0xff]
  %v4286 = vld [vmem:[%s4282 + $0x18] sm:$0xff]
  %v4287 = vunpack.c.l.bf16 %v4283
  %v4288 = vunpack.c.h.bf16 %v4283
  %v4289 = vunpack.c.l.bf16 %v4284
  %v4290 = vunpack.c.h.bf16 %v4284
  %v4291 = vunpack.c.l.bf16 %v4285
  %v4292 = vunpack.c.h.bf16 %v4285
  %v4293 = vunpack.c.l.bf16 %v4286
  %v4294 = vunpack.c.h.bf16 %v4286
  %v4295 = vld [vmem:[#allocation2] sm:$0xff]
  %v4296 = vld [vmem:[#allocation2 + $0x8] sm:$0xff]
  %v4297 = vpack.c.bf16 %v4296, %v4295
  %v4298 = vld [vmem:[%s1] sm:$0xff]
  %v4299 = vld [vmem:[%s1 + $0x8] sm:$0xff]
  %v4300 = vld [vmem:[%s1 + $0x10] sm:$0xff]
  %v4301 = vld [vmem:[%s1 + $0x18] sm:$0xff]
  %v4302 = vld [vmem:[%s1 + $0x20] sm:$0xff]
  %v4303 = vld [vmem:[%s1 + $0x28] sm:$0xff]
  %v4304 = vld [vmem:[%s1 + $0x30] sm:$0xff]
  %v4305 = vld [vmem:[%s1 + $0x38] sm:$0xff]
  %v4306 = vld [vmem:[%s1 + $0x40] sm:$0xff]
  %v4307 = vld [vmem:[%s1 + $0x48] sm:$0xff]
  %v4308 = vld [vmem:[%s1 + $0x50] sm:$0xff]
  %v4309 = vld [vmem:[%s1 + $0x58] sm:$0xff]
  %v4310 = vld [vmem:[%s1 + $0x60] sm:$0xff]
  %v4311 = vld [vmem:[%s1 + $0x68] sm:$0xff]
  %v4312 = vld [vmem:[%s1 + $0x70] sm:$0xff]
  %v4313 = vld [vmem:[%s1 + $0x78] sm:$0xff]
  %v4314 = vld [vmem:[%s1 + $0x80] sm:$0xff]
  %v4315 = vld [vmem:[%s1 + $0x88] sm:$0xff]
  %v4316 = vld [vmem:[%s1 + $0x90] sm:$0xff]
  %v4317 = vld [vmem:[%s1 + $0x98] sm:$0xff]
  %v4318 = vld [vmem:[%s1 + $0xa0] sm:$0xff]
  %v4319 = vld [vmem:[%s1 + $0xa8] sm:$0xff]
  %v4320 = vld [vmem:[%s1 + $0xb0] sm:$0xff]
  %v4321 = vld [vmem:[%s1 + $0xb8] sm:$0xff]
  %v4322 = vld [vmem:[%s1 + $0xc0] sm:$0xff]
  %v4323 = vld [vmem:[%s1 + $0xc8] sm:$0xff]
  %v4324 = vld [vmem:[%s1 + $0xd0] sm:$0xff]
  %v4325 = vld [vmem:[%s1 + $0xd8] sm:$0xff]
  %v4326 = vld [vmem:[%s1 + $0xe0] sm:$0xff]
  %v4327 = vld [vmem:[%s1 + $0xe8] sm:$0xff]
  %v4328 = vld [vmem:[%s1 + $0xf0] sm:$0xff]
  %v4329 = vld [vmem:[%s1 + $0xf8] sm:$0xff]
  %v4362 = vunpack.c.l.b16 %v4298
  %v4363 = vunpack.c.h.b16 %v4298
  %v4364 = vunpack.c.l.b16 %v4299
  %v4365 = vunpack.c.h.b16 %v4299
  %v4366 = vunpack.c.l.b16 %v4300
  %v4367 = vunpack.c.h.b16 %v4300
  %v4368 = vunpack.c.l.b16 %v4301
  %v4369 = vunpack.c.h.b16 %v4301
  %v4370 = vunpack.c.l.b16 %v4302
  %v4371 = vunpack.c.h.b16 %v4302
  %v4372 = vunpack.c.l.b16 %v4303
  %v4373 = vunpack.c.h.b16 %v4303
  %v4374 = vunpack.c.l.b16 %v4304
  %v4375 = vunpack.c.h.b16 %v4304
  %v4376 = vunpack.c.l.b16 %v4305
  %v4377 = vunpack.c.h.b16 %v4305
  %v4378 = vunpack.c.l.b16 %v4306
  %v4379 = vunpack.c.h.b16 %v4306
  %v4380 = vunpack.c.l.b16 %v4307
  %v4381 = vunpack.c.h.b16 %v4307
  %v4382 = vunpack.c.l.b16 %v4308
  %v4383 = vunpack.c.h.b16 %v4308
  %v4384 = vunpack.c.l.b16 %v4309
  %v4385 = vunpack.c.h.b16 %v4309
  %v4386 = vunpack.c.l.b16 %v4310
  %v4387 = vunpack.c.h.b16 %v4310
  %v4388 = vunpack.c.l.b16 %v4311
  %v4389 = vunpack.c.h.b16 %v4311
  %v4390 = vunpack.c.l.b16 %v4312
  %v4391 = vunpack.c.h.b16 %v4312
  %v4392 = vunpack.c.l.b16 %v4313
  %v4393 = vunpack.c.h.b16 %v4313
  %v4394 = vunpack.c.l.b16 %v4314
  %v4395 = vunpack.c.h.b16 %v4314
  %v4396 = vunpack.c.l.b16 %v4315
  %v4397 = vunpack.c.h.b16 %v4315
  %v4398 = vunpack.c.l.b16 %v4316
  %v4399 = vunpack.c.h.b16 %v4316
  %v4400 = vunpack.c.l.b16 %v4317
  %v4401 = vunpack.c.h.b16 %v4317
  %v4402 = vunpack.c.l.b16 %v4318
  %v4403 = vunpack.c.h.b16 %v4318
  %v4404 = vunpack.c.l.b16 %v4319
  %v4405 = vunpack.c.h.b16 %v4319
  %v4406 = vunpack.c.l.b16 %v4320
  %v4407 = vunpack.c.h.b16 %v4320
  %v4408 = vunpack.c.l.b16 %v4321
  %v4409 = vunpack.c.h.b16 %v4321
  %v4410 = vunpack.c.l.b16 %v4322
  %v4411 = vunpack.c.h.b16 %v4322
  %v4412 = vunpack.c.l.b16 %v4323
  %v4413 = vunpack.c.h.b16 %v4323
  %v4414 = vunpack.c.l.b16 %v4324
  %v4415 = vunpack.c.h.b16 %v4324
  %v4416 = vunpack.c.l.b16 %v4325
  %v4417 = vunpack.c.h.b16 %v4325
  %v4418 = vunpack.c.l.b16 %v4326
  %v4419 = vunpack.c.h.b16 %v4326
  %v4420 = vunpack.c.l.b16 %v4327
  %v4421 = vunpack.c.h.b16 %v4327
  %v4422 = vunpack.c.l.b16 %v4328
  %v4423 = vunpack.c.h.b16 %v4328
  %v4424 = vunpack.c.l.b16 %v4329
  %v4425 = vunpack.c.h.b16 %v4329
  %v4426 = vpack.c.b16 %v4366, %v4362
  %v4427 = vpack.c.b16 %v4367, %v4363
  %v4428 = vpack.c.b16 %v4368, %v4364
  %v4429 = vpack.c.b16 %v4369, %v4365
  %v4430 = vpack.c.b16 %v4374, %v4370
  %v4431 = vpack.c.b16 %v4375, %v4371
  %v4432 = vpack.c.b16 %v4376, %v4372
  %v4433 = vpack.c.b16 %v4377, %v4373
  %v4434 = vpack.c.b16 %v4382, %v4378
  %v4435 = vpack.c.b16 %v4383, %v4379
  %v4436 = vpack.c.b16 %v4384, %v4380
  %v4437 = vpack.c.b16 %v4385, %v4381
  %v4438 = vpack.c.b16 %v4390, %v4386
  %v4439 = vpack.c.b16 %v4391, %v4387
  %v4440 = vpack.c.b16 %v4392, %v4388
  %v4441 = vpack.c.b16 %v4393, %v4389
  %v4442 = vpack.c.b16 %v4398, %v4394
  %v4443 = vpack.c.b16 %v4399, %v4395
  %v4444 = vpack.c.b16 %v4400, %v4396
  %v4445 = vpack.c.b16 %v4401, %v4397
  %v4446 = vpack.c.b16 %v4406, %v4402
  %v4447 = vpack.c.b16 %v4407, %v4403
  %v4448 = vpack.c.b16 %v4408, %v4404
  %v4449 = vpack.c.b16 %v4409, %v4405
  %v4450 = vpack.c.b16 %v4414, %v4410
  %v4451 = vpack.c.b16 %v4415, %v4411
  %v4452 = vpack.c.b16 %v4416, %v4412
  %v4453 = vpack.c.b16 %v4417, %v4413
  %v4454 = vpack.c.b16 %v4422, %v4418
  %v4455 = vpack.c.b16 %v4423, %v4419
  %v4456 = vpack.c.b16 %v4424, %v4420
  %v4457 = vpack.c.b16 %v4425, %v4421
  %4490 = vmatprep.subr.bf16.mxu0 %v4427
  %4491 = vmatpush1.bf16.msra.mxu0 %v4426
  %4492 = vmatprep.subr.bf16.mxu0 %v4431
  %4493 = vmatpush1.bf16.msra.mxu0 %v4430
  %4494 = vmatprep.subr.bf16.mxu0 %v4435
  %4495 = vmatpush1.bf16.msra.mxu0 %v4434
  %4496 = vmatprep.subr.bf16.mxu0 %v4439
  %4497 = vmatpush1.bf16.msra.mxu0 %v4438
  %4498 = vmatprep.subr.bf16.mxu0 %v4443
  %4499 = vmatpush1.bf16.msra.mxu0 %v4442
  %4500 = vmatprep.subr.bf16.mxu0 %v4447
  %4501 = vmatpush1.bf16.msra.mxu0 %v4446
  %4502 = vmatprep.subr.bf16.mxu0 %v4451
  %4503 = vmatpush1.bf16.msra.mxu0 %v4450
  %4504 = vmatprep.subr.bf16.mxu0 %v4455
  %4505 = vmatpush1.bf16.msra.mxu0 %v4454
  %4506 = vmatprep.subr.bf16.mxu0 0
  %4507 = vmatpush1.bf16.msra.mxu0 0
  %4508 = vmatprep.subr.bf16.mxu0 0
  %4509 = vmatpush1.bf16.msra.mxu0 0
  %4510 = vmatprep.subr.bf16.mxu0 0
  %4511 = vmatpush1.bf16.msra.mxu0 0
  %4512 = vmatprep.subr.bf16.mxu0 0
  %4513 = vmatpush1.bf16.msra.mxu0 0
  %4514 = vmatprep.subr.bf16.mxu0 0
  %4515 = vmatpush1.bf16.msra.mxu0 0
  %4516 = vmatprep.subr.bf16.mxu0 0
  %4517 = vmatpush1.bf16.msra.mxu0 0
  %4518 = vmatprep.subr.bf16.mxu0 0
  %4519 = vmatpush1.bf16.msra.mxu0 0
  %4520 = vmatprep.subr.bf16.mxu0 0
  %4521 = vmatpush1.bf16.msra.mxu0 0
  %4522 = vmatprep.mubr.bf16.mxu0 0
  %4523 = vmatmul.mubr.bf16.gmra.mrb[0].mxu0 %v4297
  %v4524 = vpop.f32.mrb[0].mxu0
  %v4525 = vadd.f32 0.0, %v4524
  %v4526 = vpop.f32.mrb[0].mxu0
  %v4527 = vadd.f32 0.0, %v4526
  %v4528 = vpop.f32.mrb[0].mxu0
  %v4529 = vadd.f32 0.0, %v4528
  %v4530 = vpop.f32.mrb[0].mxu0
  %v4531 = vadd.f32 0.0, %v4530
  %4532 = vdwg.mxu0
  %4533 = vmatprep.subr.bf16.mxu0 %v4429
  %4534 = vmatpush1.bf16.msra.mxu0 %v4428
  %4535 = vmatprep.subr.bf16.mxu0 %v4433
  %4536 = vmatpush1.bf16.msra.mxu0 %v4432
  %4537 = vmatprep.subr.bf16.mxu0 %v4437
  %4538 = vmatpush1.bf16.msra.mxu0 %v4436
  %4539 = vmatprep.subr.bf16.mxu0 %v4441
  %4540 = vmatpush1.bf16.msra.mxu0 %v4440
  %4541 = vmatprep.subr.bf16.mxu0 %v4445
  %4542 = vmatpush1.bf16.msra.mxu0 %v4444
  %4543 = vmatprep.subr.bf16.mxu0 %v4449
  %4544 = vmatpush1.bf16.msra.mxu0 %v4448
  %4545 = vmatprep.subr.bf16.mxu0 %v4453
  %4546 = vmatpush1.bf16.msra.mxu0 %v4452
  %4547 = vmatprep.subr.bf16.mxu0 %v4457
  %4548 = vmatpush1.bf16.msra.mxu0 %v4456
  %4549 = vmatprep.subr.bf16.mxu0 0
  %4550 = vmatpush1.bf16.msra.mxu0 0
  %4551 = vmatprep.subr.bf16.mxu0 0
  %4552 = vmatpush1.bf16.msra.mxu0 0
  %4553 = vmatprep.subr.bf16.mxu0 0
  %4554 = vmatpush1.bf16.msra.mxu0 0
  %4555 = vmatprep.subr.bf16.mxu0 0
  %4556 = vmatpush1.bf16.msra.mxu0 0
  %4557 = vmatprep.subr.bf16.mxu0 0
  %4558 = vmatpush1.bf16.msra.mxu0 0
  %4559 = vmatprep.subr.bf16.mxu0 0
  %4560 = vmatpush1.bf16.msra.mxu0 0
  %4561 = vmatprep.subr.bf16.mxu0 0
  %4562 = vmatpush1.bf16.msra.mxu0 0
  %4563 = vmatprep.subr.bf16.mxu0 0
  %4564 = vmatpush1.bf16.msra.mxu0 0
  %4565 = vmatprep.mubr.bf16.mxu0 0
  %4566 = vmatmul.mubr.bf16.gmra.mrb[0].mxu0 %v4297
  %v4567 = vpop.f32.mrb[0].mxu0
  %v4568 = vadd.f32 0.0, %v4567
  %v4569 = vpop.f32.mrb[0].mxu0
  %v4570 = vadd.f32 0.0, %v4569
  %v4571 = vpop.f32.mrb[0].mxu0
  %v4572 = vadd.f32 0.0, %v4571
  %v4573 = vpop.f32.mrb[0].mxu0
  %v4574 = vadd.f32 0.0, %v4573
  %4575 = vdwg.mxu0
  %v4576 = vadd.f32 %v4287, %v4525
  %v4577 = vadd.f32 %v4288, %v4527
  %v4578 = vadd.f32 %v4289, %v4568
  %v4579 = vadd.f32 %v4290, %v4570
  %v4580 = vadd.f32 %v4291, %v4529
  %v4581 = vadd.f32 %v4292, %v4531
  %v4582 = vadd.f32 %v4293, %v4572
  %v4583 = vadd.f32 %v4294, %v4574
  %v4584 = vmul.f32 %v4576, 0.5
  %v4585 = vmul.f32 %v4580, 0.5
  %v4586 = vtanh.pop %v4584
  %v4587 = vtanh.pop %v4585
  %v4588 = vmul.f32 %v4586, 0.5
  %v4589 = vmul.f32 %v4587, 0.5
  %v4590 = vadd.f32 %v4588, 0.5
  %v4591 = vadd.f32 %v4589, 0.5
  %v4592 = vmul.f32 %v4577, 0.5
  %v4593 = vmul.f32 %v4581, 0.5
  %v4594 = vtanh.pop %v4592
  %v4595 = vtanh.pop %v4593
  %v4596 = vmul.f32 %v4594, 0.5
  %v4597 = vmul.f32 %v4595, 0.5
  %v4598 = vadd.f32 %v4596, 0.5
  %v4599 = vadd.f32 %v4597, 0.5
  %v4600 = vtanh.pop %v4578
  %v4601 = vtanh.pop %v4582
  %v4602 = vmul.f32 %v4579, 0.5
  %v4603 = vmul.f32 %v4583, 0.5
  %v4604 = vtanh.pop %v4602
  %v4605 = vtanh.pop %v4603
  %v4606 = vmul.f32 %v4604, 0.5
  %v4607 = vmul.f32 %v4605, 0.5
  %v4608 = vadd.f32 %v4606, 0.5
  %v4609 = vadd.f32 %v4607, 0.5
  %v4610 = vld [vmem:[#allocation3] sm:$0xff]
  %v4611 = vld [vmem:[#allocation3 + $0x8] sm:$0xff]
  %v4612 = vmul.f32 %v4598, %v4610
  %v4613 = vmul.f32 %v4599, %v4611
  %v4614 = vmul.f32 %v4590, %v4600
  %v4615 = vmul.f32 %v4591, %v4601
  %v4616 = vadd.f32 %v4612, %v4614
  %v4617 = vadd.f32 %v4613, %v4615
  %v4618 = vtanh.pop %v4616
  %v4619 = vtanh.pop %v4617
  %v4620 = vmul.f32 %v4608, %v4618
  %v4621 = vmul.f32 %v4609, %v4619
  %4622 = vst [vmem:[#allocation3] sm:$0xff] %v4616
  %4623 = vst [vmem:[#allocation3 + $0x8] sm:$0xff] %v4617
  %4624 = vst [vmem:[#allocation2] sm:$0xff] %v4620
  %4625 = vst [vmem:[#allocation2 + $0x8] sm:$0xff] %v4621
  %v4626 = vpack.c.bf16 %v4621, %v4620
  %v4628 = vunpack.c.l.b16 %v4626
  %v4629 = vunpack.c.h.b16 %v4626
  %v4630 = vpack.c.b16 %v4628, %v4628
  %v4631 = vpack.c.b16 %v4629, %v4629
  %s4634 = scalar_lea.vmem %s3, 96
  %4635 = vst [vmem:[%s4634] sm:$0xf] %v4630
  %4636 = vst [vmem:[%s4634 + $0x4] sm:$0xf] %v4631
  %s4637 = scalar_lea.vmem %s0, 416
  %v4638 = vld [vmem:[%s4637] sm:$0xff]
  %v4639 = vld [vmem:[%s4637 + $0x8] sm:$0xff]
  %v4640 = vld [vmem:[%s4637 + $0x10] sm:$0xff]
  %v4641 = vld [vmem:[%s4637 + $0x18] sm:$0xff]
  %v4642 = vunpack.c.l.bf16 %v4638
  %v4643 = vunpack.c.h.bf16 %v4638
  %v4644 = vunpack.c.l.bf16 %v4639
  %v4645 = vunpack.c.h.bf16 %v4639
  %v4646 = vunpack.c.l.bf16 %v4640
  %v4647 = vunpack.c.h.bf16 %v4640
  %v4648 = vunpack.c.l.bf16 %v4641
  %v4649 = vunpack.c.h.bf16 %v4641
  %v4650 = vld [vmem:[#allocation2] sm:$0xff]
  %v4651 = vld [vmem:[#allocation2 + $0x8] sm:$0xff]
  %v4652 = vpack.c.bf16 %v4651, %v4650
  %v4653 = vld [vmem:[%s1] sm:$0xff]
  %v4654 = vld [vmem:[%s1 + $0x8] sm:$0xff]
  %v4655 = vld [vmem:[%s1 + $0x10] sm:$0xff]
  %v4656 = vld [vmem:[%s1 + $0x18] sm:$0xff]
  %v4657 = vld [vmem:[%s1 + $0x20] sm:$0xff]
  %v4658 = vld [vmem:[%s1 + $0x28] sm:$0xff]
  %v4659 = vld [vmem:[%s1 + $0x30] sm:$0xff]
  %v4660 = vld [vmem:[%s1 + $0x38] sm:$0xff]
  %v4661 = vld [vmem:[%s1 + $0x40] sm:$0xff]
  %v4662 = vld [vmem:[%s1 + $0x48] sm:$0xff]
  %v4663 = vld [vmem:[%s1 + $0x50] sm:$0xff]
  %v4664 = vld [vmem:[%s1 + $0x58] sm:$0xff]
  %v4665 = vld [vmem:[%s1 + $0x60] sm:$0xff]
  %v4666 = vld [vmem:[%s1 + $0x68] sm:$0xff]
  %v4667 = vld [vmem:[%s1 + $0x70] sm:$0xff]
  %v4668 = vld [vmem:[%s1 + $0x78] sm:$0xff]
  %v4669 = vld [vmem:[%s1 + $0x80] sm:$0xff]
  %v4670 = vld [vmem:[%s1 + $0x88] sm:$0xff]
  %v4671 = vld [vmem:[%s1 + $0x90] sm:$0xff]
  %v4672 = vld [vmem:[%s1 + $0x98] sm:$0xff]
  %v4673 = vld [vmem:[%s1 + $0xa0] sm:$0xff]
  %v4674 = vld [vmem:[%s1 + $0xa8] sm:$0xff]
  %v4675 = vld [vmem:[%s1 + $0xb0] sm:$0xff]
  %v4676 = vld [vmem:[%s1 + $0xb8] sm:$0xff]
  %v4677 = vld [vmem:[%s1 + $0xc0] sm:$0xff]
  %v4678 = vld [vmem:[%s1 + $0xc8] sm:$0xff]
  %v4679 = vld [vmem:[%s1 + $0xd0] sm:$0xff]
  %v4680 = vld [vmem:[%s1 + $0xd8] sm:$0xff]
  %v4681 = vld [vmem:[%s1 + $0xe0] sm:$0xff]
  %v4682 = vld [vmem:[%s1 + $0xe8] sm:$0xff]
  %v4683 = vld [vmem:[%s1 + $0xf0] sm:$0xff]
  %v4684 = vld [vmem:[%s1 + $0xf8] sm:$0xff]
  %v4717 = vunpack.c.l.b16 %v4653
  %v4718 = vunpack.c.h.b16 %v4653
  %v4719 = vunpack.c.l.b16 %v4654
  %v4720 = vunpack.c.h.b16 %v4654
  %v4721 = vunpack.c.l.b16 %v4655
  %v4722 = vunpack.c.h.b16 %v4655
  %v4723 = vunpack.c.l.b16 %v4656
  %v4724 = vunpack.c.h.b16 %v4656
  %v4725 = vunpack.c.l.b16 %v4657
  %v4726 = vunpack.c.h.b16 %v4657
  %v4727 = vunpack.c.l.b16 %v4658
  %v4728 = vunpack.c.h.b16 %v4658
  %v4729 = vunpack.c.l.b16 %v4659
  %v4730 = vunpack.c.h.b16 %v4659
  %v4731 = vunpack.c.l.b16 %v4660
  %v4732 = vunpack.c.h.b16 %v4660
  %v4733 = vunpack.c.l.b16 %v4661
  %v4734 = vunpack.c.h.b16 %v4661
  %v4735 = vunpack.c.l.b16 %v4662
  %v4736 = vunpack.c.h.b16 %v4662
  %v4737 = vunpack.c.l.b16 %v4663
  %v4738 = vunpack.c.h.b16 %v4663
  %v4739 = vunpack.c.l.b16 %v4664
  %v4740 = vunpack.c.h.b16 %v4664
  %v4741 = vunpack.c.l.b16 %v4665
  %v4742 = vunpack.c.h.b16 %v4665
  %v4743 = vunpack.c.l.b16 %v4666
  %v4744 = vunpack.c.h.b16 %v4666
  %v4745 = vunpack.c.l.b16 %v4667
  %v4746 = vunpack.c.h.b16 %v4667
  %v4747 = vunpack.c.l.b16 %v4668
  %v4748 = vunpack.c.h.b16 %v4668
  %v4749 = vunpack.c.l.b16 %v4669
  %v4750 = vunpack.c.h.b16 %v4669
  %v4751 = vunpack.c.l.b16 %v4670
  %v4752 = vunpack.c.h.b16 %v4670
  %v4753 = vunpack.c.l.b16 %v4671
  %v4754 = vunpack.c.h.b16 %v4671
  %v4755 = vunpack.c.l.b16 %v4672
  %v4756 = vunpack.c.h.b16 %v4672
  %v4757 = vunpack.c.l.b16 %v4673
  %v4758 = vunpack.c.h.b16 %v4673
  %v4759 = vunpack.c.l.b16 %v4674
  %v4760 = vunpack.c.h.b16 %v4674
  %v4761 = vunpack.c.l.b16 %v4675
  %v4762 = vunpack.c.h.b16 %v4675
  %v4763 = vunpack.c.l.b16 %v4676
  %v4764 = vunpack.c.h.b16 %v4676
  %v4765 = vunpack.c.l.b16 %v4677
  %v4766 = vunpack.c.h.b16 %v4677
  %v4767 = vunpack.c.l.b16 %v4678
  %v4768 = vunpack.c.h.b16 %v4678
  %v4769 = vunpack.c.l.b16 %v4679
  %v4770 = vunpack.c.h.b16 %v4679
  %v4771 = vunpack.c.l.b16 %v4680
  %v4772 = vunpack.c.h.b16 %v4680
  %v4773 = vunpack.c.l.b16 %v4681
  %v4774 = vunpack.c.h.b16 %v4681
  %v4775 = vunpack.c.l.b16 %v4682
  %v4776 = vunpack.c.h.b16 %v4682
  %v4777 = vunpack.c.l.b16 %v4683
  %v4778 = vunpack.c.h.b16 %v4683
  %v4779 = vunpack.c.l.b16 %v4684
  %v4780 = vunpack.c.h.b16 %v4684
  %v4781 = vpack.c.b16 %v4721, %v4717
  %v4782 = vpack.c.b16 %v4722, %v4718
  %v4783 = vpack.c.b16 %v4723, %v4719
  %v4784 = vpack.c.b16 %v4724, %v4720
  %v4785 = vpack.c.b16 %v4729, %v4725
  %v4786 = vpack.c.b16 %v4730, %v4726
  %v4787 = vpack.c.b16 %v4731, %v4727
  %v4788 = vpack.c.b16 %v4732, %v4728
  %v4789 = vpack.c.b16 %v4737, %v4733
  %v4790 = vpack.c.b16 %v4738, %v4734
  %v4791 = vpack.c.b16 %v4739, %v4735
  %v4792 = vpack.c.b16 %v4740, %v4736
  %v4793 = vpack.c.b16 %v4745, %v4741
  %v4794 = vpack.c.b16 %v4746, %v4742
  %v4795 = vpack.c.b16 %v4747, %v4743
  %v4796 = vpack.c.b16 %v4748, %v4744
  %v4797 = vpack.c.b16 %v4753, %v4749
  %v4798 = vpack.c.b16 %v4754, %v4750
  %v4799 = vpack.c.b16 %v4755, %v4751
  %v4800 = vpack.c.b16 %v4756, %v4752
  %v4801 = vpack.c.b16 %v4761, %v4757
  %v4802 = vpack.c.b16 %v4762, %v4758
  %v4803 = vpack.c.b16 %v4763, %v4759
  %v4804 = vpack.c.b16 %v4764, %v4760
  %v4805 = vpack.c.b16 %v4769, %v4765
  %v4806 = vpack.c.b16 %v4770, %v4766
  %v4807 = vpack.c.b16 %v4771, %v4767
  %v4808 = vpack.c.b16 %v4772, %v4768
  %v4809 = vpack.c.b16 %v4777, %v4773
  %v4810 = vpack.c.b16 %v4778, %v4774
  %v4811 = vpack.c.b16 %v4779, %v4775
  %v4812 = vpack.c.b16 %v4780, %v4776
  %4845 = vmatprep.subr.bf16.mxu0 %v4782
  %4846 = vmatpush1.bf16.msra.mxu0 %v4781
  %4847 = vmatprep.subr.bf16.mxu0 %v4786
  %4848 = vmatpush1.bf16.msra.mxu0 %v4785
  %4849 = vmatprep.subr.bf16.mxu0 %v4790
  %4850 = vmatpush1.bf16.msra.mxu0 %v4789
  %4851 = vmatprep.subr.bf16.mxu0 %v4794
  %4852 = vmatpush1.bf16.msra.mxu0 %v4793
  %4853 = vmatprep.subr.bf16.mxu0 %v4798
  %4854 = vmatpush1.bf16.msra.mxu0 %v4797
  %4855 = vmatprep.subr.bf16.mxu0 %v4802
  %4856 = vmatpush1.bf16.msra.mxu0 %v4801
  %4857 = vmatprep.subr.bf16.mxu0 %v4806
  %4858 = vmatpush1.bf16.msra.mxu0 %v4805
  %4859 = vmatprep.subr.bf16.mxu0 %v4810
  %4860 = vmatpush1.bf16.msra.mxu0 %v4809
  %4861 = vmatprep.subr.bf16.mxu0 0
  %4862 = vmatpush1.bf16.msra.mxu0 0
  %4863 = vmatprep.subr.bf16.mxu0 0
  %4864 = vmatpush1.bf16.msra.mxu0 0
  %4865 = vmatprep.subr.bf16.mxu0 0
  %4866 = vmatpush1.bf16.msra.mxu0 0
  %4867 = vmatprep.subr.bf16.mxu0 0
  %4868 = vmatpush1.bf16.msra.mxu0 0
  %4869 = vmatprep.subr.bf16.mxu0 0
  %4870 = vmatpush1.bf16.msra.mxu0 0
  %4871 = vmatprep.subr.bf16.mxu0 0
  %4872 = vmatpush1.bf16.msra.mxu0 0
  %4873 = vmatprep.subr.bf16.mxu0 0
  %4874 = vmatpush1.bf16.msra.mxu0 0
  %4875 = vmatprep.subr.bf16.mxu0 0
  %4876 = vmatpush1.bf16.msra.mxu0 0
  %4877 = vmatprep.mubr.bf16.mxu0 0
  %4878 = vmatmul.mubr.bf16.gmra.mrb[0].mxu0 %v4652
  %v4879 = vpop.f32.mrb[0].mxu0
  %v4880 = vadd.f32 0.0, %v4879
  %v4881 = vpop.f32.mrb[0].mxu0
  %v4882 = vadd.f32 0.0, %v4881
  %v4883 = vpop.f32.mrb[0].mxu0
  %v4884 = vadd.f32 0.0, %v4883
  %v4885 = vpop.f32.mrb[0].mxu0
  %v4886 = vadd.f32 0.0, %v4885
  %4887 = vdwg.mxu0
  %4888 = vmatprep.subr.bf16.mxu0 %v4784
  %4889 = vmatpush1.bf16.msra.mxu0 %v4783
  %4890 = vmatprep.subr.bf16.mxu0 %v4788
  %4891 = vmatpush1.bf16.msra.mxu0 %v4787
  %4892 = vmatprep.subr.bf16.mxu0 %v4792
  %4893 = vmatpush1.bf16.msra.mxu0 %v4791
  %4894 = vmatprep.subr.bf16.mxu0 %v4796
  %4895 = vmatpush1.bf16.msra.mxu0 %v4795
  %4896 = vmatprep.subr.bf16.mxu0 %v4800
  %4897 = vmatpush1.bf16.msra.mxu0 %v4799
  %4898 = vmatprep.subr.bf16.mxu0 %v4804
  %4899 = vmatpush1.bf16.msra.mxu0 %v4803
  %4900 = vmatprep.subr.bf16.mxu0 %v4808
  %4901 = vmatpush1.bf16.msra.mxu0 %v4807
  %4902 = vmatprep.subr.bf16.mxu0 %v4812
  %4903 = vmatpush1.bf16.msra.mxu0 %v4811
  %4904 = vmatprep.subr.bf16.mxu0 0
  %4905 = vmatpush1.bf16.msra.mxu0 0
  %4906 = vmatprep.subr.bf16.mxu0 0
  %4907 = vmatpush1.bf16.msra.mxu0 0
  %4908 = vmatprep.subr.bf16.mxu0 0
  %4909 = vmatpush1.bf16.msra.mxu0 0
  %4910 = vmatprep.subr.bf16.mxu0 0
  %4911 = vmatpush1.bf16.msra.mxu0 0
  %4912 = vmatprep.subr.bf16.mxu0 0
  %4913 = vmatpush1.bf16.msra.mxu0 0
  %4914 = vmatprep.subr.bf16.mxu0 0
  %4915 = vmatpush1.bf16.msra.mxu0 0
  %4916 = vmatprep.subr.bf16.mxu0 0
  %4917 = vmatpush1.bf16.msra.mxu0 0
  %4918 = vmatprep.subr.bf16.mxu0 0
  %4919 = vmatpush1.bf16.msra.mxu0 0
  %4920 = vmatprep.mubr.bf16.mxu0 0
  %4921 = vmatmul.mubr.bf16.gmra.mrb[0].mxu0 %v4652
  %v4922 = vpop.f32.mrb[0].mxu0
  %v4923 = vadd.f32 0.0, %v4922
  %v4924 = vpop.f32.mrb[0].mxu0
  %v4925 = vadd.f32 0.0, %v4924
  %v4926 = vpop.f32.mrb[0].mxu0
  %v4927 = vadd.f32 0.0, %v4926
  %v4928 = vpop.f32.mrb[0].mxu0
  %v4929 = vadd.f32 0.0, %v4928
  %4930 = vdwg.mxu0
  %v4931 = vadd.f32 %v4642, %v4880
  %v4932 = vadd.f32 %v4643, %v4882
  %v4933 = vadd.f32 %v4644, %v4923
  %v4934 = vadd.f32 %v4645, %v4925
  %v4935 = vadd.f32 %v4646, %v4884
  %v4936 = vadd.f32 %v4647, %v4886
  %v4937 = vadd.f32 %v4648, %v4927
  %v4938 = vadd.f32 %v4649, %v4929
  %v4939 = vmul.f32 %v4931, 0.5
  %v4940 = vmul.f32 %v4935, 0.5
  %v4941 = vtanh.pop %v4939
  %v4942 = vtanh.pop %v4940
  %v4943 = vmul.f32 %v4941, 0.5
  %v4944 = vmul.f32 %v4942, 0.5
  %v4945 = vadd.f32 %v4943, 0.5
  %v4946 = vadd.f32 %v4944, 0.5
  %v4947 = vmul.f32 %v4932, 0.5
  %v4948 = vmul.f32 %v4936, 0.5
  %v4949 = vtanh.pop %v4947
  %v4950 = vtanh.pop %v4948
  %v4951 = vmul.f32 %v4949, 0.5
  %v4952 = vmul.f32 %v4950, 0.5
  %v4953 = vadd.f32 %v4951, 0.5
  %v4954 = vadd.f32 %v4952, 0.5
  %v4955 = vtanh.pop %v4933
  %v4956 = vtanh.pop %v4937
  %v4957 = vmul.f32 %v4934, 0.5
  %v4958 = vmul.f32 %v4938, 0.5
  %v4959 = vtanh.pop %v4957
  %v4960 = vtanh.pop %v4958
  %v4961 = vmul.f32 %v4959, 0.5
  %v4962 = vmul.f32 %v4960, 0.5
  %v4963 = vadd.f32 %v4961, 0.5
  %v4964 = vadd.f32 %v4962, 0.5
  %v4965 = vld [vmem:[#allocation3] sm:$0xff]
  %v4966 = vld [vmem:[#allocation3 + $0x8] sm:$0xff]
  %v4967 = vmul.f32 %v4953, %v4965
  %v4968 = vmul.f32 %v4954, %v4966
  %v4969 = vmul.f32 %v4945, %v4955
  %v4970 = vmul.f32 %v4946, %v4956
  %v4971 = vadd.f32 %v4967, %v4969
  %v4972 = vadd.f32 %v4968, %v4970
  %v4973 = vtanh.pop %v4971
  %v4974 = vtanh.pop %v4972
  %v4975 = vmul.f32 %v4963, %v4973
  %v4976 = vmul.f32 %v4964, %v4974
  %4977 = vst [vmem:[#allocation3] sm:$0xff] %v4971
  %4978 = vst [vmem:[#allocation3 + $0x8] sm:$0xff] %v4972
  %4979 = vst [vmem:[#allocation2] sm:$0xff] %v4975
  %4980 = vst [vmem:[#allocation2 + $0x8] sm:$0xff] %v4976
  %v4981 = vpack.c.bf16 %v4976, %v4975
  %v4983 = vunpack.c.l.b16 %v4981
  %v4984 = vunpack.c.h.b16 %v4981
  %v4985 = vpack.c.b16 %v4983, %v4983
  %v4986 = vpack.c.b16 %v4984, %v4984
  %s4989 = scalar_lea.vmem %s3, 104
  %4990 = vst [vmem:[%s4989] sm:$0xf] %v4985
  %4991 = vst [vmem:[%s4989 + $0x4] sm:$0xf] %v4986
  %s4992 = scalar_lea.vmem %s0, 448
  %v4993 = vld [vmem:[%s4992] sm:$0xff]
  %v4994 = vld [vmem:[%s4992 + $0x8] sm:$0xff]
  %v4995 = vld [vmem:[%s4992 + $0x10] sm:$0xff]
  %v4996 = vld [vmem:[%s4992 + $0x18] sm:$0xff]
  %v4997 = vunpack.c.l.bf16 %v4993
  %v4998 = vunpack.c.h.bf16 %v4993
  %v4999 = vunpack.c.l.bf16 %v4994
  %v5000 = vunpack.c.h.bf16 %v4994
  %v5001 = vunpack.c.l.bf16 %v4995
  %v5002 = vunpack.c.h.bf16 %v4995
  %v5003 = vunpack.c.l.bf16 %v4996
  %v5004 = vunpack.c.h.bf16 %v4996
  %v5005 = vld [vmem:[#allocation2] sm:$0xff]
  %v5006 = vld [vmem:[#allocation2 + $0x8] sm:$0xff]
  %v5007 = vpack.c.bf16 %v5006, %v5005
  %v5008 = vld [vmem:[%s1] sm:$0xff]
  %v5009 = vld [vmem:[%s1 + $0x8] sm:$0xff]
  %v5010 = vld [vmem:[%s1 + $0x10] sm:$0xff]
  %v5011 = vld [vmem:[%s1 + $0x18] sm:$0xff]
  %v5012 = vld [vmem:[%s1 + $0x20] sm:$0xff]
  %v5013 = vld [vmem:[%s1 + $0x28] sm:$0xff]
  %v5014 = vld [vmem:[%s1 + $0x30] sm:$0xff]
  %v5015 = vld [vmem:[%s1 + $0x38] sm:$0xff]
  %v5016 = vld [vmem:[%s1 + $0x40] sm:$0xff]
  %v5017 = vld [vmem:[%s1 + $0x48] sm:$0xff]
  %v5018 = vld [vmem:[%s1 + $0x50] sm:$0xff]
  %v5019 = vld [vmem:[%s1 + $0x58] sm:$0xff]
  %v5020 = vld [vmem:[%s1 + $0x60] sm:$0xff]
  %v5021 = vld [vmem:[%s1 + $0x68] sm:$0xff]
  %v5022 = vld [vmem:[%s1 + $0x70] sm:$0xff]
  %v5023 = vld [vmem:[%s1 + $0x78] sm:$0xff]
  %v5024 = vld [vmem:[%s1 + $0x80] sm:$0xff]
  %v5025 = vld [vmem:[%s1 + $0x88] sm:$0xff]
  %v5026 = vld [vmem:[%s1 + $0x90] sm:$0xff]
  %v5027 = vld [vmem:[%s1 + $0x98] sm:$0xff]
  %v5028 = vld [vmem:[%s1 + $0xa0] sm:$0xff]
  %v5029 = vld [vmem:[%s1 + $0xa8] sm:$0xff]
  %v5030 = vld [vmem:[%s1 + $0xb0] sm:$0xff]
  %v5031 = vld [vmem:[%s1 + $0xb8] sm:$0xff]
  %v5032 = vld [vmem:[%s1 + $0xc0] sm:$0xff]
  %v5033 = vld [vmem:[%s1 + $0xc8] sm:$0xff]
  %v5034 = vld [vmem:[%s1 + $0xd0] sm:$0xff]
  %v5035 = vld [vmem:[%s1 + $0xd8] sm:$0xff]
  %v5036 = vld [vmem:[%s1 + $0xe0] sm:$0xff]
  %v5037 = vld [vmem:[%s1 + $0xe8] sm:$0xff]
  %v5038 = vld [vmem:[%s1 + $0xf0] sm:$0xff]
  %v5039 = vld [vmem:[%s1 + $0xf8] sm:$0xff]
  %v5072 = vunpack.c.l.b16 %v5008
  %v5073 = vunpack.c.h.b16 %v5008
  %v5074 = vunpack.c.l.b16 %v5009
  %v5075 = vunpack.c.h.b16 %v5009
  %v5076 = vunpack.c.l.b16 %v5010
  %v5077 = vunpack.c.h.b16 %v5010
  %v5078 = vunpack.c.l.b16 %v5011
  %v5079 = vunpack.c.h.b16 %v5011
  %v5080 = vunpack.c.l.b16 %v5012
  %v5081 = vunpack.c.h.b16 %v5012
  %v5082 = vunpack.c.l.b16 %v5013
  %v5083 = vunpack.c.h.b16 %v5013
  %v5084 = vunpack.c.l.b16 %v5014
  %v5085 = vunpack.c.h.b16 %v5014
  %v5086 = vunpack.c.l.b16 %v5015
  %v5087 = vunpack.c.h.b16 %v5015
  %v5088 = vunpack.c.l.b16 %v5016
  %v5089 = vunpack.c.h.b16 %v5016
  %v5090 = vunpack.c.l.b16 %v5017
  %v5091 = vunpack.c.h.b16 %v5017
  %v5092 = vunpack.c.l.b16 %v5018
  %v5093 = vunpack.c.h.b16 %v5018
  %v5094 = vunpack.c.l.b16 %v5019
  %v5095 = vunpack.c.h.b16 %v5019
  %v5096 = vunpack.c.l.b16 %v5020
  %v5097 = vunpack.c.h.b16 %v5020
  %v5098 = vunpack.c.l.b16 %v5021
  %v5099 = vunpack.c.h.b16 %v5021
  %v5100 = vunpack.c.l.b16 %v5022
  %v5101 = vunpack.c.h.b16 %v5022
  %v5102 = vunpack.c.l.b16 %v5023
  %v5103 = vunpack.c.h.b16 %v5023
  %v5104 = vunpack.c.l.b16 %v5024
  %v5105 = vunpack.c.h.b16 %v5024
  %v5106 = vunpack.c.l.b16 %v5025
  %v5107 = vunpack.c.h.b16 %v5025
  %v5108 = vunpack.c.l.b16 %v5026
  %v5109 = vunpack.c.h.b16 %v5026
  %v5110 = vunpack.c.l.b16 %v5027
  %v5111 = vunpack.c.h.b16 %v5027
  %v5112 = vunpack.c.l.b16 %v5028
  %v5113 = vunpack.c.h.b16 %v5028
  %v5114 = vunpack.c.l.b16 %v5029
  %v5115 = vunpack.c.h.b16 %v5029
  %v5116 = vunpack.c.l.b16 %v5030
  %v5117 = vunpack.c.h.b16 %v5030
  %v5118 = vunpack.c.l.b16 %v5031
  %v5119 = vunpack.c.h.b16 %v5031
  %v5120 = vunpack.c.l.b16 %v5032
  %v5121 = vunpack.c.h.b16 %v5032
  %v5122 = vunpack.c.l.b16 %v5033
  %v5123 = vunpack.c.h.b16 %v5033
  %v5124 = vunpack.c.l.b16 %v5034
  %v5125 = vunpack.c.h.b16 %v5034
  %v5126 = vunpack.c.l.b16 %v5035
  %v5127 = vunpack.c.h.b16 %v5035
  %v5128 = vunpack.c.l.b16 %v5036
  %v5129 = vunpack.c.h.b16 %v5036
  %v5130 = vunpack.c.l.b16 %v5037
  %v5131 = vunpack.c.h.b16 %v5037
  %v5132 = vunpack.c.l.b16 %v5038
  %v5133 = vunpack.c.h.b16 %v5038
  %v5134 = vunpack.c.l.b16 %v5039
  %v5135 = vunpack.c.h.b16 %v5039
  %v5136 = vpack.c.b16 %v5076, %v5072
  %v5137 = vpack.c.b16 %v5077, %v5073
  %v5138 = vpack.c.b16 %v5078, %v5074
  %v5139 = vpack.c.b16 %v5079, %v5075
  %v5140 = vpack.c.b16 %v5084, %v5080
  %v5141 = vpack.c.b16 %v5085, %v5081
  %v5142 = vpack.c.b16 %v5086, %v5082
  %v5143 = vpack.c.b16 %v5087, %v5083
  %v5144 = vpack.c.b16 %v5092, %v5088
  %v5145 = vpack.c.b16 %v5093, %v5089
  %v5146 = vpack.c.b16 %v5094, %v5090
  %v5147 = vpack.c.b16 %v5095, %v5091
  %v5148 = vpack.c.b16 %v5100, %v5096
  %v5149 = vpack.c.b16 %v5101, %v5097
  %v5150 = vpack.c.b16 %v5102, %v5098
  %v5151 = vpack.c.b16 %v5103, %v5099
  %v5152 = vpack.c.b16 %v5108, %v5104
  %v5153 = vpack.c.b16 %v5109, %v5105
  %v5154 = vpack.c.b16 %v5110, %v5106
  %v5155 = vpack.c.b16 %v5111, %v5107
  %v5156 = vpack.c.b16 %v5116, %v5112
  %v5157 = vpack.c.b16 %v5117, %v5113
  %v5158 = vpack.c.b16 %v5118, %v5114
  %v5159 = vpack.c.b16 %v5119, %v5115
  %v5160 = vpack.c.b16 %v5124, %v5120
  %v5161 = vpack.c.b16 %v5125, %v5121
  %v5162 = vpack.c.b16 %v5126, %v5122
  %v5163 = vpack.c.b16 %v5127, %v5123
  %v5164 = vpack.c.b16 %v5132, %v5128
  %v5165 = vpack.c.b16 %v5133, %v5129
  %v5166 = vpack.c.b16 %v5134, %v5130
  %v5167 = vpack.c.b16 %v5135, %v5131
  %5200 = vmatprep.subr.bf16.mxu0 %v5137
  %5201 = vmatpush1.bf16.msra.mxu0 %v5136
  %5202 = vmatprep.subr.bf16.mxu0 %v5141
  %5203 = vmatpush1.bf16.msra.mxu0 %v5140
  %5204 = vmatprep.subr.bf16.mxu0 %v5145
  %5205 = vmatpush1.bf16.msra.mxu0 %v5144
  %5206 = vmatprep.subr.bf16.mxu0 %v5149
  %5207 = vmatpush1.bf16.msra.mxu0 %v5148
  %5208 = vmatprep.subr.bf16.mxu0 %v5153
  %5209 = vmatpush1.bf16.msra.mxu0 %v5152
  %5210 = vmatprep.subr.bf16.mxu0 %v5157
  %5211 = vmatpush1.bf16.msra.mxu0 %v5156
  %5212 = vmatprep.subr.bf16.mxu0 %v5161
  %5213 = vmatpush1.bf16.msra.mxu0 %v5160
  %5214 = vmatprep.subr.bf16.mxu0 %v5165
  %5215 = vmatpush1.bf16.msra.mxu0 %v5164
  %5216 = vmatprep.subr.bf16.mxu0 0
  %5217 = vmatpush1.bf16.msra.mxu0 0
  %5218 = vmatprep.subr.bf16.mxu0 0
  %5219 = vmatpush1.bf16.msra.mxu0 0
  %5220 = vmatprep.subr.bf16.mxu0 0
  %5221 = vmatpush1.bf16.msra.mxu0 0
  %5222 = vmatprep.subr.bf16.mxu0 0
  %5223 = vmatpush1.bf16.msra.mxu0 0
  %5224 = vmatprep.subr.bf16.mxu0 0
  %5225 = vmatpush1.bf16.msra.mxu0 0
  %5226 = vmatprep.subr.bf16.mxu0 0
  %5227 = vmatpush1.bf16.msra.mxu0 0
  %5228 = vmatprep.subr.bf16.mxu0 0
  %5229 = vmatpush1.bf16.msra.mxu0 0
  %5230 = vmatprep.subr.bf16.mxu0 0
  %5231 = vmatpush1.bf16.msra.mxu0 0
  %5232 = vmatprep.mubr.bf16.mxu0 0
  %5233 = vmatmul.mubr.bf16.gmra.mrb[0].mxu0 %v5007
  %v5234 = vpop.f32.mrb[0].mxu0
  %v5235 = vadd.f32 0.0, %v5234
  %v5236 = vpop.f32.mrb[0].mxu0
  %v5237 = vadd.f32 0.0, %v5236
  %v5238 = vpop.f32.mrb[0].mxu0
  %v5239 = vadd.f32 0.0, %v5238
  %v5240 = vpop.f32.mrb[0].mxu0
  %v5241 = vadd.f32 0.0, %v5240
  %5242 = vdwg.mxu0
  %5243 = vmatprep.subr.bf16.mxu0 %v5139
  %5244 = vmatpush1.bf16.msra.mxu0 %v5138
  %5245 = vmatprep.subr.bf16.mxu0 %v5143
  %5246 = vmatpush1.bf16.msra.mxu0 %v5142
  %5247 = vmatprep.subr.bf16.mxu0 %v5147
  %5248 = vmatpush1.bf16.msra.mxu0 %v5146
  %5249 = vmatprep.subr.bf16.mxu0 %v5151
  %5250 = vmatpush1.bf16.msra.mxu0 %v5150
  %5251 = vmatprep.subr.bf16.mxu0 %v5155
  %5252 = vmatpush1.bf16.msra.mxu0 %v5154
  %5253 = vmatprep.subr.bf16.mxu0 %v5159
  %5254 = vmatpush1.bf16.msra.mxu0 %v5158
  %5255 = vmatprep.subr.bf16.mxu0 %v5163
  %5256 = vmatpush1.bf16.msra.mxu0 %v5162
  %5257 = vmatprep.subr.bf16.mxu0 %v5167
  %5258 = vmatpush1.bf16.msra.mxu0 %v5166
  %5259 = vmatprep.subr.bf16.mxu0 0
  %5260 = vmatpush1.bf16.msra.mxu0 0
  %5261 = vmatprep.subr.bf16.mxu0 0
  %5262 = vmatpush1.bf16.msra.mxu0 0
  %5263 = vmatprep.subr.bf16.mxu0 0
  %5264 = vmatpush1.bf16.msra.mxu0 0
  %5265 = vmatprep.subr.bf16.mxu0 0
  %5266 = vmatpush1.bf16.msra.mxu0 0
  %5267 = vmatprep.subr.bf16.mxu0 0
  %5268 = vmatpush1.bf16.msra.mxu0 0
  %5269 = vmatprep.subr.bf16.mxu0 0
  %5270 = vmatpush1.bf16.msra.mxu0 0
  %5271 = vmatprep.subr.bf16.mxu0 0
  %5272 = vmatpush1.bf16.msra.mxu0 0
  %5273 = vmatprep.subr.bf16.mxu0 0
  %5274 = vmatpush1.bf16.msra.mxu0 0
  %5275 = vmatprep.mubr.bf16.mxu0 0
  %5276 = vmatmul.mubr.bf16.gmra.mrb[0].mxu0 %v5007
  %v5277 = vpop.f32.mrb[0].mxu0
  %v5278 = vadd.f32 0.0, %v5277
  %v5279 = vpop.f32.mrb[0].mxu0
  %v5280 = vadd.f32 0.0, %v5279
  %v5281 = vpop.f32.mrb[0].mxu0
  %v5282 = vadd.f32 0.0, %v5281
  %v5283 = vpop.f32.mrb[0].mxu0
  %v5284 = vadd.f32 0.0, %v5283
  %5285 = vdwg.mxu0
  %v5286 = vadd.f32 %v4997, %v5235
  %v5287 = vadd.f32 %v4998, %v5237
  %v5288 = vadd.f32 %v4999, %v5278
  %v5289 = vadd.f32 %v5000, %v5280
  %v5290 = vadd.f32 %v5001, %v5239
  %v5291 = vadd.f32 %v5002, %v5241
  %v5292 = vadd.f32 %v5003, %v5282
  %v5293 = vadd.f32 %v5004, %v5284
  %v5294 = vmul.f32 %v5286, 0.5
  %v5295 = vmul.f32 %v5290, 0.5
  %v5296 = vtanh.pop %v5294
  %v5297 = vtanh.pop %v5295
  %v5298 = vmul.f32 %v5296, 0.5
  %v5299 = vmul.f32 %v5297, 0.5
  %v5300 = vadd.f32 %v5298, 0.5
  %v5301 = vadd.f32 %v5299, 0.5
  %v5302 = vmul.f32 %v5287, 0.5
  %v5303 = vmul.f32 %v5291, 0.5
  %v5304 = vtanh.pop %v5302
  %v5305 = vtanh.pop %v5303
  %v5306 = vmul.f32 %v5304, 0.5
  %v5307 = vmul.f32 %v5305, 0.5
  %v5308 = vadd.f32 %v5306, 0.5
  %v5309 = vadd.f32 %v5307, 0.5
  %v5310 = vtanh.pop %v5288
  %v5311 = vtanh.pop %v5292
  %v5312 = vmul.f32 %v5289, 0.5
  %v5313 = vmul.f32 %v5293, 0.5
  %v5314 = vtanh.pop %v5312
  %v5315 = vtanh.pop %v5313
  %v5316 = vmul.f32 %v5314, 0.5
  %v5317 = vmul.f32 %v5315, 0.5
  %v5318 = vadd.f32 %v5316, 0.5
  %v5319 = vadd.f32 %v5317, 0.5
  %v5320 = vld [vmem:[#allocation3] sm:$0xff]
  %v5321 = vld [vmem:[#allocation3 + $0x8] sm:$0xff]
  %v5322 = vmul.f32 %v5308, %v5320
  %v5323 = vmul.f32 %v5309, %v5321
  %v5324 = vmul.f32 %v5300, %v5310
  %v5325 = vmul.f32 %v5301, %v5311
  %v5326 = vadd.f32 %v5322, %v5324
  %v5327 = vadd.f32 %v5323, %v5325
  %v5328 = vtanh.pop %v5326
  %v5329 = vtanh.pop %v5327
  %v5330 = vmul.f32 %v5318, %v5328
  %v5331 = vmul.f32 %v5319, %v5329
  %5332 = vst [vmem:[#allocation3] sm:$0xff] %v5326
  %5333 = vst [vmem:[#allocation3 + $0x8] sm:$0xff] %v5327
  %5334 = vst [vmem:[#allocation2] sm:$0xff] %v5330
  %5335 = vst [vmem:[#allocation2 + $0x8] sm:$0xff] %v5331
  %v5336 = vpack.c.bf16 %v5331, %v5330
  %v5338 = vunpack.c.l.b16 %v5336
  %v5339 = vunpack.c.h.b16 %v5336
  %v5340 = vpack.c.b16 %v5338, %v5338
  %v5341 = vpack.c.b16 %v5339, %v5339
  %s5344 = scalar_lea.vmem %s3, 112
  %5345 = vst [vmem:[%s5344] sm:$0xf] %v5340
  %5346 = vst [vmem:[%s5344 + $0x4] sm:$0xf] %v5341
  %s5347 = scalar_lea.vmem %s0, 480
  %v5348 = vld [vmem:[%s5347] sm:$0xff]
  %v5349 = vld [vmem:[%s5347 + $0x8] sm:$0xff]
  %v5350 = vld [vmem:[%s5347 + $0x10] sm:$0xff]
  %v5351 = vld [vmem:[%s5347 + $0x18] sm:$0xff]
  %v5352 = vunpack.c.l.bf16 %v5348
  %v5353 = vunpack.c.h.bf16 %v5348
  %v5354 = vunpack.c.l.bf16 %v5349
  %v5355 = vunpack.c.h.bf16 %v5349
  %v5356 = vunpack.c.l.bf16 %v5350
  %v5357 = vunpack.c.h.bf16 %v5350
  %v5358 = vunpack.c.l.bf16 %v5351
  %v5359 = vunpack.c.h.bf16 %v5351
  %v5360 = vld [vmem:[#allocation2] sm:$0xff]
  %v5361 = vld [vmem:[#allocation2 + $0x8] sm:$0xff]
  %v5362 = vpack.c.bf16 %v5361, %v5360
  %v5363 = vld [vmem:[%s1] sm:$0xff]
  %v5364 = vld [vmem:[%s1 + $0x8] sm:$0xff]
  %v5365 = vld [vmem:[%s1 + $0x10] sm:$0xff]
  %v5366 = vld [vmem:[%s1 + $0x18] sm:$0xff]
  %v5367 = vld [vmem:[%s1 + $0x20] sm:$0xff]
  %v5368 = vld [vmem:[%s1 + $0x28] sm:$0xff]
  %v5369 = vld [vmem:[%s1 + $0x30] sm:$0xff]
  %v5370 = vld [vmem:[%s1 + $0x38] sm:$0xff]
  %v5371 = vld [vmem:[%s1 + $0x40] sm:$0xff]
  %v5372 = vld [vmem:[%s1 + $0x48] sm:$0xff]
  %v5373 = vld [vmem:[%s1 + $0x50] sm:$0xff]
  %v5374 = vld [vmem:[%s1 + $0x58] sm:$0xff]
  %v5375 = vld [vmem:[%s1 + $0x60] sm:$0xff]
  %v5376 = vld [vmem:[%s1 + $0x68] sm:$0xff]
  %v5377 = vld [vmem:[%s1 + $0x70] sm:$0xff]
  %v5378 = vld [vmem:[%s1 + $0x78] sm:$0xff]
  %v5379 = vld [vmem:[%s1 + $0x80] sm:$0xff]
  %v5380 = vld [vmem:[%s1 + $0x88] sm:$0xff]
  %v5381 = vld [vmem:[%s1 + $0x90] sm:$0xff]
  %v5382 = vld [vmem:[%s1 + $0x98] sm:$0xff]
  %v5383 = vld [vmem:[%s1 + $0xa0] sm:$0xff]
  %v5384 = vld [vmem:[%s1 + $0xa8] sm:$0xff]
  %v5385 = vld [vmem:[%s1 + $0xb0] sm:$0xff]
  %v5386 = vld [vmem:[%s1 + $0xb8] sm:$0xff]
  %v5387 = vld [vmem:[%s1 + $0xc0] sm:$0xff]
  %v5388 = vld [vmem:[%s1 + $0xc8] sm:$0xff]
  %v5389 = vld [vmem:[%s1 + $0xd0] sm:$0xff]
  %v5390 = vld [vmem:[%s1 + $0xd8] sm:$0xff]
  %v5391 = vld [vmem:[%s1 + $0xe0] sm:$0xff]
  %v5392 = vld [vmem:[%s1 + $0xe8] sm:$0xff]
  %v5393 = vld [vmem:[%s1 + $0xf0] sm:$0xff]
  %v5394 = vld [vmem:[%s1 + $0xf8] sm:$0xff]
  %v5427 = vunpack.c.l.b16 %v5363
  %v5428 = vunpack.c.h.b16 %v5363
  %v5429 = vunpack.c.l.b16 %v5364
  %v5430 = vunpack.c.h.b16 %v5364
  %v5431 = vunpack.c.l.b16 %v5365
  %v5432 = vunpack.c.h.b16 %v5365
  %v5433 = vunpack.c.l.b16 %v5366
  %v5434 = vunpack.c.h.b16 %v5366
  %v5435 = vunpack.c.l.b16 %v5367
  %v5436 = vunpack.c.h.b16 %v5367
  %v5437 = vunpack.c.l.b16 %v5368
  %v5438 = vunpack.c.h.b16 %v5368
  %v5439 = vunpack.c.l.b16 %v5369
  %v5440 = vunpack.c.h.b16 %v5369
  %v5441 = vunpack.c.l.b16 %v5370
  %v5442 = vunpack.c.h.b16 %v5370
  %v5443 = vunpack.c.l.b16 %v5371
  %v5444 = vunpack.c.h.b16 %v5371
  %v5445 = vunpack.c.l.b16 %v5372
  %v5446 = vunpack.c.h.b16 %v5372
  %v5447 = vunpack.c.l.b16 %v5373
  %v5448 = vunpack.c.h.b16 %v5373
  %v5449 = vunpack.c.l.b16 %v5374
  %v5450 = vunpack.c.h.b16 %v5374
  %v5451 = vunpack.c.l.b16 %v5375
  %v5452 = vunpack.c.h.b16 %v5375
  %v5453 = vunpack.c.l.b16 %v5376
  %v5454 = vunpack.c.h.b16 %v5376
  %v5455 = vunpack.c.l.b16 %v5377
  %v5456 = vunpack.c.h.b16 %v5377
  %v5457 = vunpack.c.l.b16 %v5378
  %v5458 = vunpack.c.h.b16 %v5378
  %v5459 = vunpack.c.l.b16 %v5379
  %v5460 = vunpack.c.h.b16 %v5379
  %v5461 = vunpack.c.l.b16 %v5380
  %v5462 = vunpack.c.h.b16 %v5380
  %v5463 = vunpack.c.l.b16 %v5381
  %v5464 = vunpack.c.h.b16 %v5381
  %v5465 = vunpack.c.l.b16 %v5382
  %v5466 = vunpack.c.h.b16 %v5382
  %v5467 = vunpack.c.l.b16 %v5383
  %v5468 = vunpack.c.h.b16 %v5383
  %v5469 = vunpack.c.l.b16 %v5384
  %v5470 = vunpack.c.h.b16 %v5384
  %v5471 = vunpack.c.l.b16 %v5385
  %v5472 = vunpack.c.h.b16 %v5385
  %v5473 = vunpack.c.l.b16 %v5386
  %v5474 = vunpack.c.h.b16 %v5386
  %v5475 = vunpack.c.l.b16 %v5387
  %v5476 = vunpack.c.h.b16 %v5387
  %v5477 = vunpack.c.l.b16 %v5388
  %v5478 = vunpack.c.h.b16 %v5388
  %v5479 = vunpack.c.l.b16 %v5389
  %v5480 = vunpack.c.h.b16 %v5389
  %v5481 = vunpack.c.l.b16 %v5390
  %v5482 = vunpack.c.h.b16 %v5390
  %v5483 = vunpack.c.l.b16 %v5391
  %v5484 = vunpack.c.h.b16 %v5391
  %v5485 = vunpack.c.l.b16 %v5392
  %v5486 = vunpack.c.h.b16 %v5392
  %v5487 = vunpack.c.l.b16 %v5393
  %v5488 = vunpack.c.h.b16 %v5393
  %v5489 = vunpack.c.l.b16 %v5394
  %v5490 = vunpack.c.h.b16 %v5394
  %v5491 = vpack.c.b16 %v5431, %v5427
  %v5492 = vpack.c.b16 %v5432, %v5428
  %v5493 = vpack.c.b16 %v5433, %v5429
  %v5494 = vpack.c.b16 %v5434, %v5430
  %v5495 = vpack.c.b16 %v5439, %v5435
  %v5496 = vpack.c.b16 %v5440, %v5436
  %v5497 = vpack.c.b16 %v5441, %v5437
  %v5498 = vpack.c.b16 %v5442, %v5438
  %v5499 = vpack.c.b16 %v5447, %v5443
  %v5500 = vpack.c.b16 %v5448, %v5444
  %v5501 = vpack.c.b16 %v5449, %v5445
  %v5502 = vpack.c.b16 %v5450, %v5446
  %v5503 = vpack.c.b16 %v5455, %v5451
  %v5504 = vpack.c.b16 %v5456, %v5452
  %v5505 = vpack.c.b16 %v5457, %v5453
  %v5506 = vpack.c.b16 %v5458, %v5454
  %v5507 = vpack.c.b16 %v5463, %v5459
  %v5508 = vpack.c.b16 %v5464, %v5460
  %v5509 = vpack.c.b16 %v5465, %v5461
  %v5510 = vpack.c.b16 %v5466, %v5462
  %v5511 = vpack.c.b16 %v5471, %v5467
  %v5512 = vpack.c.b16 %v5472, %v5468
  %v5513 = vpack.c.b16 %v5473, %v5469
  %v5514 = vpack.c.b16 %v5474, %v5470
  %v5515 = vpack.c.b16 %v5479, %v5475
  %v5516 = vpack.c.b16 %v5480, %v5476
  %v5517 = vpack.c.b16 %v5481, %v5477
  %v5518 = vpack.c.b16 %v5482, %v5478
  %v5519 = vpack.c.b16 %v5487, %v5483
  %v5520 = vpack.c.b16 %v5488, %v5484
  %v5521 = vpack.c.b16 %v5489, %v5485
  %v5522 = vpack.c.b16 %v5490, %v5486
  %5555 = vmatprep.subr.bf16.mxu0 %v5492
  %5556 = vmatpush1.bf16.msra.mxu0 %v5491
  %5557 = vmatprep.subr.bf16.mxu0 %v5496
  %5558 = vmatpush1.bf16.msra.mxu0 %v5495
  %5559 = vmatprep.subr.bf16.mxu0 %v5500
  %5560 = vmatpush1.bf16.msra.mxu0 %v5499
  %5561 = vmatprep.subr.bf16.mxu0 %v5504
  %5562 = vmatpush1.bf16.msra.mxu0 %v5503
  %5563 = vmatprep.subr.bf16.mxu0 %v5508
  %5564 = vmatpush1.bf16.msra.mxu0 %v5507
  %5565 = vmatprep.subr.bf16.mxu0 %v5512
  %5566 = vmatpush1.bf16.msra.mxu0 %v5511
  %5567 = vmatprep.subr.bf16.mxu0 %v5516
  %5568 = vmatpush1.bf16.msra.mxu0 %v5515
  %5569 = vmatprep.subr.bf16.mxu0 %v5520
  %5570 = vmatpush1.bf16.msra.mxu0 %v5519
  %5571 = vmatprep.subr.bf16.mxu0 0
  %5572 = vmatpush1.bf16.msra.mxu0 0
  %5573 = vmatprep.subr.bf16.mxu0 0
  %5574 = vmatpush1.bf16.msra.mxu0 0
  %5575 = vmatprep.subr.bf16.mxu0 0
  %5576 = vmatpush1.bf16.msra.mxu0 0
  %5577 = vmatprep.subr.bf16.mxu0 0
  %5578 = vmatpush1.bf16.msra.mxu0 0
  %5579 = vmatprep.subr.bf16.mxu0 0
  %5580 = vmatpush1.bf16.msra.mxu0 0
  %5581 = vmatprep.subr.bf16.mxu0 0
  %5582 = vmatpush1.bf16.msra.mxu0 0
  %5583 = vmatprep.subr.bf16.mxu0 0
  %5584 = vmatpush1.bf16.msra.mxu0 0
  %5585 = vmatprep.subr.bf16.mxu0 0
  %5586 = vmatpush1.bf16.msra.mxu0 0
  %5587 = vmatprep.mubr.bf16.mxu0 0
  %5588 = vmatmul.mubr.bf16.gmra.mrb[0].mxu0 %v5362
  %v5589 = vpop.f32.mrb[0].mxu0
  %v5590 = vadd.f32 0.0, %v5589
  %v5591 = vpop.f32.mrb[0].mxu0
  %v5592 = vadd.f32 0.0, %v5591
  %v5593 = vpop.f32.mrb[0].mxu0
  %v5594 = vadd.f32 0.0, %v5593
  %v5595 = vpop.f32.mrb[0].mxu0
  %v5596 = vadd.f32 0.0, %v5595
  %5597 = vdwg.mxu0
  %5598 = vmatprep.subr.bf16.mxu0 %v5494
  %5599 = vmatpush1.bf16.msra.mxu0 %v5493
  %5600 = vmatprep.subr.bf16.mxu0 %v5498
  %5601 = vmatpush1.bf16.msra.mxu0 %v5497
  %5602 = vmatprep.subr.bf16.mxu0 %v5502
  %5603 = vmatpush1.bf16.msra.mxu0 %v5501
  %5604 = vmatprep.subr.bf16.mxu0 %v5506
  %5605 = vmatpush1.bf16.msra.mxu0 %v5505
  %5606 = vmatprep.subr.bf16.mxu0 %v5510
  %5607 = vmatpush1.bf16.msra.mxu0 %v5509
  %5608 = vmatprep.subr.bf16.mxu0 %v5514
  %5609 = vmatpush1.bf16.msra.mxu0 %v5513
  %5610 = vmatprep.subr.bf16.mxu0 %v5518
  %5611 = vmatpush1.bf16.msra.mxu0 %v5517
  %5612 = vmatprep.subr.bf16.mxu0 %v5522
  %5613 = vmatpush1.bf16.msra.mxu0 %v5521
  %5614 = vmatprep.subr.bf16.mxu0 0
  %5615 = vmatpush1.bf16.msra.mxu0 0
  %5616 = vmatprep.subr.bf16.mxu0 0
  %5617 = vmatpush1.bf16.msra.mxu0 0
  %5618 = vmatprep.subr.bf16.mxu0 0
  %5619 = vmatpush1.bf16.msra.mxu0 0
  %5620 = vmatprep.subr.bf16.mxu0 0
  %5621 = vmatpush1.bf16.msra.mxu0 0
  %5622 = vmatprep.subr.bf16.mxu0 0
  %5623 = vmatpush1.bf16.msra.mxu0 0
  %5624 = vmatprep.subr.bf16.mxu0 0
  %5625 = vmatpush1.bf16.msra.mxu0 0
  %5626 = vmatprep.subr.bf16.mxu0 0
  %5627 = vmatpush1.bf16.msra.mxu0 0
  %5628 = vmatprep.subr.bf16.mxu0 0
  %5629 = vmatpush1.bf16.msra.mxu0 0
  %5630 = vmatprep.mubr.bf16.mxu0 0
  %5631 = vmatmul.mubr.bf16.gmra.mrb[0].mxu0 %v5362
  %v5632 = vpop.f32.mrb[0].mxu0
  %v5633 = vadd.f32 0.0, %v5632
  %v5634 = vpop.f32.mrb[0].mxu0
  %v5635 = vadd.f32 0.0, %v5634
  %v5636 = vpop.f32.mrb[0].mxu0
  %v5637 = vadd.f32 0.0, %v5636
  %v5638 = vpop.f32.mrb[0].mxu0
  %v5639 = vadd.f32 0.0, %v5638
  %5640 = vdwg.mxu0
  %v5641 = vadd.f32 %v5352, %v5590
  %v5642 = vadd.f32 %v5353, %v5592
  %v5643 = vadd.f32 %v5354, %v5633
  %v5644 = vadd.f32 %v5355, %v5635
  %v5645 = vadd.f32 %v5356, %v5594
  %v5646 = vadd.f32 %v5357, %v5596
  %v5647 = vadd.f32 %v5358, %v5637
  %v5648 = vadd.f32 %v5359, %v5639
  %v5649 = vmul.f32 %v5641, 0.5
  %v5650 = vmul.f32 %v5645, 0.5
  %v5651 = vtanh.pop %v5649
  %v5652 = vtanh.pop %v5650
  %v5653 = vmul.f32 %v5651, 0.5
  %v5654 = vmul.f32 %v5652, 0.5
  %v5655 = vadd.f32 %v5653, 0.5
  %v5656 = vadd.f32 %v5654, 0.5
  %v5657 = vmul.f32 %v5642, 0.5
  %v5658 = vmul.f32 %v5646, 0.5
  %v5659 = vtanh.pop %v5657
  %v5660 = vtanh.pop %v5658
  %v5661 = vmul.f32 %v5659, 0.5
  %v5662 = vmul.f32 %v5660, 0.5
  %v5663 = vadd.f32 %v5661, 0.5
  %v5664 = vadd.f32 %v5662, 0.5
  %v5665 = vtanh.pop %v5643
  %v5666 = vtanh.pop %v5647
  %v5667 = vmul.f32 %v5644, 0.5
  %v5668 = vmul.f32 %v5648, 0.5
  %v5669 = vtanh.pop %v5667
  %v5670 = vtanh.pop %v5668
  %v5671 = vmul.f32 %v5669, 0.5
  %v5672 = vmul.f32 %v5670, 0.5
  %v5673 = vadd.f32 %v5671, 0.5
  %v5674 = vadd.f32 %v5672, 0.5
  %v5675 = vld [vmem:[#allocation3] sm:$0xff]
  %v5676 = vld [vmem:[#allocation3 + $0x8] sm:$0xff]
  %v5677 = vmul.f32 %v5663, %v5675
  %v5678 = vmul.f32 %v5664, %v5676
  %v5679 = vmul.f32 %v5655, %v5665
  %v5680 = vmul.f32 %v5656, %v5666
  %v5681 = vadd.f32 %v5677, %v5679
  %v5682 = vadd.f32 %v5678, %v5680
  %v5683 = vtanh.pop %v5681
  %v5684 = vtanh.pop %v5682
  %v5685 = vmul.f32 %v5673, %v5683
  %v5686 = vmul.f32 %v5674, %v5684
  %5687 = vst [vmem:[#allocation3] sm:$0xff] %v5681
  %5688 = vst [vmem:[#allocation3 + $0x8] sm:$0xff] %v5682
  %5689 = vst [vmem:[#allocation2] sm:$0xff] %v5685
  %5690 = vst [vmem:[#allocation2 + $0x8] sm:$0xff] %v5686
  %v5691 = vpack.c.bf16 %v5686, %v5685
  %v5693 = vunpack.c.l.b16 %v5691
  %v5694 = vunpack.c.h.b16 %v5691
  %v5695 = vpack.c.b16 %v5693, %v5693
  %v5696 = vpack.c.b16 %v5694, %v5694
  %s5699 = scalar_lea.vmem %s3, 120
  %5700 = vst [vmem:[%s5699] sm:$0xf] %v5695
  %5701 = vst [vmem:[%s5699 + $0x4] sm:$0xf] %v5696
  %v5702 = vstv %s23
  %v5703 = vadd.s32 %v5702, 1
  %v5704 = vadd.s32 %v5702, 2
  %v5705 = vadd.s32 %v5702, 3
  %v5706 = vadd.s32 %v5702, 4
  %v5707 = vadd.s32 %v5702, 5
  %v5708 = vadd.s32 %v5702, 6
  %v5709 = vadd.s32 %v5702, 7
  %v5710 = vadd.s32 %v5702, 8
  %v5711 = vadd.s32 %v5702, 9
  %v5712 = vadd.s32 %v5702, 10
  %v5713 = vadd.s32 %v5702, 11
  %v5714 = vadd.s32 %v5702, 12
  %v5715 = vadd.s32 %v5702, 13
  %v5716 = vadd.s32 %v5702, 14
  %v5717 = vadd.s32 %v5702, 15
  %v5718 = vld [vmem:[%s2] sm:$0xff]
  %v5719 = vld [vmem:[%s2 + $0x8] sm:$0xff]
  %vm5720 = vcmp.ge.s32.totalorder %v5718, %v5702
  %vm5721 = vcmp.ge.s32.totalorder %v5719, %v5702
  %vm5722 = vcmp.ge.s32.totalorder %v5718, %v5703
  %vm5723 = vcmp.ge.s32.totalorder %v5719, %v5703
  %vm5724 = vcmp.ge.s32.totalorder %v5718, %v5704
  %vm5725 = vcmp.ge.s32.totalorder %v5719, %v5704
  %vm5726 = vcmp.ge.s32.totalorder %v5718, %v5705
  %vm5727 = vcmp.ge.s32.totalorder %v5719, %v5705
  %vm5728 = vcmp.ge.s32.totalorder %v5718, %v5706
  %vm5729 = vcmp.ge.s32.totalorder %v5719, %v5706
  %vm5730 = vcmp.ge.s32.totalorder %v5718, %v5707
  %vm5731 = vcmp.ge.s32.totalorder %v5719, %v5707
  %vm5732 = vcmp.ge.s32.totalorder %v5718, %v5708
  %vm5733 = vcmp.ge.s32.totalorder %v5719, %v5708
  %vm5734 = vcmp.ge.s32.totalorder %v5718, %v5709
  %vm5735 = vcmp.ge.s32.totalorder %v5719, %v5709
  %vm5736 = vcmp.ge.s32.totalorder %v5718, %v5710
  %vm5737 = vcmp.ge.s32.totalorder %v5719, %v5710
  %vm5738 = vcmp.ge.s32.totalorder %v5718, %v5711
  %vm5739 = vcmp.ge.s32.totalorder %v5719, %v5711
  %vm5740 = vcmp.ge.s32.totalorder %v5718, %v5712
  %vm5741 = vcmp.ge.s32.totalorder %v5719, %v5712
  %vm5742 = vcmp.ge.s32.totalorder %v5718, %v5713
  %vm5743 = vcmp.ge.s32.totalorder %v5719, %v5713
  %vm5744 = vcmp.ge.s32.totalorder %v5718, %v5714
  %vm5745 = vcmp.ge.s32.totalorder %v5719, %v5714
  %vm5746 = vcmp.ge.s32.totalorder %v5718, %v5715
  %vm5747 = vcmp.ge.s32.totalorder %v5719, %v5715
  %vm5748 = vcmp.ge.s32.totalorder %v5718, %v5716
  %vm5749 = vcmp.ge.s32.totalorder %v5719, %v5716
  %vm5750 = vcmp.ge.s32.totalorder %v5718, %v5717
  %vm5751 = vcmp.ge.s32.totalorder %v5719, %v5717
  %v5752 = vsel %vm5720, 1, 0
  %v5753 = vsel %vm5721, 1, 0
  %v5754 = vsel %vm5722, 1, 0
  %v5755 = vsel %vm5723, 1, 0
  %v5756 = vsel %vm5724, 1, 0
  %v5757 = vsel %vm5725, 1, 0
  %v5758 = vsel %vm5726, 1, 0
  %v5759 = vsel %vm5727, 1, 0
  %v5760 = vsel %vm5728, 1, 0
  %v5761 = vsel %vm5729, 1, 0
  %v5762 = vsel %vm5730, 1, 0
  %v5763 = vsel %vm5731, 1, 0
  %v5764 = vsel %vm5732, 1, 0
  %v5765 = vsel %vm5733, 1, 0
  %v5766 = vsel %vm5734, 1, 0
  %v5767 = vsel %vm5735, 1, 0
  %v5768 = vsel %vm5736, 1, 0
  %v5769 = vsel %vm5737, 1, 0
  %v5770 = vsel %vm5738, 1, 0
  %v5771 = vsel %vm5739, 1, 0
  %v5772 = vsel %vm5740, 1, 0
  %v5773 = vsel %vm5741, 1, 0
  %v5774 = vsel %vm5742, 1, 0
  %v5775 = vsel %vm5743, 1, 0
  %v5776 = vsel %vm5744, 1, 0
  %v5777 = vsel %vm5745, 1, 0
  %v5778 = vsel %vm5746, 1, 0
  %v5779 = vsel %vm5747, 1, 0
  %v5780 = vsel %vm5748, 1, 0
  %v5781 = vsel %vm5749, 1, 0
  %v5782 = vsel %vm5750, 1, 0
  %v5783 = vsel %vm5751, 1, 0
  %v5784 = vcvt.s32.f32 %v5752
  %v5785 = vcvt.s32.f32 %v5753
  %v5786 = vcvt.s32.f32 %v5754
  %v5787 = vcvt.s32.f32 %v5755
  %v5788 = vcvt.s32.f32 %v5756
  %v5789 = vcvt.s32.f32 %v5757
  %v5790 = vcvt.s32.f32 %v5758
  %v5791 = vcvt.s32.f32 %v5759
  %v5792 = vcvt.s32.f32 %v5760
  %v5793 = vcvt.s32.f32 %v5761
  %v5794 = vcvt.s32.f32 %v5762
  %v5795 = vcvt.s32.f32 %v5763
  %v5796 = vcvt.s32.f32 %v5764
  %v5797 = vcvt.s32.f32 %v5765
  %v5798 = vcvt.s32.f32 %v5766
  %v5799 = vcvt.s32.f32 %v5767
  %v5800 = vcvt.s32.f32 %v5768
  %v5801 = vcvt.s32.f32 %v5769
  %v5802 = vcvt.s32.f32 %v5770
  %v5803 = vcvt.s32.f32 %v5771
  %v5804 = vcvt.s32.f32 %v5772
  %v5805 = vcvt.s32.f32 %v5773
  %v5806 = vcvt.s32.f32 %v5774
  %v5807 = vcvt.s32.f32 %v5775
  %v5808 = vcvt.s32.f32 %v5776
  %v5809 = vcvt.s32.f32 %v5777
  %v5810 = vcvt.s32.f32 %v5778
  %v5811 = vcvt.s32.f32 %v5779
  %v5812 = vcvt.s32.f32 %v5780
  %v5813 = vcvt.s32.f32 %v5781
  %v5814 = vcvt.s32.f32 %v5782
  %v5815 = vcvt.s32.f32 %v5783
  %v5816 = vld [vmem:[%s3] sm:$0xf]
  %v5817 = vld [vmem:[%s3 + $0x4] sm:$0xf]
  %v5818 = vld [vmem:[%s3 + $0x8] sm:$0xf]
  %v5819 = vld [vmem:[%s3 + $0xc] sm:$0xf]
  %v5820 = vld [vmem:[%s3 + $0x10] sm:$0xf]
  %v5821 = vld [vmem:[%s3 + $0x14] sm:$0xf]
  %v5822 = vld [vmem:[%s3 + $0x18] sm:$0xf]
  %v5823 = vld [vmem:[%s3 + $0x1c] sm:$0xf]
  %v5824 = vld [vmem:[%s3 + $0x20] sm:$0xf]
  %v5825 = vld [vmem:[%s3 + $0x24] sm:$0xf]
  %v5826 = vld [vmem:[%s3 + $0x28] sm:$0xf]
  %v5827 = vld [vmem:[%s3 + $0x2c] sm:$0xf]
  %v5828 = vld [vmem:[%s3 + $0x30] sm:$0xf]
  %v5829 = vld [vmem:[%s3 + $0x34] sm:$0xf]
  %v5830 = vld [vmem:[%s3 + $0x38] sm:$0xf]
  %v5831 = vld [vmem:[%s3 + $0x3c] sm:$0xf]
  %v5832 = vld [vmem:[%s3 + $0x40] sm:$0xf]
  %v5833 = vld [vmem:[%s3 + $0x44] sm:$0xf]
  %v5834 = vld [vmem:[%s3 + $0x48] sm:$0xf]
  %v5835 = vld [vmem:[%s3 + $0x4c] sm:$0xf]
  %v5836 = vld [vmem:[%s3 + $0x50] sm:$0xf]
  %v5837 = vld [vmem:[%s3 + $0x54] sm:$0xf]
  %v5838 = vld [vmem:[%s3 + $0x58] sm:$0xf]
  %v5839 = vld [vmem:[%s3 + $0x5c] sm:$0xf]
  %v5840 = vld [vmem:[%s3 + $0x60] sm:$0xf]
  %v5841 = vld [vmem:[%s3 + $0x64] sm:$0xf]
  %v5842 = vld [vmem:[%s3 + $0x68] sm:$0xf]
  %v5843 = vld [vmem:[%s3 + $0x6c] sm:$0xf]
  %v5844 = vld [vmem:[%s3 + $0x70] sm:$0xf]
  %v5845 = vld [vmem:[%s3 + $0x74] sm:$0xf]
  %v5846 = vld [vmem:[%s3 + $0x78] sm:$0xf]
  %v5847 = vld [vmem:[%s3 + $0x7c] sm:$0xf]
  %v5848 = vunpack.c.l.bf16 %v5816
  %v5849 = vunpack.c.l.bf16 %v5817
  %v5850 = vunpack.c.l.bf16 %v5818
  %v5851 = vunpack.c.l.bf16 %v5819
  %v5852 = vunpack.c.l.bf16 %v5820
  %v5853 = vunpack.c.l.bf16 %v5821
  %v5854 = vunpack.c.l.bf16 %v5822
  %v5855 = vunpack.c.l.bf16 %v5823
  %v5856 = vunpack.c.l.bf16 %v5824
  %v5857 = vunpack.c.l.bf16 %v5825
  %v5858 = vunpack.c.l.bf16 %v5826
  %v5859 = vunpack.c.l.bf16 %v5827
  %v5860 = vunpack.c.l.bf16 %v5828
  %v5861 = vunpack.c.l.bf16 %v5829
  %v5862 = vunpack.c.l.bf16 %v5830
  %v5863 = vunpack.c.l.bf16 %v5831
  %v5864 = vunpack.c.l.bf16 %v5832
  %v5865 = vunpack.c.l.bf16 %v5833
  %v5866 = vunpack.c.l.bf16 %v5834
  %v5867 = vunpack.c.l.bf16 %v5835
  %v5868 = vunpack.c.l.bf16 %v5836
  %v5869 = vunpack.c.l.bf16 %v5837
  %v5870 = vunpack.c.l.bf16 %v5838
  %v5871 = vunpack.c.l.bf16 %v5839
  %v5872 = vunpack.c.l.bf16 %v5840
  %v5873 = vunpack.c.l.bf16 %v5841
  %v5874 = vunpack.c.l.bf16 %v5842
  %v5875 = vunpack.c.l.bf16 %v5843
  %v5876 = vunpack.c.l.bf16 %v5844
  %v5877 = vunpack.c.l.bf16 %v5845
  %v5878 = vunpack.c.l.bf16 %v5846
  %v5879 = vunpack.c.l.bf16 %v5847
  %5881 = vset.pattern.permute.xlu0 0
  %5882 = vperm.xlu0 %5881, %v5784
  %v5883 = vpop.permute.xlu0 %5882
  %5886 = vset.pattern.permute.xlu0 0
  %5887 = vperm.xlu0 %5886, %v5785
  %v5888 = vpop.permute.xlu0 %5887
  %5891 = vset.pattern.permute.xlu0 0
  %5892 = vperm.xlu0 %5891, %v5786
  %v5893 = vpop.permute.xlu0 %5892
  %5896 = vset.pattern.permute.xlu0 0
  %5897 = vperm.xlu0 %5896, %v5787
  %v5898 = vpop.permute.xlu0 %5897
  %5901 = vset.pattern.permute.xlu0 0
  %5902 = vperm.xlu0 %5901, %v5788
  %v5903 = vpop.permute.xlu0 %5902
  %5906 = vset.pattern.permute.xlu0 0
  %5907 = vperm.xlu0 %5906, %v5789
  %v5908 = vpop.permute.xlu0 %5907
  %5911 = vset.pattern.permute.xlu0 0
  %5912 = vperm.xlu0 %5911, %v5790
  %v5913 = vpop.permute.xlu0 %5912
  %5916 = vset.pattern.permute.xlu0 0
  %5917 = vperm.xlu0 %5916, %v5791
  %v5918 = vpop.permute.xlu0 %5917
  %5921 = vset.pattern.permute.xlu0 0
  %5922 = vperm.xlu0 %5921, %v5792
  %v5923 = vpop.permute.xlu0 %5922
  %5926 = vset.pattern.permute.xlu0 0
  %5927 = vperm.xlu0 %5926, %v5793
  %v5928 = vpop.permute.xlu0 %5927
  %5931 = vset.pattern.permute.xlu0 0
  %5932 = vperm.xlu0 %5931, %v5794
  %v5933 = vpop.permute.xlu0 %5932
  %5936 = vset.pattern.permute.xlu0 0
  %5937 = vperm.xlu0 %5936, %v5795
  %v5938 = vpop.permute.xlu0 %5937
  %5941 = vset.pattern.permute.xlu0 0
  %5942 = vperm.xlu0 %5941, %v5796
  %v5943 = vpop.permute.xlu0 %5942
  %5946 = vset.pattern.permute.xlu0 0
  %5947 = vperm.xlu0 %5946, %v5797
  %v5948 = vpop.permute.xlu0 %5947
  %5951 = vset.pattern.permute.xlu0 0
  %5952 = vperm.xlu0 %5951, %v5798
  %v5953 = vpop.permute.xlu0 %5952
  %5956 = vset.pattern.permute.xlu0 0
  %5957 = vperm.xlu0 %5956, %v5799
  %v5958 = vpop.permute.xlu0 %5957
  %5961 = vset.pattern.permute.xlu0 0
  %5962 = vperm.xlu0 %5961, %v5800
  %v5963 = vpop.permute.xlu0 %5962
  %5966 = vset.pattern.permute.xlu0 0
  %5967 = vperm.xlu0 %5966, %v5801
  %v5968 = vpop.permute.xlu0 %5967
  %5971 = vset.pattern.permute.xlu0 0
  %5972 = vperm.xlu0 %5971, %v5802
  %v5973 = vpop.permute.xlu0 %5972
  %5976 = vset.pattern.permute.xlu0 0
  %5977 = vperm.xlu0 %5976, %v5803
  %v5978 = vpop.permute.xlu0 %5977
  %5981 = vset.pattern.permute.xlu0 0
  %5982 = vperm.xlu0 %5981, %v5804
  %v5983 = vpop.permute.xlu0 %5982
  %5986 = vset.pattern.permute.xlu0 0
  %5987 = vperm.xlu0 %5986, %v5805
  %v5988 = vpop.permute.xlu0 %5987
  %5991 = vset.pattern.permute.xlu0 0
  %5992 = vperm.xlu0 %5991, %v5806
  %v5993 = vpop.permute.xlu0 %5992
  %5996 = vset.pattern.permute.xlu0 0
  %5997 = vperm.xlu0 %5996, %v5807
  %v5998 = vpop.permute.xlu0 %5997
  %6001 = vset.pattern.permute.xlu0 0
  %6002 = vperm.xlu0 %6001, %v5808
  %v6003 = vpop.permute.xlu0 %6002
  %6006 = vset.pattern.permute.xlu0 0
  %6007 = vperm.xlu0 %6006, %v5809
  %v6008 = vpop.permute.xlu0 %6007
  %6011 = vset.pattern.permute.xlu0 0
  %6012 = vperm.xlu0 %6011, %v5810
  %v6013 = vpop.permute.xlu0 %6012
  %6016 = vset.pattern.permute.xlu0 0
  %6017 = vperm.xlu0 %6016, %v5811
  %v6018 = vpop.permute.xlu0 %6017
  %6021 = vset.pattern.permute.xlu0 0
  %6022 = vperm.xlu0 %6021, %v5812
  %v6023 = vpop.permute.xlu0 %6022
  %6026 = vset.pattern.permute.xlu0 0
  %6027 = vperm.xlu0 %6026, %v5813
  %v6028 = vpop.permute.xlu0 %6027
  %6031 = vset.pattern.permute.xlu0 0
  %6032 = vperm.xlu0 %6031, %v5814
  %v6033 = vpop.permute.xlu0 %6032
  %6036 = vset.pattern.permute.xlu0 0
  %6037 = vperm.xlu0 %6036, %v5815
  %v6038 = vpop.permute.xlu0 %6037
  %v6040 = vmul.f32 %v5848, %v5883
  %v6041 = vmul.f32 %v5849, %v5888
  %v6042 = vmul.f32 %v5850, %v5893
  %v6043 = vmul.f32 %v5851, %v5898
  %v6044 = vmul.f32 %v5852, %v5903
  %v6045 = vmul.f32 %v5853, %v5908
  %v6046 = vmul.f32 %v5854, %v5913
  %v6047 = vmul.f32 %v5855, %v5918
  %v6048 = vmul.f32 %v5856, %v5923
  %v6049 = vmul.f32 %v5857, %v5928
  %v6050 = vmul.f32 %v5858, %v5933
  %v6051 = vmul.f32 %v5859, %v5938
  %v6052 = vmul.f32 %v5860, %v5943
  %v6053 = vmul.f32 %v5861, %v5948
  %v6054 = vmul.f32 %v5862, %v5953
  %v6055 = vmul.f32 %v5863, %v5958
  %v6056 = vmul.f32 %v5864, %v5963
  %v6057 = vmul.f32 %v5865, %v5968
  %v6058 = vmul.f32 %v5866, %v5973
  %v6059 = vmul.f32 %v5867, %v5978
  %v6060 = vmul.f32 %v5868, %v5983
  %v6061 = vmul.f32 %v5869, %v5988
  %v6062 = vmul.f32 %v5870, %v5993
  %v6063 = vmul.f32 %v5871, %v5998
  %v6064 = vmul.f32 %v5872, %v6003
  %v6065 = vmul.f32 %v5873, %v6008
  %v6066 = vmul.f32 %v5874, %v6013
  %v6067 = vmul.f32 %v5875, %v6018
  %v6068 = vmul.f32 %v5876, %v6023
  %v6069 = vmul.f32 %v5877, %v6028
  %v6070 = vmul.f32 %v5878, %v6033
  %v6071 = vmul.f32 %v5879, %v6038
  %v6072 = vpack.c.bf16 %v6041, %v6040
  %v6073 = vpack.c.bf16 %v6043, %v6042
  %v6074 = vpack.c.bf16 %v6045, %v6044
  %v6075 = vpack.c.bf16 %v6047, %v6046
  %v6076 = vpack.c.bf16 %v6049, %v6048
  %v6077 = vpack.c.bf16 %v6051, %v6050
  %v6078 = vpack.c.bf16 %v6053, %v6052
  %v6079 = vpack.c.bf16 %v6055, %v6054
  %v6080 = vpack.c.bf16 %v6057, %v6056
  %v6081 = vpack.c.bf16 %v6059, %v6058
  %v6082 = vpack.c.bf16 %v6061, %v6060
  %v6083 = vpack.c.bf16 %v6063, %v6062
  %v6084 = vpack.c.bf16 %v6065, %v6064
  %v6085 = vpack.c.bf16 %v6067, %v6066
  %v6086 = vpack.c.bf16 %v6069, %v6068
  %v6087 = vpack.c.bf16 %v6071, %v6070
  %v6104 = vunpack.c.l.b16 %v6072
  %v6105 = vunpack.c.h.b16 %v6072
  %v6106 = vunpack.c.l.b16 %v6073
  %v6107 = vunpack.c.h.b16 %v6073
  %v6108 = vunpack.c.l.b16 %v6074
  %v6109 = vunpack.c.h.b16 %v6074
  %v6110 = vunpack.c.l.b16 %v6075
  %v6111 = vunpack.c.h.b16 %v6075
  %v6112 = vunpack.c.l.b16 %v6076
  %v6113 = vunpack.c.h.b16 %v6076
  %v6114 = vunpack.c.l.b16 %v6077
  %v6115 = vunpack.c.h.b16 %v6077
  %v6116 = vunpack.c.l.b16 %v6078
  %v6117 = vunpack.c.h.b16 %v6078
  %v6118 = vunpack.c.l.b16 %v6079
  %v6119 = vunpack.c.h.b16 %v6079
  %v6120 = vunpack.c.l.b16 %v6080
  %v6121 = vunpack.c.h.b16 %v6080
  %v6122 = vunpack.c.l.b16 %v6081
  %v6123 = vunpack.c.h.b16 %v6081
  %v6124 = vunpack.c.l.b16 %v6082
  %v6125 = vunpack.c.h.b16 %v6082
  %v6126 = vunpack.c.l.b16 %v6083
  %v6127 = vunpack.c.h.b16 %v6083
  %v6128 = vunpack.c.l.b16 %v6084
  %v6129 = vunpack.c.h.b16 %v6084
  %v6130 = vunpack.c.l.b16 %v6085
  %v6131 = vunpack.c.h.b16 %v6085
  %v6132 = vunpack.c.l.b16 %v6086
  %v6133 = vunpack.c.h.b16 %v6086
  %v6134 = vunpack.c.l.b16 %v6087
  %v6135 = vunpack.c.h.b16 %v6087
  %v6136 = vpack.c.b16 %v6104, %v6104
  %v6137 = vpack.c.b16 %v6105, %v6105
  %v6138 = vpack.c.b16 %v6106, %v6106
  %v6139 = vpack.c.b16 %v6107, %v6107
  %v6140 = vpack.c.b16 %v6108, %v6108
  %v6141 = vpack.c.b16 %v6109, %v6109
  %v6142 = vpack.c.b16 %v6110, %v6110
  %v6143 = vpack.c.b16 %v6111, %v6111
  %v6144 = vpack.c.b16 %v6112, %v6112
  %v6145 = vpack.c.b16 %v6113, %v6113
  %v6146 = vpack.c.b16 %v6114, %v6114
  %v6147 = vpack.c.b16 %v6115, %v6115
  %v6148 = vpack.c.b16 %v6116, %v6116
  %v6149 = vpack.c.b16 %v6117, %v6117
  %v6150 = vpack.c.b16 %v6118, %v6118
  %v6151 = vpack.c.b16 %v6119, %v6119
  %v6152 = vpack.c.b16 %v6120, %v6120
  %v6153 = vpack.c.b16 %v6121, %v6121
  %v6154 = vpack.c.b16 %v6122, %v6122
  %v6155 = vpack.c.b16 %v6123, %v6123
  %v6156 = vpack.c.b16 %v6124, %v6124
  %v6157 = vpack.c.b16 %v6125, %v6125
  %v6158 = vpack.c.b16 %v6126, %v6126
  %v6159 = vpack.c.b16 %v6127, %v6127
  %v6160 = vpack.c.b16 %v6128, %v6128
  %v6161 = vpack.c.b16 %v6129, %v6129
  %v6162 = vpack.c.b16 %v6130, %v6130
  %v6163 = vpack.c.b16 %v6131, %v6131
  %v6164 = vpack.c.b16 %v6132, %v6132
  %v6165 = vpack.c.b16 %v6133, %v6133
  %v6166 = vpack.c.b16 %v6134, %v6134
  %v6167 = vpack.c.b16 %v6135, %v6135
  %6200 = vst [vmem:[%s3] sm:$0xf] %v6136
  %6201 = vst [vmem:[%s3 + $0x4] sm:$0xf] %v6137
  %6202 = vst [vmem:[%s3 + $0x8] sm:$0xf] %v6138
  %6203 = vst [vmem:[%s3 + $0xc] sm:$0xf] %v6139
  %6204 = vst [vmem:[%s3 + $0x10] sm:$0xf] %v6140
  %6205 = vst [vmem:[%s3 + $0x14] sm:$0xf] %v6141
  %6206 = vst [vmem:[%s3 + $0x18] sm:$0xf] %v6142
  %6207 = vst [vmem:[%s3 + $0x1c] sm:$0xf] %v6143
  %6208 = vst [vmem:[%s3 + $0x20] sm:$0xf] %v6144
  %6209 = vst [vmem:[%s3 + $0x24] sm:$0xf] %v6145
  %6210 = vst [vmem:[%s3 + $0x28] sm:$0xf] %v6146
  %6211 = vst [vmem:[%s3 + $0x2c] sm:$0xf] %v6147
  %6212 = vst [vmem:[%s3 + $0x30] sm:$0xf] %v6148
  %6213 = vst [vmem:[%s3 + $0x34] sm:$0xf] %v6149
  %6214 = vst [vmem:[%s3 + $0x38] sm:$0xf] %v6150
  %6215 = vst [vmem:[%s3 + $0x3c] sm:$0xf] %v6151
  %6216 = vst [vmem:[%s3 + $0x40] sm:$0xf] %v6152
  %6217 = vst [vmem:[%s3 + $0x44] sm:$0xf] %v6153
  %6218 = vst [vmem:[%s3 + $0x48] sm:$0xf] %v6154
  %6219 = vst [vmem:[%s3 + $0x4c] sm:$0xf] %v6155
  %6220 = vst [vmem:[%s3 + $0x50] sm:$0xf] %v6156
  %6221 = vst [vmem:[%s3 + $0x54] sm:$0xf] %v6157
  %6222 = vst [vmem:[%s3 + $0x58] sm:$0xf] %v6158
  %6223 = vst [vmem:[%s3 + $0x5c] sm:$0xf] %v6159
  %6224 = vst [vmem:[%s3 + $0x60] sm:$0xf] %v6160
  %6225 = vst [vmem:[%s3 + $0x64] sm:$0xf] %v6161
  %6226 = vst [vmem:[%s3 + $0x68] sm:$0xf] %v6162
  %6227 = vst [vmem:[%s3 + $0x6c] sm:$0xf] %v6163
  %6228 = vst [vmem:[%s3 + $0x70] sm:$0xf] %v6164
  %6229 = vst [vmem:[%s3 + $0x74] sm:$0xf] %v6165
  %6230 = vst [vmem:[%s3 + $0x78] sm:$0xf] %v6166
  %6231 = vst [vmem:[%s3 + $0x7c] sm:$0xf] %v6167
  // Predicated region
  $region18: #{rnn_forward.4} parent=0 // pred_check
    _
  $region19: #{rnn_forward.4} parent=0 // pred_check_branch
    %6233 = sbr.rel (0) target = $region21
  $region20: #{rnn_forward.4} parent=0 // pred_region
    _
  $region21: #{rnn_forward.4} parent=0 // pred_fallthru
    _
  // Predicated region
  $region22: #{rnn_forward.4} parent=0 // pred_check
    _
  $region23: #{rnn_forward.4} parent=0 // pred_check_branch
    %6235 = sbr.rel (0) target = $region25
  $region24: #{rnn_forward.4} parent=0 // pred_region
    _
  $region25: #{rnn_forward.4} parent=0 // pred_fallthru
    _

</llo_original>
